<compile_context>
chip_gen: v7x
topology: tpu7x:2x2x1
jax: 0.10.0
libtpu: 0.0.40
codegen_flags: <defaults>
</compile_context>

<pallas_src>
import numpy as np
import jax
import jax.numpy as jnp
from jax.experimental import pallas as pl
from jax.experimental.pallas import tpu as pltpu

KERNEL_SIZES = (3, 7, 15)
DILATIONS = (1, 2, 4)
MAXPAD = max(d * (k - 1) // 2 for k, d in zip(KERNEL_SIZES, DILATIONS))  # 28
HALO = 32                       # MAXPAD rounded up to a sublane multiple
assert MAXPAD <= HALO
LN_EPS = 1e-5
MATMUL_DTYPE = jnp.float32      # set to jnp.bfloat16 on v6e/v7x for MXU throughput


def striped_hyena_kernel(xp_hbm, w0_ref, w1_ref, w2_ref, bconv_ref, wgr_ref, bgr_ref,
                         ar_ref, ai_ref, br_ref, bi_ref, cr_ref, ci_ref,
                         dskip_ref, gamma_ref, beta_ref,
                         out_ref,
                         xbuf, dma_sem, u_ref, y_ref, sr_ref, si_ref):
    b = pl.program_id(0)
    c = pl.program_id(1)
    TL = out_ref.shape[1]
    D = xbuf.shape[1]
    H3 = out_ref.shape[2]

    # ---- Manual halo fetch: rows [c*TL, c*TL + TL + 2*HALO) of the padded seq ----
    start = pl.multiple_of(c * TL, 8)
    cp = pltpu.make_async_copy(xp_hbm.at[b, pl.ds(start, TL + 2 * HALO)], xbuf, dma_sem)
    cp.start()

    # Reset the carried SSM state at the first chunk of every batch element
    # (VMEM scratch persists across grid iterations).
    @pl.when(c == 0)
    def _():
        sr_ref[...] = jnp.zeros_like(sr_ref)
        si_ref[...] = jnp.zeros_like(si_ref)

    cp.wait()

    x_in = xbuf[HALO:HALO + TL, :]                               # (TL, D) current chunk

    # ---- Fused gate + residual 1x1 convs: one (TL, D) @ (D, 2*H3) matmul ----
    gr = jnp.dot(x_in.astype(MATMUL_DTYPE), wgr_ref[...].astype(MATMUL_DTYPE),
                 preferred_element_type=jnp.float32) + bgr_ref[...]
    gate = jax.nn.sigmoid(gr[:, :H3])
    resid = gr[:, H3:]

    # ---- Dilated 'same' convs: one stacked-tap matmul per conv; gated result is
    #      written directly into lane-slices of u_ref (no concatenate). ----
    def conv_into(idx, w_ref, ksize, dil):
        pad = dil * (ksize - 1) // 2
        taps = [xbuf[HALO - pad + j * dil: HALO - pad + j * dil + TL, :]
                for j in range(ksize)]
        slab = jnp.concatenate(taps, axis=-1).astype(MATMUL_DTYPE)    # (TL, k*D)
        y = jnp.dot(slab, w_ref[...].astype(MATMUL_DTYPE),
                    preferred_element_type=jnp.float32)
        y = y + bconv_ref[:, idx * D:(idx + 1) * D]
        u_ref[:, idx * D:(idx + 1) * D] = y * gate[:, idx * D:(idx + 1) * D]

    conv_into(0, w0_ref, 3, 1)
    conv_into(1, w1_ref, 7, 2)
    conv_into(2, w2_ref, 15, 4)

    # ---- S4 as diagonal-SSM recurrence (d_state = N), state carried in scratch.
    #      Complex state s = (sr, si), each (N, H3); time handled in aligned
    #      blocks of 8 rows. ----
    arv, aiv = ar_ref[...], ai_ref[...]
    brv, biv = br_ref[...], bi_ref[...]
    crv, civ = cr_ref[...], ci_ref[...]

    def time_block(sb, carry):
        base = pl.multiple_of(sb * 8, 8)
        u_blk = u_ref[pl.ds(base, 8), :]                 # aligned (8, H3) load
        sr, si = sr_ref[...], si_ref[...]
        rows = []
        for r in range(8):                               # static 8-row unroll
            u_t = u_blk[r:r + 1, :]                      # (1, H3) bcast over N sublanes
            sr, si = (arv * sr - aiv * si + brv * u_t,
                      arv * si + aiv * sr + biv * u_t)
            rows.append(2.0 * jnp.sum(crv * sr - civ * si, axis=0, keepdims=True))
        sr_ref[...] = sr
        si_ref[...] = si
        y_ref[pl.ds(base, 8), :] = jnp.concatenate(rows, axis=0)
        return carry

    jax.lax.fori_loop(0, TL // 8, time_block, 0)

    # ---- D*u skip + residual, LayerNorm over channels (3*d_model) ----
    o = y_ref[...] + u_ref[...] * dskip_ref[...] + resid
    mean = jnp.mean(o, axis=-1, keepdims=True)
    var = jnp.mean((o - mean) ** 2, axis=-1, keepdims=True)
    o = (o - mean) * jax.lax.rsqrt(var + LN_EPS)
    out_ref[0] = (o * gamma_ref[...] + beta_ref[...]).astype(out_ref.dtype)


def striped_hyena_forward(x, params, *, chunk=64):
    B, L, D = x.shape
    H3 = 3 * D
    assert L % chunk == 0 and chunk % 8 == 0
    C = L // chunk
    N = params[6].shape[0]                 # ar is (N, H3)
    xp = jnp.pad(x, ((0, 0), (HALO, HALO), (0, 0)))

    def const_spec(p):
        return pl.BlockSpec(p.shape, lambda b, c, _nd=p.ndim: (0,) * _nd)

    in_specs = [pl.BlockSpec(memory_space=pl.ANY)] + [const_spec(p) for p in params]
    out_specs = pl.BlockSpec((1, chunk, H3), lambda b, c: (b, c, 0))

    return pl.pallas_call(
        striped_hyena_kernel,
        out_shape=jax.ShapeDtypeStruct((B, L, H3), jnp.float32),
        grid=(B, C),
        in_specs=in_specs,
        out_specs=out_specs,
        scratch_shapes=[
            pltpu.VMEM((chunk + 2 * HALO, D), jnp.float32),   # halo'd x chunk
            pltpu.SemaphoreType.DMA(()),                      # halo DMA semaphore
            pltpu.VMEM((chunk, H3), jnp.float32),             # u = gated conv
            pltpu.VMEM((chunk, H3), jnp.float32),             # SSM output rows
            pltpu.VMEM((N, H3), jnp.float32),                 # SSM state (real)
            pltpu.VMEM((N, H3), jnp.float32),                 # SSM state (imag)
        ],
        compiler_params=pltpu.CompilerParams(
            dimension_semantics=("parallel", "arbitrary"),
            vmem_limit_bytes=48 * 1024 * 1024,
        ),
    )(xp, *params)


def make_params(d_model, d_state=64, seed=0):
    rng = np.random.default_rng(seed)
    D, H3, N = d_model, 3 * d_model, d_state

    def conv_w(k):
        # w[j] is (D_in, D_out); stacked along contraction dim -> (k*D, D).
        w = (rng.standard_normal((k, D, D)) / np.sqrt(k * D)).astype(np.float32)
        bias = (0.01 * rng.standard_normal((D,))).astype(np.float32)
        return w.reshape(k * D, D), bias

    w0s, b0 = conv_w(3)
    w1s, b1 = conv_w(7)
    w2s, b2 = conv_w(15)
    bconv = np.concatenate([b0, b1, b2])[None, :]                 # (1, H3)

    wg = (rng.standard_normal((D, H3)) / np.sqrt(D)).astype(np.float32)
    bg = (0.01 * rng.standard_normal((H3,))).astype(np.float32)
    wr = (rng.standard_normal((D, H3)) / np.sqrt(D)).astype(np.float32)
    br = (0.01 * rng.standard_normal((H3,))).astype(np.float32)
    wgr = np.concatenate([wg, wr], axis=1)                        # (D, 2*H3) fused
    bgr = np.concatenate([bg, br])[None, :]                       # (1, 2*H3)

    # S4D diagonal SSM (ZOH, B=1): s_t = dA*s_{t-1} + dB*u_t ; y_t = 2 Re(C.s_t) + D*u_t
    log_dt = rng.uniform(np.log(1e-3), np.log(1e-1), size=(H3,))
    dt = np.exp(log_dt)
    A = -0.5 + 1j * np.pi * np.arange(N)
    Cc = (rng.standard_normal((H3, N)) + 1j * rng.standard_normal((H3, N))) * np.sqrt(0.5)
    dtA = dt[:, None] * A[None, :]
    dA = np.exp(dtA)
    dB = (dA - 1.0) / A[None, :]
    ar = np.ascontiguousarray(dA.real.T).astype(np.float32)       # (N, H3)
    ai = np.ascontiguousarray(dA.imag.T).astype(np.float32)
    brm = np.ascontiguousarray(dB.real.T).astype(np.float32)
    bim = np.ascontiguousarray(dB.imag.T).astype(np.float32)
    cr = np.ascontiguousarray(Cc.real.T).astype(np.float32)
    ci = np.ascontiguousarray(Cc.imag.T).astype(np.float32)
    dskip = rng.standard_normal((1, H3)).astype(np.float32)

    gamma = np.ones((1, H3), np.float32)
    beta = np.zeros((1, H3), np.float32)

    params = (w0s, w1s, w2s, bconv, wgr, bgr, ar, ai, brm, bim, cr, ci,
              dskip, gamma, beta)
    return tuple(jnp.asarray(p) for p in params)


def reference_forward(x, params):
    (w0s, w1s, w2s, bconv, wgr, bgr, ar, ai, brm, bim, cr, ci,
     dskip, gamma, beta) = params
    B, L, D = x.shape
    H3 = 3 * D
    xp = jnp.pad(x, ((0, 0), (HALO, HALO), (0, 0)))

    def conv(wst, k, dil):
        pad = dil * (k - 1) // 2
        slab = jnp.concatenate(
            [xp[:, HALO - pad + j * dil: HALO - pad + j * dil + L, :] for j in range(k)],
            axis=-1)
        return jnp.einsum('blk,ko->blo', slab, wst)

    combined = jnp.concatenate(
        [conv(w0s, 3, 1), conv(w1s, 7, 2), conv(w2s, 15, 4)], axis=-1) + bconv
    gr = jnp.einsum('bld,dh->blh', x, wgr) + bgr
    gate = jax.nn.sigmoid(gr[..., :H3])
    resid = gr[..., H3:]
    u = combined * gate

    def step(carry, u_t):                       # u_t: (B, H3)
        sr, si = carry                          # (B, N, H3)
        ut = u_t[:, None, :]
        sr_n = ar * sr - ai * si + brm * ut
        si_n = ar * si + ai * sr + bim * ut
        y_t = 2.0 * jnp.sum(cr * sr_n - ci * si_n, axis=1)
        return (sr_n, si_n), y_t

    N = ar.shape[0]
    s0 = jnp.zeros((B, N, H3), jnp.float32)
    _, ys = jax.lax.scan(step, (s0, s0), jnp.swapaxes(u, 0, 1))
    y = jnp.swapaxes(ys, 0, 1)

    o = y + u * dskip + resid
    mean = jnp.mean(o, axis=-1, keepdims=True)
    var = jnp.mean((o - mean) ** 2, axis=-1, keepdims=True)
    return (o - mean) * jax.lax.rsqrt(var + LN_EPS) * gamma + beta


if __name__ == "__main__":
    # d_model=128 -> H3 = 384 (lane-dense, 3*128); L=128 with chunk=64 -> 2 chunks
    # per sequence so the cross-chunk SSM-state carry is exercised.
    B, d_model, L = 2, 128, 128
    params = make_params(d_model, d_state=64, seed=0)
    x = jax.random.normal(jax.random.PRNGKey(0), (B, L, d_model), dtype=jnp.float32)

    out = jax.block_until_ready(striped_hyena_forward(x, params, chunk=64))
    ref = jax.block_until_ready(reference_forward(x, params))

    assert out.shape == (B, L, 3 * d_model)
    max_err = float(jnp.max(jnp.abs(out - ref)))
    assert np.allclose(np.asarray(out), np.asarray(ref), atol=1e-2, rtol=1e-2), \
        f"mismatch, max|err|={max_err}"
    print("KERNEL_OK")
</pallas_src>

<mosaic_0001>
module attributes {stable_mosaic.version = 11 : i64} {
  func.func @striped_hyena_kernel(%arg0: i32, %arg1: i32, %arg2: memref<2x192x128xf32, #tpu.memory_space<any>>, %arg3: memref<384x128xf32, #tpu.memory_space<vmem>>, %arg4: memref<896x128xf32, #tpu.memory_space<vmem>>, %arg5: memref<1920x128xf32, #tpu.memory_space<vmem>>, %arg6: memref<1x384xf32, #tpu.memory_space<vmem>>, %arg7: memref<128x768xf32, #tpu.memory_space<vmem>>, %arg8: memref<1x768xf32, #tpu.memory_space<vmem>>, %arg9: memref<64x384xf32, #tpu.memory_space<vmem>>, %arg10: memref<64x384xf32, #tpu.memory_space<vmem>>, %arg11: memref<64x384xf32, #tpu.memory_space<vmem>>, %arg12: memref<64x384xf32, #tpu.memory_space<vmem>>, %arg13: memref<64x384xf32, #tpu.memory_space<vmem>>, %arg14: memref<64x384xf32, #tpu.memory_space<vmem>>, %arg15: memref<1x384xf32, #tpu.memory_space<vmem>>, %arg16: memref<1x384xf32, #tpu.memory_space<vmem>>, %arg17: memref<1x384xf32, #tpu.memory_space<vmem>>, %arg18: memref<1x64x384xf32, #tpu.memory_space<vmem>>, %arg19: memref<128x128xf32, #tpu.memory_space<vmem>>, %arg20: memref<!tpu.dma_semaphore, #tpu.memory_space<semaphore_mem>>, %arg21: memref<64x384xf32, #tpu.memory_space<vmem>>, %arg22: memref<64x384xf32, #tpu.memory_space<vmem>>, %arg23: memref<64x384xf32, #tpu.memory_space<vmem>>, %arg24: memref<64x384xf32, #tpu.memory_space<vmem>>) attributes {dimension_semantics = [#tpu.dimension_semantics<parallel>, #tpu.dimension_semantics<arbitrary>], iteration_bounds = array<i64: 2, 2>, scalar_prefetch = 0 : i64, scratch_operands = 6 : i64, tpu.core_type = #tpu.core_type<tc>, window_params = [{}, {pipeline_mode = #tpu.pipeline_mode<synchronous>, transform_indices = @transform_1, window_bounds = array<i64: 384, 128>}, {pipeline_mode = #tpu.pipeline_mode<synchronous>, transform_indices = @transform_2, window_bounds = array<i64: 896, 128>}, {pipeline_mode = #tpu.pipeline_mode<synchronous>, transform_indices = @transform_3, window_bounds = array<i64: 1920, 128>}, {pipeline_mode = #tpu.pipeline_mode<synchronous>, transform_indices = @transform_4, window_bounds = array<i64: 1, 384>}, {pipeline_mode = #tpu.pipeline_mode<synchronous>, transform_indices = @transform_5, window_bounds = array<i64: 128, 768>}, {pipeline_mode = #tpu.pipeline_mode<synchronous>, transform_indices = @transform_6, window_bounds = array<i64: 1, 768>}, {pipeline_mode = #tpu.pipeline_mode<synchronous>, transform_indices = @transform_7, window_bounds = array<i64: 64, 384>}, {pipeline_mode = #tpu.pipeline_mode<synchronous>, transform_indices = @transform_8, window_bounds = array<i64: 64, 384>}, {pipeline_mode = #tpu.pipeline_mode<synchronous>, transform_indices = @transform_9, window_bounds = array<i64: 64, 384>}, {pipeline_mode = #tpu.pipeline_mode<synchronous>, transform_indices = @transform_10, window_bounds = array<i64: 64, 384>}, {pipeline_mode = #tpu.pipeline_mode<synchronous>, transform_indices = @transform_11, window_bounds = array<i64: 64, 384>}, {pipeline_mode = #tpu.pipeline_mode<synchronous>, transform_indices = @transform_12, window_bounds = array<i64: 64, 384>}, {pipeline_mode = #tpu.pipeline_mode<synchronous>, transform_indices = @transform_13, window_bounds = array<i64: 1, 384>}, {pipeline_mode = #tpu.pipeline_mode<synchronous>, transform_indices = @transform_14, window_bounds = array<i64: 1, 384>}, {pipeline_mode = #tpu.pipeline_mode<synchronous>, transform_indices = @transform_15, window_bounds = array<i64: 1, 384>}, {transform_indices = @transform_16, window_bounds = array<i64: 1, 64, 384>}]} {
    %c64_i32 = arith.constant 64 : i32
    %0 = arith.muli %arg1, %c64_i32 : i32
    %1 = tpu.assume_multiple %0, 8 : i32
    %c0_i32 = arith.constant 0 : i32
    %2 = tpu.memref_slice %arg2[%arg0, %1, %c0_i32] : memref<2x192x128xf32, #tpu.memory_space<any>> -> memref<1x128x128xf32, #tpu.memory_space<any>>
    %3 = tpu.memref_squeeze %2 : memref<1x128x128xf32, #tpu.memory_space<any>> -> memref<128x128xf32, #tpu.memory_space<any>>
    tpu.enqueue_dma source(%3 : memref<128x128xf32, #tpu.memory_space<any>>) target(%arg19 : memref<128x128xf32, #tpu.memory_space<vmem>>) target_semaphore(%arg20 : memref<!tpu.dma_semaphore, #tpu.memory_space<semaphore_mem>>)
    %c0_i32_0 = arith.constant 0 : i32
    %4 = arith.cmpi eq, %arg1, %c0_i32_0 : i32
    %5 = arith.extui %4 : i1 to i32
    %c0_i32_1 = arith.constant 0 : i32
    %6 = arith.cmpi ne, %5, %c0_i32_1 : i32
    scf.if %6 {
      %cst_89 = arith.constant 0.000000e+00 : f32
      %115 = vector.broadcast %cst_89 : f32 to vector<64x384xf32>
      %c0_90 = arith.constant 0 : index
      %c0_91 = arith.constant 0 : index
      %116 = vector.load %arg23[%c0_90, %c0_91] : memref<64x384xf32, #tpu.memory_space<vmem>>, vector<64x384xf32>
      tpu.vector_store %arg23[%c0_90, %c0_91], %115 {strides = array<i32>} : memref<64x384xf32, #tpu.memory_space<vmem>>, vector<64x384xf32>,
      %cst_92 = arith.constant 0.000000e+00 : f32
      %117 = vector.broadcast %cst_92 : f32 to vector<64x384xf32>
      %c0_93 = arith.constant 0 : index
      %c0_94 = arith.constant 0 : index
      %118 = vector.load %arg24[%c0_93, %c0_94] : memref<64x384xf32, #tpu.memory_space<vmem>>, vector<64x384xf32>
      tpu.vector_store %arg24[%c0_93, %c0_94], %117 {strides = array<i32>} : memref<64x384xf32, #tpu.memory_space<vmem>>, vector<64x384xf32>,
    } else {
    }
    %c0_i32_2 = arith.constant 0 : i32
    %7 = tpu.memref_slice %arg2[%arg0, %1, %c0_i32_2] : memref<2x192x128xf32, #tpu.memory_space<any>> -> memref<1x128x128xf32, #tpu.memory_space<any>>
    %8 = tpu.memref_squeeze %7 : memref<1x128x128xf32, #tpu.memory_space<any>> -> memref<128x128xf32, #tpu.memory_space<any>>
    tpu.wait_dma2 semaphore(%arg20 : memref<!tpu.dma_semaphore, #tpu.memory_space<semaphore_mem>>) src(%8 : memref<128x128xf32, #tpu.memory_space<any>>) dst(%arg19 : memref<128x128xf32, #tpu.memory_space<vmem>>)
    %c32 = arith.constant 32 : index
    %c0 = arith.constant 0 : index
    %9 = vector.load %arg19[%c32, %c0] : memref<128x128xf32, #tpu.memory_space<vmem>>, vector<64x128xf32>
    %c0_3 = arith.constant 0 : index
    %c0_4 = arith.constant 0 : index
    %10 = vector.load %arg7[%c0_3, %c0_4] : memref<128x768xf32, #tpu.memory_space<vmem>>, vector<128x768xf32>
    %cst = arith.constant dense<0.000000e+00> : vector<64x768xf32>
    %11 = tpu.matmul %9, %10, %cst {dimension_numbers = #tpu.dot_dimension_numbers<[1], [0], [0], [1], [0, 0, 1, 1], [], []>} : vector<64x128xf32>, vector<128x768xf32>, vector<64x768xf32> -> vector<64x768xf32>
    %c0_5 = arith.constant 0 : index
    %c0_6 = arith.constant 0 : index
    %12 = vector.load %arg8[%c0_5, %c0_6] : memref<1x768xf32, #tpu.memory_space<vmem>>, vector<1x768xf32>
    %13 = vector.broadcast %12 : vector<1x768xf32> to vector<64x768xf32>
    %14 = arith.addf %11, %13 : vector<64x768xf32>
    %15 = vector.extract_strided_slice %14 {offsets = [0, 0], sizes = [64, 384], strides = [1, 1]} : vector<64x768xf32> to vector<64x384xf32>
    %16 = arith.negf %15 : vector<64x384xf32>
    %17 = math.exp %16 : vector<64x384xf32>
    %cst_7 = arith.constant 1.000000e+00 : f32
    %18 = vector.broadcast %cst_7 : f32 to vector<64x384xf32>
    %19 = arith.addf %18, %17 : vector<64x384xf32>
    %20 = arith.divf %18, %19 : vector<64x384xf32>
    %21 = vector.extract_strided_slice %14 {offsets = [0, 384], sizes = [64, 384], strides = [1, 1]} : vector<64x768xf32> to vector<64x384xf32>
    %c31 = arith.constant 31 : index
    %c0_8 = arith.constant 0 : index
    %22 = vector.load %arg19[%c31, %c0_8] : memref<128x128xf32, #tpu.memory_space<vmem>>, vector<64x128xf32>
    %c32_9 = arith.constant 32 : index
    %c0_10 = arith.constant 0 : index
    %23 = vector.load %arg19[%c32_9, %c0_10] : memref<128x128xf32, #tpu.memory_space<vmem>>, vector<64x128xf32>
    %c33 = arith.constant 33 : index
    %c0_11 = arith.constant 0 : index
    %24 = vector.load %arg19[%c33, %c0_11] : memref<128x128xf32, #tpu.memory_space<vmem>>, vector<64x128xf32>
    %25 = tpu.concatenate %22, %23, %24 in 1 : vector<64x128xf32>, vector<64x128xf32>, vector<64x128xf32> -> vector<64x384xf32>
    %c0_12 = arith.constant 0 : index
    %c0_13 = arith.constant 0 : index
    %26 = vector.load %arg3[%c0_12, %c0_13] : memref<384x128xf32, #tpu.memory_space<vmem>>, vector<384x128xf32>
    %cst_14 = arith.constant dense<0.000000e+00> : vector<64x128xf32>
    %27 = tpu.matmul %25, %26, %cst_14 {dimension_numbers = #tpu.dot_dimension_numbers<[1], [0], [0], [1], [0, 0, 1, 1], [], []>} : vector<64x384xf32>, vector<384x128xf32>, vector<64x128xf32> -> vector<64x128xf32>
    %c0_15 = arith.constant 0 : index
    %c0_16 = arith.constant 0 : index
    %28 = vector.load %arg6[%c0_15, %c0_16] : memref<1x384xf32, #tpu.memory_space<vmem>>, vector<1x128xf32>
    %29 = vector.broadcast %28 : vector<1x128xf32> to vector<64x128xf32>
    %30 = arith.addf %27, %29 : vector<64x128xf32>
    %31 = vector.extract_strided_slice %20 {offsets = [0, 0], sizes = [64, 128], strides = [1, 1]} : vector<64x384xf32> to vector<64x128xf32>
    %32 = arith.mulf %30, %31 : vector<64x128xf32>
    %c0_17 = arith.constant 0 : index
    %c0_18 = arith.constant 0 : index
    %33 = vector.load %arg21[%c0_17, %c0_18] : memref<64x384xf32, #tpu.memory_space<vmem>>, vector<64x128xf32>
    tpu.vector_store %arg21[%c0_17, %c0_18], %32 {strides = array<i32>} : memref<64x384xf32, #tpu.memory_space<vmem>>, vector<64x128xf32>,
    %c26 = arith.constant 26 : index
    %c0_19 = arith.constant 0 : index
    %34 = vector.load %arg19[%c26, %c0_19] : memref<128x128xf32, #tpu.memory_space<vmem>>, vector<64x128xf32>
    %c28 = arith.constant 28 : index
    %c0_20 = arith.constant 0 : index
    %35 = vector.load %arg19[%c28, %c0_20] : memref<128x128xf32, #tpu.memory_space<vmem>>, vector<64x128xf32>
    %c30 = arith.constant 30 : index
    %c0_21 = arith.constant 0 : index
    %36 = vector.load %arg19[%c30, %c0_21] : memref<128x128xf32, #tpu.memory_space<vmem>>, vector<64x128xf32>
    %c32_22 = arith.constant 32 : index
    %c0_23 = arith.constant 0 : index
    %37 = vector.load %arg19[%c32_22, %c0_23] : memref<128x128xf32, #tpu.memory_space<vmem>>, vector<64x128xf32>
    %c34 = arith.constant 34 : index
    %c0_24 = arith.constant 0 : index
    %38 = vector.load %arg19[%c34, %c0_24] : memref<128x128xf32, #tpu.memory_space<vmem>>, vector<64x128xf32>
    %c36 = arith.constant 36 : index
    %c0_25 = arith.constant 0 : index
    %39 = vector.load %arg19[%c36, %c0_25] : memref<128x128xf32, #tpu.memory_space<vmem>>, vector<64x128xf32>
    %c38 = arith.constant 38 : index
    %c0_26 = arith.constant 0 : index
    %40 = vector.load %arg19[%c38, %c0_26] : memref<128x128xf32, #tpu.memory_space<vmem>>, vector<64x128xf32>
    %41 = tpu.concatenate %34, %35, %36, %37, %38, %39, %40 in 1 : vector<64x128xf32>, vector<64x128xf32>, vector<64x128xf32>, vector<64x128xf32>, vector<64x128xf32>, vector<64x128xf32>, vector<64x128xf32> -> vector<64x896xf32>
    %c0_27 = arith.constant 0 : index
    %c0_28 = arith.constant 0 : index
    %42 = vector.load %arg4[%c0_27, %c0_28] : memref<896x128xf32, #tpu.memory_space<vmem>>, vector<896x128xf32>
    %cst_29 = arith.constant dense<0.000000e+00> : vector<64x128xf32>
    %43 = tpu.matmul %41, %42, %cst_29 {dimension_numbers = #tpu.dot_dimension_numbers<[1], [0], [0], [1], [0, 0, 1, 1], [], []>} : vector<64x896xf32>, vector<896x128xf32>, vector<64x128xf32> -> vector<64x128xf32>
    %c0_30 = arith.constant 0 : index
    %c128 = arith.constant 128 : index
    %44 = vector.load %arg6[%c0_30, %c128] : memref<1x384xf32, #tpu.memory_space<vmem>>, vector<1x128xf32>
    %45 = vector.broadcast %44 : vector<1x128xf32> to vector<64x128xf32>
    %46 = arith.addf %43, %45 : vector<64x128xf32>
    %47 = vector.extract_strided_slice %20 {offsets = [0, 128], sizes = [64, 128], strides = [1, 1]} : vector<64x384xf32> to vector<64x128xf32>
    %48 = arith.mulf %46, %47 : vector<64x128xf32>
    %c0_31 = arith.constant 0 : index
    %c128_32 = arith.constant 128 : index
    %49 = vector.load %arg21[%c0_31, %c128_32] : memref<64x384xf32, #tpu.memory_space<vmem>>, vector<64x128xf32>
    tpu.vector_store %arg21[%c0_31, %c128_32], %48 {strides = array<i32>} : memref<64x384xf32, #tpu.memory_space<vmem>>, vector<64x128xf32>,
    %c4 = arith.constant 4 : index
    %c0_33 = arith.constant 0 : index
    %50 = vector.load %arg19[%c4, %c0_33] : memref<128x128xf32, #tpu.memory_space<vmem>>, vector<64x128xf32>
    %c8 = arith.constant 8 : index
    %c0_34 = arith.constant 0 : index
    %51 = vector.load %arg19[%c8, %c0_34] : memref<128x128xf32, #tpu.memory_space<vmem>>, vector<64x128xf32>
    %c12 = arith.constant 12 : index
    %c0_35 = arith.constant 0 : index
    %52 = vector.load %arg19[%c12, %c0_35] : memref<128x128xf32, #tpu.memory_space<vmem>>, vector<64x128xf32>
    %c16 = arith.constant 16 : index
    %c0_36 = arith.constant 0 : index
    %53 = vector.load %arg19[%c16, %c0_36] : memref<128x128xf32, #tpu.memory_space<vmem>>, vector<64x128xf32>
    %c20 = arith.constant 20 : index
    %c0_37 = arith.constant 0 : index
    %54 = vector.load %arg19[%c20, %c0_37] : memref<128x128xf32, #tpu.memory_space<vmem>>, vector<64x128xf32>
    %c24 = arith.constant 24 : index
    %c0_38 = arith.constant 0 : index
    %55 = vector.load %arg19[%c24, %c0_38] : memref<128x128xf32, #tpu.memory_space<vmem>>, vector<64x128xf32>
    %c28_39 = arith.constant 28 : index
    %c0_40 = arith.constant 0 : index
    %56 = vector.load %arg19[%c28_39, %c0_40] : memref<128x128xf32, #tpu.memory_space<vmem>>, vector<64x128xf32>
    %c32_41 = arith.constant 32 : index
    %c0_42 = arith.constant 0 : index
    %57 = vector.load %arg19[%c32_41, %c0_42] : memref<128x128xf32, #tpu.memory_space<vmem>>, vector<64x128xf32>
    %c36_43 = arith.constant 36 : index
    %c0_44 = arith.constant 0 : index
    %58 = vector.load %arg19[%c36_43, %c0_44] : memref<128x128xf32, #tpu.memory_space<vmem>>, vector<64x128xf32>
    %c40 = arith.constant 40 : index
    %c0_45 = arith.constant 0 : index
    %59 = vector.load %arg19[%c40, %c0_45] : memref<128x128xf32, #tpu.memory_space<vmem>>, vector<64x128xf32>
    %c44 = arith.constant 44 : index
    %c0_46 = arith.constant 0 : index
    %60 = vector.load %arg19[%c44, %c0_46] : memref<128x128xf32, #tpu.memory_space<vmem>>, vector<64x128xf32>
    %c48 = arith.constant 48 : index
    %c0_47 = arith.constant 0 : index
    %61 = vector.load %arg19[%c48, %c0_47] : memref<128x128xf32, #tpu.memory_space<vmem>>, vector<64x128xf32>
    %c52 = arith.constant 52 : index
    %c0_48 = arith.constant 0 : index
    %62 = vector.load %arg19[%c52, %c0_48] : memref<128x128xf32, #tpu.memory_space<vmem>>, vector<64x128xf32>
    %c56 = arith.constant 56 : index
    %c0_49 = arith.constant 0 : index
    %63 = vector.load %arg19[%c56, %c0_49] : memref<128x128xf32, #tpu.memory_space<vmem>>, vector<64x128xf32>
    %c60 = arith.constant 60 : index
    %c0_50 = arith.constant 0 : index
    %64 = vector.load %arg19[%c60, %c0_50] : memref<128x128xf32, #tpu.memory_space<vmem>>, vector<64x128xf32>
    %65 = tpu.concatenate %50, %51, %52, %53, %54, %55, %56, %57, %58, %59, %60, %61, %62, %63, %64 in 1 : vector<64x128xf32>, vector<64x128xf32>, vector<64x128xf32>, vector<64x128xf32>, vector<64x128xf32>, vector<64x128xf32>, vector<64x128xf32>, vector<64x128xf32>, vector<64x128xf32>, vector<64x128xf32>, vector<64x128xf32>, vector<64x128xf32>, vector<64x128xf32>, vector<64x128xf32>, vector<64x128xf32> -> vector<64x1920xf32>
    %c0_51 = arith.constant 0 : index
    %c0_52 = arith.constant 0 : index
    %66 = vector.load %arg5[%c0_51, %c0_52] : memref<1920x128xf32, #tpu.memory_space<vmem>>, vector<1920x128xf32>
    %cst_53 = arith.constant dense<0.000000e+00> : vector<64x128xf32>
    %67 = tpu.matmul %65, %66, %cst_53 {dimension_numbers = #tpu.dot_dimension_numbers<[1], [0], [0], [1], [0, 0, 1, 1], [], []>} : vector<64x1920xf32>, vector<1920x128xf32>, vector<64x128xf32> -> vector<64x128xf32>
    %c0_54 = arith.constant 0 : index
    %c256 = arith.constant 256 : index
    %68 = vector.load %arg6[%c0_54, %c256] : memref<1x384xf32, #tpu.memory_space<vmem>>, vector<1x128xf32>
    %69 = vector.broadcast %68 : vector<1x128xf32> to vector<64x128xf32>
    %70 = arith.addf %67, %69 : vector<64x128xf32>
    %71 = vector.extract_strided_slice %20 {offsets = [0, 256], sizes = [64, 128], strides = [1, 1]} : vector<64x384xf32> to vector<64x128xf32>
    %72 = arith.mulf %70, %71 : vector<64x128xf32>
    %c0_55 = arith.constant 0 : index
    %c256_56 = arith.constant 256 : index
    %73 = vector.load %arg21[%c0_55, %c256_56] : memref<64x384xf32, #tpu.memory_space<vmem>>, vector<64x128xf32>
    tpu.vector_store %arg21[%c0_55, %c256_56], %72 {strides = array<i32>} : memref<64x384xf32, #tpu.memory_space<vmem>>, vector<64x128xf32>,
    %c0_57 = arith.constant 0 : index
    %c0_58 = arith.constant 0 : index
    %74 = vector.load %arg9[%c0_57, %c0_58] : memref<64x384xf32, #tpu.memory_space<vmem>>, vector<64x384xf32>
    %c0_59 = arith.constant 0 : index
    %c0_60 = arith.constant 0 : index
    %75 = vector.load %arg10[%c0_59, %c0_60] : memref<64x384xf32, #tpu.memory_space<vmem>>, vector<64x384xf32>
    %c0_61 = arith.constant 0 : index
    %c0_62 = arith.constant 0 : index
    %76 = vector.load %arg11[%c0_61, %c0_62] : memref<64x384xf32, #tpu.memory_space<vmem>>, vector<64x384xf32>
    %c0_63 = arith.constant 0 : index
    %c0_64 = arith.constant 0 : index
    %77 = vector.load %arg12[%c0_63, %c0_64] : memref<64x384xf32, #tpu.memory_space<vmem>>, vector<64x384xf32>
    %c0_65 = arith.constant 0 : index
    %c0_66 = arith.constant 0 : index
    %78 = vector.load %arg13[%c0_65, %c0_66] : memref<64x384xf32, #tpu.memory_space<vmem>>, vector<64x384xf32>
    %c0_67 = arith.constant 0 : index
    %c0_68 = arith.constant 0 : index
    %79 = vector.load %arg14[%c0_67, %c0_68] : memref<64x384xf32, #tpu.memory_space<vmem>>, vector<64x384xf32>
    %c0_i32_69 = arith.constant 0 : i32
    %c8_i32 = arith.constant 8 : i32
    %80 = arith.addi %c0_i32_69, %c8_i32 : i32
    %c1_i32 = arith.constant 1 : i32
    scf.for %arg25 = %c0_i32_69 to %80 step %c1_i32  : i32 {
      %c8_i32_89 = arith.constant 8 : i32
      %115 = arith.muli %arg25, %c8_i32_89 : i32
      %116 = tpu.assume_multiple %115, 8 : i32
      %117 = arith.index_cast %116 : i32 to index
      %c0_90 = arith.constant 0 : index
      %118 = vector.load %arg21[%117, %c0_90] : memref<64x384xf32, #tpu.memory_space<vmem>>, vector<8x384xf32>
      %c0_91 = arith.constant 0 : index
      %c0_92 = arith.constant 0 : index
      %119 = vector.load %arg23[%c0_91, %c0_92] : memref<64x384xf32, #tpu.memory_space<vmem>>, vector<64x384xf32>
      %c0_93 = arith.constant 0 : index
      %c0_94 = arith.constant 0 : index
      %120 = vector.load %arg24[%c0_93, %c0_94] : memref<64x384xf32, #tpu.memory_space<vmem>>, vector<64x384xf32>
      %121 = vector.extract_strided_slice %118 {offsets = [0, 0], sizes = [1, 384], strides = [1, 1]} : vector<8x384xf32> to vector<1x384xf32>
      %122 = arith.mulf %74, %119 : vector<64x384xf32>
      %123 = arith.mulf %75, %120 : vector<64x384xf32>
      %124 = arith.subf %122, %123 : vector<64x384xf32>
      %125 = vector.broadcast %121 : vector<1x384xf32> to vector<64x384xf32>
      %126 = arith.mulf %76, %125 : vector<64x384xf32>
      %127 = arith.addf %124, %126 : vector<64x384xf32>
      %128 = arith.mulf %74, %120 : vector<64x384xf32>
      %129 = arith.mulf %75, %119 : vector<64x384xf32>
      %130 = arith.addf %128, %129 : vector<64x384xf32>
      %131 = vector.broadcast %121 : vector<1x384xf32> to vector<64x384xf32>
      %132 = arith.mulf %77, %131 : vector<64x384xf32>
      %133 = arith.addf %130, %132 : vector<64x384xf32>
      %134 = arith.mulf %78, %127 : vector<64x384xf32>
      %135 = arith.mulf %79, %133 : vector<64x384xf32>
      %136 = arith.subf %134, %135 : vector<64x384xf32>
      %cst_95 = arith.constant dense<0.000000e+00> : vector<384xf32>
      %137 = vector.multi_reduction <add>, %136, %cst_95 [0] : vector<64x384xf32> to vector<384xf32>
      %138 = vector.shape_cast %137 : vector<384xf32> to vector<1x384xf32>
      %cst_96 = arith.constant 2.000000e+00 : f32
      %139 = vector.broadcast %cst_96 : f32 to vector<1x384xf32>
      %140 = arith.mulf %139, %138 : vector<1x384xf32>
      %141 = vector.extract_strided_slice %118 {offsets = [1, 0], sizes = [1, 384], strides = [1, 1]} : vector<8x384xf32> to vector<1x384xf32>
      %142 = arith.mulf %74, %127 : vector<64x384xf32>
      %143 = arith.mulf %75, %133 : vector<64x384xf32>
      %144 = arith.subf %142, %143 : vector<64x384xf32>
      %145 = vector.broadcast %141 : vector<1x384xf32> to vector<64x384xf32>
      %146 = arith.mulf %76, %145 : vector<64x384xf32>
      %147 = arith.addf %144, %146 : vector<64x384xf32>
      %148 = arith.mulf %74, %133 : vector<64x384xf32>
      %149 = arith.mulf %75, %127 : vector<64x384xf32>
      %150 = arith.addf %148, %149 : vector<64x384xf32>
      %151 = vector.broadcast %141 : vector<1x384xf32> to vector<64x384xf32>
      %152 = arith.mulf %77, %151 : vector<64x384xf32>
      %153 = arith.addf %150, %152 : vector<64x384xf32>
      %154 = arith.mulf %78, %147 : vector<64x384xf32>
      %155 = arith.mulf %79, %153 : vector<64x384xf32>
      %156 = arith.subf %154, %155 : vector<64x384xf32>
      %cst_97 = arith.constant dense<0.000000e+00> : vector<384xf32>
      %157 = vector.multi_reduction <add>, %156, %cst_97 [0] : vector<64x384xf32> to vector<384xf32>
      %158 = vector.shape_cast %157 : vector<384xf32> to vector<1x384xf32>
      %cst_98 = arith.constant 2.000000e+00 : f32
      %159 = vector.broadcast %cst_98 : f32 to vector<1x384xf32>
      %160 = arith.mulf %159, %158 : vector<1x384xf32>
      %161 = vector.extract_strided_slice %118 {offsets = [2, 0], sizes = [1, 384], strides = [1, 1]} : vector<8x384xf32> to vector<1x384xf32>
      %162 = arith.mulf %74, %147 : vector<64x384xf32>
      %163 = arith.mulf %75, %153 : vector<64x384xf32>
      %164 = arith.subf %162, %163 : vector<64x384xf32>
      %165 = vector.broadcast %161 : vector<1x384xf32> to vector<64x384xf32>
      %166 = arith.mulf %76, %165 : vector<64x384xf32>
      %167 = arith.addf %164, %166 : vector<64x384xf32>
      %168 = arith.mulf %74, %153 : vector<64x384xf32>
      %169 = arith.mulf %75, %147 : vector<64x384xf32>
      %170 = arith.addf %168, %169 : vector<64x384xf32>
      %171 = vector.broadcast %161 : vector<1x384xf32> to vector<64x384xf32>
      %172 = arith.mulf %77, %171 : vector<64x384xf32>
      %173 = arith.addf %170, %172 : vector<64x384xf32>
      %174 = arith.mulf %78, %167 : vector<64x384xf32>
      %175 = arith.mulf %79, %173 : vector<64x384xf32>
      %176 = arith.subf %174, %175 : vector<64x384xf32>
      %cst_99 = arith.constant dense<0.000000e+00> : vector<384xf32>
      %177 = vector.multi_reduction <add>, %176, %cst_99 [0] : vector<64x384xf32> to vector<384xf32>
      %178 = vector.shape_cast %177 : vector<384xf32> to vector<1x384xf32>
      %cst_100 = arith.constant 2.000000e+00 : f32
      %179 = vector.broadcast %cst_100 : f32 to vector<1x384xf32>
      %180 = arith.mulf %179, %178 : vector<1x384xf32>
      %181 = vector.extract_strided_slice %118 {offsets = [3, 0], sizes = [1, 384], strides = [1, 1]} : vector<8x384xf32> to vector<1x384xf32>
      %182 = arith.mulf %74, %167 : vector<64x384xf32>
      %183 = arith.mulf %75, %173 : vector<64x384xf32>
      %184 = arith.subf %182, %183 : vector<64x384xf32>
      %185 = vector.broadcast %181 : vector<1x384xf32> to vector<64x384xf32>
      %186 = arith.mulf %76, %185 : vector<64x384xf32>
      %187 = arith.addf %184, %186 : vector<64x384xf32>
      %188 = arith.mulf %74, %173 : vector<64x384xf32>
      %189 = arith.mulf %75, %167 : vector<64x384xf32>
      %190 = arith.addf %188, %189 : vector<64x384xf32>
      %191 = vector.broadcast %181 : vector<1x384xf32> to vector<64x384xf32>
      %192 = arith.mulf %77, %191 : vector<64x384xf32>
      %193 = arith.addf %190, %192 : vector<64x384xf32>
      %194 = arith.mulf %78, %187 : vector<64x384xf32>
      %195 = arith.mulf %79, %193 : vector<64x384xf32>
      %196 = arith.subf %194, %195 : vector<64x384xf32>
      %cst_101 = arith.constant dense<0.000000e+00> : vector<384xf32>
      %197 = vector.multi_reduction <add>, %196, %cst_101 [0] : vector<64x384xf32> to vector<384xf32>
      %198 = vector.shape_cast %197 : vector<384xf32> to vector<1x384xf32>
      %cst_102 = arith.constant 2.000000e+00 : f32
      %199 = vector.broadcast %cst_102 : f32 to vector<1x384xf32>
      %200 = arith.mulf %199, %198 : vector<1x384xf32>
      %201 = vector.extract_strided_slice %118 {offsets = [4, 0], sizes = [1, 384], strides = [1, 1]} : vector<8x384xf32> to vector<1x384xf32>
      %202 = arith.mulf %74, %187 : vector<64x384xf32>
      %203 = arith.mulf %75, %193 : vector<64x384xf32>
      %204 = arith.subf %202, %203 : vector<64x384xf32>
      %205 = vector.broadcast %201 : vector<1x384xf32> to vector<64x384xf32>
      %206 = arith.mulf %76, %205 : vector<64x384xf32>
      %207 = arith.addf %204, %206 : vector<64x384xf32>
      %208 = arith.mulf %74, %193 : vector<64x384xf32>
      %209 = arith.mulf %75, %187 : vector<64x384xf32>
      %210 = arith.addf %208, %209 : vector<64x384xf32>
      %211 = vector.broadcast %201 : vector<1x384xf32> to vector<64x384xf32>
      %212 = arith.mulf %77, %211 : vector<64x384xf32>
      %213 = arith.addf %210, %212 : vector<64x384xf32>
      %214 = arith.mulf %78, %207 : vector<64x384xf32>
      %215 = arith.mulf %79, %213 : vector<64x384xf32>
      %216 = arith.subf %214, %215 : vector<64x384xf32>
      %cst_103 = arith.constant dense<0.000000e+00> : vector<384xf32>
      %217 = vector.multi_reduction <add>, %216, %cst_103 [0] : vector<64x384xf32> to vector<384xf32>
      %218 = vector.shape_cast %217 : vector<384xf32> to vector<1x384xf32>
      %cst_104 = arith.constant 2.000000e+00 : f32
      %219 = vector.broadcast %cst_104 : f32 to vector<1x384xf32>
      %220 = arith.mulf %219, %218 : vector<1x384xf32>
      %221 = vector.extract_strided_slice %118 {offsets = [5, 0], sizes = [1, 384], strides = [1, 1]} : vector<8x384xf32> to vector<1x384xf32>
      %222 = arith.mulf %74, %207 : vector<64x384xf32>
      %223 = arith.mulf %75, %213 : vector<64x384xf32>
      %224 = arith.subf %222, %223 : vector<64x384xf32>
      %225 = vector.broadcast %221 : vector<1x384xf32> to vector<64x384xf32>
      %226 = arith.mulf %76, %225 : vector<64x384xf32>
      %227 = arith.addf %224, %226 : vector<64x384xf32>
      %228 = arith.mulf %74, %213 : vector<64x384xf32>
      %229 = arith.mulf %75, %207 : vector<64x384xf32>
      %230 = arith.addf %228, %229 : vector<64x384xf32>
      %231 = vector.broadcast %221 : vector<1x384xf32> to vector<64x384xf32>
      %232 = arith.mulf %77, %231 : vector<64x384xf32>
      %233 = arith.addf %230, %232 : vector<64x384xf32>
      %234 = arith.mulf %78, %227 : vector<64x384xf32>
      %235 = arith.mulf %79, %233 : vector<64x384xf32>
      %236 = arith.subf %234, %235 : vector<64x384xf32>
      %cst_105 = arith.constant dense<0.000000e+00> : vector<384xf32>
      %237 = vector.multi_reduction <add>, %236, %cst_105 [0] : vector<64x384xf32> to vector<384xf32>
      %238 = vector.shape_cast %237 : vector<384xf32> to vector<1x384xf32>
      %cst_106 = arith.constant 2.000000e+00 : f32
      %239 = vector.broadcast %cst_106 : f32 to vector<1x384xf32>
      %240 = arith.mulf %239, %238 : vector<1x384xf32>
      %241 = vector.extract_strided_slice %118 {offsets = [6, 0], sizes = [1, 384], strides = [1, 1]} : vector<8x384xf32> to vector<1x384xf32>
      %242 = arith.mulf %74, %227 : vector<64x384xf32>
      %243 = arith.mulf %75, %233 : vector<64x384xf32>
      %244 = arith.subf %242, %243 : vector<64x384xf32>
      %245 = vector.broadcast %241 : vector<1x384xf32> to vector<64x384xf32>
      %246 = arith.mulf %76, %245 : vector<64x384xf32>
      %247 = arith.addf %244, %246 : vector<64x384xf32>
      %248 = arith.mulf %74, %233 : vector<64x384xf32>
      %249 = arith.mulf %75, %227 : vector<64x384xf32>
      %250 = arith.addf %248, %249 : vector<64x384xf32>
      %251 = vector.broadcast %241 : vector<1x384xf32> to vector<64x384xf32>
      %252 = arith.mulf %77, %251 : vector<64x384xf32>
      %253 = arith.addf %250, %252 : vector<64x384xf32>
      %254 = arith.mulf %78, %247 : vector<64x384xf32>
      %255 = arith.mulf %79, %253 : vector<64x384xf32>
      %256 = arith.subf %254, %255 : vector<64x384xf32>
      %cst_107 = arith.constant dense<0.000000e+00> : vector<384xf32>
      %257 = vector.multi_reduction <add>, %256, %cst_107 [0] : vector<64x384xf32> to vector<384xf32>
      %258 = vector.shape_cast %257 : vector<384xf32> to vector<1x384xf32>
      %cst_108 = arith.constant 2.000000e+00 : f32
      %259 = vector.broadcast %cst_108 : f32 to vector<1x384xf32>
      %260 = arith.mulf %259, %258 : vector<1x384xf32>
      %261 = vector.extract_strided_slice %118 {offsets = [7, 0], sizes = [1, 384], strides = [1, 1]} : vector<8x384xf32> to vector<1x384xf32>
      %262 = arith.mulf %74, %247 : vector<64x384xf32>
      %263 = arith.mulf %75, %253 : vector<64x384xf32>
      %264 = arith.subf %262, %263 : vector<64x384xf32>
      %265 = vector.broadcast %261 : vector<1x384xf32> to vector<64x384xf32>
      %266 = arith.mulf %76, %265 : vector<64x384xf32>
      %267 = arith.addf %264, %266 : vector<64x384xf32>
      %268 = arith.mulf %74, %253 : vector<64x384xf32>
      %269 = arith.mulf %75, %247 : vector<64x384xf32>
      %270 = arith.addf %268, %269 : vector<64x384xf32>
      %271 = vector.broadcast %261 : vector<1x384xf32> to vector<64x384xf32>
      %272 = arith.mulf %77, %271 : vector<64x384xf32>
      %273 = arith.addf %270, %272 : vector<64x384xf32>
      %274 = arith.mulf %78, %267 : vector<64x384xf32>
      %275 = arith.mulf %79, %273 : vector<64x384xf32>
      %276 = arith.subf %274, %275 : vector<64x384xf32>
      %cst_109 = arith.constant dense<0.000000e+00> : vector<384xf32>
      %277 = vector.multi_reduction <add>, %276, %cst_109 [0] : vector<64x384xf32> to vector<384xf32>
      %278 = vector.shape_cast %277 : vector<384xf32> to vector<1x384xf32>
      %cst_110 = arith.constant 2.000000e+00 : f32
      %279 = vector.broadcast %cst_110 : f32 to vector<1x384xf32>
      %280 = arith.mulf %279, %278 : vector<1x384xf32>
      %c0_111 = arith.constant 0 : index
      %c0_112 = arith.constant 0 : index
      %281 = vector.load %arg23[%c0_111, %c0_112] : memref<64x384xf32, #tpu.memory_space<vmem>>, vector<64x384xf32>
      tpu.vector_store %arg23[%c0_111, %c0_112], %267 {strides = array<i32>} : memref<64x384xf32, #tpu.memory_space<vmem>>, vector<64x384xf32>,
      %c0_113 = arith.constant 0 : index
      %c0_114 = arith.constant 0 : index
      %282 = vector.load %arg24[%c0_113, %c0_114] : memref<64x384xf32, #tpu.memory_space<vmem>>, vector<64x384xf32>
      tpu.vector_store %arg24[%c0_113, %c0_114], %273 {strides = array<i32>} : memref<64x384xf32, #tpu.memory_space<vmem>>, vector<64x384xf32>,
      %283 = tpu.concatenate %140, %160, %180, %200, %220, %240, %260, %280 in 0 : vector<1x384xf32>, vector<1x384xf32>, vector<1x384xf32>, vector<1x384xf32>, vector<1x384xf32>, vector<1x384xf32>, vector<1x384xf32>, vector<1x384xf32> -> vector<8x384xf32>
      %284 = arith.index_cast %116 : i32 to index
      %c0_115 = arith.constant 0 : index
      %285 = vector.load %arg22[%284, %c0_115] : memref<64x384xf32, #tpu.memory_space<vmem>>, vector<8x384xf32>
      tpu.vector_store %arg22[%284, %c0_115], %283 {strides = array<i32>} : memref<64x384xf32, #tpu.memory_space<vmem>>, vector<8x384xf32>,
    }
    %c8_i32_70 = arith.constant 8 : i32
    %c0_71 = arith.constant 0 : index
    %c0_72 = arith.constant 0 : index
    %81 = vector.load %arg22[%c0_71, %c0_72] : memref<64x384xf32, #tpu.memory_space<vmem>>, vector<64x384xf32>
    %c0_73 = arith.constant 0 : index
    %c0_74 = arith.constant 0 : index
    %82 = vector.load %arg21[%c0_73, %c0_74] : memref<64x384xf32, #tpu.memory_space<vmem>>, vector<64x384xf32>
    %c0_75 = arith.constant 0 : index
    %c0_76 = arith.constant 0 : index
    %83 = vector.load %arg15[%c0_75, %c0_76] : memref<1x384xf32, #tpu.memory_space<vmem>>, vector<1x384xf32>
    %84 = vector.broadcast %83 : vector<1x384xf32> to vector<64x384xf32>
    %85 = arith.mulf %82, %84 : vector<64x384xf32>
    %86 = arith.addf %81, %85 : vector<64x384xf32>
    %87 = arith.addf %86, %21 : vector<64x384xf32>
    %cst_77 = arith.constant dense<0.000000e+00> : vector<64xf32>
    %88 = vector.multi_reduction <add>, %87, %cst_77 [1] : vector<64x384xf32> to vector<64xf32>
    %89 = vector.shape_cast %88 : vector<64xf32> to vector<64x1xf32>
    %cst_78 = arith.constant 3.840000e+02 : f32
    %90 = vector.broadcast %cst_78 : f32 to vector<64x1xf32>
    %91 = arith.divf %89, %90 : vector<64x1xf32>
    %92 = vector.broadcast %91 : vector<64x1xf32> to vector<64x384xf32>
    %93 = arith.subf %87, %92 : vector<64x384xf32>
    %94 = arith.mulf %93, %93 : vector<64x384xf32>
    %cst_79 = arith.constant dense<0.000000e+00> : vector<64xf32>
    %95 = vector.multi_reduction <add>, %94, %cst_79 [1] : vector<64x384xf32> to vector<64xf32>
    %96 = vector.shape_cast %95 : vector<64xf32> to vector<64x1xf32>
    %cst_80 = arith.constant 3.840000e+02 : f32
    %97 = vector.broadcast %cst_80 : f32 to vector<64x1xf32>
    %98 = arith.divf %96, %97 : vector<64x1xf32>
    %99 = vector.broadcast %91 : vector<64x1xf32> to vector<64x384xf32>
    %100 = arith.subf %87, %99 : vector<64x384xf32>
    %cst_81 = arith.constant 9.99999974E-6 : f32
    %101 = vector.broadcast %cst_81 : f32 to vector<64x1xf32>
    %102 = arith.addf %98, %101 : vector<64x1xf32>
    %103 = math.rsqrt %102 : vector<64x1xf32>
    %104 = vector.broadcast %103 : vector<64x1xf32> to vector<64x384xf32>
    %105 = arith.mulf %100, %104 : vector<64x384xf32>
    %c0_82 = arith.constant 0 : index
    %c0_83 = arith.constant 0 : index
    %106 = vector.load %arg16[%c0_82, %c0_83] : memref<1x384xf32, #tpu.memory_space<vmem>>, vector<1x384xf32>
    %107 = vector.broadcast %106 : vector<1x384xf32> to vector<64x384xf32>
    %108 = arith.mulf %105, %107 : vector<64x384xf32>
    %c0_84 = arith.constant 0 : index
    %c0_85 = arith.constant 0 : index
    %109 = vector.load %arg17[%c0_84, %c0_85] : memref<1x384xf32, #tpu.memory_space<vmem>>, vector<1x384xf32>
    %110 = vector.broadcast %109 : vector<1x384xf32> to vector<64x384xf32>
    %111 = arith.addf %108, %110 : vector<64x384xf32>
    %c0_86 = arith.constant 0 : index
    %c0_87 = arith.constant 0 : index
    %c0_88 = arith.constant 0 : index
    %112 = vector.load %arg18[%c0_86, %c0_87, %c0_88] : memref<1x64x384xf32, #tpu.memory_space<vmem>>, vector<1x64x384xf32>
    %113 = vector.shape_cast %112 : vector<1x64x384xf32> to vector<64x384xf32>
    %114 = vector.shape_cast %111 : vector<64x384xf32> to vector<1x64x384xf32>
    tpu.vector_store %arg18[%c0_86, %c0_87, %c0_88], %114 {strides = array<i32>} : memref<1x64x384xf32, #tpu.memory_space<vmem>>, vector<1x64x384xf32>,
    return
  }
  func.func @transform_1(%arg0: i32, %arg1: i32) -> (i32, i32) {
    %c0_i32 = arith.constant 0 : i32
    %c0_i32_0 = arith.constant 0 : i32
    %c0_i32_1 = arith.constant 0 : i32
    return %c0_i32, %c0_i32_0 : i32, i32
  }
  func.func @transform_2(%arg0: i32, %arg1: i32) -> (i32, i32) {
    %c0_i32 = arith.constant 0 : i32
    %c0_i32_0 = arith.constant 0 : i32
    %c0_i32_1 = arith.constant 0 : i32
    return %c0_i32, %c0_i32_0 : i32, i32
  }
  func.func @transform_3(%arg0: i32, %arg1: i32) -> (i32, i32) {
    %c0_i32 = arith.constant 0 : i32
    %c0_i32_0 = arith.constant 0 : i32
    %c0_i32_1 = arith.constant 0 : i32
    return %c0_i32, %c0_i32_0 : i32, i32
  }
  func.func @transform_4(%arg0: i32, %arg1: i32) -> (i32, i32) {
    %c0_i32 = arith.constant 0 : i32
    %c0_i32_0 = arith.constant 0 : i32
    %c0_i32_1 = arith.constant 0 : i32
    return %c0_i32, %c0_i32_0 : i32, i32
  }
  func.func @transform_5(%arg0: i32, %arg1: i32) -> (i32, i32) {
    %c0_i32 = arith.constant 0 : i32
    %c0_i32_0 = arith.constant 0 : i32
    %c0_i32_1 = arith.constant 0 : i32
    return %c0_i32, %c0_i32_0 : i32, i32
  }
  func.func @transform_6(%arg0: i32, %arg1: i32) -> (i32, i32) {
    %c0_i32 = arith.constant 0 : i32
    %c0_i32_0 = arith.constant 0 : i32
    %c0_i32_1 = arith.constant 0 : i32
    return %c0_i32, %c0_i32_0 : i32, i32
  }
  func.func @transform_7(%arg0: i32, %arg1: i32) -> (i32, i32) {
    %c0_i32 = arith.constant 0 : i32
    %c0_i32_0 = arith.constant 0 : i32
    %c0_i32_1 = arith.constant 0 : i32
    return %c0_i32, %c0_i32_0 : i32, i32
  }
  func.func @transform_8(%arg0: i32, %arg1: i32) -> (i32, i32) {
    %c0_i32 = arith.constant 0 : i32
    %c0_i32_0 = arith.constant 0 : i32
    %c0_i32_1 = arith.constant 0 : i32
    return %c0_i32, %c0_i32_0 : i32, i32
  }
  func.func @transform_9(%arg0: i32, %arg1: i32) -> (i32, i32) {
    %c0_i32 = arith.constant 0 : i32
    %c0_i32_0 = arith.constant 0 : i32
    %c0_i32_1 = arith.constant 0 : i32
    return %c0_i32, %c0_i32_0 : i32, i32
  }
  func.func @transform_10(%arg0: i32, %arg1: i32) -> (i32, i32) {
    %c0_i32 = arith.constant 0 : i32
    %c0_i32_0 = arith.constant 0 : i32
    %c0_i32_1 = arith.constant 0 : i32
    return %c0_i32, %c0_i32_0 : i32, i32
  }
  func.func @transform_11(%arg0: i32, %arg1: i32) -> (i32, i32) {
    %c0_i32 = arith.constant 0 : i32
    %c0_i32_0 = arith.constant 0 : i32
    %c0_i32_1 = arith.constant 0 : i32
    return %c0_i32, %c0_i32_0 : i32, i32
  }
  func.func @transform_12(%arg0: i32, %arg1: i32) -> (i32, i32) {
    %c0_i32 = arith.constant 0 : i32
    %c0_i32_0 = arith.constant 0 : i32
    %c0_i32_1 = arith.constant 0 : i32
    return %c0_i32, %c0_i32_0 : i32, i32
  }
  func.func @transform_13(%arg0: i32, %arg1: i32) -> (i32, i32) {
    %c0_i32 = arith.constant 0 : i32
    %c0_i32_0 = arith.constant 0 : i32
    %c0_i32_1 = arith.constant 0 : i32
    return %c0_i32, %c0_i32_0 : i32, i32
  }
  func.func @transform_14(%arg0: i32, %arg1: i32) -> (i32, i32) {
    %c0_i32 = arith.constant 0 : i32
    %c0_i32_0 = arith.constant 0 : i32
    %c0_i32_1 = arith.constant 0 : i32
    return %c0_i32, %c0_i32_0 : i32, i32
  }
  func.func @transform_15(%arg0: i32, %arg1: i32) -> (i32, i32) {
    %c0_i32 = arith.constant 0 : i32
    %c0_i32_0 = arith.constant 0 : i32
    %c0_i32_1 = arith.constant 0 : i32
    return %c0_i32, %c0_i32_0 : i32, i32
  }
  func.func @transform_16(%arg0: i32, %arg1: i32) -> (i32, i32, i32) {
    %c0_i32 = arith.constant 0 : i32
    %c0_i32_0 = arith.constant 0 : i32
    return %arg0, %arg1, %c0_i32 : i32, i32, i32
  }
}

</mosaic_0001>

<llo_original>
// kernel: tpu_custom_call.1
$region0: #{tpu_custom_call.1}
  #allocation0 [shape = 'u32[]', space=smem, size = 0x4, offset = 0x4, fixed_abs, tag = 'smem constant byte address 0x4 - core index']
  #allocation1 [shape = 'u32[144,128]{1,0:T(1,128)}', space=vmem, size = 0x12000, scoped, tag = 'internal scratch']
  #allocation2 [shape = 'f32[128,128]{1,0:T(8,128)}', space=vmem, size = 0x10000, scoped, tag = 'scratch operand']
  #allocation3 [shape = 's32[1]{0}', space=sflag, size = 0x4, scoped, tag = 'scratch operand']
  #allocation4 [shape = 'f32[64,384]{1,0:T(8,128)}', space=vmem, size = 0x18000, scoped, tag = 'scratch operand']
  #allocation5 [shape = 'f32[64,384]{1,0:T(8,128)}', space=vmem, size = 0x18000, scoped, tag = 'scratch operand']
  #allocation6 [shape = 'f32[64,384]{1,0:T(8,128)}', space=vmem, size = 0x18000, scoped, tag = 'scratch operand']
  #allocation7 [shape = 'f32[64,384]{1,0:T(8,128)}', space=vmem, size = 0x18000, scoped, tag = 'scratch operand']
  #allocation26 [shape = 's32[]', space=sflag, size = 0x4, offset = 0, fixed_abs, tag = 'sflag constant byte address 0x0 - dummy sync flag']
  #allocation27 [shape = 's32[]', space=sflag, size = 0x4, offset = 0, fixed_abs, tag = 'sflag constant byte address 0x0 - dummy sync flag']
  #allocation28 [shape = 'u32[]', space=smem, size = 0x4, offset = 0x44, fixed_abs, tag = 'smem constant byte address 0x44 - assertion arg 0']
  #allocation29 [shape = 'u32[]', space=smem, size = 0x4, offset = 0x48, fixed_abs, tag = 'smem constant byte address 0x48 - assertion arg 1']
  %s0 = inlined_call_operand.hbm [shape: f32[2,192,128], index: 0, kind: input, shape index: {}]
  %s1 = inlined_call_operand.hbm [shape: f32[384,128], index: 1, kind: input, shape index: {}]
  %s2 = inlined_call_operand.hbm [shape: f32[896,128], index: 2, kind: input, shape index: {}]
  %s3 = inlined_call_operand.hbm [shape: f32[1920,128], index: 3, kind: input, shape index: {}]
  %s4 = inlined_call_operand.vmem [shape: f32[1,384], index: 4, kind: input, shape index: {}]
  %s5 = inlined_call_operand.hbm [shape: f32[128,768], index: 5, kind: input, shape index: {}]
  %s6 = inlined_call_operand.vmem [shape: f32[1,768], index: 6, kind: input, shape index: {}]
  %s7 = inlined_call_operand.hbm [shape: f32[64,384], index: 7, kind: input, shape index: {}]
  %s8 = inlined_call_operand.hbm [shape: f32[64,384], index: 8, kind: input, shape index: {}]
  %s9 = inlined_call_operand.hbm [shape: f32[64,384], index: 9, kind: input, shape index: {}]
  %s10 = inlined_call_operand.hbm [shape: f32[64,384], index: 10, kind: input, shape index: {}]
  %s11 = inlined_call_operand.hbm [shape: f32[64,384], index: 11, kind: input, shape index: {}]
  %s12 = inlined_call_operand.hbm [shape: f32[64,384], index: 12, kind: input, shape index: {}]
  %s13 = inlined_call_operand.vmem [shape: f32[1,384], index: 13, kind: input, shape index: {}]
  %s14 = inlined_call_operand.vmem [shape: f32[1,384], index: 14, kind: input, shape index: {}]
  %s15 = inlined_call_operand.vmem [shape: f32[1,384], index: 15, kind: input, shape index: {}]
  %s16 = inlined_call_operand.hbm [shape: f32[2,128,384], index: 16, kind: output, shape index: {}]
  %s17 = sld [smem:[#allocation0]]
  $region148: #{tpu_custom_call.1} parent=0
    _
  %s19 = ssub.s32 1, %s17
  %s20 = scalar_select 0, %s19, %s17
  $region1: #{tpu_custom_call.1} parent=0
    #allocation8 [shape = 'u8[196608]{0}', space=vmem, size = 0x30000, scoped, tag = 'input window, operand 1, single buffered']
    #allocation9 [shape = 's32[2]{0}', space=sflag, size = 0x8, scoped, tag = 'scoped memory for tpu_custom_call.1']
    #allocation10 [shape = 's32[2]{0}', space=sflag, size = 0x8, scoped, tag = 'scoped memory for tpu_custom_call.1']
    #allocation11 [shape = 'u8[458752]{0}', space=vmem, size = 0x70000, scoped, tag = 'input window, operand 2, single buffered']
    #allocation12 [shape = 's32[1]{0}', space=sflag, size = 0x4, scoped, tag = 'scoped memory for tpu_custom_call.1']
    #allocation13 [shape = 'u8[983040]{0}', space=vmem, size = 0xf0000, scoped, tag = 'input window, operand 3, single buffered']
    #allocation14 [shape = 'u8[393216]{0}', space=vmem, size = 0x60000, scoped, tag = 'input window, operand 5, single buffered']
    #allocation15 [shape = 's32[1]{0}', space=sflag, size = 0x4, scoped, tag = 'scoped memory for tpu_custom_call.1']
    #allocation16 [shape = 'u8[98304]{0}', space=vmem, size = 0x18000, scoped, tag = 'input window, operand 7, single buffered']
    #allocation17 [shape = 'u8[98304]{0}', space=vmem, size = 0x18000, scoped, tag = 'input window, operand 8, single buffered']
    #allocation18 [shape = 's32[1]{0}', space=sflag, size = 0x4, scoped, tag = 'scoped memory for tpu_custom_call.1']
    #allocation19 [shape = 'u8[98304]{0}', space=vmem, size = 0x18000, scoped, tag = 'input window, operand 9, single buffered']
    #allocation20 [shape = 'u8[98304]{0}', space=vmem, size = 0x18000, scoped, tag = 'input window, operand 10, single buffered']
    #allocation21 [shape = 's32[1]{0}', space=sflag, size = 0x4, scoped, tag = 'scoped memory for tpu_custom_call.1']
    #allocation22 [shape = 'u8[98304]{0}', space=vmem, size = 0x18000, scoped, tag = 'input window, operand 11, single buffered']
    #allocation23 [shape = 'u8[98304]{0}', space=vmem, size = 0x18000, scoped, tag = 'input window, operand 12, single buffered']
    #allocation24 [shape = 's32[1]{0}', space=sflag, size = 0x4, scoped, tag = 'scoped memory for tpu_custom_call.1']
    #allocation25 [shape = 'u8[196608]{0}', space=vmem, size = 0x30000, scoped, tag = 'output window, operand 0']
    %21 = vsyncpa [#allocation9], 0
    %22 = vsyncpa [#allocation12], 0
    %23 = vsyncpa [#allocation15], 0
    %24 = vsyncpa [#allocation18], 0
    %25 = vsyncpa [#allocation21], 0
    %26 = vsyncpa [#allocation24], 0
    %27 = vsyncpa [#allocation10], 0
    %s28 = scalar_lea.sflag [#allocation10], 1
    %29 = vsyncpa %s28, 0
    loop: start=0, step=1, limit=6
    $region2: #{tpu_custom_call.1} parent=1 // loop_pre_header
      _
    $region3: #{tpu_custom_call.1} parent=1 // loop_header
      %s31 = sphi 0, %s35
      %p32 = scmp.ge.s32.totalorder %s31, 6
      %s38 = sphi 0, %s50
      %s39 = sphi 0, %s46
      %s40 = sphi 0, %s38
      %s41 = sphi 0, %s39
      %s42 = sphi 0, %s40
      %s43 = sphi 0, %s41
      %s51 = sphi 0, %s51
      %s53 = sphi 0, %s51
      %s54 = sphi 0, %s53
      %s68 = sphi 0, %s54
      %s72 = sphi 0, %s72
      %s74 = sphi 0, %s72
      %s75 = sphi 0, %s74
      %s89 = sphi 0, %s75
      %s93 = sphi 0, %s93
      %s95 = sphi 0, %s93
      %s96 = sphi 0, %s95
      %s110 = sphi 0, %s96
      %s114 = sphi 0, %s114
      %s116 = sphi 0, %s114
      %s117 = sphi 0, %s116
      %s131 = sphi 0, %s117
      %s135 = sphi 0, %s135
      %s137 = sphi 0, %s135
      %s138 = sphi 0, %s137
      %s152 = sphi 0, %s138
      %s156 = sphi 0, %s156
      %s158 = sphi 0, %s156
      %s159 = sphi 0, %s158
      %s173 = sphi 0, %s159
      %s177 = sphi 0, %s177
      %s179 = sphi 0, %s177
      %s180 = sphi 0, %s179
      %s194 = sphi 0, %s180
      %s198 = sphi 0, %s198
      %s200 = sphi 0, %s198
      %s201 = sphi 0, %s200
      %s215 = sphi 0, %s201
      %s219 = sphi 0, %s219
      %s221 = sphi 0, %s219
      %s222 = sphi 0, %s221
      %s236 = sphi 0, %s222
      %s240 = sphi 0, %s240
      %s242 = sphi 0, %s240
      %s243 = sphi 0, %s242
      %s257 = sphi 0, %s243
      %s261 = sphi 0, %s261
      %s263 = sphi 0, %s261
      %s264 = sphi 0, %s263
      %s278 = sphi 0, %s264
      %s282 = sphi 0, %s282
      %s284 = sphi 0, %s282
      %s285 = sphi 0, %s284
      %s299 = sphi 0, %s285
      %s303 = sphi 0, %s303
      %s305 = sphi 0, %s303
      %s306 = sphi 0, %s305
      %s320 = sphi 0, %s306
      %s324 = sphi 0, %s324
      %s326 = sphi 0, %s324
      %s327 = sphi 0, %s326
      %s341 = sphi 0, %s327
      %s345 = sphi 0, %s345
      %s347 = sphi 0, %s345
      %s348 = sphi 0, %s347
      %s362 = sphi 0, %s348
      %s370 = sphi 0, %s372
      %s373 = sphi 0, %s370
      %s374 = sphi 0, %s373
      %s390 = sphi 0, %s374
    $region4: #{tpu_custom_call.1} parent=1 // loop_header_branch
      %34 = sbr.rel (%p32) target = $region8
    $region5: #{tpu_custom_call.1} parent=1 // loop_body
      %s36 = ssub.s32 %s31, 1
      %s37 = ssub.s32 %s31, 2
      %s44 = sadd.s32 1, %s39
      %p45 = scmp.ge.s32.totalorder %s44, 2
      %s46 = scalar_select %p45, 0, %s44
      %s47 = sadd.s32 1, %s38
      %s48 = scalar_select %p45, %s47, %s38
      %p49 = scmp.ge.s32.totalorder %s48, 2
      %s50 = scalar_select %p49, 0, %s48
      %s52 = sadd.s32 %s51, 1
      %p55 = scmp.eq.s32.totalorder %s31, 3
      %p56 = scmp.ne.s32.totalorder %s51, %s53
      %p57 = scmp.eq.s32.totalorder %s31, 0
      %p58 = por %p56, %p57
      %p59 = scmp.ne.s32.totalorder %s51, %s53
      %p60 = scmp.eq.s32.totalorder %s36, 3
      %p61 = por %p59, %p60
      %p62 = scmp.ne.s32.totalorder %s53, %s54
      %p63 = scmp.eq.s32.totalorder %s36, 0
      %p64 = por %p62, %p63
      %p65 = scmp.ne.s32.totalorder %s53, %s54
      %p66 = scmp.eq.s32.totalorder %s37, 3
      %p67 = por %p65, %p66
      %p69 = scmp.ne.s32.totalorder %s54, %s68
      %p70 = scmp.eq.s32.totalorder %s37, 0
      %p71 = por %p69, %p70
      %s73 = sadd.s32 %s72, 1
      %p76 = scmp.eq.s32.totalorder %s31, 3
      %p77 = scmp.ne.s32.totalorder %s72, %s74
      %p78 = scmp.eq.s32.totalorder %s31, 0
      %p79 = por %p77, %p78
      %p80 = scmp.ne.s32.totalorder %s72, %s74
      %p81 = scmp.eq.s32.totalorder %s36, 3
      %p82 = por %p80, %p81
      %p83 = scmp.ne.s32.totalorder %s74, %s75
      %p84 = scmp.eq.s32.totalorder %s36, 0
      %p85 = por %p83, %p84
      %p86 = scmp.ne.s32.totalorder %s74, %s75
      %p87 = scmp.eq.s32.totalorder %s37, 3
      %p88 = por %p86, %p87
      %p90 = scmp.ne.s32.totalorder %s75, %s89
      %p91 = scmp.eq.s32.totalorder %s37, 0
      %p92 = por %p90, %p91
      %s94 = sadd.s32 %s93, 1
      %p97 = scmp.eq.s32.totalorder %s31, 3
      %p98 = scmp.ne.s32.totalorder %s93, %s95
      %p99 = scmp.eq.s32.totalorder %s31, 0
      %p100 = por %p98, %p99
      %p101 = scmp.ne.s32.totalorder %s93, %s95
      %p102 = scmp.eq.s32.totalorder %s36, 3
      %p103 = por %p101, %p102
      %p104 = scmp.ne.s32.totalorder %s95, %s96
      %p105 = scmp.eq.s32.totalorder %s36, 0
      %p106 = por %p104, %p105
      %p107 = scmp.ne.s32.totalorder %s95, %s96
      %p108 = scmp.eq.s32.totalorder %s37, 3
      %p109 = por %p107, %p108
      %p111 = scmp.ne.s32.totalorder %s96, %s110
      %p112 = scmp.eq.s32.totalorder %s37, 0
      %p113 = por %p111, %p112
      %s115 = sadd.s32 %s114, 1
      %p118 = scmp.eq.s32.totalorder %s31, 3
      %p119 = scmp.ne.s32.totalorder %s114, %s116
      %p120 = scmp.eq.s32.totalorder %s31, 0
      %p121 = por %p119, %p120
      %p122 = scmp.ne.s32.totalorder %s114, %s116
      %p123 = scmp.eq.s32.totalorder %s36, 3
      %p124 = por %p122, %p123
      %p125 = scmp.ne.s32.totalorder %s116, %s117
      %p126 = scmp.eq.s32.totalorder %s36, 0
      %p127 = por %p125, %p126
      %p128 = scmp.ne.s32.totalorder %s116, %s117
      %p129 = scmp.eq.s32.totalorder %s37, 3
      %p130 = por %p128, %p129
      %p132 = scmp.ne.s32.totalorder %s117, %s131
      %p133 = scmp.eq.s32.totalorder %s37, 0
      %p134 = por %p132, %p133
      %s136 = sadd.s32 %s135, 1
      %p139 = scmp.eq.s32.totalorder %s31, 3
      %p140 = scmp.ne.s32.totalorder %s135, %s137
      %p141 = scmp.eq.s32.totalorder %s31, 0
      %p142 = por %p140, %p141
      %p143 = scmp.ne.s32.totalorder %s135, %s137
      %p144 = scmp.eq.s32.totalorder %s36, 3
      %p145 = por %p143, %p144
      %p146 = scmp.ne.s32.totalorder %s137, %s138
      %p147 = scmp.eq.s32.totalorder %s36, 0
      %p148 = por %p146, %p147
      %p149 = scmp.ne.s32.totalorder %s137, %s138
      %p150 = scmp.eq.s32.totalorder %s37, 3
      %p151 = por %p149, %p150
      %p153 = scmp.ne.s32.totalorder %s138, %s152
      %p154 = scmp.eq.s32.totalorder %s37, 0
      %p155 = por %p153, %p154
      %s157 = sadd.s32 %s156, 1
      %p160 = scmp.eq.s32.totalorder %s31, 3
      %p161 = scmp.ne.s32.totalorder %s156, %s158
      %p162 = scmp.eq.s32.totalorder %s31, 0
      %p163 = por %p161, %p162
      %p164 = scmp.ne.s32.totalorder %s156, %s158
      %p165 = scmp.eq.s32.totalorder %s36, 3
      %p166 = por %p164, %p165
      %p167 = scmp.ne.s32.totalorder %s158, %s159
      %p168 = scmp.eq.s32.totalorder %s36, 0
      %p169 = por %p167, %p168
      %p170 = scmp.ne.s32.totalorder %s158, %s159
      %p171 = scmp.eq.s32.totalorder %s37, 3
      %p172 = por %p170, %p171
      %p174 = scmp.ne.s32.totalorder %s159, %s173
      %p175 = scmp.eq.s32.totalorder %s37, 0
      %p176 = por %p174, %p175
      %s178 = sadd.s32 %s177, 1
      %p181 = scmp.eq.s32.totalorder %s31, 3
      %p182 = scmp.ne.s32.totalorder %s177, %s179
      %p183 = scmp.eq.s32.totalorder %s31, 0
      %p184 = por %p182, %p183
      %p185 = scmp.ne.s32.totalorder %s177, %s179
      %p186 = scmp.eq.s32.totalorder %s36, 3
      %p187 = por %p185, %p186
      %p188 = scmp.ne.s32.totalorder %s179, %s180
      %p189 = scmp.eq.s32.totalorder %s36, 0
      %p190 = por %p188, %p189
      %p191 = scmp.ne.s32.totalorder %s179, %s180
      %p192 = scmp.eq.s32.totalorder %s37, 3
      %p193 = por %p191, %p192
      %p195 = scmp.ne.s32.totalorder %s180, %s194
      %p196 = scmp.eq.s32.totalorder %s37, 0
      %p197 = por %p195, %p196
      %s199 = sadd.s32 %s198, 1
      %p202 = scmp.eq.s32.totalorder %s31, 3
      %p203 = scmp.ne.s32.totalorder %s198, %s200
      %p204 = scmp.eq.s32.totalorder %s31, 0
      %p205 = por %p203, %p204
      %p206 = scmp.ne.s32.totalorder %s198, %s200
      %p207 = scmp.eq.s32.totalorder %s36, 3
      %p208 = por %p206, %p207
      %p209 = scmp.ne.s32.totalorder %s200, %s201
      %p210 = scmp.eq.s32.totalorder %s36, 0
      %p211 = por %p209, %p210
      %p212 = scmp.ne.s32.totalorder %s200, %s201
      %p213 = scmp.eq.s32.totalorder %s37, 3
      %p214 = por %p212, %p213
      %p216 = scmp.ne.s32.totalorder %s201, %s215
      %p217 = scmp.eq.s32.totalorder %s37, 0
      %p218 = por %p216, %p217
      %s220 = sadd.s32 %s219, 1
      %p223 = scmp.eq.s32.totalorder %s31, 3
      %p224 = scmp.ne.s32.totalorder %s219, %s221
      %p225 = scmp.eq.s32.totalorder %s31, 0
      %p226 = por %p224, %p225
      %p227 = scmp.ne.s32.totalorder %s219, %s221
      %p228 = scmp.eq.s32.totalorder %s36, 3
      %p229 = por %p227, %p228
      %p230 = scmp.ne.s32.totalorder %s221, %s222
      %p231 = scmp.eq.s32.totalorder %s36, 0
      %p232 = por %p230, %p231
      %p233 = scmp.ne.s32.totalorder %s221, %s222
      %p234 = scmp.eq.s32.totalorder %s37, 3
      %p235 = por %p233, %p234
      %p237 = scmp.ne.s32.totalorder %s222, %s236
      %p238 = scmp.eq.s32.totalorder %s37, 0
      %p239 = por %p237, %p238
      %s241 = sadd.s32 %s240, 1
      %p244 = scmp.eq.s32.totalorder %s31, 3
      %p245 = scmp.ne.s32.totalorder %s240, %s242
      %p246 = scmp.eq.s32.totalorder %s31, 0
      %p247 = por %p245, %p246
      %p248 = scmp.ne.s32.totalorder %s240, %s242
      %p249 = scmp.eq.s32.totalorder %s36, 3
      %p250 = por %p248, %p249
      %p251 = scmp.ne.s32.totalorder %s242, %s243
      %p252 = scmp.eq.s32.totalorder %s36, 0
      %p253 = por %p251, %p252
      %p254 = scmp.ne.s32.totalorder %s242, %s243
      %p255 = scmp.eq.s32.totalorder %s37, 3
      %p256 = por %p254, %p255
      %p258 = scmp.ne.s32.totalorder %s243, %s257
      %p259 = scmp.eq.s32.totalorder %s37, 0
      %p260 = por %p258, %p259
      %s262 = sadd.s32 %s261, 1
      %p265 = scmp.eq.s32.totalorder %s31, 3
      %p266 = scmp.ne.s32.totalorder %s261, %s263
      %p267 = scmp.eq.s32.totalorder %s31, 0
      %p268 = por %p266, %p267
      %p269 = scmp.ne.s32.totalorder %s261, %s263
      %p270 = scmp.eq.s32.totalorder %s36, 3
      %p271 = por %p269, %p270
      %p272 = scmp.ne.s32.totalorder %s263, %s264
      %p273 = scmp.eq.s32.totalorder %s36, 0
      %p274 = por %p272, %p273
      %p275 = scmp.ne.s32.totalorder %s263, %s264
      %p276 = scmp.eq.s32.totalorder %s37, 3
      %p277 = por %p275, %p276
      %p279 = scmp.ne.s32.totalorder %s264, %s278
      %p280 = scmp.eq.s32.totalorder %s37, 0
      %p281 = por %p279, %p280
      %s283 = sadd.s32 %s282, 1
      %p286 = scmp.eq.s32.totalorder %s31, 3
      %p287 = scmp.ne.s32.totalorder %s282, %s284
      %p288 = scmp.eq.s32.totalorder %s31, 0
      %p289 = por %p287, %p288
      %p290 = scmp.ne.s32.totalorder %s282, %s284
      %p291 = scmp.eq.s32.totalorder %s36, 3
      %p292 = por %p290, %p291
      %p293 = scmp.ne.s32.totalorder %s284, %s285
      %p294 = scmp.eq.s32.totalorder %s36, 0
      %p295 = por %p293, %p294
      %p296 = scmp.ne.s32.totalorder %s284, %s285
      %p297 = scmp.eq.s32.totalorder %s37, 3
      %p298 = por %p296, %p297
      %p300 = scmp.ne.s32.totalorder %s285, %s299
      %p301 = scmp.eq.s32.totalorder %s37, 0
      %p302 = por %p300, %p301
      %s304 = sadd.s32 %s303, 1
      %p307 = scmp.eq.s32.totalorder %s31, 3
      %p308 = scmp.ne.s32.totalorder %s303, %s305
      %p309 = scmp.eq.s32.totalorder %s31, 0
      %p310 = por %p308, %p309
      %p311 = scmp.ne.s32.totalorder %s303, %s305
      %p312 = scmp.eq.s32.totalorder %s36, 3
      %p313 = por %p311, %p312
      %p314 = scmp.ne.s32.totalorder %s305, %s306
      %p315 = scmp.eq.s32.totalorder %s36, 0
      %p316 = por %p314, %p315
      %p317 = scmp.ne.s32.totalorder %s305, %s306
      %p318 = scmp.eq.s32.totalorder %s37, 3
      %p319 = por %p317, %p318
      %p321 = scmp.ne.s32.totalorder %s306, %s320
      %p322 = scmp.eq.s32.totalorder %s37, 0
      %p323 = por %p321, %p322
      %s325 = sadd.s32 %s324, 1
      %p328 = scmp.eq.s32.totalorder %s31, 3
      %p329 = scmp.ne.s32.totalorder %s324, %s326
      %p330 = scmp.eq.s32.totalorder %s31, 0
      %p331 = por %p329, %p330
      %p332 = scmp.ne.s32.totalorder %s324, %s326
      %p333 = scmp.eq.s32.totalorder %s36, 3
      %p334 = por %p332, %p333
      %p335 = scmp.ne.s32.totalorder %s326, %s327
      %p336 = scmp.eq.s32.totalorder %s36, 0
      %p337 = por %p335, %p336
      %p338 = scmp.ne.s32.totalorder %s326, %s327
      %p339 = scmp.eq.s32.totalorder %s37, 3
      %p340 = por %p338, %p339
      %p342 = scmp.ne.s32.totalorder %s327, %s341
      %p343 = scmp.eq.s32.totalorder %s37, 0
      %p344 = por %p342, %p343
      %s346 = sadd.s32 %s345, 1
      %p349 = scmp.eq.s32.totalorder %s31, 3
      %p350 = scmp.ne.s32.totalorder %s345, %s347
      %p351 = scmp.eq.s32.totalorder %s31, 0
      %p352 = por %p350, %p351
      %p353 = scmp.ne.s32.totalorder %s345, %s347
      %p354 = scmp.eq.s32.totalorder %s36, 3
      %p355 = por %p353, %p354
      %p356 = scmp.ne.s32.totalorder %s347, %s348
      %p357 = scmp.eq.s32.totalorder %s36, 0
      %p358 = por %p356, %p357
      %p359 = scmp.ne.s32.totalorder %s347, %s348
      %p360 = scmp.eq.s32.totalorder %s37, 3
      %p361 = por %p359, %p360
      %p363 = scmp.ne.s32.totalorder %s348, %s362
      %p364 = scmp.eq.s32.totalorder %s37, 0
      %p365 = por %p363, %p364
      %s366 = ssub.s32 %s38, %s50
      %s367 = ssub.s32 %s39, %s46
      %s368 = sor.u32 %s366, %s367
      %p369 = scmp.eq.s32.totalorder %s368, 0
      %s371 = sadd.s32 %s370, 1
      %s372 = scalar_select %p369, %s370, %s371
      %p375 = pneg %p369
      %p376 = scmp.eq.s32.totalorder %s31, 3
      %p377 = por %p375, %p376
      %p378 = scmp.ne.s32.totalorder %s370, %s373
      %p379 = scmp.eq.s32.totalorder %s31, 0
      %p380 = por %p378, %p379
      %p381 = scmp.ne.s32.totalorder %s370, %s373
      %p382 = scmp.eq.s32.totalorder %s36, 3
      %p383 = por %p381, %p382
      %p384 = scmp.ne.s32.totalorder %s373, %s374
      %p385 = scmp.eq.s32.totalorder %s36, 0
      %p386 = por %p384, %p385
      %p387 = scmp.ne.s32.totalorder %s373, %s374
      %p388 = scmp.eq.s32.totalorder %s37, 3
      %p389 = por %p387, %p388
      %p391 = scmp.ne.s32.totalorder %s374, %s390
      %p392 = scmp.eq.s32.totalorder %s37, 0
      %p393 = por %p391, %p392
      %p394 = scmp.le.s32.totalorder 1, %s31
      %p395 = scmp.lt.s32.totalorder %s31, 5
      %p396 = pnand %p394, %p395
      %p397 = pneg %p396
      // Predicated region
      $region9: #{tpu_custom_call.1} parent=5 // pred_check
        _
      $region10: #{tpu_custom_call.1} parent=5 // pred_check_branch
        %399 = sbr.rel (%p396) target = $region12
      $region11: #{tpu_custom_call.1} parent=5 // pred_region
        %s400 = ssub.s32 %s31, 1
        // Predicated region
        $region13: #{tpu_custom_call.1} parent=11 // pred_check
          %p401 = pneg %p64
        $region14: #{tpu_custom_call.1} parent=11 // pred_check_branch
          %403 = sbr.rel (%p401) target = $region16
        $region15: #{tpu_custom_call.1} parent=11 // pred_region
          %s405 = ssub.s32 6144, 6144
          %406 = vsyncadd [#allocation9], %s405
          %s407 = sshll.u32 [#allocation8], 4
          %s408 = int_to_ptr.vmem [resolvable:$true] %s407
          %413 = dma.hbm_to_vmem [thread:$0]  %s1, 6144, %s408, [#allocation9], 128, 128, 8
        $region16: #{tpu_custom_call.1} parent=11 // pred_fallthru
          _
        // Predicated region
        $region17: #{tpu_custom_call.1} parent=11 // pred_check
          %p414 = pneg %p85
        $region18: #{tpu_custom_call.1} parent=11 // pred_check_branch
          %416 = sbr.rel (%p414) target = $region20
        $region19: #{tpu_custom_call.1} parent=11 // pred_region
          %s418 = ssub.s32 14336, 14336
          %419 = vsyncadd [#allocation12], %s418
          %s420 = sshll.u32 [#allocation11], 4
          %s421 = int_to_ptr.vmem [resolvable:$true] %s420
          %426 = dma.hbm_to_vmem [thread:$0]  %s2, 14336, %s421, [#allocation12], 128, 128, 8
        $region20: #{tpu_custom_call.1} parent=11 // pred_fallthru
          _
        // Predicated region
        $region21: #{tpu_custom_call.1} parent=11 // pred_check
          %p427 = pneg %p106
        $region22: #{tpu_custom_call.1} parent=11 // pred_check_branch
          %429 = sbr.rel (%p427) target = $region24
        $region23: #{tpu_custom_call.1} parent=11 // pred_region
          %s431 = ssub.s32 30720, 30720
          %432 = vsyncadd [#allocation12], %s431
          %s433 = sshll.u32 [#allocation13], 4
          %s434 = int_to_ptr.vmem [resolvable:$true] %s433
          %439 = dma.hbm_to_vmem [thread:$0]  %s3, 30720, %s434, [#allocation12], 128, 128, 8
        $region24: #{tpu_custom_call.1} parent=11 // pred_fallthru
          _
        // Predicated region
        $region25: #{tpu_custom_call.1} parent=11 // pred_check
          %p440 = pneg %p127
        $region26: #{tpu_custom_call.1} parent=11 // pred_check_branch
          %442 = sbr.rel (%p440) target = $region28
        $region27: #{tpu_custom_call.1} parent=11 // pred_region
          _
        $region28: #{tpu_custom_call.1} parent=11 // pred_fallthru
          _
        // Predicated region
        $region29: #{tpu_custom_call.1} parent=11 // pred_check
          %p443 = pneg %p148
        $region30: #{tpu_custom_call.1} parent=11 // pred_check_branch
          %445 = sbr.rel (%p443) target = $region32
        $region31: #{tpu_custom_call.1} parent=11 // pred_region
          %s447 = ssub.s32 12288, 12288
          %448 = vsyncadd [#allocation15], %s447
          %s449 = sshll.u32 [#allocation14], 4
          %s450 = int_to_ptr.vmem [resolvable:$true] %s449
          %455 = dma.hbm_to_vmem [thread:$0]  %s5, 12288, %s450, [#allocation15], 768, 768, 48
        $region32: #{tpu_custom_call.1} parent=11 // pred_fallthru
          _
        // Predicated region
        $region33: #{tpu_custom_call.1} parent=11 // pred_check
          %p456 = pneg %p169
        $region34: #{tpu_custom_call.1} parent=11 // pred_check_branch
          %458 = sbr.rel (%p456) target = $region36
        $region35: #{tpu_custom_call.1} parent=11 // pred_region
          _
        $region36: #{tpu_custom_call.1} parent=11 // pred_fallthru
          _
        // Predicated region
        $region37: #{tpu_custom_call.1} parent=11 // pred_check
          %p459 = pneg %p190
        $region38: #{tpu_custom_call.1} parent=11 // pred_check_branch
          %461 = sbr.rel (%p459) target = $region40
        $region39: #{tpu_custom_call.1} parent=11 // pred_region
          %s463 = ssub.s32 3072, 3072
          %464 = vsyncadd [#allocation15], %s463
          %s465 = sshll.u32 [#allocation16], 4
          %s466 = int_to_ptr.vmem [resolvable:$true] %s465
          %471 = dma.hbm_to_vmem [thread:$0]  %s7, 3072, %s466, [#allocation15], 384, 384, 24
        $region40: #{tpu_custom_call.1} parent=11 // pred_fallthru
          _
        // Predicated region
        $region41: #{tpu_custom_call.1} parent=11 // pred_check
          %p472 = pneg %p211
        $region42: #{tpu_custom_call.1} parent=11 // pred_check_branch
          %474 = sbr.rel (%p472) target = $region44
        $region43: #{tpu_custom_call.1} parent=11 // pred_region
          %s476 = ssub.s32 3072, 3072
          %477 = vsyncadd [#allocation18], %s476
          %s478 = sshll.u32 [#allocation17], 4
          %s479 = int_to_ptr.vmem [resolvable:$true] %s478
          %484 = dma.hbm_to_vmem [thread:$0]  %s8, 3072, %s479, [#allocation18], 384, 384, 24
        $region44: #{tpu_custom_call.1} parent=11 // pred_fallthru
          _
        // Predicated region
        $region45: #{tpu_custom_call.1} parent=11 // pred_check
          %p485 = pneg %p232
        $region46: #{tpu_custom_call.1} parent=11 // pred_check_branch
          %487 = sbr.rel (%p485) target = $region48
        $region47: #{tpu_custom_call.1} parent=11 // pred_region
          %s489 = ssub.s32 3072, 3072
          %490 = vsyncadd [#allocation18], %s489
          %s491 = sshll.u32 [#allocation19], 4
          %s492 = int_to_ptr.vmem [resolvable:$true] %s491
          %497 = dma.hbm_to_vmem [thread:$0]  %s9, 3072, %s492, [#allocation18], 384, 384, 24
        $region48: #{tpu_custom_call.1} parent=11 // pred_fallthru
          _
        // Predicated region
        $region49: #{tpu_custom_call.1} parent=11 // pred_check
          %p498 = pneg %p253
        $region50: #{tpu_custom_call.1} parent=11 // pred_check_branch
          %500 = sbr.rel (%p498) target = $region52
        $region51: #{tpu_custom_call.1} parent=11 // pred_region
          %s502 = ssub.s32 3072, 3072
          %503 = vsyncadd [#allocation21], %s502
          %s504 = sshll.u32 [#allocation20], 4
          %s505 = int_to_ptr.vmem [resolvable:$true] %s504
          %510 = dma.hbm_to_vmem [thread:$0]  %s10, 3072, %s505, [#allocation21], 384, 384, 24
        $region52: #{tpu_custom_call.1} parent=11 // pred_fallthru
          _
        // Predicated region
        $region53: #{tpu_custom_call.1} parent=11 // pred_check
          %p511 = pneg %p274
        $region54: #{tpu_custom_call.1} parent=11 // pred_check_branch
          %513 = sbr.rel (%p511) target = $region56
        $region55: #{tpu_custom_call.1} parent=11 // pred_region
          %s515 = ssub.s32 3072, 3072
          %516 = vsyncadd [#allocation21], %s515
          %s517 = sshll.u32 [#allocation22], 4
          %s518 = int_to_ptr.vmem [resolvable:$true] %s517
          %523 = dma.hbm_to_vmem [thread:$0]  %s11, 3072, %s518, [#allocation21], 384, 384, 24
        $region56: #{tpu_custom_call.1} parent=11 // pred_fallthru
          _
        // Predicated region
        $region57: #{tpu_custom_call.1} parent=11 // pred_check
          %p524 = pneg %p295
        $region58: #{tpu_custom_call.1} parent=11 // pred_check_branch
          %526 = sbr.rel (%p524) target = $region60
        $region59: #{tpu_custom_call.1} parent=11 // pred_region
          %s528 = ssub.s32 3072, 3072
          %529 = vsyncadd [#allocation24], %s528
          %s530 = sshll.u32 [#allocation23], 4
          %s531 = int_to_ptr.vmem [resolvable:$true] %s530
          %536 = dma.hbm_to_vmem [thread:$0]  %s12, 3072, %s531, [#allocation24], 384, 384, 24
        $region60: #{tpu_custom_call.1} parent=11 // pred_fallthru
          _
        // Predicated region
        $region61: #{tpu_custom_call.1} parent=11 // pred_check
          %p537 = pneg %p316
        $region62: #{tpu_custom_call.1} parent=11 // pred_check_branch
          %539 = sbr.rel (%p537) target = $region64
        $region63: #{tpu_custom_call.1} parent=11 // pred_region
          _
        $region64: #{tpu_custom_call.1} parent=11 // pred_fallthru
          _
        // Predicated region
        $region65: #{tpu_custom_call.1} parent=11 // pred_check
          %p540 = pneg %p337
        $region66: #{tpu_custom_call.1} parent=11 // pred_check_branch
          %542 = sbr.rel (%p540) target = $region68
        $region67: #{tpu_custom_call.1} parent=11 // pred_region
          _
        $region68: #{tpu_custom_call.1} parent=11 // pred_fallthru
          _
        // Predicated region
        $region69: #{tpu_custom_call.1} parent=11 // pred_check
          %p543 = pneg %p358
        $region70: #{tpu_custom_call.1} parent=11 // pred_check_branch
          %545 = sbr.rel (%p543) target = $region72
        $region71: #{tpu_custom_call.1} parent=11 // pred_region
          _
        $region72: #{tpu_custom_call.1} parent=11 // pred_fallthru
          _
      $region12: #{tpu_custom_call.1} parent=5 // pred_fallthru
        _
      %p546 = scmp.lt.s32.totalorder %s31, 4
      // Predicated region
      $region73: #{tpu_custom_call.1} parent=5 // pred_check
        %p547 = pneg %p546
      $region74: #{tpu_custom_call.1} parent=5 // pred_check_branch
        %549 = sbr.rel (%p547) target = $region76
      $region75: #{tpu_custom_call.1} parent=5 // pred_region
        _
      $region76: #{tpu_custom_call.1} parent=5 // pred_fallthru
        _
      %p550 = scmp.le.s32.totalorder 1, %s31
      %p551 = scmp.lt.s32.totalorder %s31, 5
      %p552 = pnand %p550, %p551
      %p553 = pneg %p552
      // Predicated region
      $region77: #{tpu_custom_call.1} parent=5 // pred_check
        _
      $region78: #{tpu_custom_call.1} parent=5 // pred_check_branch
        %555 = sbr.rel (%p552) target = $region80
      $region79: #{tpu_custom_call.1} parent=5 // pred_region
        %s556 = ssub.s32 %s31, 1
        // Predicated region
        $region81: #{tpu_custom_call.1} parent=79 // pred_check
          %p557 = pneg %p64
        $region82: #{tpu_custom_call.1} parent=79 // pred_check_branch
          %559 = sbr.rel (%p557) target = $region84
        $region83: #{tpu_custom_call.1} parent=79 // pred_region
          %560 = dma.done [#allocation9], 6144
        $region84: #{tpu_custom_call.1} parent=79 // pred_fallthru
          _
        // Predicated region
        $region85: #{tpu_custom_call.1} parent=79 // pred_check
          %p561 = pneg %p85
        $region86: #{tpu_custom_call.1} parent=79 // pred_check_branch
          %563 = sbr.rel (%p561) target = $region88
        $region87: #{tpu_custom_call.1} parent=79 // pred_region
          %564 = dma.done [#allocation12], 14336
        $region88: #{tpu_custom_call.1} parent=79 // pred_fallthru
          _
        // Predicated region
        $region89: #{tpu_custom_call.1} parent=79 // pred_check
          %p565 = pneg %p106
        $region90: #{tpu_custom_call.1} parent=79 // pred_check_branch
          %567 = sbr.rel (%p565) target = $region92
        $region91: #{tpu_custom_call.1} parent=79 // pred_region
          %568 = dma.done [#allocation12], 30720
        $region92: #{tpu_custom_call.1} parent=79 // pred_fallthru
          _
        // Predicated region
        $region93: #{tpu_custom_call.1} parent=79 // pred_check
          %p569 = pneg %p148
        $region94: #{tpu_custom_call.1} parent=79 // pred_check_branch
          %571 = sbr.rel (%p569) target = $region96
        $region95: #{tpu_custom_call.1} parent=79 // pred_region
          %572 = dma.done [#allocation15], 12288
        $region96: #{tpu_custom_call.1} parent=79 // pred_fallthru
          _
        // Predicated region
        $region97: #{tpu_custom_call.1} parent=79 // pred_check
          %p573 = pneg %p190
        $region98: #{tpu_custom_call.1} parent=79 // pred_check_branch
          %575 = sbr.rel (%p573) target = $region100
        $region99: #{tpu_custom_call.1} parent=79 // pred_region
          %576 = dma.done [#allocation15], 3072
        $region100: #{tpu_custom_call.1} parent=79 // pred_fallthru
          _
        // Predicated region
        $region101: #{tpu_custom_call.1} parent=79 // pred_check
          %p577 = pneg %p211
        $region102: #{tpu_custom_call.1} parent=79 // pred_check_branch
          %579 = sbr.rel (%p577) target = $region104
        $region103: #{tpu_custom_call.1} parent=79 // pred_region
          %580 = dma.done [#allocation18], 3072
        $region104: #{tpu_custom_call.1} parent=79 // pred_fallthru
          _
        // Predicated region
        $region105: #{tpu_custom_call.1} parent=79 // pred_check
          %p581 = pneg %p232
        $region106: #{tpu_custom_call.1} parent=79 // pred_check_branch
          %583 = sbr.rel (%p581) target = $region108
        $region107: #{tpu_custom_call.1} parent=79 // pred_region
          %584 = dma.done [#allocation18], 3072
        $region108: #{tpu_custom_call.1} parent=79 // pred_fallthru
          _
        // Predicated region
        $region109: #{tpu_custom_call.1} parent=79 // pred_check
          %p585 = pneg %p253
        $region110: #{tpu_custom_call.1} parent=79 // pred_check_branch
          %587 = sbr.rel (%p585) target = $region112
        $region111: #{tpu_custom_call.1} parent=79 // pred_region
          %588 = dma.done [#allocation21], 3072
        $region112: #{tpu_custom_call.1} parent=79 // pred_fallthru
          _
        // Predicated region
        $region113: #{tpu_custom_call.1} parent=79 // pred_check
          %p589 = pneg %p274
        $region114: #{tpu_custom_call.1} parent=79 // pred_check_branch
          %591 = sbr.rel (%p589) target = $region116
        $region115: #{tpu_custom_call.1} parent=79 // pred_region
          %592 = dma.done [#allocation21], 3072
        $region116: #{tpu_custom_call.1} parent=79 // pred_fallthru
          _
        // Predicated region
        $region117: #{tpu_custom_call.1} parent=79 // pred_check
          %p593 = pneg %p295
        $region118: #{tpu_custom_call.1} parent=79 // pred_check_branch
          %595 = sbr.rel (%p593) target = $region120
        $region119: #{tpu_custom_call.1} parent=79 // pred_region
          %596 = dma.done [#allocation24], 3072
        $region120: #{tpu_custom_call.1} parent=79 // pred_fallthru
          _
        %p597 = pneg %p64
        %p598 = pneg %p61
        %p599 = pneg %p85
        %p600 = pneg %p82
        %p601 = pneg %p106
        %p602 = pneg %p103
        %p603 = pneg %p127
        %p604 = pneg %p124
        %p605 = pneg %p148
        %p606 = pneg %p145
        %p607 = pneg %p169
        %p608 = pneg %p166
        %p609 = pneg %p190
        %p610 = pneg %p187
        %p611 = pneg %p211
        %p612 = pneg %p208
        %p613 = pneg %p232
        %p614 = pneg %p229
        %p615 = pneg %p253
        %p616 = pneg %p250
        %p617 = pneg %p274
        %p618 = pneg %p271
        %p619 = pneg %p295
        %p620 = pneg %p292
        %p621 = pneg %p316
        %p622 = pneg %p313
        %p623 = pneg %p337
        %p624 = pneg %p334
        %p625 = pneg %p358
        %p626 = pneg %p355
        %p627 = pneg %p386
        %p628 = pneg %p383
        %s629 = sand.u32 %s373, 1
        %s630 = scalar_lea.sflag [#allocation10], %s629
        %s631 = sand.u32 %s373, 1
        %s632 = smul.addr %s631, 192
        %s633 = scalar_lea.vmem [#allocation25], %s632
        %s634 = smul.u32 8, %s41
        %s635 = smul.u32 %s41, 64
        %s636 = smul.u32 %s40, 192
        %s637 = sadd.s32 %s635, %s636
        %s638 = smul.addr %s637, 16
        %s639 = scalar_lea.hbm %s0, %s638
        // Predicated region
        $region121: #{tpu_custom_call.1} parent=79 // pred_check
          _
        $region122: #{tpu_custom_call.1} parent=79 // pred_check_branch
          %641 = sbr.rel target = $region124
        $region123: #{tpu_custom_call.1} parent=79 // pred_region
          %642 = sst [smem:[#allocation28]] [#allocation27]
          %643 = sst [smem:[#allocation29]] [#allocation26]
        $region124: #{tpu_custom_call.1} parent=79 // pred_fallthru
          _
        %645 = shalt.err (0)
        %s647 = sshll.u32 [#allocation2], 4
        %s648 = int_to_ptr.vmem [resolvable:$true] %s647
        %650 = dma.hbm_to_vmem [thread:$0]  %s639, 2048, %s648, [#allocation3]
        %p651 = scmp.eq.s32.totalorder %s41, 0
        // Predicated region
        $region125: #{tpu_custom_call.1} parent=79 // pred_check
          %p652 = pneg %p651
        $region126: #{tpu_custom_call.1} parent=79 // pred_check_branch
          %654 = sbr.rel (%p652) target = $region128
        $region127: #{tpu_custom_call.1} parent=79 // pred_region
          %655 = vst [vmem:[#allocation6] sm:$0xff] 0.0
          %656 = vst [vmem:[#allocation6 + $0x8] sm:$0xff] 0.0
          %657 = vst [vmem:[#allocation6 + $0x10] sm:$0xff] 0.0
          %658 = vst [vmem:[#allocation6 + $0x18] sm:$0xff] 0.0
          %659 = vst [vmem:[#allocation6 + $0x20] sm:$0xff] 0.0
          %660 = vst [vmem:[#allocation6 + $0x28] sm:$0xff] 0.0
          %661 = vst [vmem:[#allocation6 + $0x30] sm:$0xff] 0.0
          %662 = vst [vmem:[#allocation6 + $0x38] sm:$0xff] 0.0
          %663 = vst [vmem:[#allocation6 + $0x40] sm:$0xff] 0.0
          %664 = vst [vmem:[#allocation6 + $0x48] sm:$0xff] 0.0
          %665 = vst [vmem:[#allocation6 + $0x50] sm:$0xff] 0.0
          %666 = vst [vmem:[#allocation6 + $0x58] sm:$0xff] 0.0
          %667 = vst [vmem:[#allocation6 + $0x60] sm:$0xff] 0.0
          %668 = vst [vmem:[#allocation6 + $0x68] sm:$0xff] 0.0
          %669 = vst [vmem:[#allocation6 + $0x70] sm:$0xff] 0.0
          %670 = vst [vmem:[#allocation6 + $0x78] sm:$0xff] 0.0
          %671 = vst [vmem:[#allocation6 + $0x80] sm:$0xff] 0.0
          %672 = vst [vmem:[#allocation6 + $0x88] sm:$0xff] 0.0
          %673 = vst [vmem:[#allocation6 + $0x90] sm:$0xff] 0.0
          %674 = vst [vmem:[#allocation6 + $0x98] sm:$0xff] 0.0
          %675 = vst [vmem:[#allocation6 + $0xa0] sm:$0xff] 0.0
          %676 = vst [vmem:[#allocation6 + $0xa8] sm:$0xff] 0.0
          %677 = vst [vmem:[#allocation6 + $0xb0] sm:$0xff] 0.0
          %678 = vst [vmem:[#allocation6 + $0xb8] sm:$0xff] 0.0
          %679 = vst [vmem:[#allocation7] sm:$0xff] 0.0
          %680 = vst [vmem:[#allocation7 + $0x8] sm:$0xff] 0.0
          %681 = vst [vmem:[#allocation7 + $0x10] sm:$0xff] 0.0
          %682 = vst [vmem:[#allocation7 + $0x18] sm:$0xff] 0.0
          %683 = vst [vmem:[#allocation7 + $0x20] sm:$0xff] 0.0
          %684 = vst [vmem:[#allocation7 + $0x28] sm:$0xff] 0.0
          %685 = vst [vmem:[#allocation7 + $0x30] sm:$0xff] 0.0
          %686 = vst [vmem:[#allocation7 + $0x38] sm:$0xff] 0.0
          %687 = vst [vmem:[#allocation7 + $0x40] sm:$0xff] 0.0
          %688 = vst [vmem:[#allocation7 + $0x48] sm:$0xff] 0.0
          %689 = vst [vmem:[#allocation7 + $0x50] sm:$0xff] 0.0
          %690 = vst [vmem:[#allocation7 + $0x58] sm:$0xff] 0.0
          %691 = vst [vmem:[#allocation7 + $0x60] sm:$0xff] 0.0
          %692 = vst [vmem:[#allocation7 + $0x68] sm:$0xff] 0.0
          %693 = vst [vmem:[#allocation7 + $0x70] sm:$0xff] 0.0
          %694 = vst [vmem:[#allocation7 + $0x78] sm:$0xff] 0.0
          %695 = vst [vmem:[#allocation7 + $0x80] sm:$0xff] 0.0
          %696 = vst [vmem:[#allocation7 + $0x88] sm:$0xff] 0.0
          %697 = vst [vmem:[#allocation7 + $0x90] sm:$0xff] 0.0
          %698 = vst [vmem:[#allocation7 + $0x98] sm:$0xff] 0.0
          %699 = vst [vmem:[#allocation7 + $0xa0] sm:$0xff] 0.0
          %700 = vst [vmem:[#allocation7 + $0xa8] sm:$0xff] 0.0
          %701 = vst [vmem:[#allocation7 + $0xb0] sm:$0xff] 0.0
          %702 = vst [vmem:[#allocation7 + $0xb8] sm:$0xff] 0.0
        $region128: #{tpu_custom_call.1} parent=79 // pred_fallthru
          _
        %s703 = smul.u32 128, 1
        %s704 = sshll.u32 %s703, 4
        %705 = dma.done [#allocation3], %s704
        %v706 = vld [vmem:[#allocation2 + $0x20] sm:$0xff]
        %v707 = vld [vmem:[#allocation2 + $0x28] sm:$0xff]
        %v708 = vld [vmem:[#allocation2 + $0x30] sm:$0xff]
        %v709 = vld [vmem:[#allocation2 + $0x38] sm:$0xff]
        %v710 = vld [vmem:[#allocation2 + $0x40] sm:$0xff]
        %v711 = vld [vmem:[#allocation2 + $0x48] sm:$0xff]
        %v712 = vld [vmem:[#allocation2 + $0x50] sm:$0xff]
        %v713 = vld [vmem:[#allocation2 + $0x58] sm:$0xff]
        %v714 = vld [vmem:[#allocation14] sm:$0xff]
        %v715 = vld [vmem:[#allocation14 + $0x8] sm:$0xff]
        %v716 = vld [vmem:[#allocation14 + $0x10] sm:$0xff]
        %v717 = vld [vmem:[#allocation14 + $0x18] sm:$0xff]
        %v718 = vld [vmem:[#allocation14 + $0x20] sm:$0xff]
        %v719 = vld [vmem:[#allocation14 + $0x28] sm:$0xff]
        %v720 = vld [vmem:[#allocation14 + $0x30] sm:$0xff]
        %v721 = vld [vmem:[#allocation14 + $0x38] sm:$0xff]
        %v722 = vld [vmem:[#allocation14 + $0x40] sm:$0xff]
        %v723 = vld [vmem:[#allocation14 + $0x48] sm:$0xff]
        %v724 = vld [vmem:[#allocation14 + $0x50] sm:$0xff]
        %v725 = vld [vmem:[#allocation14 + $0x58] sm:$0xff]
        %v726 = vld [vmem:[#allocation14 + $0x60] sm:$0xff]
        %v727 = vld [vmem:[#allocation14 + $0x68] sm:$0xff]
        %v728 = vld [vmem:[#allocation14 + $0x70] sm:$0xff]
        %v729 = vld [vmem:[#allocation14 + $0x78] sm:$0xff]
        %v730 = vld [vmem:[#allocation14 + $0x80] sm:$0xff]
        %v731 = vld [vmem:[#allocation14 + $0x88] sm:$0xff]
        %v732 = vld [vmem:[#allocation14 + $0x90] sm:$0xff]
        %v733 = vld [vmem:[#allocation14 + $0x98] sm:$0xff]
        %v734 = vld [vmem:[#allocation14 + $0xa0] sm:$0xff]
        %v735 = vld [vmem:[#allocation14 + $0xa8] sm:$0xff]
        %v736 = vld [vmem:[#allocation14 + $0xb0] sm:$0xff]
        %v737 = vld [vmem:[#allocation14 + $0xb8] sm:$0xff]
        %v738 = vld [vmem:[#allocation14 + $0xc0] sm:$0xff]
        %v739 = vld [vmem:[#allocation14 + $0xc8] sm:$0xff]
        %v740 = vld [vmem:[#allocation14 + $0xd0] sm:$0xff]
        %v741 = vld [vmem:[#allocation14 + $0xd8] sm:$0xff]
        %v742 = vld [vmem:[#allocation14 + $0xe0] sm:$0xff]
        %v743 = vld [vmem:[#allocation14 + $0xe8] sm:$0xff]
        %v744 = vld [vmem:[#allocation14 + $0xf0] sm:$0xff]
        %v745 = vld [vmem:[#allocation14 + $0xf8] sm:$0xff]
        %v746 = vld [vmem:[#allocation14 + $0x100] sm:$0xff]
        %v747 = vld [vmem:[#allocation14 + $0x108] sm:$0xff]
        %v748 = vld [vmem:[#allocation14 + $0x110] sm:$0xff]
        %v749 = vld [vmem:[#allocation14 + $0x118] sm:$0xff]
        %v750 = vld [vmem:[#allocation14 + $0x120] sm:$0xff]
        %v751 = vld [vmem:[#allocation14 + $0x128] sm:$0xff]
        %v752 = vld [vmem:[#allocation14 + $0x130] sm:$0xff]
        %v753 = vld [vmem:[#allocation14 + $0x138] sm:$0xff]
        %v754 = vld [vmem:[#allocation14 + $0x140] sm:$0xff]
        %v755 = vld [vmem:[#allocation14 + $0x148] sm:$0xff]
        %v756 = vld [vmem:[#allocation14 + $0x150] sm:$0xff]
        %v757 = vld [vmem:[#allocation14 + $0x158] sm:$0xff]
        %v758 = vld [vmem:[#allocation14 + $0x160] sm:$0xff]
        %v759 = vld [vmem:[#allocation14 + $0x168] sm:$0xff]
        %v760 = vld [vmem:[#allocation14 + $0x170] sm:$0xff]
        %v761 = vld [vmem:[#allocation14 + $0x178] sm:$0xff]
        %v762 = vld [vmem:[#allocation14 + $0x180] sm:$0xff]
        %v763 = vld [vmem:[#allocation14 + $0x188] sm:$0xff]
        %v764 = vld [vmem:[#allocation14 + $0x190] sm:$0xff]
        %v765 = vld [vmem:[#allocation14 + $0x198] sm:$0xff]
        %v766 = vld [vmem:[#allocation14 + $0x1a0] sm:$0xff]
        %v767 = vld [vmem:[#allocation14 + $0x1a8] sm:$0xff]
        %v768 = vld [vmem:[#allocation14 + $0x1b0] sm:$0xff]
        %v769 = vld [vmem:[#allocation14 + $0x1b8] sm:$0xff]
        %v770 = vld [vmem:[#allocation14 + $0x1c0] sm:$0xff]
        %v771 = vld [vmem:[#allocation14 + $0x1c8] sm:$0xff]
        %v772 = vld [vmem:[#allocation14 + $0x1d0] sm:$0xff]
        %v773 = vld [vmem:[#allocation14 + $0x1d8] sm:$0xff]
        %v774 = vld [vmem:[#allocation14 + $0x1e0] sm:$0xff]
        %v775 = vld [vmem:[#allocation14 + $0x1e8] sm:$0xff]
        %v776 = vld [vmem:[#allocation14 + $0x1f0] sm:$0xff]
        %v777 = vld [vmem:[#allocation14 + $0x1f8] sm:$0xff]
        %v778 = vld [vmem:[#allocation14 + $0x200] sm:$0xff]
        %v779 = vld [vmem:[#allocation14 + $0x208] sm:$0xff]
        %v780 = vld [vmem:[#allocation14 + $0x210] sm:$0xff]
        %v781 = vld [vmem:[#allocation14 + $0x218] sm:$0xff]
        %v782 = vld [vmem:[#allocation14 + $0x220] sm:$0xff]
        %v783 = vld [vmem:[#allocation14 + $0x228] sm:$0xff]
        %v784 = vld [vmem:[#allocation14 + $0x230] sm:$0xff]
        %v785 = vld [vmem:[#allocation14 + $0x238] sm:$0xff]
        %v786 = vld [vmem:[#allocation14 + $0x240] sm:$0xff]
        %v787 = vld [vmem:[#allocation14 + $0x248] sm:$0xff]
        %v788 = vld [vmem:[#allocation14 + $0x250] sm:$0xff]
        %v789 = vld [vmem:[#allocation14 + $0x258] sm:$0xff]
        %v790 = vld [vmem:[#allocation14 + $0x260] sm:$0xff]
        %v791 = vld [vmem:[#allocation14 + $0x268] sm:$0xff]
        %v792 = vld [vmem:[#allocation14 + $0x270] sm:$0xff]
        %v793 = vld [vmem:[#allocation14 + $0x278] sm:$0xff]
        %v794 = vld [vmem:[#allocation14 + $0x280] sm:$0xff]
        %v795 = vld [vmem:[#allocation14 + $0x288] sm:$0xff]
        %v796 = vld [vmem:[#allocation14 + $0x290] sm:$0xff]
        %v797 = vld [vmem:[#allocation14 + $0x298] sm:$0xff]
        %v798 = vld [vmem:[#allocation14 + $0x2a0] sm:$0xff]
        %v799 = vld [vmem:[#allocation14 + $0x2a8] sm:$0xff]
        %v800 = vld [vmem:[#allocation14 + $0x2b0] sm:$0xff]
        %v801 = vld [vmem:[#allocation14 + $0x2b8] sm:$0xff]
        %v802 = vld [vmem:[#allocation14 + $0x2c0] sm:$0xff]
        %v803 = vld [vmem:[#allocation14 + $0x2c8] sm:$0xff]
        %v804 = vld [vmem:[#allocation14 + $0x2d0] sm:$0xff]
        %v805 = vld [vmem:[#allocation14 + $0x2d8] sm:$0xff]
        %v806 = vld [vmem:[#allocation14 + $0x2e0] sm:$0xff]
        %v807 = vld [vmem:[#allocation14 + $0x2e8] sm:$0xff]
        %v808 = vld [vmem:[#allocation14 + $0x2f0] sm:$0xff]
        %v809 = vld [vmem:[#allocation14 + $0x2f8] sm:$0xff]
        %v810 = vld [vmem:[%s6] sm:$0x3f]
        %v812 = vlaneseq
        %v813 = vshrl.u32 %v812, 7
        %v814 = vsub.s32 0, %v813
        %v815 = vrot.slane %v810, %v814
        %v816 = vlaneseq
        %v817 = vshrl.u32 %v816, 7
        %v818 = vsub.s32 1, %v817
        %v819 = vrot.slane %v810, %v818
        %v820 = vlaneseq
        %v821 = vshrl.u32 %v820, 7
        %v822 = vsub.s32 2, %v821
        %v823 = vrot.slane %v810, %v822
        %v824 = vlaneseq
        %v825 = vshrl.u32 %v824, 7
        %v826 = vsub.s32 3, %v825
        %v827 = vrot.slane %v810, %v826
        %v828 = vlaneseq
        %v829 = vshrl.u32 %v828, 7
        %v830 = vsub.s32 4, %v829
        %v831 = vrot.slane %v810, %v830
        %v832 = vlaneseq
        %v833 = vshrl.u32 %v832, 7
        %v834 = vsub.s32 5, %v833
        %v835 = vrot.slane %v810, %v834
        %842 = vmatprep.subr.mxu0 %v715
        %843 = vmatpush1.msra.mxu0 %v714
        %844 = vmatprep.subr.mxu0 %v721
        %845 = vmatpush1.msra.mxu0 %v720
        %846 = vmatprep.subr.mxu0 %v727
        %847 = vmatpush1.msra.mxu0 %v726
        %848 = vmatprep.subr.mxu0 %v733
        %849 = vmatpush1.msra.mxu0 %v732
        %850 = vmatprep.subr.mxu0 %v739
        %851 = vmatpush1.msra.mxu0 %v738
        %852 = vmatprep.subr.mxu0 %v745
        %853 = vmatpush1.msra.mxu0 %v744
        %854 = vmatprep.subr.mxu0 %v751
        %855 = vmatpush1.msra.mxu0 %v750
        %856 = vmatprep.subr.mxu0 %v757
        %857 = vmatpush1.msra.mxu0 %v756
        %858 = vmatprep.subr.mxu0 %v763
        %859 = vmatpush1.msra.mxu0 %v762
        %860 = vmatprep.subr.mxu0 %v769
        %861 = vmatpush1.msra.mxu0 %v768
        %862 = vmatprep.subr.mxu0 %v775
        %863 = vmatpush1.msra.mxu0 %v774
        %864 = vmatprep.subr.mxu0 %v781
        %865 = vmatpush1.msra.mxu0 %v780
        %866 = vmatprep.subr.mxu0 %v787
        %867 = vmatpush1.msra.mxu0 %v786
        %868 = vmatprep.subr.mxu0 %v793
        %869 = vmatpush1.msra.mxu0 %v792
        %870 = vmatprep.subr.mxu0 %v799
        %871 = vmatpush1.msra.mxu0 %v798
        %872 = vmatprep.subr.mxu0 %v805
        %873 = vmatpush1.msra.mxu0 %v804
        %874 = vmatprep.subr.mxu0 0.0
        %875 = vmatpush1.msra.mxu0 0.0
        %876 = vmatprep.subr.mxu0 0.0
        %877 = vmatpush1.msra.mxu0 0.0
        %878 = vmatprep.subr.mxu0 0.0
        %879 = vmatpush1.msra.mxu0 0.0
        %880 = vmatprep.subr.mxu0 0.0
        %881 = vmatpush1.msra.mxu0 0.0
        %882 = vmatprep.subr.mxu0 0.0
        %883 = vmatpush1.msra.mxu0 0.0
        %884 = vmatprep.subr.mxu0 0.0
        %885 = vmatpush1.msra.mxu0 0.0
        %886 = vmatprep.subr.mxu0 0.0
        %887 = vmatpush1.msra.mxu0 0.0
        %888 = vmatprep.subr.mxu0 0.0
        %889 = vmatpush1.msra.mxu0 0.0
        %890 = vmatprep.subr.mxu0 0.0
        %891 = vmatpush1.msra.mxu0 0.0
        %892 = vmatprep.subr.mxu0 0.0
        %893 = vmatpush1.msra.mxu0 0.0
        %894 = vmatprep.subr.mxu0 0.0
        %895 = vmatpush1.msra.mxu0 0.0
        %896 = vmatprep.subr.mxu0 0.0
        %897 = vmatpush1.msra.mxu0 0.0
        %898 = vmatprep.subr.mxu0 0.0
        %899 = vmatpush1.msra.mxu0 0.0
        %900 = vmatprep.subr.mxu0 0.0
        %901 = vmatpush1.msra.mxu0 0.0
        %902 = vmatprep.subr.mxu0 0.0
        %903 = vmatpush1.msra.mxu0 0.0
        %904 = vmatprep.subr.mxu0 0.0
        %905 = vmatpush1.msra.mxu0 0.0
        %906 = vmatprep.mubr.f32.mxu0 0.0
        %907 = vmatmul.mubr.f32.gmra.mrb[0].mxu0 %v706
        %v908 = vpop.f32.mrb[0].mxu0
        %v909 = vadd.f32 %v815, %v908
        %v910 = vpop.f32.mrb[0].mxu0
        %v911 = vadd.f32 %v819, %v910
        %912 = vmatprep.mubr.f32.mxu0 0.0
        %913 = vmatmul.mubr.f32.gmra.mrb[0].mxu0 %v707
        %v914 = vpop.f32.mrb[0].mxu0
        %v915 = vadd.f32 %v815, %v914
        %v916 = vpop.f32.mrb[0].mxu0
        %v917 = vadd.f32 %v819, %v916
        %918 = vmatprep.mubr.f32.mxu0 0.0
        %919 = vmatmul.mubr.f32.gmra.mrb[0].mxu0 %v708
        %v920 = vpop.f32.mrb[0].mxu0
        %v921 = vadd.f32 %v815, %v920
        %v922 = vpop.f32.mrb[0].mxu0
        %v923 = vadd.f32 %v819, %v922
        %924 = vmatprep.mubr.f32.mxu0 0.0
        %925 = vmatmul.mubr.f32.gmra.mrb[0].mxu0 %v709
        %v926 = vpop.f32.mrb[0].mxu0
        %v927 = vadd.f32 %v815, %v926
        %v928 = vpop.f32.mrb[0].mxu0
        %v929 = vadd.f32 %v819, %v928
        %930 = vmatprep.mubr.f32.mxu0 0.0
        %931 = vmatmul.mubr.f32.gmra.mrb[0].mxu0 %v710
        %v932 = vpop.f32.mrb[0].mxu0
        %v933 = vadd.f32 %v815, %v932
        %v934 = vpop.f32.mrb[0].mxu0
        %v935 = vadd.f32 %v819, %v934
        %936 = vmatprep.mubr.f32.mxu0 0.0
        %937 = vmatmul.mubr.f32.gmra.mrb[0].mxu0 %v711
        %v938 = vpop.f32.mrb[0].mxu0
        %v939 = vadd.f32 %v815, %v938
        %v940 = vpop.f32.mrb[0].mxu0
        %v941 = vadd.f32 %v819, %v940
        %942 = vmatprep.mubr.f32.mxu0 0.0
        %943 = vmatmul.mubr.f32.gmra.mrb[0].mxu0 %v712
        %v944 = vpop.f32.mrb[0].mxu0
        %v945 = vadd.f32 %v815, %v944
        %v946 = vpop.f32.mrb[0].mxu0
        %v947 = vadd.f32 %v819, %v946
        %948 = vmatprep.mubr.f32.mxu0 0.0
        %949 = vmatmul.mubr.f32.gmra.mrb[0].mxu0 %v713
        %v950 = vpop.f32.mrb[0].mxu0
        %v951 = vadd.f32 %v815, %v950
        %v952 = vpop.f32.mrb[0].mxu0
        %v953 = vadd.f32 %v819, %v952
        %954 = vdwg.mxu0
        %955 = vmatprep.subr.mxu0 %v717
        %956 = vmatpush1.msra.mxu0 %v716
        %957 = vmatprep.subr.mxu0 %v723
        %958 = vmatpush1.msra.mxu0 %v722
        %959 = vmatprep.subr.mxu0 %v729
        %960 = vmatpush1.msra.mxu0 %v728
        %961 = vmatprep.subr.mxu0 %v735
        %962 = vmatpush1.msra.mxu0 %v734
        %963 = vmatprep.subr.mxu0 %v741
        %964 = vmatpush1.msra.mxu0 %v740
        %965 = vmatprep.subr.mxu0 %v747
        %966 = vmatpush1.msra.mxu0 %v746
        %967 = vmatprep.subr.mxu0 %v753
        %968 = vmatpush1.msra.mxu0 %v752
        %969 = vmatprep.subr.mxu0 %v759
        %970 = vmatpush1.msra.mxu0 %v758
        %971 = vmatprep.subr.mxu0 %v765
        %972 = vmatpush1.msra.mxu0 %v764
        %973 = vmatprep.subr.mxu0 %v771
        %974 = vmatpush1.msra.mxu0 %v770
        %975 = vmatprep.subr.mxu0 %v777
        %976 = vmatpush1.msra.mxu0 %v776
        %977 = vmatprep.subr.mxu0 %v783
        %978 = vmatpush1.msra.mxu0 %v782
        %979 = vmatprep.subr.mxu0 %v789
        %980 = vmatpush1.msra.mxu0 %v788
        %981 = vmatprep.subr.mxu0 %v795
        %982 = vmatpush1.msra.mxu0 %v794
        %983 = vmatprep.subr.mxu0 %v801
        %984 = vmatpush1.msra.mxu0 %v800
        %985 = vmatprep.subr.mxu0 %v807
        %986 = vmatpush1.msra.mxu0 %v806
        %987 = vmatprep.subr.mxu0 0.0
        %988 = vmatpush1.msra.mxu0 0.0
        %989 = vmatprep.subr.mxu0 0.0
        %990 = vmatpush1.msra.mxu0 0.0
        %991 = vmatprep.subr.mxu0 0.0
        %992 = vmatpush1.msra.mxu0 0.0
        %993 = vmatprep.subr.mxu0 0.0
        %994 = vmatpush1.msra.mxu0 0.0
        %995 = vmatprep.subr.mxu0 0.0
        %996 = vmatpush1.msra.mxu0 0.0
        %997 = vmatprep.subr.mxu0 0.0
        %998 = vmatpush1.msra.mxu0 0.0
        %999 = vmatprep.subr.mxu0 0.0
        %1000 = vmatpush1.msra.mxu0 0.0
        %1001 = vmatprep.subr.mxu0 0.0
        %1002 = vmatpush1.msra.mxu0 0.0
        %1003 = vmatprep.subr.mxu0 0.0
        %1004 = vmatpush1.msra.mxu0 0.0
        %1005 = vmatprep.subr.mxu0 0.0
        %1006 = vmatpush1.msra.mxu0 0.0
        %1007 = vmatprep.subr.mxu0 0.0
        %1008 = vmatpush1.msra.mxu0 0.0
        %1009 = vmatprep.subr.mxu0 0.0
        %1010 = vmatpush1.msra.mxu0 0.0
        %1011 = vmatprep.subr.mxu0 0.0
        %1012 = vmatpush1.msra.mxu0 0.0
        %1013 = vmatprep.subr.mxu0 0.0
        %1014 = vmatpush1.msra.mxu0 0.0
        %1015 = vmatprep.subr.mxu0 0.0
        %1016 = vmatpush1.msra.mxu0 0.0
        %1017 = vmatprep.subr.mxu0 0.0
        %1018 = vmatpush1.msra.mxu0 0.0
        %1019 = vmatprep.mubr.f32.mxu0 0.0
        %1020 = vmatmul.mubr.f32.gmra.mrb[0].mxu0 %v706
        %v1021 = vpop.f32.mrb[0].mxu0
        %v1022 = vadd.f32 %v823, %v1021
        %v1023 = vpop.f32.mrb[0].mxu0
        %v1024 = vadd.f32 %v827, %v1023
        %1025 = vmatprep.mubr.f32.mxu0 0.0
        %1026 = vmatmul.mubr.f32.gmra.mrb[0].mxu0 %v707
        %v1027 = vpop.f32.mrb[0].mxu0
        %v1028 = vadd.f32 %v823, %v1027
        %v1029 = vpop.f32.mrb[0].mxu0
        %v1030 = vadd.f32 %v827, %v1029
        %1031 = vmatprep.mubr.f32.mxu0 0.0
        %1032 = vmatmul.mubr.f32.gmra.mrb[0].mxu0 %v708
        %v1033 = vpop.f32.mrb[0].mxu0
        %v1034 = vadd.f32 %v823, %v1033
        %v1035 = vpop.f32.mrb[0].mxu0
        %v1036 = vadd.f32 %v827, %v1035
        %1037 = vmatprep.mubr.f32.mxu0 0.0
        %1038 = vmatmul.mubr.f32.gmra.mrb[0].mxu0 %v709
        %v1039 = vpop.f32.mrb[0].mxu0
        %v1040 = vadd.f32 %v823, %v1039
        %v1041 = vpop.f32.mrb[0].mxu0
        %v1042 = vadd.f32 %v827, %v1041
        %1043 = vmatprep.mubr.f32.mxu0 0.0
        %1044 = vmatmul.mubr.f32.gmra.mrb[0].mxu0 %v710
        %v1045 = vpop.f32.mrb[0].mxu0
        %v1046 = vadd.f32 %v823, %v1045
        %v1047 = vpop.f32.mrb[0].mxu0
        %v1048 = vadd.f32 %v827, %v1047
        %1049 = vmatprep.mubr.f32.mxu0 0.0
        %1050 = vmatmul.mubr.f32.gmra.mrb[0].mxu0 %v711
        %v1051 = vpop.f32.mrb[0].mxu0
        %v1052 = vadd.f32 %v823, %v1051
        %v1053 = vpop.f32.mrb[0].mxu0
        %v1054 = vadd.f32 %v827, %v1053
        %1055 = vmatprep.mubr.f32.mxu0 0.0
        %1056 = vmatmul.mubr.f32.gmra.mrb[0].mxu0 %v712
        %v1057 = vpop.f32.mrb[0].mxu0
        %v1058 = vadd.f32 %v823, %v1057
        %v1059 = vpop.f32.mrb[0].mxu0
        %v1060 = vadd.f32 %v827, %v1059
        %1061 = vmatprep.mubr.f32.mxu0 0.0
        %1062 = vmatmul.mubr.f32.gmra.mrb[0].mxu0 %v713
        %v1063 = vpop.f32.mrb[0].mxu0
        %v1064 = vadd.f32 %v823, %v1063
        %v1065 = vpop.f32.mrb[0].mxu0
        %v1066 = vadd.f32 %v827, %v1065
        %1067 = vdwg.mxu0
        %1068 = vmatprep.subr.mxu0 %v719
        %1069 = vmatpush1.msra.mxu0 %v718
        %1070 = vmatprep.subr.mxu0 %v725
        %1071 = vmatpush1.msra.mxu0 %v724
        %1072 = vmatprep.subr.mxu0 %v731
        %1073 = vmatpush1.msra.mxu0 %v730
        %1074 = vmatprep.subr.mxu0 %v737
        %1075 = vmatpush1.msra.mxu0 %v736
        %1076 = vmatprep.subr.mxu0 %v743
        %1077 = vmatpush1.msra.mxu0 %v742
        %1078 = vmatprep.subr.mxu0 %v749
        %1079 = vmatpush1.msra.mxu0 %v748
        %1080 = vmatprep.subr.mxu0 %v755
        %1081 = vmatpush1.msra.mxu0 %v754
        %1082 = vmatprep.subr.mxu0 %v761
        %1083 = vmatpush1.msra.mxu0 %v760
        %1084 = vmatprep.subr.mxu0 %v767
        %1085 = vmatpush1.msra.mxu0 %v766
        %1086 = vmatprep.subr.mxu0 %v773
        %1087 = vmatpush1.msra.mxu0 %v772
        %1088 = vmatprep.subr.mxu0 %v779
        %1089 = vmatpush1.msra.mxu0 %v778
        %1090 = vmatprep.subr.mxu0 %v785
        %1091 = vmatpush1.msra.mxu0 %v784
        %1092 = vmatprep.subr.mxu0 %v791
        %1093 = vmatpush1.msra.mxu0 %v790
        %1094 = vmatprep.subr.mxu0 %v797
        %1095 = vmatpush1.msra.mxu0 %v796
        %1096 = vmatprep.subr.mxu0 %v803
        %1097 = vmatpush1.msra.mxu0 %v802
        %1098 = vmatprep.subr.mxu0 %v809
        %1099 = vmatpush1.msra.mxu0 %v808
        %1100 = vmatprep.subr.mxu0 0.0
        %1101 = vmatpush1.msra.mxu0 0.0
        %1102 = vmatprep.subr.mxu0 0.0
        %1103 = vmatpush1.msra.mxu0 0.0
        %1104 = vmatprep.subr.mxu0 0.0
        %1105 = vmatpush1.msra.mxu0 0.0
        %1106 = vmatprep.subr.mxu0 0.0
        %1107 = vmatpush1.msra.mxu0 0.0
        %1108 = vmatprep.subr.mxu0 0.0
        %1109 = vmatpush1.msra.mxu0 0.0
        %1110 = vmatprep.subr.mxu0 0.0
        %1111 = vmatpush1.msra.mxu0 0.0
        %1112 = vmatprep.subr.mxu0 0.0
        %1113 = vmatpush1.msra.mxu0 0.0
        %1114 = vmatprep.subr.mxu0 0.0
        %1115 = vmatpush1.msra.mxu0 0.0
        %1116 = vmatprep.subr.mxu0 0.0
        %1117 = vmatpush1.msra.mxu0 0.0
        %1118 = vmatprep.subr.mxu0 0.0
        %1119 = vmatpush1.msra.mxu0 0.0
        %1120 = vmatprep.subr.mxu0 0.0
        %1121 = vmatpush1.msra.mxu0 0.0
        %1122 = vmatprep.subr.mxu0 0.0
        %1123 = vmatpush1.msra.mxu0 0.0
        %1124 = vmatprep.subr.mxu0 0.0
        %1125 = vmatpush1.msra.mxu0 0.0
        %1126 = vmatprep.subr.mxu0 0.0
        %1127 = vmatpush1.msra.mxu0 0.0
        %1128 = vmatprep.subr.mxu0 0.0
        %1129 = vmatpush1.msra.mxu0 0.0
        %1130 = vmatprep.subr.mxu0 0.0
        %1131 = vmatpush1.msra.mxu0 0.0
        %1132 = vmatprep.mubr.f32.mxu0 0.0
        %1133 = vmatmul.mubr.f32.gmra.mrb[0].mxu0 %v706
        %v1134 = vpop.f32.mrb[0].mxu0
        %v1135 = vadd.f32 %v831, %v1134
        %v1136 = vpop.f32.mrb[0].mxu0
        %v1137 = vadd.f32 %v835, %v1136
        %1138 = vmatprep.mubr.f32.mxu0 0.0
        %1139 = vmatmul.mubr.f32.gmra.mrb[0].mxu0 %v707
        %v1140 = vpop.f32.mrb[0].mxu0
        %v1141 = vadd.f32 %v831, %v1140
        %v1142 = vpop.f32.mrb[0].mxu0
        %v1143 = vadd.f32 %v835, %v1142
        %1144 = vmatprep.mubr.f32.mxu0 0.0
        %1145 = vmatmul.mubr.f32.gmra.mrb[0].mxu0 %v708
        %v1146 = vpop.f32.mrb[0].mxu0
        %v1147 = vadd.f32 %v831, %v1146
        %v1148 = vpop.f32.mrb[0].mxu0
        %v1149 = vadd.f32 %v835, %v1148
        %1150 = vmatprep.mubr.f32.mxu0 0.0
        %1151 = vmatmul.mubr.f32.gmra.mrb[0].mxu0 %v709
        %v1152 = vpop.f32.mrb[0].mxu0
        %v1153 = vadd.f32 %v831, %v1152
        %v1154 = vpop.f32.mrb[0].mxu0
        %v1155 = vadd.f32 %v835, %v1154
        %1156 = vmatprep.mubr.f32.mxu0 0.0
        %1157 = vmatmul.mubr.f32.gmra.mrb[0].mxu0 %v710
        %v1158 = vpop.f32.mrb[0].mxu0
        %v1159 = vadd.f32 %v831, %v1158
        %v1160 = vpop.f32.mrb[0].mxu0
        %v1161 = vadd.f32 %v835, %v1160
        %1162 = vmatprep.mubr.f32.mxu0 0.0
        %1163 = vmatmul.mubr.f32.gmra.mrb[0].mxu0 %v711
        %v1164 = vpop.f32.mrb[0].mxu0
        %v1165 = vadd.f32 %v831, %v1164
        %v1166 = vpop.f32.mrb[0].mxu0
        %v1167 = vadd.f32 %v835, %v1166
        %1168 = vmatprep.mubr.f32.mxu0 0.0
        %1169 = vmatmul.mubr.f32.gmra.mrb[0].mxu0 %v712
        %v1170 = vpop.f32.mrb[0].mxu0
        %v1171 = vadd.f32 %v831, %v1170
        %v1172 = vpop.f32.mrb[0].mxu0
        %v1173 = vadd.f32 %v835, %v1172
        %1174 = vmatprep.mubr.f32.mxu0 0.0
        %1175 = vmatmul.mubr.f32.gmra.mrb[0].mxu0 %v713
        %v1176 = vpop.f32.mrb[0].mxu0
        %v1177 = vadd.f32 %v831, %v1176
        %v1178 = vpop.f32.mrb[0].mxu0
        %v1179 = vadd.f32 %v835, %v1178
        %1180 = vdwg.mxu0
        %v1181 = vxor.u32 %v909, 2147483648
        %v1182 = vxor.u32 %v911, 2147483648
        %v1183 = vxor.u32 %v1022, 2147483648
        %v1184 = vxor.u32 %v915, 2147483648
        %v1185 = vxor.u32 %v917, 2147483648
        %v1186 = vxor.u32 %v1028, 2147483648
        %v1187 = vxor.u32 %v921, 2147483648
        %v1188 = vxor.u32 %v923, 2147483648
        %v1189 = vxor.u32 %v1034, 2147483648
        %v1190 = vxor.u32 %v927, 2147483648
        %v1191 = vxor.u32 %v929, 2147483648
        %v1192 = vxor.u32 %v1040, 2147483648
        %v1193 = vxor.u32 %v933, 2147483648
        %v1194 = vxor.u32 %v935, 2147483648
        %v1195 = vxor.u32 %v1046, 2147483648
        %v1196 = vxor.u32 %v939, 2147483648
        %v1197 = vxor.u32 %v941, 2147483648
        %v1198 = vxor.u32 %v1052, 2147483648
        %v1199 = vxor.u32 %v945, 2147483648
        %v1200 = vxor.u32 %v947, 2147483648
        %v1201 = vxor.u32 %v1058, 2147483648
        %v1202 = vxor.u32 %v951, 2147483648
        %v1203 = vxor.u32 %v953, 2147483648
        %v1204 = vxor.u32 %v1064, 2147483648
        %v1205 = vmul.f32 %v1181, 1.442695
        %v1206 = vpow.pop %v1205
        %v1207 = vmul.f32 %v1182, 1.442695
        %v1208 = vpow.pop %v1207
        %v1209 = vmul.f32 %v1183, 1.442695
        %v1210 = vpow.pop %v1209
        %v1211 = vmul.f32 %v1184, 1.442695
        %v1212 = vpow.pop %v1211
        %v1213 = vmul.f32 %v1185, 1.442695
        %v1214 = vpow.pop %v1213
        %v1215 = vmul.f32 %v1186, 1.442695
        %v1216 = vpow.pop %v1215
        %v1217 = vmul.f32 %v1187, 1.442695
        %v1218 = vpow.pop %v1217
        %v1219 = vmul.f32 %v1188, 1.442695
        %v1220 = vpow.pop %v1219
        %v1221 = vmul.f32 %v1189, 1.442695
        %v1222 = vpow.pop %v1221
        %v1223 = vmul.f32 %v1190, 1.442695
        %v1224 = vpow.pop %v1223
        %v1225 = vmul.f32 %v1191, 1.442695
        %v1226 = vpow.pop %v1225
        %v1227 = vmul.f32 %v1192, 1.442695
        %v1228 = vpow.pop %v1227
        %v1229 = vmul.f32 %v1193, 1.442695
        %v1230 = vpow.pop %v1229
        %v1231 = vmul.f32 %v1194, 1.442695
        %v1232 = vpow.pop %v1231
        %v1233 = vmul.f32 %v1195, 1.442695
        %v1234 = vpow.pop %v1233
        %v1235 = vmul.f32 %v1196, 1.442695
        %v1236 = vpow.pop %v1235
        %v1237 = vmul.f32 %v1197, 1.442695
        %v1238 = vpow.pop %v1237
        %v1239 = vmul.f32 %v1198, 1.442695
        %v1240 = vpow.pop %v1239
        %v1241 = vmul.f32 %v1199, 1.442695
        %v1242 = vpow.pop %v1241
        %v1243 = vmul.f32 %v1200, 1.442695
        %v1244 = vpow.pop %v1243
        %v1245 = vmul.f32 %v1201, 1.442695
        %v1246 = vpow.pop %v1245
        %v1247 = vmul.f32 %v1202, 1.442695
        %v1248 = vpow.pop %v1247
        %v1249 = vmul.f32 %v1203, 1.442695
        %v1250 = vpow.pop %v1249
        %v1251 = vmul.f32 %v1204, 1.442695
        %v1252 = vpow.pop %v1251
        %v1253 = vadd.f32 %v1206, 1.0
        %v1254 = vadd.f32 %v1208, 1.0
        %v1255 = vadd.f32 %v1210, 1.0
        %v1256 = vadd.f32 %v1212, 1.0
        %v1257 = vadd.f32 %v1214, 1.0
        %v1258 = vadd.f32 %v1216, 1.0
        %v1259 = vadd.f32 %v1218, 1.0
        %v1260 = vadd.f32 %v1220, 1.0
        %v1261 = vadd.f32 %v1222, 1.0
        %v1262 = vadd.f32 %v1224, 1.0
        %v1263 = vadd.f32 %v1226, 1.0
        %v1264 = vadd.f32 %v1228, 1.0
        %v1265 = vadd.f32 %v1230, 1.0
        %v1266 = vadd.f32 %v1232, 1.0
        %v1267 = vadd.f32 %v1234, 1.0
        %v1268 = vadd.f32 %v1236, 1.0
        %v1269 = vadd.f32 %v1238, 1.0
        %v1270 = vadd.f32 %v1240, 1.0
        %v1271 = vadd.f32 %v1242, 1.0
        %v1272 = vadd.f32 %v1244, 1.0
        %v1273 = vadd.f32 %v1246, 1.0
        %v1274 = vadd.f32 %v1248, 1.0
        %v1275 = vadd.f32 %v1250, 1.0
        %v1276 = vadd.f32 %v1252, 1.0
        %v1277 = vrcp.pop %v1253
        %v1278 = vmul.f32 1.0, %v1277
        %v1279 = vrcp.pop %v1254
        %v1280 = vmul.f32 1.0, %v1279
        %v1281 = vrcp.pop %v1255
        %v1282 = vmul.f32 1.0, %v1281
        %v1283 = vrcp.pop %v1256
        %v1284 = vmul.f32 1.0, %v1283
        %v1285 = vrcp.pop %v1257
        %v1286 = vmul.f32 1.0, %v1285
        %v1287 = vrcp.pop %v1258
        %v1288 = vmul.f32 1.0, %v1287
        %v1289 = vrcp.pop %v1259
        %v1290 = vmul.f32 1.0, %v1289
        %v1291 = vrcp.pop %v1260
        %v1292 = vmul.f32 1.0, %v1291
        %v1293 = vrcp.pop %v1261
        %v1294 = vmul.f32 1.0, %v1293
        %v1295 = vrcp.pop %v1262
        %v1296 = vmul.f32 1.0, %v1295
        %v1297 = vrcp.pop %v1263
        %v1298 = vmul.f32 1.0, %v1297
        %v1299 = vrcp.pop %v1264
        %v1300 = vmul.f32 1.0, %v1299
        %v1301 = vrcp.pop %v1265
        %v1302 = vmul.f32 1.0, %v1301
        %v1303 = vrcp.pop %v1266
        %v1304 = vmul.f32 1.0, %v1303
        %v1305 = vrcp.pop %v1267
        %v1306 = vmul.f32 1.0, %v1305
        %v1307 = vrcp.pop %v1268
        %v1308 = vmul.f32 1.0, %v1307
        %v1309 = vrcp.pop %v1269
        %v1310 = vmul.f32 1.0, %v1309
        %v1311 = vrcp.pop %v1270
        %v1312 = vmul.f32 1.0, %v1311
        %v1313 = vrcp.pop %v1271
        %v1314 = vmul.f32 1.0, %v1313
        %v1315 = vrcp.pop %v1272
        %v1316 = vmul.f32 1.0, %v1315
        %v1317 = vrcp.pop %v1273
        %v1318 = vmul.f32 1.0, %v1317
        %v1319 = vrcp.pop %v1274
        %v1320 = vmul.f32 1.0, %v1319
        %v1321 = vrcp.pop %v1275
        %v1322 = vmul.f32 1.0, %v1321
        %v1323 = vrcp.pop %v1276
        %v1324 = vmul.f32 1.0, %v1323
        %v1325 = vld [vmem:[#allocation2 + $0x1f] sm:$0xff]
        %v1326 = vld [vmem:[#allocation2 + $0x27] sm:$0xff]
        %v1327 = vld [vmem:[#allocation2 + $0x2f] sm:$0xff]
        %v1328 = vld [vmem:[#allocation2 + $0x37] sm:$0xff]
        %v1329 = vld [vmem:[#allocation2 + $0x3f] sm:$0xff]
        %v1330 = vld [vmem:[#allocation2 + $0x47] sm:$0xff]
        %v1331 = vld [vmem:[#allocation2 + $0x4f] sm:$0xff]
        %v1332 = vld [vmem:[#allocation2 + $0x57] sm:$0xff]
        %v1333 = vld [vmem:[#allocation2 + $0x21] sm:$0xff]
        %v1334 = vld [vmem:[#allocation2 + $0x29] sm:$0xff]
        %v1335 = vld [vmem:[#allocation2 + $0x31] sm:$0xff]
        %v1336 = vld [vmem:[#allocation2 + $0x39] sm:$0xff]
        %v1337 = vld [vmem:[#allocation2 + $0x41] sm:$0xff]
        %v1338 = vld [vmem:[#allocation2 + $0x49] sm:$0xff]
        %v1339 = vld [vmem:[#allocation2 + $0x51] sm:$0xff]
        %v1340 = vld [vmem:[#allocation2 + $0x59] sm:$0xff]
        %v1341 = vld [vmem:[#allocation8] sm:$0xff]
        %v1342 = vld [vmem:[#allocation8 + $0x8] sm:$0xff]
        %v1343 = vld [vmem:[#allocation8 + $0x10] sm:$0xff]
        %v1344 = vld [vmem:[#allocation8 + $0x18] sm:$0xff]
        %v1345 = vld [vmem:[#allocation8 + $0x20] sm:$0xff]
        %v1346 = vld [vmem:[#allocation8 + $0x28] sm:$0xff]
        %v1347 = vld [vmem:[#allocation8 + $0x30] sm:$0xff]
        %v1348 = vld [vmem:[#allocation8 + $0x38] sm:$0xff]
        %v1349 = vld [vmem:[#allocation8 + $0x40] sm:$0xff]
        %v1350 = vld [vmem:[#allocation8 + $0x48] sm:$0xff]
        %v1351 = vld [vmem:[#allocation8 + $0x50] sm:$0xff]
        %v1352 = vld [vmem:[#allocation8 + $0x58] sm:$0xff]
        %v1353 = vld [vmem:[#allocation8 + $0x60] sm:$0xff]
        %v1354 = vld [vmem:[#allocation8 + $0x68] sm:$0xff]
        %v1355 = vld [vmem:[#allocation8 + $0x70] sm:$0xff]
        %v1356 = vld [vmem:[#allocation8 + $0x78] sm:$0xff]
        %v1357 = vld [vmem:[#allocation8 + $0x80] sm:$0xff]
        %v1358 = vld [vmem:[#allocation8 + $0x88] sm:$0xff]
        %v1359 = vld [vmem:[#allocation8 + $0x90] sm:$0xff]
        %v1360 = vld [vmem:[#allocation8 + $0x98] sm:$0xff]
        %v1361 = vld [vmem:[#allocation8 + $0xa0] sm:$0xff]
        %v1362 = vld [vmem:[#allocation8 + $0xa8] sm:$0xff]
        %v1363 = vld [vmem:[#allocation8 + $0xb0] sm:$0xff]
        %v1364 = vld [vmem:[#allocation8 + $0xb8] sm:$0xff]
        %v1365 = vld [vmem:[#allocation8 + $0xc0] sm:$0xff]
        %v1366 = vld [vmem:[#allocation8 + $0xc8] sm:$0xff]
        %v1367 = vld [vmem:[#allocation8 + $0xd0] sm:$0xff]
        %v1368 = vld [vmem:[#allocation8 + $0xd8] sm:$0xff]
        %v1369 = vld [vmem:[#allocation8 + $0xe0] sm:$0xff]
        %v1370 = vld [vmem:[#allocation8 + $0xe8] sm:$0xff]
        %v1371 = vld [vmem:[#allocation8 + $0xf0] sm:$0xff]
        %v1372 = vld [vmem:[#allocation8 + $0xf8] sm:$0xff]
        %v1373 = vld [vmem:[#allocation8 + $0x100] sm:$0xff]
        %v1374 = vld [vmem:[#allocation8 + $0x108] sm:$0xff]
        %v1375 = vld [vmem:[#allocation8 + $0x110] sm:$0xff]
        %v1376 = vld [vmem:[#allocation8 + $0x118] sm:$0xff]
        %v1377 = vld [vmem:[#allocation8 + $0x120] sm:$0xff]
        %v1378 = vld [vmem:[#allocation8 + $0x128] sm:$0xff]
        %v1379 = vld [vmem:[#allocation8 + $0x130] sm:$0xff]
        %v1380 = vld [vmem:[#allocation8 + $0x138] sm:$0xff]
        %v1381 = vld [vmem:[#allocation8 + $0x140] sm:$0xff]
        %v1382 = vld [vmem:[#allocation8 + $0x148] sm:$0xff]
        %v1383 = vld [vmem:[#allocation8 + $0x150] sm:$0xff]
        %v1384 = vld [vmem:[#allocation8 + $0x158] sm:$0xff]
        %v1385 = vld [vmem:[#allocation8 + $0x160] sm:$0xff]
        %v1386 = vld [vmem:[#allocation8 + $0x168] sm:$0xff]
        %v1387 = vld [vmem:[#allocation8 + $0x170] sm:$0xff]
        %v1388 = vld [vmem:[#allocation8 + $0x178] sm:$0xff]
        %v1389 = vld [vmem:[%s4] sm:$0x1]
        %v1391 = vlaneseq
        %v1392 = vshrl.u32 %v1391, 7
        %v1393 = vsub.s32 0, %v1392
        %v1394 = vrot.slane %v1389, %v1393
        %1396 = vmatprep.subr.mxu0 0.0
        %1397 = vmatpush1.msra.mxu0 %v1341
        %1398 = vmatprep.subr.mxu0 0.0
        %1399 = vmatpush1.msra.mxu0 %v1342
        %1400 = vmatprep.subr.mxu0 0.0
        %1401 = vmatpush1.msra.mxu0 %v1343
        %1402 = vmatprep.subr.mxu0 0.0
        %1403 = vmatpush1.msra.mxu0 %v1344
        %1404 = vmatprep.subr.mxu0 0.0
        %1405 = vmatpush1.msra.mxu0 %v1345
        %1406 = vmatprep.subr.mxu0 0.0
        %1407 = vmatpush1.msra.mxu0 %v1346
        %1408 = vmatprep.subr.mxu0 0.0
        %1409 = vmatpush1.msra.mxu0 %v1347
        %1410 = vmatprep.subr.mxu0 0.0
        %1411 = vmatpush1.msra.mxu0 %v1348
        %1412 = vmatprep.subr.mxu0 0.0
        %1413 = vmatpush1.msra.mxu0 %v1349
        %1414 = vmatprep.subr.mxu0 0.0
        %1415 = vmatpush1.msra.mxu0 %v1350
        %1416 = vmatprep.subr.mxu0 0.0
        %1417 = vmatpush1.msra.mxu0 %v1351
        %1418 = vmatprep.subr.mxu0 0.0
        %1419 = vmatpush1.msra.mxu0 %v1352
        %1420 = vmatprep.subr.mxu0 0.0
        %1421 = vmatpush1.msra.mxu0 %v1353
        %1422 = vmatprep.subr.mxu0 0.0
        %1423 = vmatpush1.msra.mxu0 %v1354
        %1424 = vmatprep.subr.mxu0 0.0
        %1425 = vmatpush1.msra.mxu0 %v1355
        %1426 = vmatprep.subr.mxu0 0.0
        %1427 = vmatpush1.msra.mxu0 %v1356
        %1428 = vmatprep.subr.mxu0 0.0
        %1429 = vmatpush1.msra.mxu0 %v1357
        %1430 = vmatprep.subr.mxu0 0.0
        %1431 = vmatpush1.msra.mxu0 %v1358
        %1432 = vmatprep.subr.mxu0 0.0
        %1433 = vmatpush1.msra.mxu0 %v1359
        %1434 = vmatprep.subr.mxu0 0.0
        %1435 = vmatpush1.msra.mxu0 %v1360
        %1436 = vmatprep.subr.mxu0 0.0
        %1437 = vmatpush1.msra.mxu0 %v1361
        %1438 = vmatprep.subr.mxu0 0.0
        %1439 = vmatpush1.msra.mxu0 %v1362
        %1440 = vmatprep.subr.mxu0 0.0
        %1441 = vmatpush1.msra.mxu0 %v1363
        %1442 = vmatprep.subr.mxu0 0.0
        %1443 = vmatpush1.msra.mxu0 %v1364
        %1444 = vmatprep.subr.mxu0 0.0
        %1445 = vmatpush1.msra.mxu0 %v1365
        %1446 = vmatprep.subr.mxu0 0.0
        %1447 = vmatpush1.msra.mxu0 %v1366
        %1448 = vmatprep.subr.mxu0 0.0
        %1449 = vmatpush1.msra.mxu0 %v1367
        %1450 = vmatprep.subr.mxu0 0.0
        %1451 = vmatpush1.msra.mxu0 %v1368
        %1452 = vmatprep.subr.mxu0 0.0
        %1453 = vmatpush1.msra.mxu0 %v1369
        %1454 = vmatprep.subr.mxu0 0.0
        %1455 = vmatpush1.msra.mxu0 %v1370
        %1456 = vmatprep.subr.mxu0 0.0
        %1457 = vmatpush1.msra.mxu0 %v1371
        %1458 = vmatprep.subr.mxu0 0.0
        %1459 = vmatpush1.msra.mxu0 %v1372
        %1460 = vmatprep.mubr.f32.mxu0 %v706
        %1461 = vmatmul.mubr.f32.gmra.mrb[0].mxu0 %v1325
        %v1462 = vpop.f32.mrb[0].mxu0
        %v1463 = vadd.f32 %v1394, %v1462
        %v1464 = vpop.f32.mrb[0].mxu0
        %1465 = vmatprep.mubr.f32.mxu0 %v707
        %1466 = vmatmul.mubr.f32.gmra.mrb[0].mxu0 %v1326
        %v1467 = vpop.f32.mrb[0].mxu0
        %v1468 = vadd.f32 %v1394, %v1467
        %v1469 = vpop.f32.mrb[0].mxu0
        %1470 = vmatprep.mubr.f32.mxu0 %v708
        %1471 = vmatmul.mubr.f32.gmra.mrb[0].mxu0 %v1327
        %v1472 = vpop.f32.mrb[0].mxu0
        %v1473 = vadd.f32 %v1394, %v1472
        %v1474 = vpop.f32.mrb[0].mxu0
        %1475 = vmatprep.mubr.f32.mxu0 %v709
        %1476 = vmatmul.mubr.f32.gmra.mrb[0].mxu0 %v1328
        %v1477 = vpop.f32.mrb[0].mxu0
        %v1478 = vadd.f32 %v1394, %v1477
        %v1479 = vpop.f32.mrb[0].mxu0
        %1480 = vmatprep.mubr.f32.mxu0 %v710
        %1481 = vmatmul.mubr.f32.gmra.mrb[0].mxu0 %v1329
        %v1482 = vpop.f32.mrb[0].mxu0
        %v1483 = vadd.f32 %v1394, %v1482
        %v1484 = vpop.f32.mrb[0].mxu0
        %1485 = vmatprep.mubr.f32.mxu0 %v711
        %1486 = vmatmul.mubr.f32.gmra.mrb[0].mxu0 %v1330
        %v1487 = vpop.f32.mrb[0].mxu0
        %v1488 = vadd.f32 %v1394, %v1487
        %v1489 = vpop.f32.mrb[0].mxu0
        %1490 = vmatprep.mubr.f32.mxu0 %v712
        %1491 = vmatmul.mubr.f32.gmra.mrb[0].mxu0 %v1331
        %v1492 = vpop.f32.mrb[0].mxu0
        %v1493 = vadd.f32 %v1394, %v1492
        %v1494 = vpop.f32.mrb[0].mxu0
        %1495 = vmatprep.mubr.f32.mxu0 %v713
        %1496 = vmatmul.mubr.f32.gmra.mrb[0].mxu0 %v1332
        %v1497 = vpop.f32.mrb[0].mxu0
        %v1498 = vadd.f32 %v1394, %v1497
        %v1499 = vpop.f32.mrb[0].mxu0
        %1500 = vdwg.mxu0
        %1501 = vmatprep.subr.mxu0 0.0
        %1502 = vmatpush1.msra.mxu0 %v1373
        %1503 = vmatprep.subr.mxu0 0.0
        %1504 = vmatpush1.msra.mxu0 %v1374
        %1505 = vmatprep.subr.mxu0 0.0
        %1506 = vmatpush1.msra.mxu0 %v1375
        %1507 = vmatprep.subr.mxu0 0.0
        %1508 = vmatpush1.msra.mxu0 %v1376
        %1509 = vmatprep.subr.mxu0 0.0
        %1510 = vmatpush1.msra.mxu0 %v1377
        %1511 = vmatprep.subr.mxu0 0.0
        %1512 = vmatpush1.msra.mxu0 %v1378
        %1513 = vmatprep.subr.mxu0 0.0
        %1514 = vmatpush1.msra.mxu0 %v1379
        %1515 = vmatprep.subr.mxu0 0.0
        %1516 = vmatpush1.msra.mxu0 %v1380
        %1517 = vmatprep.subr.mxu0 0.0
        %1518 = vmatpush1.msra.mxu0 %v1381
        %1519 = vmatprep.subr.mxu0 0.0
        %1520 = vmatpush1.msra.mxu0 %v1382
        %1521 = vmatprep.subr.mxu0 0.0
        %1522 = vmatpush1.msra.mxu0 %v1383
        %1523 = vmatprep.subr.mxu0 0.0
        %1524 = vmatpush1.msra.mxu0 %v1384
        %1525 = vmatprep.subr.mxu0 0.0
        %1526 = vmatpush1.msra.mxu0 %v1385
        %1527 = vmatprep.subr.mxu0 0.0
        %1528 = vmatpush1.msra.mxu0 %v1386
        %1529 = vmatprep.subr.mxu0 0.0
        %1530 = vmatpush1.msra.mxu0 %v1387
        %1531 = vmatprep.subr.mxu0 0.0
        %1532 = vmatpush1.msra.mxu0 %v1388
        %1533 = vmatprep.subr.mxu0 0.0
        %1534 = vmatpush1.msra.mxu0 0.0
        %1535 = vmatprep.subr.mxu0 0.0
        %1536 = vmatpush1.msra.mxu0 0.0
        %1537 = vmatprep.subr.mxu0 0.0
        %1538 = vmatpush1.msra.mxu0 0.0
        %1539 = vmatprep.subr.mxu0 0.0
        %1540 = vmatpush1.msra.mxu0 0.0
        %1541 = vmatprep.subr.mxu0 0.0
        %1542 = vmatpush1.msra.mxu0 0.0
        %1543 = vmatprep.subr.mxu0 0.0
        %1544 = vmatpush1.msra.mxu0 0.0
        %1545 = vmatprep.subr.mxu0 0.0
        %1546 = vmatpush1.msra.mxu0 0.0
        %1547 = vmatprep.subr.mxu0 0.0
        %1548 = vmatpush1.msra.mxu0 0.0
        %1549 = vmatprep.subr.mxu0 0.0
        %1550 = vmatpush1.msra.mxu0 0.0
        %1551 = vmatprep.subr.mxu0 0.0
        %1552 = vmatpush1.msra.mxu0 0.0
        %1553 = vmatprep.subr.mxu0 0.0
        %1554 = vmatpush1.msra.mxu0 0.0
        %1555 = vmatprep.subr.mxu0 0.0
        %1556 = vmatpush1.msra.mxu0 0.0
        %1557 = vmatprep.subr.mxu0 0.0
        %1558 = vmatpush1.msra.mxu0 0.0
        %1559 = vmatprep.subr.mxu0 0.0
        %1560 = vmatpush1.msra.mxu0 0.0
        %1561 = vmatprep.subr.mxu0 0.0
        %1562 = vmatpush1.msra.mxu0 0.0
        %1563 = vmatprep.subr.mxu0 0.0
        %1564 = vmatpush1.msra.mxu0 0.0
        %1565 = vmatprep.mubr.f32.mxu0 0.0
        %1566 = vmatmul.mubr.f32.gmra.mrb[0].mxu0 %v1333
        %v1567 = vpop.f32.mrb[0].mxu0
        %v1568 = vadd.f32 %v1463, %v1567
        %v1569 = vpop.f32.mrb[0].mxu0
        %1570 = vmatprep.mubr.f32.mxu0 0.0
        %1571 = vmatmul.mubr.f32.gmra.mrb[0].mxu0 %v1334
        %v1572 = vpop.f32.mrb[0].mxu0
        %v1573 = vadd.f32 %v1468, %v1572
        %v1574 = vpop.f32.mrb[0].mxu0
        %1575 = vmatprep.mubr.f32.mxu0 0.0
        %1576 = vmatmul.mubr.f32.gmra.mrb[0].mxu0 %v1335
        %v1577 = vpop.f32.mrb[0].mxu0
        %v1578 = vadd.f32 %v1473, %v1577
        %v1579 = vpop.f32.mrb[0].mxu0
        %1580 = vmatprep.mubr.f32.mxu0 0.0
        %1581 = vmatmul.mubr.f32.gmra.mrb[0].mxu0 %v1336
        %v1582 = vpop.f32.mrb[0].mxu0
        %v1583 = vadd.f32 %v1478, %v1582
        %v1584 = vpop.f32.mrb[0].mxu0
        %1585 = vmatprep.mubr.f32.mxu0 0.0
        %1586 = vmatmul.mubr.f32.gmra.mrb[0].mxu0 %v1337
        %v1587 = vpop.f32.mrb[0].mxu0
        %v1588 = vadd.f32 %v1483, %v1587
        %v1589 = vpop.f32.mrb[0].mxu0
        %1590 = vmatprep.mubr.f32.mxu0 0.0
        %1591 = vmatmul.mubr.f32.gmra.mrb[0].mxu0 %v1338
        %v1592 = vpop.f32.mrb[0].mxu0
        %v1593 = vadd.f32 %v1488, %v1592
        %v1594 = vpop.f32.mrb[0].mxu0
        %1595 = vmatprep.mubr.f32.mxu0 0.0
        %1596 = vmatmul.mubr.f32.gmra.mrb[0].mxu0 %v1339
        %v1597 = vpop.f32.mrb[0].mxu0
        %v1598 = vadd.f32 %v1493, %v1597
        %v1599 = vpop.f32.mrb[0].mxu0
        %1600 = vmatprep.mubr.f32.mxu0 0.0
        %1601 = vmatmul.mubr.f32.gmra.mrb[0].mxu0 %v1340
        %v1602 = vpop.f32.mrb[0].mxu0
        %v1603 = vadd.f32 %v1498, %v1602
        %v1604 = vpop.f32.mrb[0].mxu0
        %1605 = vdwg.mxu0
        %v1606 = vmul.f32 %v1568, %v1278
        %v1607 = vmul.f32 %v1573, %v1284
        %v1608 = vmul.f32 %v1578, %v1290
        %v1609 = vmul.f32 %v1583, %v1296
        %v1610 = vmul.f32 %v1588, %v1302
        %v1611 = vmul.f32 %v1593, %v1308
        %v1612 = vmul.f32 %v1598, %v1314
        %v1613 = vmul.f32 %v1603, %v1320
        %1614 = vst [vmem:[#allocation4] sm:$0xff] %v1606
        %1615 = vst [vmem:[#allocation4 + $0x18] sm:$0xff] %v1607
        %1616 = vst [vmem:[#allocation4 + $0x30] sm:$0xff] %v1608
        %1617 = vst [vmem:[#allocation4 + $0x48] sm:$0xff] %v1609
        %1618 = vst [vmem:[#allocation4 + $0x60] sm:$0xff] %v1610
        %1619 = vst [vmem:[#allocation4 + $0x78] sm:$0xff] %v1611
        %1620 = vst [vmem:[#allocation4 + $0x90] sm:$0xff] %v1612
        %1621 = vst [vmem:[#allocation4 + $0xa8] sm:$0xff] %v1613
        %v1622 = vld [vmem:[#allocation2 + $0x1a] sm:$0xff]
        %v1623 = vld [vmem:[#allocation2 + $0x22] sm:$0xff]
        %v1624 = vld [vmem:[#allocation2 + $0x2a] sm:$0xff]
        %v1625 = vld [vmem:[#allocation2 + $0x32] sm:$0xff]
        %v1626 = vld [vmem:[#allocation2 + $0x3a] sm:$0xff]
        %v1627 = vld [vmem:[#allocation2 + $0x42] sm:$0xff]
        %v1628 = vld [vmem:[#allocation2 + $0x4a] sm:$0xff]
        %v1629 = vld [vmem:[#allocation2 + $0x52] sm:$0xff]
        %v1630 = vld [vmem:[#allocation2 + $0x1c] sm:$0xff]
        %v1631 = vld [vmem:[#allocation2 + $0x24] sm:$0xff]
        %v1632 = vld [vmem:[#allocation2 + $0x2c] sm:$0xff]
        %v1633 = vld [vmem:[#allocation2 + $0x34] sm:$0xff]
        %v1634 = vld [vmem:[#allocation2 + $0x3c] sm:$0xff]
        %v1635 = vld [vmem:[#allocation2 + $0x44] sm:$0xff]
        %v1636 = vld [vmem:[#allocation2 + $0x4c] sm:$0xff]
        %v1637 = vld [vmem:[#allocation2 + $0x54] sm:$0xff]
        %v1638 = vld [vmem:[#allocation2 + $0x1e] sm:$0xff]
        %v1639 = vld [vmem:[#allocation2 + $0x26] sm:$0xff]
        %v1640 = vld [vmem:[#allocation2 + $0x2e] sm:$0xff]
        %v1641 = vld [vmem:[#allocation2 + $0x36] sm:$0xff]
        %v1642 = vld [vmem:[#allocation2 + $0x3e] sm:$0xff]
        %v1643 = vld [vmem:[#allocation2 + $0x46] sm:$0xff]
        %v1644 = vld [vmem:[#allocation2 + $0x4e] sm:$0xff]
        %v1645 = vld [vmem:[#allocation2 + $0x56] sm:$0xff]
        %v1646 = vld [vmem:[#allocation2 + $0x20] sm:$0xff]
        %v1647 = vld [vmem:[#allocation2 + $0x28] sm:$0xff]
        %v1648 = vld [vmem:[#allocation2 + $0x30] sm:$0xff]
        %v1649 = vld [vmem:[#allocation2 + $0x38] sm:$0xff]
        %v1650 = vld [vmem:[#allocation2 + $0x40] sm:$0xff]
        %v1651 = vld [vmem:[#allocation2 + $0x48] sm:$0xff]
        %v1652 = vld [vmem:[#allocation2 + $0x50] sm:$0xff]
        %v1653 = vld [vmem:[#allocation2 + $0x58] sm:$0xff]
        %v1654 = vld [vmem:[#allocation2 + $0x5a] sm:$0xff]
        %v1655 = vld [vmem:[#allocation2 + $0x5c] sm:$0xff]
        %v1656 = vld [vmem:[#allocation2 + $0x5e] sm:$0xff]
        %v1657 = vld [vmem:[#allocation11] sm:$0xff]
        %v1658 = vld [vmem:[#allocation11 + $0x8] sm:$0xff]
        %v1659 = vld [vmem:[#allocation11 + $0x10] sm:$0xff]
        %v1660 = vld [vmem:[#allocation11 + $0x18] sm:$0xff]
        %v1661 = vld [vmem:[#allocation11 + $0x20] sm:$0xff]
        %v1662 = vld [vmem:[#allocation11 + $0x28] sm:$0xff]
        %v1663 = vld [vmem:[#allocation11 + $0x30] sm:$0xff]
        %v1664 = vld [vmem:[#allocation11 + $0x38] sm:$0xff]
        %v1665 = vld [vmem:[#allocation11 + $0x40] sm:$0xff]
        %v1666 = vld [vmem:[#allocation11 + $0x48] sm:$0xff]
        %v1667 = vld [vmem:[#allocation11 + $0x50] sm:$0xff]
        %v1668 = vld [vmem:[#allocation11 + $0x58] sm:$0xff]
        %v1669 = vld [vmem:[#allocation11 + $0x60] sm:$0xff]
        %v1670 = vld [vmem:[#allocation11 + $0x68] sm:$0xff]
        %v1671 = vld [vmem:[#allocation11 + $0x70] sm:$0xff]
        %v1672 = vld [vmem:[#allocation11 + $0x78] sm:$0xff]
        %v1673 = vld [vmem:[#allocation11 + $0x80] sm:$0xff]
        %v1674 = vld [vmem:[#allocation11 + $0x88] sm:$0xff]
        %v1675 = vld [vmem:[#allocation11 + $0x90] sm:$0xff]
        %v1676 = vld [vmem:[#allocation11 + $0x98] sm:$0xff]
        %v1677 = vld [vmem:[#allocation11 + $0xa0] sm:$0xff]
        %v1678 = vld [vmem:[#allocation11 + $0xa8] sm:$0xff]
        %v1679 = vld [vmem:[#allocation11 + $0xb0] sm:$0xff]
        %v1680 = vld [vmem:[#allocation11 + $0xb8] sm:$0xff]
        %v1681 = vld [vmem:[#allocation11 + $0xc0] sm:$0xff]
        %v1682 = vld [vmem:[#allocation11 + $0xc8] sm:$0xff]
        %v1683 = vld [vmem:[#allocation11 + $0xd0] sm:$0xff]
        %v1684 = vld [vmem:[#allocation11 + $0xd8] sm:$0xff]
        %v1685 = vld [vmem:[#allocation11 + $0xe0] sm:$0xff]
        %v1686 = vld [vmem:[#allocation11 + $0xe8] sm:$0xff]
        %v1687 = vld [vmem:[#allocation11 + $0xf0] sm:$0xff]
        %v1688 = vld [vmem:[#allocation11 + $0xf8] sm:$0xff]
        %v1689 = vld [vmem:[#allocation11 + $0x100] sm:$0xff]
        %v1690 = vld [vmem:[#allocation11 + $0x108] sm:$0xff]
        %v1691 = vld [vmem:[#allocation11 + $0x110] sm:$0xff]
        %v1692 = vld [vmem:[#allocation11 + $0x118] sm:$0xff]
        %v1693 = vld [vmem:[#allocation11 + $0x120] sm:$0xff]
        %v1694 = vld [vmem:[#allocation11 + $0x128] sm:$0xff]
        %v1695 = vld [vmem:[#allocation11 + $0x130] sm:$0xff]
        %v1696 = vld [vmem:[#allocation11 + $0x138] sm:$0xff]
        %v1697 = vld [vmem:[#allocation11 + $0x140] sm:$0xff]
        %v1698 = vld [vmem:[#allocation11 + $0x148] sm:$0xff]
        %v1699 = vld [vmem:[#allocation11 + $0x150] sm:$0xff]
        %v1700 = vld [vmem:[#allocation11 + $0x158] sm:$0xff]
        %v1701 = vld [vmem:[#allocation11 + $0x160] sm:$0xff]
        %v1702 = vld [vmem:[#allocation11 + $0x168] sm:$0xff]
        %v1703 = vld [vmem:[#allocation11 + $0x170] sm:$0xff]
        %v1704 = vld [vmem:[#allocation11 + $0x178] sm:$0xff]
        %v1705 = vld [vmem:[#allocation11 + $0x180] sm:$0xff]
        %v1706 = vld [vmem:[#allocation11 + $0x188] sm:$0xff]
        %v1707 = vld [vmem:[#allocation11 + $0x190] sm:$0xff]
        %v1708 = vld [vmem:[#allocation11 + $0x198] sm:$0xff]
        %v1709 = vld [vmem:[#allocation11 + $0x1a0] sm:$0xff]
        %v1710 = vld [vmem:[#allocation11 + $0x1a8] sm:$0xff]
        %v1711 = vld [vmem:[#allocation11 + $0x1b0] sm:$0xff]
        %v1712 = vld [vmem:[#allocation11 + $0x1b8] sm:$0xff]
        %v1713 = vld [vmem:[#allocation11 + $0x1c0] sm:$0xff]
        %v1714 = vld [vmem:[#allocation11 + $0x1c8] sm:$0xff]
        %v1715 = vld [vmem:[#allocation11 + $0x1d0] sm:$0xff]
        %v1716 = vld [vmem:[#allocation11 + $0x1d8] sm:$0xff]
        %v1717 = vld [vmem:[#allocation11 + $0x1e0] sm:$0xff]
        %v1718 = vld [vmem:[#allocation11 + $0x1e8] sm:$0xff]
        %v1719 = vld [vmem:[#allocation11 + $0x1f0] sm:$0xff]
        %v1720 = vld [vmem:[#allocation11 + $0x1f8] sm:$0xff]
        %v1721 = vld [vmem:[#allocation11 + $0x200] sm:$0xff]
        %v1722 = vld [vmem:[#allocation11 + $0x208] sm:$0xff]
        %v1723 = vld [vmem:[#allocation11 + $0x210] sm:$0xff]
        %v1724 = vld [vmem:[#allocation11 + $0x218] sm:$0xff]
        %v1725 = vld [vmem:[#allocation11 + $0x220] sm:$0xff]
        %v1726 = vld [vmem:[#allocation11 + $0x228] sm:$0xff]
        %v1727 = vld [vmem:[#allocation11 + $0x230] sm:$0xff]
        %v1728 = vld [vmem:[#allocation11 + $0x238] sm:$0xff]
        %v1729 = vld [vmem:[#allocation11 + $0x240] sm:$0xff]
        %v1730 = vld [vmem:[#allocation11 + $0x248] sm:$0xff]
        %v1731 = vld [vmem:[#allocation11 + $0x250] sm:$0xff]
        %v1732 = vld [vmem:[#allocation11 + $0x258] sm:$0xff]
        %v1733 = vld [vmem:[#allocation11 + $0x260] sm:$0xff]
        %v1734 = vld [vmem:[#allocation11 + $0x268] sm:$0xff]
        %v1735 = vld [vmem:[#allocation11 + $0x270] sm:$0xff]
        %v1736 = vld [vmem:[#allocation11 + $0x278] sm:$0xff]
        %v1737 = vld [vmem:[#allocation11 + $0x280] sm:$0xff]
        %v1738 = vld [vmem:[#allocation11 + $0x288] sm:$0xff]
        %v1739 = vld [vmem:[#allocation11 + $0x290] sm:$0xff]
        %v1740 = vld [vmem:[#allocation11 + $0x298] sm:$0xff]
        %v1741 = vld [vmem:[#allocation11 + $0x2a0] sm:$0xff]
        %v1742 = vld [vmem:[#allocation11 + $0x2a8] sm:$0xff]
        %v1743 = vld [vmem:[#allocation11 + $0x2b0] sm:$0xff]
        %v1744 = vld [vmem:[#allocation11 + $0x2b8] sm:$0xff]
        %v1745 = vld [vmem:[#allocation11 + $0x2c0] sm:$0xff]
        %v1746 = vld [vmem:[#allocation11 + $0x2c8] sm:$0xff]
        %v1747 = vld [vmem:[#allocation11 + $0x2d0] sm:$0xff]
        %v1748 = vld [vmem:[#allocation11 + $0x2d8] sm:$0xff]
        %v1749 = vld [vmem:[#allocation11 + $0x2e0] sm:$0xff]
        %v1750 = vld [vmem:[#allocation11 + $0x2e8] sm:$0xff]
        %v1751 = vld [vmem:[#allocation11 + $0x2f0] sm:$0xff]
        %v1752 = vld [vmem:[#allocation11 + $0x2f8] sm:$0xff]
        %v1753 = vld [vmem:[#allocation11 + $0x300] sm:$0xff]
        %v1754 = vld [vmem:[#allocation11 + $0x308] sm:$0xff]
        %v1755 = vld [vmem:[#allocation11 + $0x310] sm:$0xff]
        %v1756 = vld [vmem:[#allocation11 + $0x318] sm:$0xff]
        %v1757 = vld [vmem:[#allocation11 + $0x320] sm:$0xff]
        %v1758 = vld [vmem:[#allocation11 + $0x328] sm:$0xff]
        %v1759 = vld [vmem:[#allocation11 + $0x330] sm:$0xff]
        %v1760 = vld [vmem:[#allocation11 + $0x338] sm:$0xff]
        %v1761 = vld [vmem:[#allocation11 + $0x340] sm:$0xff]
        %v1762 = vld [vmem:[#allocation11 + $0x348] sm:$0xff]
        %v1763 = vld [vmem:[#allocation11 + $0x350] sm:$0xff]
        %v1764 = vld [vmem:[#allocation11 + $0x358] sm:$0xff]
        %v1765 = vld [vmem:[#allocation11 + $0x360] sm:$0xff]
        %v1766 = vld [vmem:[#allocation11 + $0x368] sm:$0xff]
        %v1767 = vld [vmem:[#allocation11 + $0x370] sm:$0xff]
        %v1768 = vld [vmem:[#allocation11 + $0x378] sm:$0xff]
        %v1769 = vld [vmem:[%s4 + $0x1] sm:$0x1]
        %v1771 = vlaneseq
        %v1772 = vshrl.u32 %v1771, 7
        %v1773 = vsub.s32 0, %v1772
        %v1774 = vrot.slane %v1769, %v1773
        %1776 = vmatprep.subr.mxu0 0.0
        %1777 = vmatpush1.msra.mxu0 %v1657
        %1778 = vmatprep.subr.mxu0 0.0
        %1779 = vmatpush1.msra.mxu0 %v1658
        %1780 = vmatprep.subr.mxu0 0.0
        %1781 = vmatpush1.msra.mxu0 %v1659
        %1782 = vmatprep.subr.mxu0 0.0
        %1783 = vmatpush1.msra.mxu0 %v1660
        %1784 = vmatprep.subr.mxu0 0.0
        %1785 = vmatpush1.msra.mxu0 %v1661
        %1786 = vmatprep.subr.mxu0 0.0
        %1787 = vmatpush1.msra.mxu0 %v1662
        %1788 = vmatprep.subr.mxu0 0.0
        %1789 = vmatpush1.msra.mxu0 %v1663
        %1790 = vmatprep.subr.mxu0 0.0
        %1791 = vmatpush1.msra.mxu0 %v1664
        %1792 = vmatprep.subr.mxu0 0.0
        %1793 = vmatpush1.msra.mxu0 %v1665
        %1794 = vmatprep.subr.mxu0 0.0
        %1795 = vmatpush1.msra.mxu0 %v1666
        %1796 = vmatprep.subr.mxu0 0.0
        %1797 = vmatpush1.msra.mxu0 %v1667
        %1798 = vmatprep.subr.mxu0 0.0
        %1799 = vmatpush1.msra.mxu0 %v1668
        %1800 = vmatprep.subr.mxu0 0.0
        %1801 = vmatpush1.msra.mxu0 %v1669
        %1802 = vmatprep.subr.mxu0 0.0
        %1803 = vmatpush1.msra.mxu0 %v1670
        %1804 = vmatprep.subr.mxu0 0.0
        %1805 = vmatpush1.msra.mxu0 %v1671
        %1806 = vmatprep.subr.mxu0 0.0
        %1807 = vmatpush1.msra.mxu0 %v1672
        %1808 = vmatprep.subr.mxu0 0.0
        %1809 = vmatpush1.msra.mxu0 %v1673
        %1810 = vmatprep.subr.mxu0 0.0
        %1811 = vmatpush1.msra.mxu0 %v1674
        %1812 = vmatprep.subr.mxu0 0.0
        %1813 = vmatpush1.msra.mxu0 %v1675
        %1814 = vmatprep.subr.mxu0 0.0
        %1815 = vmatpush1.msra.mxu0 %v1676
        %1816 = vmatprep.subr.mxu0 0.0
        %1817 = vmatpush1.msra.mxu0 %v1677
        %1818 = vmatprep.subr.mxu0 0.0
        %1819 = vmatpush1.msra.mxu0 %v1678
        %1820 = vmatprep.subr.mxu0 0.0
        %1821 = vmatpush1.msra.mxu0 %v1679
        %1822 = vmatprep.subr.mxu0 0.0
        %1823 = vmatpush1.msra.mxu0 %v1680
        %1824 = vmatprep.subr.mxu0 0.0
        %1825 = vmatpush1.msra.mxu0 %v1681
        %1826 = vmatprep.subr.mxu0 0.0
        %1827 = vmatpush1.msra.mxu0 %v1682
        %1828 = vmatprep.subr.mxu0 0.0
        %1829 = vmatpush1.msra.mxu0 %v1683
        %1830 = vmatprep.subr.mxu0 0.0
        %1831 = vmatpush1.msra.mxu0 %v1684
        %1832 = vmatprep.subr.mxu0 0.0
        %1833 = vmatpush1.msra.mxu0 %v1685
        %1834 = vmatprep.subr.mxu0 0.0
        %1835 = vmatpush1.msra.mxu0 %v1686
        %1836 = vmatprep.subr.mxu0 0.0
        %1837 = vmatpush1.msra.mxu0 %v1687
        %1838 = vmatprep.subr.mxu0 0.0
        %1839 = vmatpush1.msra.mxu0 %v1688
        %1840 = vmatprep.mubr.f32.mxu0 %v1630
        %1841 = vmatmul.mubr.f32.gmra.mrb[0].mxu0 %v1622
        %v1842 = vpop.f32.mrb[0].mxu0
        %v1843 = vadd.f32 %v1774, %v1842
        %v1844 = vpop.f32.mrb[0].mxu0
        %1845 = vmatprep.mubr.f32.mxu0 %v1631
        %1846 = vmatmul.mubr.f32.gmra.mrb[0].mxu0 %v1623
        %v1847 = vpop.f32.mrb[0].mxu0
        %v1848 = vadd.f32 %v1774, %v1847
        %v1849 = vpop.f32.mrb[0].mxu0
        %1850 = vmatprep.mubr.f32.mxu0 %v1632
        %1851 = vmatmul.mubr.f32.gmra.mrb[0].mxu0 %v1624
        %v1852 = vpop.f32.mrb[0].mxu0
        %v1853 = vadd.f32 %v1774, %v1852
        %v1854 = vpop.f32.mrb[0].mxu0
        %1855 = vmatprep.mubr.f32.mxu0 %v1633
        %1856 = vmatmul.mubr.f32.gmra.mrb[0].mxu0 %v1625
        %v1857 = vpop.f32.mrb[0].mxu0
        %v1858 = vadd.f32 %v1774, %v1857
        %v1859 = vpop.f32.mrb[0].mxu0
        %1860 = vmatprep.mubr.f32.mxu0 %v1634
        %1861 = vmatmul.mubr.f32.gmra.mrb[0].mxu0 %v1626
        %v1862 = vpop.f32.mrb[0].mxu0
        %v1863 = vadd.f32 %v1774, %v1862
        %v1864 = vpop.f32.mrb[0].mxu0
        %1865 = vmatprep.mubr.f32.mxu0 %v1635
        %1866 = vmatmul.mubr.f32.gmra.mrb[0].mxu0 %v1627
        %v1867 = vpop.f32.mrb[0].mxu0
        %v1868 = vadd.f32 %v1774, %v1867
        %v1869 = vpop.f32.mrb[0].mxu0
        %1870 = vmatprep.mubr.f32.mxu0 %v1636
        %1871 = vmatmul.mubr.f32.gmra.mrb[0].mxu0 %v1628
        %v1872 = vpop.f32.mrb[0].mxu0
        %v1873 = vadd.f32 %v1774, %v1872
        %v1874 = vpop.f32.mrb[0].mxu0
        %1875 = vmatprep.mubr.f32.mxu0 %v1637
        %1876 = vmatmul.mubr.f32.gmra.mrb[0].mxu0 %v1629
        %v1877 = vpop.f32.mrb[0].mxu0
        %v1878 = vadd.f32 %v1774, %v1877
        %v1879 = vpop.f32.mrb[0].mxu0
        %1880 = vdwg.mxu0
        %1881 = vmatprep.subr.mxu0 0.0
        %1882 = vmatpush1.msra.mxu0 %v1689
        %1883 = vmatprep.subr.mxu0 0.0
        %1884 = vmatpush1.msra.mxu0 %v1690
        %1885 = vmatprep.subr.mxu0 0.0
        %1886 = vmatpush1.msra.mxu0 %v1691
        %1887 = vmatprep.subr.mxu0 0.0
        %1888 = vmatpush1.msra.mxu0 %v1692
        %1889 = vmatprep.subr.mxu0 0.0
        %1890 = vmatpush1.msra.mxu0 %v1693
        %1891 = vmatprep.subr.mxu0 0.0
        %1892 = vmatpush1.msra.mxu0 %v1694
        %1893 = vmatprep.subr.mxu0 0.0
        %1894 = vmatpush1.msra.mxu0 %v1695
        %1895 = vmatprep.subr.mxu0 0.0
        %1896 = vmatpush1.msra.mxu0 %v1696
        %1897 = vmatprep.subr.mxu0 0.0
        %1898 = vmatpush1.msra.mxu0 %v1697
        %1899 = vmatprep.subr.mxu0 0.0
        %1900 = vmatpush1.msra.mxu0 %v1698
        %1901 = vmatprep.subr.mxu0 0.0
        %1902 = vmatpush1.msra.mxu0 %v1699
        %1903 = vmatprep.subr.mxu0 0.0
        %1904 = vmatpush1.msra.mxu0 %v1700
        %1905 = vmatprep.subr.mxu0 0.0
        %1906 = vmatpush1.msra.mxu0 %v1701
        %1907 = vmatprep.subr.mxu0 0.0
        %1908 = vmatpush1.msra.mxu0 %v1702
        %1909 = vmatprep.subr.mxu0 0.0
        %1910 = vmatpush1.msra.mxu0 %v1703
        %1911 = vmatprep.subr.mxu0 0.0
        %1912 = vmatpush1.msra.mxu0 %v1704
        %1913 = vmatprep.subr.mxu0 0.0
        %1914 = vmatpush1.msra.mxu0 %v1705
        %1915 = vmatprep.subr.mxu0 0.0
        %1916 = vmatpush1.msra.mxu0 %v1706
        %1917 = vmatprep.subr.mxu0 0.0
        %1918 = vmatpush1.msra.mxu0 %v1707
        %1919 = vmatprep.subr.mxu0 0.0
        %1920 = vmatpush1.msra.mxu0 %v1708
        %1921 = vmatprep.subr.mxu0 0.0
        %1922 = vmatpush1.msra.mxu0 %v1709
        %1923 = vmatprep.subr.mxu0 0.0
        %1924 = vmatpush1.msra.mxu0 %v1710
        %1925 = vmatprep.subr.mxu0 0.0
        %1926 = vmatpush1.msra.mxu0 %v1711
        %1927 = vmatprep.subr.mxu0 0.0
        %1928 = vmatpush1.msra.mxu0 %v1712
        %1929 = vmatprep.subr.mxu0 0.0
        %1930 = vmatpush1.msra.mxu0 %v1713
        %1931 = vmatprep.subr.mxu0 0.0
        %1932 = vmatpush1.msra.mxu0 %v1714
        %1933 = vmatprep.subr.mxu0 0.0
        %1934 = vmatpush1.msra.mxu0 %v1715
        %1935 = vmatprep.subr.mxu0 0.0
        %1936 = vmatpush1.msra.mxu0 %v1716
        %1937 = vmatprep.subr.mxu0 0.0
        %1938 = vmatpush1.msra.mxu0 %v1717
        %1939 = vmatprep.subr.mxu0 0.0
        %1940 = vmatpush1.msra.mxu0 %v1718
        %1941 = vmatprep.subr.mxu0 0.0
        %1942 = vmatpush1.msra.mxu0 %v1719
        %1943 = vmatprep.subr.mxu0 0.0
        %1944 = vmatpush1.msra.mxu0 %v1720
        %1945 = vmatprep.mubr.f32.mxu0 %v1646
        %1946 = vmatmul.mubr.f32.gmra.mrb[0].mxu0 %v1638
        %v1947 = vpop.f32.mrb[0].mxu0
        %v1948 = vadd.f32 %v1843, %v1947
        %v1949 = vpop.f32.mrb[0].mxu0
        %1950 = vmatprep.mubr.f32.mxu0 %v1647
        %1951 = vmatmul.mubr.f32.gmra.mrb[0].mxu0 %v1639
        %v1952 = vpop.f32.mrb[0].mxu0
        %v1953 = vadd.f32 %v1848, %v1952
        %v1954 = vpop.f32.mrb[0].mxu0
        %1955 = vmatprep.mubr.f32.mxu0 %v1648
        %1956 = vmatmul.mubr.f32.gmra.mrb[0].mxu0 %v1640
        %v1957 = vpop.f32.mrb[0].mxu0
        %v1958 = vadd.f32 %v1853, %v1957
        %v1959 = vpop.f32.mrb[0].mxu0
        %1960 = vmatprep.mubr.f32.mxu0 %v1649
        %1961 = vmatmul.mubr.f32.gmra.mrb[0].mxu0 %v1641
        %v1962 = vpop.f32.mrb[0].mxu0
        %v1963 = vadd.f32 %v1858, %v1962
        %v1964 = vpop.f32.mrb[0].mxu0
        %1965 = vmatprep.mubr.f32.mxu0 %v1650
        %1966 = vmatmul.mubr.f32.gmra.mrb[0].mxu0 %v1642
        %v1967 = vpop.f32.mrb[0].mxu0
        %v1968 = vadd.f32 %v1863, %v1967
        %v1969 = vpop.f32.mrb[0].mxu0
        %1970 = vmatprep.mubr.f32.mxu0 %v1651
        %1971 = vmatmul.mubr.f32.gmra.mrb[0].mxu0 %v1643
        %v1972 = vpop.f32.mrb[0].mxu0
        %v1973 = vadd.f32 %v1868, %v1972
        %v1974 = vpop.f32.mrb[0].mxu0
        %1975 = vmatprep.mubr.f32.mxu0 %v1652
        %1976 = vmatmul.mubr.f32.gmra.mrb[0].mxu0 %v1644
        %v1977 = vpop.f32.mrb[0].mxu0
        %v1978 = vadd.f32 %v1873, %v1977
        %v1979 = vpop.f32.mrb[0].mxu0
        %1980 = vmatprep.mubr.f32.mxu0 %v1653
        %1981 = vmatmul.mubr.f32.gmra.mrb[0].mxu0 %v1645
        %v1982 = vpop.f32.mrb[0].mxu0
        %v1983 = vadd.f32 %v1878, %v1982
        %v1984 = vpop.f32.mrb[0].mxu0
        %1985 = vdwg.mxu0
        %1986 = vmatprep.subr.mxu0 0.0
        %1987 = vmatpush1.msra.mxu0 %v1721
        %1988 = vmatprep.subr.mxu0 0.0
        %1989 = vmatpush1.msra.mxu0 %v1722
        %1990 = vmatprep.subr.mxu0 0.0
        %1991 = vmatpush1.msra.mxu0 %v1723
        %1992 = vmatprep.subr.mxu0 0.0
        %1993 = vmatpush1.msra.mxu0 %v1724
        %1994 = vmatprep.subr.mxu0 0.0
        %1995 = vmatpush1.msra.mxu0 %v1725
        %1996 = vmatprep.subr.mxu0 0.0
        %1997 = vmatpush1.msra.mxu0 %v1726
        %1998 = vmatprep.subr.mxu0 0.0
        %1999 = vmatpush1.msra.mxu0 %v1727
        %2000 = vmatprep.subr.mxu0 0.0
        %2001 = vmatpush1.msra.mxu0 %v1728
        %2002 = vmatprep.subr.mxu0 0.0
        %2003 = vmatpush1.msra.mxu0 %v1729
        %2004 = vmatprep.subr.mxu0 0.0
        %2005 = vmatpush1.msra.mxu0 %v1730
        %2006 = vmatprep.subr.mxu0 0.0
        %2007 = vmatpush1.msra.mxu0 %v1731
        %2008 = vmatprep.subr.mxu0 0.0
        %2009 = vmatpush1.msra.mxu0 %v1732
        %2010 = vmatprep.subr.mxu0 0.0
        %2011 = vmatpush1.msra.mxu0 %v1733
        %2012 = vmatprep.subr.mxu0 0.0
        %2013 = vmatpush1.msra.mxu0 %v1734
        %2014 = vmatprep.subr.mxu0 0.0
        %2015 = vmatpush1.msra.mxu0 %v1735
        %2016 = vmatprep.subr.mxu0 0.0
        %2017 = vmatpush1.msra.mxu0 %v1736
        %2018 = vmatprep.subr.mxu0 0.0
        %2019 = vmatpush1.msra.mxu0 %v1737
        %2020 = vmatprep.subr.mxu0 0.0
        %2021 = vmatpush1.msra.mxu0 %v1738
        %2022 = vmatprep.subr.mxu0 0.0
        %2023 = vmatpush1.msra.mxu0 %v1739
        %2024 = vmatprep.subr.mxu0 0.0
        %2025 = vmatpush1.msra.mxu0 %v1740
        %2026 = vmatprep.subr.mxu0 0.0
        %2027 = vmatpush1.msra.mxu0 %v1741
        %2028 = vmatprep.subr.mxu0 0.0
        %2029 = vmatpush1.msra.mxu0 %v1742
        %2030 = vmatprep.subr.mxu0 0.0
        %2031 = vmatpush1.msra.mxu0 %v1743
        %2032 = vmatprep.subr.mxu0 0.0
        %2033 = vmatpush1.msra.mxu0 %v1744
        %2034 = vmatprep.subr.mxu0 0.0
        %2035 = vmatpush1.msra.mxu0 %v1745
        %2036 = vmatprep.subr.mxu0 0.0
        %2037 = vmatpush1.msra.mxu0 %v1746
        %2038 = vmatprep.subr.mxu0 0.0
        %2039 = vmatpush1.msra.mxu0 %v1747
        %2040 = vmatprep.subr.mxu0 0.0
        %2041 = vmatpush1.msra.mxu0 %v1748
        %2042 = vmatprep.subr.mxu0 0.0
        %2043 = vmatpush1.msra.mxu0 %v1749
        %2044 = vmatprep.subr.mxu0 0.0
        %2045 = vmatpush1.msra.mxu0 %v1750
        %2046 = vmatprep.subr.mxu0 0.0
        %2047 = vmatpush1.msra.mxu0 %v1751
        %2048 = vmatprep.subr.mxu0 0.0
        %2049 = vmatpush1.msra.mxu0 %v1752
        %2050 = vmatprep.mubr.f32.mxu0 %v1631
        %2051 = vmatmul.mubr.f32.gmra.mrb[0].mxu0 %v1623
        %v2052 = vpop.f32.mrb[0].mxu0
        %v2053 = vadd.f32 %v1948, %v2052
        %v2054 = vpop.f32.mrb[0].mxu0
        %2055 = vmatprep.mubr.f32.mxu0 %v1632
        %2056 = vmatmul.mubr.f32.gmra.mrb[0].mxu0 %v1624
        %v2057 = vpop.f32.mrb[0].mxu0
        %v2058 = vadd.f32 %v1953, %v2057
        %v2059 = vpop.f32.mrb[0].mxu0
        %2060 = vmatprep.mubr.f32.mxu0 %v1633
        %2061 = vmatmul.mubr.f32.gmra.mrb[0].mxu0 %v1625
        %v2062 = vpop.f32.mrb[0].mxu0
        %v2063 = vadd.f32 %v1958, %v2062
        %v2064 = vpop.f32.mrb[0].mxu0
        %2065 = vmatprep.mubr.f32.mxu0 %v1634
        %2066 = vmatmul.mubr.f32.gmra.mrb[0].mxu0 %v1626
        %v2067 = vpop.f32.mrb[0].mxu0
        %v2068 = vadd.f32 %v1963, %v2067
        %v2069 = vpop.f32.mrb[0].mxu0
        %2070 = vmatprep.mubr.f32.mxu0 %v1635
        %2071 = vmatmul.mubr.f32.gmra.mrb[0].mxu0 %v1627
        %v2072 = vpop.f32.mrb[0].mxu0
        %v2073 = vadd.f32 %v1968, %v2072
        %v2074 = vpop.f32.mrb[0].mxu0
        %2075 = vmatprep.mubr.f32.mxu0 %v1636
        %2076 = vmatmul.mubr.f32.gmra.mrb[0].mxu0 %v1628
        %v2077 = vpop.f32.mrb[0].mxu0
        %v2078 = vadd.f32 %v1973, %v2077
        %v2079 = vpop.f32.mrb[0].mxu0
        %2080 = vmatprep.mubr.f32.mxu0 %v1637
        %2081 = vmatmul.mubr.f32.gmra.mrb[0].mxu0 %v1629
        %v2082 = vpop.f32.mrb[0].mxu0
        %v2083 = vadd.f32 %v1978, %v2082
        %v2084 = vpop.f32.mrb[0].mxu0
        %2085 = vmatprep.mubr.f32.mxu0 %v1655
        %2086 = vmatmul.mubr.f32.gmra.mrb[0].mxu0 %v1654
        %v2087 = vpop.f32.mrb[0].mxu0
        %v2088 = vadd.f32 %v1983, %v2087
        %v2089 = vpop.f32.mrb[0].mxu0
        %2090 = vdwg.mxu0
        %2091 = vmatprep.subr.mxu0 0.0
        %2092 = vmatpush1.msra.mxu0 %v1753
        %2093 = vmatprep.subr.mxu0 0.0
        %2094 = vmatpush1.msra.mxu0 %v1754
        %2095 = vmatprep.subr.mxu0 0.0
        %2096 = vmatpush1.msra.mxu0 %v1755
        %2097 = vmatprep.subr.mxu0 0.0
        %2098 = vmatpush1.msra.mxu0 %v1756
        %2099 = vmatprep.subr.mxu0 0.0
        %2100 = vmatpush1.msra.mxu0 %v1757
        %2101 = vmatprep.subr.mxu0 0.0
        %2102 = vmatpush1.msra.mxu0 %v1758
        %2103 = vmatprep.subr.mxu0 0.0
        %2104 = vmatpush1.msra.mxu0 %v1759
        %2105 = vmatprep.subr.mxu0 0.0
        %2106 = vmatpush1.msra.mxu0 %v1760
        %2107 = vmatprep.subr.mxu0 0.0
        %2108 = vmatpush1.msra.mxu0 %v1761
        %2109 = vmatprep.subr.mxu0 0.0
        %2110 = vmatpush1.msra.mxu0 %v1762
        %2111 = vmatprep.subr.mxu0 0.0
        %2112 = vmatpush1.msra.mxu0 %v1763
        %2113 = vmatprep.subr.mxu0 0.0
        %2114 = vmatpush1.msra.mxu0 %v1764
        %2115 = vmatprep.subr.mxu0 0.0
        %2116 = vmatpush1.msra.mxu0 %v1765
        %2117 = vmatprep.subr.mxu0 0.0
        %2118 = vmatpush1.msra.mxu0 %v1766
        %2119 = vmatprep.subr.mxu0 0.0
        %2120 = vmatpush1.msra.mxu0 %v1767
        %2121 = vmatprep.subr.mxu0 0.0
        %2122 = vmatpush1.msra.mxu0 %v1768
        %2123 = vmatprep.subr.mxu0 0.0
        %2124 = vmatpush1.msra.mxu0 0.0
        %2125 = vmatprep.subr.mxu0 0.0
        %2126 = vmatpush1.msra.mxu0 0.0
        %2127 = vmatprep.subr.mxu0 0.0
        %2128 = vmatpush1.msra.mxu0 0.0
        %2129 = vmatprep.subr.mxu0 0.0
        %2130 = vmatpush1.msra.mxu0 0.0
        %2131 = vmatprep.subr.mxu0 0.0
        %2132 = vmatpush1.msra.mxu0 0.0
        %2133 = vmatprep.subr.mxu0 0.0
        %2134 = vmatpush1.msra.mxu0 0.0
        %2135 = vmatprep.subr.mxu0 0.0
        %2136 = vmatpush1.msra.mxu0 0.0
        %2137 = vmatprep.subr.mxu0 0.0
        %2138 = vmatpush1.msra.mxu0 0.0
        %2139 = vmatprep.subr.mxu0 0.0
        %2140 = vmatpush1.msra.mxu0 0.0
        %2141 = vmatprep.subr.mxu0 0.0
        %2142 = vmatpush1.msra.mxu0 0.0
        %2143 = vmatprep.subr.mxu0 0.0
        %2144 = vmatpush1.msra.mxu0 0.0
        %2145 = vmatprep.subr.mxu0 0.0
        %2146 = vmatpush1.msra.mxu0 0.0
        %2147 = vmatprep.subr.mxu0 0.0
        %2148 = vmatpush1.msra.mxu0 0.0
        %2149 = vmatprep.subr.mxu0 0.0
        %2150 = vmatpush1.msra.mxu0 0.0
        %2151 = vmatprep.subr.mxu0 0.0
        %2152 = vmatpush1.msra.mxu0 0.0
        %2153 = vmatprep.subr.mxu0 0.0
        %2154 = vmatpush1.msra.mxu0 0.0
        %2155 = vmatprep.mubr.f32.mxu0 0.0
        %2156 = vmatmul.mubr.f32.gmra.mrb[0].mxu0 %v1639
        %v2157 = vpop.f32.mrb[0].mxu0
        %v2158 = vadd.f32 %v2053, %v2157
        %v2159 = vpop.f32.mrb[0].mxu0
        %2160 = vmatprep.mubr.f32.mxu0 0.0
        %2161 = vmatmul.mubr.f32.gmra.mrb[0].mxu0 %v1640
        %v2162 = vpop.f32.mrb[0].mxu0
        %v2163 = vadd.f32 %v2058, %v2162
        %v2164 = vpop.f32.mrb[0].mxu0
        %2165 = vmatprep.mubr.f32.mxu0 0.0
        %2166 = vmatmul.mubr.f32.gmra.mrb[0].mxu0 %v1641
        %v2167 = vpop.f32.mrb[0].mxu0
        %v2168 = vadd.f32 %v2063, %v2167
        %v2169 = vpop.f32.mrb[0].mxu0
        %2170 = vmatprep.mubr.f32.mxu0 0.0
        %2171 = vmatmul.mubr.f32.gmra.mrb[0].mxu0 %v1642
        %v2172 = vpop.f32.mrb[0].mxu0
        %v2173 = vadd.f32 %v2068, %v2172
        %v2174 = vpop.f32.mrb[0].mxu0
        %2175 = vmatprep.mubr.f32.mxu0 0.0
        %2176 = vmatmul.mubr.f32.gmra.mrb[0].mxu0 %v1643
        %v2177 = vpop.f32.mrb[0].mxu0
        %v2178 = vadd.f32 %v2073, %v2177
        %v2179 = vpop.f32.mrb[0].mxu0
        %2180 = vmatprep.mubr.f32.mxu0 0.0
        %2181 = vmatmul.mubr.f32.gmra.mrb[0].mxu0 %v1644
        %v2182 = vpop.f32.mrb[0].mxu0
        %v2183 = vadd.f32 %v2078, %v2182
        %v2184 = vpop.f32.mrb[0].mxu0
        %2185 = vmatprep.mubr.f32.mxu0 0.0
        %2186 = vmatmul.mubr.f32.gmra.mrb[0].mxu0 %v1645
        %v2187 = vpop.f32.mrb[0].mxu0
        %v2188 = vadd.f32 %v2083, %v2187
        %v2189 = vpop.f32.mrb[0].mxu0
        %2190 = vmatprep.mubr.f32.mxu0 0.0
        %2191 = vmatmul.mubr.f32.gmra.mrb[0].mxu0 %v1656
        %v2192 = vpop.f32.mrb[0].mxu0
        %v2193 = vadd.f32 %v2088, %v2192
        %v2194 = vpop.f32.mrb[0].mxu0
        %2195 = vdwg.mxu0
        %v2196 = vmul.f32 %v2158, %v1280
        %v2197 = vmul.f32 %v2163, %v1286
        %v2198 = vmul.f32 %v2168, %v1292
        %v2199 = vmul.f32 %v2173, %v1298
        %v2200 = vmul.f32 %v2178, %v1304
        %v2201 = vmul.f32 %v2183, %v1310
        %v2202 = vmul.f32 %v2188, %v1316
        %v2203 = vmul.f32 %v2193, %v1322
        %2204 = vst [vmem:[#allocation4 + $0x8] sm:$0xff] %v2196
        %2205 = vst [vmem:[#allocation4 + $0x20] sm:$0xff] %v2197
        %2206 = vst [vmem:[#allocation4 + $0x38] sm:$0xff] %v2198
        %2207 = vst [vmem:[#allocation4 + $0x50] sm:$0xff] %v2199
        %2208 = vst [vmem:[#allocation4 + $0x68] sm:$0xff] %v2200
        %2209 = vst [vmem:[#allocation4 + $0x80] sm:$0xff] %v2201
        %2210 = vst [vmem:[#allocation4 + $0x98] sm:$0xff] %v2202
        %2211 = vst [vmem:[#allocation4 + $0xb0] sm:$0xff] %v2203
        %v2212 = vld [vmem:[#allocation2 + $0x4] sm:$0xff]
        %v2213 = vld [vmem:[#allocation2 + $0xc] sm:$0xff]
        %v2214 = vld [vmem:[#allocation2 + $0x14] sm:$0xff]
        %v2215 = vld [vmem:[#allocation2 + $0x1c] sm:$0xff]
        %v2216 = vld [vmem:[#allocation2 + $0x24] sm:$0xff]
        %v2217 = vld [vmem:[#allocation2 + $0x2c] sm:$0xff]
        %v2218 = vld [vmem:[#allocation2 + $0x34] sm:$0xff]
        %v2219 = vld [vmem:[#allocation2 + $0x3c] sm:$0xff]
        %v2220 = vld [vmem:[#allocation2 + $0x8] sm:$0xff]
        %v2221 = vld [vmem:[#allocation2 + $0x10] sm:$0xff]
        %v2222 = vld [vmem:[#allocation2 + $0x18] sm:$0xff]
        %v2223 = vld [vmem:[#allocation2 + $0x20] sm:$0xff]
        %v2224 = vld [vmem:[#allocation2 + $0x28] sm:$0xff]
        %v2225 = vld [vmem:[#allocation2 + $0x30] sm:$0xff]
        %v2226 = vld [vmem:[#allocation2 + $0x38] sm:$0xff]
        %v2227 = vld [vmem:[#allocation2 + $0x40] sm:$0xff]
        %v2228 = vld [vmem:[#allocation2 + $0x44] sm:$0xff]
        %v2229 = vld [vmem:[#allocation2 + $0x48] sm:$0xff]
        %v2230 = vld [vmem:[#allocation2 + $0x4c] sm:$0xff]
        %v2231 = vld [vmem:[#allocation2 + $0x50] sm:$0xff]
        %v2232 = vld [vmem:[#allocation2 + $0x54] sm:$0xff]
        %v2233 = vld [vmem:[#allocation2 + $0x58] sm:$0xff]
        %v2234 = vld [vmem:[#allocation2 + $0x5c] sm:$0xff]
        %v2235 = vld [vmem:[#allocation2 + $0x60] sm:$0xff]
        %v2236 = vld [vmem:[#allocation2 + $0x64] sm:$0xff]
        %v2237 = vld [vmem:[#allocation2 + $0x68] sm:$0xff]
        %v2238 = vld [vmem:[#allocation2 + $0x6c] sm:$0xff]
        %v2239 = vld [vmem:[#allocation2 + $0x70] sm:$0xff]
        %v2240 = vld [vmem:[#allocation2 + $0x74] sm:$0xff]
        %v2241 = vld [vmem:[#allocation13] sm:$0xff]
        %v2242 = vld [vmem:[#allocation13 + $0x8] sm:$0xff]
        %v2243 = vld [vmem:[#allocation13 + $0x10] sm:$0xff]
        %v2244 = vld [vmem:[#allocation13 + $0x18] sm:$0xff]
        %v2245 = vld [vmem:[#allocation13 + $0x20] sm:$0xff]
        %v2246 = vld [vmem:[#allocation13 + $0x28] sm:$0xff]
        %v2247 = vld [vmem:[#allocation13 + $0x30] sm:$0xff]
        %v2248 = vld [vmem:[#allocation13 + $0x38] sm:$0xff]
        %v2249 = vld [vmem:[#allocation13 + $0x40] sm:$0xff]
        %v2250 = vld [vmem:[#allocation13 + $0x48] sm:$0xff]
        %v2251 = vld [vmem:[#allocation13 + $0x50] sm:$0xff]
        %v2252 = vld [vmem:[#allocation13 + $0x58] sm:$0xff]
        %v2253 = vld [vmem:[#allocation13 + $0x60] sm:$0xff]
        %v2254 = vld [vmem:[#allocation13 + $0x68] sm:$0xff]
        %v2255 = vld [vmem:[#allocation13 + $0x70] sm:$0xff]
        %v2256 = vld [vmem:[#allocation13 + $0x78] sm:$0xff]
        %v2257 = vld [vmem:[#allocation13 + $0x80] sm:$0xff]
        %v2258 = vld [vmem:[#allocation13 + $0x88] sm:$0xff]
        %v2259 = vld [vmem:[#allocation13 + $0x90] sm:$0xff]
        %v2260 = vld [vmem:[#allocation13 + $0x98] sm:$0xff]
        %v2261 = vld [vmem:[#allocation13 + $0xa0] sm:$0xff]
        %v2262 = vld [vmem:[#allocation13 + $0xa8] sm:$0xff]
        %v2263 = vld [vmem:[#allocation13 + $0xb0] sm:$0xff]
        %v2264 = vld [vmem:[#allocation13 + $0xb8] sm:$0xff]
        %v2265 = vld [vmem:[#allocation13 + $0xc0] sm:$0xff]
        %v2266 = vld [vmem:[#allocation13 + $0xc8] sm:$0xff]
        %v2267 = vld [vmem:[#allocation13 + $0xd0] sm:$0xff]
        %v2268 = vld [vmem:[#allocation13 + $0xd8] sm:$0xff]
        %v2269 = vld [vmem:[#allocation13 + $0xe0] sm:$0xff]
        %v2270 = vld [vmem:[#allocation13 + $0xe8] sm:$0xff]
        %v2271 = vld [vmem:[#allocation13 + $0xf0] sm:$0xff]
        %v2272 = vld [vmem:[#allocation13 + $0xf8] sm:$0xff]
        %v2273 = vld [vmem:[#allocation13 + $0x100] sm:$0xff]
        %v2274 = vld [vmem:[#allocation13 + $0x108] sm:$0xff]
        %v2275 = vld [vmem:[#allocation13 + $0x110] sm:$0xff]
        %v2276 = vld [vmem:[#allocation13 + $0x118] sm:$0xff]
        %v2277 = vld [vmem:[#allocation13 + $0x120] sm:$0xff]
        %v2278 = vld [vmem:[#allocation13 + $0x128] sm:$0xff]
        %v2279 = vld [vmem:[#allocation13 + $0x130] sm:$0xff]
        %v2280 = vld [vmem:[#allocation13 + $0x138] sm:$0xff]
        %v2281 = vld [vmem:[#allocation13 + $0x140] sm:$0xff]
        %v2282 = vld [vmem:[#allocation13 + $0x148] sm:$0xff]
        %v2283 = vld [vmem:[#allocation13 + $0x150] sm:$0xff]
        %v2284 = vld [vmem:[#allocation13 + $0x158] sm:$0xff]
        %v2285 = vld [vmem:[#allocation13 + $0x160] sm:$0xff]
        %v2286 = vld [vmem:[#allocation13 + $0x168] sm:$0xff]
        %v2287 = vld [vmem:[#allocation13 + $0x170] sm:$0xff]
        %v2288 = vld [vmem:[#allocation13 + $0x178] sm:$0xff]
        %v2289 = vld [vmem:[#allocation13 + $0x180] sm:$0xff]
        %v2290 = vld [vmem:[#allocation13 + $0x188] sm:$0xff]
        %v2291 = vld [vmem:[#allocation13 + $0x190] sm:$0xff]
        %v2292 = vld [vmem:[#allocation13 + $0x198] sm:$0xff]
        %v2293 = vld [vmem:[#allocation13 + $0x1a0] sm:$0xff]
        %v2294 = vld [vmem:[#allocation13 + $0x1a8] sm:$0xff]
        %v2295 = vld [vmem:[#allocation13 + $0x1b0] sm:$0xff]
        %v2296 = vld [vmem:[#allocation13 + $0x1b8] sm:$0xff]
        %v2297 = vld [vmem:[#allocation13 + $0x1c0] sm:$0xff]
        %v2298 = vld [vmem:[#allocation13 + $0x1c8] sm:$0xff]
        %v2299 = vld [vmem:[#allocation13 + $0x1d0] sm:$0xff]
        %v2300 = vld [vmem:[#allocation13 + $0x1d8] sm:$0xff]
        %v2301 = vld [vmem:[#allocation13 + $0x1e0] sm:$0xff]
        %v2302 = vld [vmem:[#allocation13 + $0x1e8] sm:$0xff]
        %v2303 = vld [vmem:[#allocation13 + $0x1f0] sm:$0xff]
        %v2304 = vld [vmem:[#allocation13 + $0x1f8] sm:$0xff]
        %v2305 = vld [vmem:[#allocation13 + $0x200] sm:$0xff]
        %v2306 = vld [vmem:[#allocation13 + $0x208] sm:$0xff]
        %v2307 = vld [vmem:[#allocation13 + $0x210] sm:$0xff]
        %v2308 = vld [vmem:[#allocation13 + $0x218] sm:$0xff]
        %v2309 = vld [vmem:[#allocation13 + $0x220] sm:$0xff]
        %v2310 = vld [vmem:[#allocation13 + $0x228] sm:$0xff]
        %v2311 = vld [vmem:[#allocation13 + $0x230] sm:$0xff]
        %v2312 = vld [vmem:[#allocation13 + $0x238] sm:$0xff]
        %v2313 = vld [vmem:[#allocation13 + $0x240] sm:$0xff]
        %v2314 = vld [vmem:[#allocation13 + $0x248] sm:$0xff]
        %v2315 = vld [vmem:[#allocation13 + $0x250] sm:$0xff]
        %v2316 = vld [vmem:[#allocation13 + $0x258] sm:$0xff]
        %v2317 = vld [vmem:[#allocation13 + $0x260] sm:$0xff]
        %v2318 = vld [vmem:[#allocation13 + $0x268] sm:$0xff]
        %v2319 = vld [vmem:[#allocation13 + $0x270] sm:$0xff]
        %v2320 = vld [vmem:[#allocation13 + $0x278] sm:$0xff]
        %v2321 = vld [vmem:[#allocation13 + $0x280] sm:$0xff]
        %v2322 = vld [vmem:[#allocation13 + $0x288] sm:$0xff]
        %v2323 = vld [vmem:[#allocation13 + $0x290] sm:$0xff]
        %v2324 = vld [vmem:[#allocation13 + $0x298] sm:$0xff]
        %v2325 = vld [vmem:[#allocation13 + $0x2a0] sm:$0xff]
        %v2326 = vld [vmem:[#allocation13 + $0x2a8] sm:$0xff]
        %v2327 = vld [vmem:[#allocation13 + $0x2b0] sm:$0xff]
        %v2328 = vld [vmem:[#allocation13 + $0x2b8] sm:$0xff]
        %v2329 = vld [vmem:[#allocation13 + $0x2c0] sm:$0xff]
        %v2330 = vld [vmem:[#allocation13 + $0x2c8] sm:$0xff]
        %v2331 = vld [vmem:[#allocation13 + $0x2d0] sm:$0xff]
        %v2332 = vld [vmem:[#allocation13 + $0x2d8] sm:$0xff]
        %v2333 = vld [vmem:[#allocation13 + $0x2e0] sm:$0xff]
        %v2334 = vld [vmem:[#allocation13 + $0x2e8] sm:$0xff]
        %v2335 = vld [vmem:[#allocation13 + $0x2f0] sm:$0xff]
        %v2336 = vld [vmem:[#allocation13 + $0x2f8] sm:$0xff]
        %v2337 = vld [vmem:[#allocation13 + $0x300] sm:$0xff]
        %v2338 = vld [vmem:[#allocation13 + $0x308] sm:$0xff]
        %v2339 = vld [vmem:[#allocation13 + $0x310] sm:$0xff]
        %v2340 = vld [vmem:[#allocation13 + $0x318] sm:$0xff]
        %v2341 = vld [vmem:[#allocation13 + $0x320] sm:$0xff]
        %v2342 = vld [vmem:[#allocation13 + $0x328] sm:$0xff]
        %v2343 = vld [vmem:[#allocation13 + $0x330] sm:$0xff]
        %v2344 = vld [vmem:[#allocation13 + $0x338] sm:$0xff]
        %v2345 = vld [vmem:[#allocation13 + $0x340] sm:$0xff]
        %v2346 = vld [vmem:[#allocation13 + $0x348] sm:$0xff]
        %v2347 = vld [vmem:[#allocation13 + $0x350] sm:$0xff]
        %v2348 = vld [vmem:[#allocation13 + $0x358] sm:$0xff]
        %v2349 = vld [vmem:[#allocation13 + $0x360] sm:$0xff]
        %v2350 = vld [vmem:[#allocation13 + $0x368] sm:$0xff]
        %v2351 = vld [vmem:[#allocation13 + $0x370] sm:$0xff]
        %v2352 = vld [vmem:[#allocation13 + $0x378] sm:$0xff]
        %v2353 = vld [vmem:[#allocation13 + $0x380] sm:$0xff]
        %v2354 = vld [vmem:[#allocation13 + $0x388] sm:$0xff]
        %v2355 = vld [vmem:[#allocation13 + $0x390] sm:$0xff]
        %v2356 = vld [vmem:[#allocation13 + $0x398] sm:$0xff]
        %v2357 = vld [vmem:[#allocation13 + $0x3a0] sm:$0xff]
        %v2358 = vld [vmem:[#allocation13 + $0x3a8] sm:$0xff]
        %v2359 = vld [vmem:[#allocation13 + $0x3b0] sm:$0xff]
        %v2360 = vld [vmem:[#allocation13 + $0x3b8] sm:$0xff]
        %v2361 = vld [vmem:[#allocation13 + $0x3c0] sm:$0xff]
        %v2362 = vld [vmem:[#allocation13 + $0x3c8] sm:$0xff]
        %v2363 = vld [vmem:[#allocation13 + $0x3d0] sm:$0xff]
        %v2364 = vld [vmem:[#allocation13 + $0x3d8] sm:$0xff]
        %v2365 = vld [vmem:[#allocation13 + $0x3e0] sm:$0xff]
        %v2366 = vld [vmem:[#allocation13 + $0x3e8] sm:$0xff]
        %v2367 = vld [vmem:[#allocation13 + $0x3f0] sm:$0xff]
        %v2368 = vld [vmem:[#allocation13 + $0x3f8] sm:$0xff]
        %v2369 = vld [vmem:[#allocation13 + $0x400] sm:$0xff]
        %v2370 = vld [vmem:[#allocation13 + $0x408] sm:$0xff]
        %v2371 = vld [vmem:[#allocation13 + $0x410] sm:$0xff]
        %v2372 = vld [vmem:[#allocation13 + $0x418] sm:$0xff]
        %v2373 = vld [vmem:[#allocation13 + $0x420] sm:$0xff]
        %v2374 = vld [vmem:[#allocation13 + $0x428] sm:$0xff]
        %v2375 = vld [vmem:[#allocation13 + $0x430] sm:$0xff]
        %v2376 = vld [vmem:[#allocation13 + $0x438] sm:$0xff]
        %v2377 = vld [vmem:[#allocation13 + $0x440] sm:$0xff]
        %v2378 = vld [vmem:[#allocation13 + $0x448] sm:$0xff]
        %v2379 = vld [vmem:[#allocation13 + $0x450] sm:$0xff]
        %v2380 = vld [vmem:[#allocation13 + $0x458] sm:$0xff]
        %v2381 = vld [vmem:[#allocation13 + $0x460] sm:$0xff]
        %v2382 = vld [vmem:[#allocation13 + $0x468] sm:$0xff]
        %v2383 = vld [vmem:[#allocation13 + $0x470] sm:$0xff]
        %v2384 = vld [vmem:[#allocation13 + $0x478] sm:$0xff]
        %v2385 = vld [vmem:[#allocation13 + $0x480] sm:$0xff]
        %v2386 = vld [vmem:[#allocation13 + $0x488] sm:$0xff]
        %v2387 = vld [vmem:[#allocation13 + $0x490] sm:$0xff]
        %v2388 = vld [vmem:[#allocation13 + $0x498] sm:$0xff]
        %v2389 = vld [vmem:[#allocation13 + $0x4a0] sm:$0xff]
        %v2390 = vld [vmem:[#allocation13 + $0x4a8] sm:$0xff]
        %v2391 = vld [vmem:[#allocation13 + $0x4b0] sm:$0xff]
        %v2392 = vld [vmem:[#allocation13 + $0x4b8] sm:$0xff]
        %v2393 = vld [vmem:[#allocation13 + $0x4c0] sm:$0xff]
        %v2394 = vld [vmem:[#allocation13 + $0x4c8] sm:$0xff]
        %v2395 = vld [vmem:[#allocation13 + $0x4d0] sm:$0xff]
        %v2396 = vld [vmem:[#allocation13 + $0x4d8] sm:$0xff]
        %v2397 = vld [vmem:[#allocation13 + $0x4e0] sm:$0xff]
        %v2398 = vld [vmem:[#allocation13 + $0x4e8] sm:$0xff]
        %v2399 = vld [vmem:[#allocation13 + $0x4f0] sm:$0xff]
        %v2400 = vld [vmem:[#allocation13 + $0x4f8] sm:$0xff]
        %v2401 = vld [vmem:[#allocation13 + $0x500] sm:$0xff]
        %v2402 = vld [vmem:[#allocation13 + $0x508] sm:$0xff]
        %v2403 = vld [vmem:[#allocation13 + $0x510] sm:$0xff]
        %v2404 = vld [vmem:[#allocation13 + $0x518] sm:$0xff]
        %v2405 = vld [vmem:[#allocation13 + $0x520] sm:$0xff]
        %v2406 = vld [vmem:[#allocation13 + $0x528] sm:$0xff]
        %v2407 = vld [vmem:[#allocation13 + $0x530] sm:$0xff]
        %v2408 = vld [vmem:[#allocation13 + $0x538] sm:$0xff]
        %v2409 = vld [vmem:[#allocation13 + $0x540] sm:$0xff]
        %v2410 = vld [vmem:[#allocation13 + $0x548] sm:$0xff]
        %v2411 = vld [vmem:[#allocation13 + $0x550] sm:$0xff]
        %v2412 = vld [vmem:[#allocation13 + $0x558] sm:$0xff]
        %v2413 = vld [vmem:[#allocation13 + $0x560] sm:$0xff]
        %v2414 = vld [vmem:[#allocation13 + $0x568] sm:$0xff]
        %v2415 = vld [vmem:[#allocation13 + $0x570] sm:$0xff]
        %v2416 = vld [vmem:[#allocation13 + $0x578] sm:$0xff]
        %v2417 = vld [vmem:[#allocation13 + $0x580] sm:$0xff]
        %v2418 = vld [vmem:[#allocation13 + $0x588] sm:$0xff]
        %v2419 = vld [vmem:[#allocation13 + $0x590] sm:$0xff]
        %v2420 = vld [vmem:[#allocation13 + $0x598] sm:$0xff]
        %v2421 = vld [vmem:[#allocation13 + $0x5a0] sm:$0xff]
        %v2422 = vld [vmem:[#allocation13 + $0x5a8] sm:$0xff]
        %v2423 = vld [vmem:[#allocation13 + $0x5b0] sm:$0xff]
        %v2424 = vld [vmem:[#allocation13 + $0x5b8] sm:$0xff]
        %v2425 = vld [vmem:[#allocation13 + $0x5c0] sm:$0xff]
        %v2426 = vld [vmem:[#allocation13 + $0x5c8] sm:$0xff]
        %v2427 = vld [vmem:[#allocation13 + $0x5d0] sm:$0xff]
        %v2428 = vld [vmem:[#allocation13 + $0x5d8] sm:$0xff]
        %v2429 = vld [vmem:[#allocation13 + $0x5e0] sm:$0xff]
        %v2430 = vld [vmem:[#allocation13 + $0x5e8] sm:$0xff]
        %v2431 = vld [vmem:[#allocation13 + $0x5f0] sm:$0xff]
        %v2432 = vld [vmem:[#allocation13 + $0x5f8] sm:$0xff]
        %v2433 = vld [vmem:[#allocation13 + $0x600] sm:$0xff]
        %v2434 = vld [vmem:[#allocation13 + $0x608] sm:$0xff]
        %v2435 = vld [vmem:[#allocation13 + $0x610] sm:$0xff]
        %v2436 = vld [vmem:[#allocation13 + $0x618] sm:$0xff]
        %v2437 = vld [vmem:[#allocation13 + $0x620] sm:$0xff]
        %v2438 = vld [vmem:[#allocation13 + $0x628] sm:$0xff]
        %v2439 = vld [vmem:[#allocation13 + $0x630] sm:$0xff]
        %v2440 = vld [vmem:[#allocation13 + $0x638] sm:$0xff]
        %v2441 = vld [vmem:[#allocation13 + $0x640] sm:$0xff]
        %v2442 = vld [vmem:[#allocation13 + $0x648] sm:$0xff]
        %v2443 = vld [vmem:[#allocation13 + $0x650] sm:$0xff]
        %v2444 = vld [vmem:[#allocation13 + $0x658] sm:$0xff]
        %v2445 = vld [vmem:[#allocation13 + $0x660] sm:$0xff]
        %v2446 = vld [vmem:[#allocation13 + $0x668] sm:$0xff]
        %v2447 = vld [vmem:[#allocation13 + $0x670] sm:$0xff]
        %v2448 = vld [vmem:[#allocation13 + $0x678] sm:$0xff]
        %v2449 = vld [vmem:[#allocation13 + $0x680] sm:$0xff]
        %v2450 = vld [vmem:[#allocation13 + $0x688] sm:$0xff]
        %v2451 = vld [vmem:[#allocation13 + $0x690] sm:$0xff]
        %v2452 = vld [vmem:[#allocation13 + $0x698] sm:$0xff]
        %v2453 = vld [vmem:[#allocation13 + $0x6a0] sm:$0xff]
        %v2454 = vld [vmem:[#allocation13 + $0x6a8] sm:$0xff]
        %v2455 = vld [vmem:[#allocation13 + $0x6b0] sm:$0xff]
        %v2456 = vld [vmem:[#allocation13 + $0x6b8] sm:$0xff]
        %v2457 = vld [vmem:[#allocation13 + $0x6c0] sm:$0xff]
        %v2458 = vld [vmem:[#allocation13 + $0x6c8] sm:$0xff]
        %v2459 = vld [vmem:[#allocation13 + $0x6d0] sm:$0xff]
        %v2460 = vld [vmem:[#allocation13 + $0x6d8] sm:$0xff]
        %v2461 = vld [vmem:[#allocation13 + $0x6e0] sm:$0xff]
        %v2462 = vld [vmem:[#allocation13 + $0x6e8] sm:$0xff]
        %v2463 = vld [vmem:[#allocation13 + $0x6f0] sm:$0xff]
        %v2464 = vld [vmem:[#allocation13 + $0x6f8] sm:$0xff]
        %v2465 = vld [vmem:[#allocation13 + $0x700] sm:$0xff]
        %v2466 = vld [vmem:[#allocation13 + $0x708] sm:$0xff]
        %v2467 = vld [vmem:[#allocation13 + $0x710] sm:$0xff]
        %v2468 = vld [vmem:[#allocation13 + $0x718] sm:$0xff]
        %v2469 = vld [vmem:[#allocation13 + $0x720] sm:$0xff]
        %v2470 = vld [vmem:[#allocation13 + $0x728] sm:$0xff]
        %v2471 = vld [vmem:[#allocation13 + $0x730] sm:$0xff]
        %v2472 = vld [vmem:[#allocation13 + $0x738] sm:$0xff]
        %v2473 = vld [vmem:[#allocation13 + $0x740] sm:$0xff]
        %v2474 = vld [vmem:[#allocation13 + $0x748] sm:$0xff]
        %v2475 = vld [vmem:[#allocation13 + $0x750] sm:$0xff]
        %v2476 = vld [vmem:[#allocation13 + $0x758] sm:$0xff]
        %v2477 = vld [vmem:[#allocation13 + $0x760] sm:$0xff]
        %v2478 = vld [vmem:[#allocation13 + $0x768] sm:$0xff]
        %v2479 = vld [vmem:[#allocation13 + $0x770] sm:$0xff]
        %v2480 = vld [vmem:[#allocation13 + $0x778] sm:$0xff]
        %v2481 = vld [vmem:[%s4 + $0x2] sm:$0x1]
        %v2483 = vlaneseq
        %v2484 = vshrl.u32 %v2483, 7
        %v2485 = vsub.s32 0, %v2484
        %v2486 = vrot.slane %v2481, %v2485
        %2488 = vmatprep.subr.mxu0 0.0
        %2489 = vmatpush1.msra.mxu0 %v2241
        %2490 = vmatprep.subr.mxu0 0.0
        %2491 = vmatpush1.msra.mxu0 %v2242
        %2492 = vmatprep.subr.mxu0 0.0
        %2493 = vmatpush1.msra.mxu0 %v2243
        %2494 = vmatprep.subr.mxu0 0.0
        %2495 = vmatpush1.msra.mxu0 %v2244
        %2496 = vmatprep.subr.mxu0 0.0
        %2497 = vmatpush1.msra.mxu0 %v2245
        %2498 = vmatprep.subr.mxu0 0.0
        %2499 = vmatpush1.msra.mxu0 %v2246
        %2500 = vmatprep.subr.mxu0 0.0
        %2501 = vmatpush1.msra.mxu0 %v2247
        %2502 = vmatprep.subr.mxu0 0.0
        %2503 = vmatpush1.msra.mxu0 %v2248
        %2504 = vmatprep.subr.mxu0 0.0
        %2505 = vmatpush1.msra.mxu0 %v2249
        %2506 = vmatprep.subr.mxu0 0.0
        %2507 = vmatpush1.msra.mxu0 %v2250
        %2508 = vmatprep.subr.mxu0 0.0
        %2509 = vmatpush1.msra.mxu0 %v2251
        %2510 = vmatprep.subr.mxu0 0.0
        %2511 = vmatpush1.msra.mxu0 %v2252
        %2512 = vmatprep.subr.mxu0 0.0
        %2513 = vmatpush1.msra.mxu0 %v2253
        %2514 = vmatprep.subr.mxu0 0.0
        %2515 = vmatpush1.msra.mxu0 %v2254
        %2516 = vmatprep.subr.mxu0 0.0
        %2517 = vmatpush1.msra.mxu0 %v2255
        %2518 = vmatprep.subr.mxu0 0.0
        %2519 = vmatpush1.msra.mxu0 %v2256
        %2520 = vmatprep.subr.mxu0 0.0
        %2521 = vmatpush1.msra.mxu0 %v2257
        %2522 = vmatprep.subr.mxu0 0.0
        %2523 = vmatpush1.msra.mxu0 %v2258
        %2524 = vmatprep.subr.mxu0 0.0
        %2525 = vmatpush1.msra.mxu0 %v2259
        %2526 = vmatprep.subr.mxu0 0.0
        %2527 = vmatpush1.msra.mxu0 %v2260
        %2528 = vmatprep.subr.mxu0 0.0
        %2529 = vmatpush1.msra.mxu0 %v2261
        %2530 = vmatprep.subr.mxu0 0.0
        %2531 = vmatpush1.msra.mxu0 %v2262
        %2532 = vmatprep.subr.mxu0 0.0
        %2533 = vmatpush1.msra.mxu0 %v2263
        %2534 = vmatprep.subr.mxu0 0.0
        %2535 = vmatpush1.msra.mxu0 %v2264
        %2536 = vmatprep.subr.mxu0 0.0
        %2537 = vmatpush1.msra.mxu0 %v2265
        %2538 = vmatprep.subr.mxu0 0.0
        %2539 = vmatpush1.msra.mxu0 %v2266
        %2540 = vmatprep.subr.mxu0 0.0
        %2541 = vmatpush1.msra.mxu0 %v2267
        %2542 = vmatprep.subr.mxu0 0.0
        %2543 = vmatpush1.msra.mxu0 %v2268
        %2544 = vmatprep.subr.mxu0 0.0
        %2545 = vmatpush1.msra.mxu0 %v2269
        %2546 = vmatprep.subr.mxu0 0.0
        %2547 = vmatpush1.msra.mxu0 %v2270
        %2548 = vmatprep.subr.mxu0 0.0
        %2549 = vmatpush1.msra.mxu0 %v2271
        %2550 = vmatprep.subr.mxu0 0.0
        %2551 = vmatpush1.msra.mxu0 %v2272
        %2552 = vmatprep.mubr.f32.mxu0 %v2220
        %2553 = vmatmul.mubr.f32.gmra.mrb[0].mxu0 %v2212
        %v2554 = vpop.f32.mrb[0].mxu0
        %v2555 = vadd.f32 %v2486, %v2554
        %v2556 = vpop.f32.mrb[0].mxu0
        %2557 = vmatprep.mubr.f32.mxu0 %v2221
        %2558 = vmatmul.mubr.f32.gmra.mrb[0].mxu0 %v2213
        %v2559 = vpop.f32.mrb[0].mxu0
        %v2560 = vadd.f32 %v2486, %v2559
        %v2561 = vpop.f32.mrb[0].mxu0
        %2562 = vmatprep.mubr.f32.mxu0 %v2222
        %2563 = vmatmul.mubr.f32.gmra.mrb[0].mxu0 %v2214
        %v2564 = vpop.f32.mrb[0].mxu0
        %v2565 = vadd.f32 %v2486, %v2564
        %v2566 = vpop.f32.mrb[0].mxu0
        %2567 = vmatprep.mubr.f32.mxu0 %v2223
        %2568 = vmatmul.mubr.f32.gmra.mrb[0].mxu0 %v2215
        %v2569 = vpop.f32.mrb[0].mxu0
        %v2570 = vadd.f32 %v2486, %v2569
        %v2571 = vpop.f32.mrb[0].mxu0
        %2572 = vmatprep.mubr.f32.mxu0 %v2224
        %2573 = vmatmul.mubr.f32.gmra.mrb[0].mxu0 %v2216
        %v2574 = vpop.f32.mrb[0].mxu0
        %v2575 = vadd.f32 %v2486, %v2574
        %v2576 = vpop.f32.mrb[0].mxu0
        %2577 = vmatprep.mubr.f32.mxu0 %v2225
        %2578 = vmatmul.mubr.f32.gmra.mrb[0].mxu0 %v2217
        %v2579 = vpop.f32.mrb[0].mxu0
        %v2580 = vadd.f32 %v2486, %v2579
        %v2581 = vpop.f32.mrb[0].mxu0
        %2582 = vmatprep.mubr.f32.mxu0 %v2226
        %2583 = vmatmul.mubr.f32.gmra.mrb[0].mxu0 %v2218
        %v2584 = vpop.f32.mrb[0].mxu0
        %v2585 = vadd.f32 %v2486, %v2584
        %v2586 = vpop.f32.mrb[0].mxu0
        %2587 = vmatprep.mubr.f32.mxu0 %v2227
        %2588 = vmatmul.mubr.f32.gmra.mrb[0].mxu0 %v2219
        %v2589 = vpop.f32.mrb[0].mxu0
        %v2590 = vadd.f32 %v2486, %v2589
        %v2591 = vpop.f32.mrb[0].mxu0
        %2592 = vdwg.mxu0
        %2593 = vmatprep.subr.mxu0 0.0
        %2594 = vmatpush1.msra.mxu0 %v2273
        %2595 = vmatprep.subr.mxu0 0.0
        %2596 = vmatpush1.msra.mxu0 %v2274
        %2597 = vmatprep.subr.mxu0 0.0
        %2598 = vmatpush1.msra.mxu0 %v2275
        %2599 = vmatprep.subr.mxu0 0.0
        %2600 = vmatpush1.msra.mxu0 %v2276
        %2601 = vmatprep.subr.mxu0 0.0
        %2602 = vmatpush1.msra.mxu0 %v2277
        %2603 = vmatprep.subr.mxu0 0.0
        %2604 = vmatpush1.msra.mxu0 %v2278
        %2605 = vmatprep.subr.mxu0 0.0
        %2606 = vmatpush1.msra.mxu0 %v2279
        %2607 = vmatprep.subr.mxu0 0.0
        %2608 = vmatpush1.msra.mxu0 %v2280
        %2609 = vmatprep.subr.mxu0 0.0
        %2610 = vmatpush1.msra.mxu0 %v2281
        %2611 = vmatprep.subr.mxu0 0.0
        %2612 = vmatpush1.msra.mxu0 %v2282
        %2613 = vmatprep.subr.mxu0 0.0
        %2614 = vmatpush1.msra.mxu0 %v2283
        %2615 = vmatprep.subr.mxu0 0.0
        %2616 = vmatpush1.msra.mxu0 %v2284
        %2617 = vmatprep.subr.mxu0 0.0
        %2618 = vmatpush1.msra.mxu0 %v2285
        %2619 = vmatprep.subr.mxu0 0.0
        %2620 = vmatpush1.msra.mxu0 %v2286
        %2621 = vmatprep.subr.mxu0 0.0
        %2622 = vmatpush1.msra.mxu0 %v2287
        %2623 = vmatprep.subr.mxu0 0.0
        %2624 = vmatpush1.msra.mxu0 %v2288
        %2625 = vmatprep.subr.mxu0 0.0
        %2626 = vmatpush1.msra.mxu0 %v2289
        %2627 = vmatprep.subr.mxu0 0.0
        %2628 = vmatpush1.msra.mxu0 %v2290
        %2629 = vmatprep.subr.mxu0 0.0
        %2630 = vmatpush1.msra.mxu0 %v2291
        %2631 = vmatprep.subr.mxu0 0.0
        %2632 = vmatpush1.msra.mxu0 %v2292
        %2633 = vmatprep.subr.mxu0 0.0
        %2634 = vmatpush1.msra.mxu0 %v2293
        %2635 = vmatprep.subr.mxu0 0.0
        %2636 = vmatpush1.msra.mxu0 %v2294
        %2637 = vmatprep.subr.mxu0 0.0
        %2638 = vmatpush1.msra.mxu0 %v2295
        %2639 = vmatprep.subr.mxu0 0.0
        %2640 = vmatpush1.msra.mxu0 %v2296
        %2641 = vmatprep.subr.mxu0 0.0
        %2642 = vmatpush1.msra.mxu0 %v2297
        %2643 = vmatprep.subr.mxu0 0.0
        %2644 = vmatpush1.msra.mxu0 %v2298
        %2645 = vmatprep.subr.mxu0 0.0
        %2646 = vmatpush1.msra.mxu0 %v2299
        %2647 = vmatprep.subr.mxu0 0.0
        %2648 = vmatpush1.msra.mxu0 %v2300
        %2649 = vmatprep.subr.mxu0 0.0
        %2650 = vmatpush1.msra.mxu0 %v2301
        %2651 = vmatprep.subr.mxu0 0.0
        %2652 = vmatpush1.msra.mxu0 %v2302
        %2653 = vmatprep.subr.mxu0 0.0
        %2654 = vmatpush1.msra.mxu0 %v2303
        %2655 = vmatprep.subr.mxu0 0.0
        %2656 = vmatpush1.msra.mxu0 %v2304
        %2657 = vmatprep.mubr.f32.mxu0 %v2221
        %2658 = vmatmul.mubr.f32.gmra.mrb[0].mxu0 %v2213
        %v2659 = vpop.f32.mrb[0].mxu0
        %v2660 = vadd.f32 %v2555, %v2659
        %v2661 = vpop.f32.mrb[0].mxu0
        %2662 = vmatprep.mubr.f32.mxu0 %v2222
        %2663 = vmatmul.mubr.f32.gmra.mrb[0].mxu0 %v2214
        %v2664 = vpop.f32.mrb[0].mxu0
        %v2665 = vadd.f32 %v2560, %v2664
        %v2666 = vpop.f32.mrb[0].mxu0
        %2667 = vmatprep.mubr.f32.mxu0 %v2223
        %2668 = vmatmul.mubr.f32.gmra.mrb[0].mxu0 %v2215
        %v2669 = vpop.f32.mrb[0].mxu0
        %v2670 = vadd.f32 %v2565, %v2669
        %v2671 = vpop.f32.mrb[0].mxu0
        %2672 = vmatprep.mubr.f32.mxu0 %v2224
        %2673 = vmatmul.mubr.f32.gmra.mrb[0].mxu0 %v2216
        %v2674 = vpop.f32.mrb[0].mxu0
        %v2675 = vadd.f32 %v2570, %v2674
        %v2676 = vpop.f32.mrb[0].mxu0
        %2677 = vmatprep.mubr.f32.mxu0 %v2225
        %2678 = vmatmul.mubr.f32.gmra.mrb[0].mxu0 %v2217
        %v2679 = vpop.f32.mrb[0].mxu0
        %v2680 = vadd.f32 %v2575, %v2679
        %v2681 = vpop.f32.mrb[0].mxu0
        %2682 = vmatprep.mubr.f32.mxu0 %v2226
        %2683 = vmatmul.mubr.f32.gmra.mrb[0].mxu0 %v2218
        %v2684 = vpop.f32.mrb[0].mxu0
        %v2685 = vadd.f32 %v2580, %v2684
        %v2686 = vpop.f32.mrb[0].mxu0
        %2687 = vmatprep.mubr.f32.mxu0 %v2227
        %2688 = vmatmul.mubr.f32.gmra.mrb[0].mxu0 %v2219
        %v2689 = vpop.f32.mrb[0].mxu0
        %v2690 = vadd.f32 %v2585, %v2689
        %v2691 = vpop.f32.mrb[0].mxu0
        %2692 = vmatprep.mubr.f32.mxu0 %v2229
        %2693 = vmatmul.mubr.f32.gmra.mrb[0].mxu0 %v2228
        %v2694 = vpop.f32.mrb[0].mxu0
        %v2695 = vadd.f32 %v2590, %v2694
        %v2696 = vpop.f32.mrb[0].mxu0
        %2697 = vdwg.mxu0
        %2698 = vmatprep.subr.mxu0 0.0
        %2699 = vmatpush1.msra.mxu0 %v2305
        %2700 = vmatprep.subr.mxu0 0.0
        %2701 = vmatpush1.msra.mxu0 %v2306
        %2702 = vmatprep.subr.mxu0 0.0
        %2703 = vmatpush1.msra.mxu0 %v2307
        %2704 = vmatprep.subr.mxu0 0.0
        %2705 = vmatpush1.msra.mxu0 %v2308
        %2706 = vmatprep.subr.mxu0 0.0
        %2707 = vmatpush1.msra.mxu0 %v2309
        %2708 = vmatprep.subr.mxu0 0.0
        %2709 = vmatpush1.msra.mxu0 %v2310
        %2710 = vmatprep.subr.mxu0 0.0
        %2711 = vmatpush1.msra.mxu0 %v2311
        %2712 = vmatprep.subr.mxu0 0.0
        %2713 = vmatpush1.msra.mxu0 %v2312
        %2714 = vmatprep.subr.mxu0 0.0
        %2715 = vmatpush1.msra.mxu0 %v2313
        %2716 = vmatprep.subr.mxu0 0.0
        %2717 = vmatpush1.msra.mxu0 %v2314
        %2718 = vmatprep.subr.mxu0 0.0
        %2719 = vmatpush1.msra.mxu0 %v2315
        %2720 = vmatprep.subr.mxu0 0.0
        %2721 = vmatpush1.msra.mxu0 %v2316
        %2722 = vmatprep.subr.mxu0 0.0
        %2723 = vmatpush1.msra.mxu0 %v2317
        %2724 = vmatprep.subr.mxu0 0.0
        %2725 = vmatpush1.msra.mxu0 %v2318
        %2726 = vmatprep.subr.mxu0 0.0
        %2727 = vmatpush1.msra.mxu0 %v2319
        %2728 = vmatprep.subr.mxu0 0.0
        %2729 = vmatpush1.msra.mxu0 %v2320
        %2730 = vmatprep.subr.mxu0 0.0
        %2731 = vmatpush1.msra.mxu0 %v2321
        %2732 = vmatprep.subr.mxu0 0.0
        %2733 = vmatpush1.msra.mxu0 %v2322
        %2734 = vmatprep.subr.mxu0 0.0
        %2735 = vmatpush1.msra.mxu0 %v2323
        %2736 = vmatprep.subr.mxu0 0.0
        %2737 = vmatpush1.msra.mxu0 %v2324
        %2738 = vmatprep.subr.mxu0 0.0
        %2739 = vmatpush1.msra.mxu0 %v2325
        %2740 = vmatprep.subr.mxu0 0.0
        %2741 = vmatpush1.msra.mxu0 %v2326
        %2742 = vmatprep.subr.mxu0 0.0
        %2743 = vmatpush1.msra.mxu0 %v2327
        %2744 = vmatprep.subr.mxu0 0.0
        %2745 = vmatpush1.msra.mxu0 %v2328
        %2746 = vmatprep.subr.mxu0 0.0
        %2747 = vmatpush1.msra.mxu0 %v2329
        %2748 = vmatprep.subr.mxu0 0.0
        %2749 = vmatpush1.msra.mxu0 %v2330
        %2750 = vmatprep.subr.mxu0 0.0
        %2751 = vmatpush1.msra.mxu0 %v2331
        %2752 = vmatprep.subr.mxu0 0.0
        %2753 = vmatpush1.msra.mxu0 %v2332
        %2754 = vmatprep.subr.mxu0 0.0
        %2755 = vmatpush1.msra.mxu0 %v2333
        %2756 = vmatprep.subr.mxu0 0.0
        %2757 = vmatpush1.msra.mxu0 %v2334
        %2758 = vmatprep.subr.mxu0 0.0
        %2759 = vmatpush1.msra.mxu0 %v2335
        %2760 = vmatprep.subr.mxu0 0.0
        %2761 = vmatpush1.msra.mxu0 %v2336
        %2762 = vmatprep.mubr.f32.mxu0 %v2222
        %2763 = vmatmul.mubr.f32.gmra.mrb[0].mxu0 %v2214
        %v2764 = vpop.f32.mrb[0].mxu0
        %v2765 = vadd.f32 %v2660, %v2764
        %v2766 = vpop.f32.mrb[0].mxu0
        %2767 = vmatprep.mubr.f32.mxu0 %v2223
        %2768 = vmatmul.mubr.f32.gmra.mrb[0].mxu0 %v2215
        %v2769 = vpop.f32.mrb[0].mxu0
        %v2770 = vadd.f32 %v2665, %v2769
        %v2771 = vpop.f32.mrb[0].mxu0
        %2772 = vmatprep.mubr.f32.mxu0 %v2224
        %2773 = vmatmul.mubr.f32.gmra.mrb[0].mxu0 %v2216
        %v2774 = vpop.f32.mrb[0].mxu0
        %v2775 = vadd.f32 %v2670, %v2774
        %v2776 = vpop.f32.mrb[0].mxu0
        %2777 = vmatprep.mubr.f32.mxu0 %v2225
        %2778 = vmatmul.mubr.f32.gmra.mrb[0].mxu0 %v2217
        %v2779 = vpop.f32.mrb[0].mxu0
        %v2780 = vadd.f32 %v2675, %v2779
        %v2781 = vpop.f32.mrb[0].mxu0
        %2782 = vmatprep.mubr.f32.mxu0 %v2226
        %2783 = vmatmul.mubr.f32.gmra.mrb[0].mxu0 %v2218
        %v2784 = vpop.f32.mrb[0].mxu0
        %v2785 = vadd.f32 %v2680, %v2784
        %v2786 = vpop.f32.mrb[0].mxu0
        %2787 = vmatprep.mubr.f32.mxu0 %v2227
        %2788 = vmatmul.mubr.f32.gmra.mrb[0].mxu0 %v2219
        %v2789 = vpop.f32.mrb[0].mxu0
        %v2790 = vadd.f32 %v2685, %v2789
        %v2791 = vpop.f32.mrb[0].mxu0
        %2792 = vmatprep.mubr.f32.mxu0 %v2229
        %2793 = vmatmul.mubr.f32.gmra.mrb[0].mxu0 %v2228
        %v2794 = vpop.f32.mrb[0].mxu0
        %v2795 = vadd.f32 %v2690, %v2794
        %v2796 = vpop.f32.mrb[0].mxu0
        %2797 = vmatprep.mubr.f32.mxu0 %v2231
        %2798 = vmatmul.mubr.f32.gmra.mrb[0].mxu0 %v2230
        %v2799 = vpop.f32.mrb[0].mxu0
        %v2800 = vadd.f32 %v2695, %v2799
        %v2801 = vpop.f32.mrb[0].mxu0
        %2802 = vdwg.mxu0
        %2803 = vmatprep.subr.mxu0 0.0
        %2804 = vmatpush1.msra.mxu0 %v2337
        %2805 = vmatprep.subr.mxu0 0.0
        %2806 = vmatpush1.msra.mxu0 %v2338
        %2807 = vmatprep.subr.mxu0 0.0
        %2808 = vmatpush1.msra.mxu0 %v2339
        %2809 = vmatprep.subr.mxu0 0.0
        %2810 = vmatpush1.msra.mxu0 %v2340
        %2811 = vmatprep.subr.mxu0 0.0
        %2812 = vmatpush1.msra.mxu0 %v2341
        %2813 = vmatprep.subr.mxu0 0.0
        %2814 = vmatpush1.msra.mxu0 %v2342
        %2815 = vmatprep.subr.mxu0 0.0
        %2816 = vmatpush1.msra.mxu0 %v2343
        %2817 = vmatprep.subr.mxu0 0.0
        %2818 = vmatpush1.msra.mxu0 %v2344
        %2819 = vmatprep.subr.mxu0 0.0
        %2820 = vmatpush1.msra.mxu0 %v2345
        %2821 = vmatprep.subr.mxu0 0.0
        %2822 = vmatpush1.msra.mxu0 %v2346
        %2823 = vmatprep.subr.mxu0 0.0
        %2824 = vmatpush1.msra.mxu0 %v2347
        %2825 = vmatprep.subr.mxu0 0.0
        %2826 = vmatpush1.msra.mxu0 %v2348
        %2827 = vmatprep.subr.mxu0 0.0
        %2828 = vmatpush1.msra.mxu0 %v2349
        %2829 = vmatprep.subr.mxu0 0.0
        %2830 = vmatpush1.msra.mxu0 %v2350
        %2831 = vmatprep.subr.mxu0 0.0
        %2832 = vmatpush1.msra.mxu0 %v2351
        %2833 = vmatprep.subr.mxu0 0.0
        %2834 = vmatpush1.msra.mxu0 %v2352
        %2835 = vmatprep.subr.mxu0 0.0
        %2836 = vmatpush1.msra.mxu0 %v2353
        %2837 = vmatprep.subr.mxu0 0.0
        %2838 = vmatpush1.msra.mxu0 %v2354
        %2839 = vmatprep.subr.mxu0 0.0
        %2840 = vmatpush1.msra.mxu0 %v2355
        %2841 = vmatprep.subr.mxu0 0.0
        %2842 = vmatpush1.msra.mxu0 %v2356
        %2843 = vmatprep.subr.mxu0 0.0
        %2844 = vmatpush1.msra.mxu0 %v2357
        %2845 = vmatprep.subr.mxu0 0.0
        %2846 = vmatpush1.msra.mxu0 %v2358
        %2847 = vmatprep.subr.mxu0 0.0
        %2848 = vmatpush1.msra.mxu0 %v2359
        %2849 = vmatprep.subr.mxu0 0.0
        %2850 = vmatpush1.msra.mxu0 %v2360
        %2851 = vmatprep.subr.mxu0 0.0
        %2852 = vmatpush1.msra.mxu0 %v2361
        %2853 = vmatprep.subr.mxu0 0.0
        %2854 = vmatpush1.msra.mxu0 %v2362
        %2855 = vmatprep.subr.mxu0 0.0
        %2856 = vmatpush1.msra.mxu0 %v2363
        %2857 = vmatprep.subr.mxu0 0.0
        %2858 = vmatpush1.msra.mxu0 %v2364
        %2859 = vmatprep.subr.mxu0 0.0
        %2860 = vmatpush1.msra.mxu0 %v2365
        %2861 = vmatprep.subr.mxu0 0.0
        %2862 = vmatpush1.msra.mxu0 %v2366
        %2863 = vmatprep.subr.mxu0 0.0
        %2864 = vmatpush1.msra.mxu0 %v2367
        %2865 = vmatprep.subr.mxu0 0.0
        %2866 = vmatpush1.msra.mxu0 %v2368
        %2867 = vmatprep.mubr.f32.mxu0 %v2223
        %2868 = vmatmul.mubr.f32.gmra.mrb[0].mxu0 %v2215
        %v2869 = vpop.f32.mrb[0].mxu0
        %v2870 = vadd.f32 %v2765, %v2869
        %v2871 = vpop.f32.mrb[0].mxu0
        %2872 = vmatprep.mubr.f32.mxu0 %v2224
        %2873 = vmatmul.mubr.f32.gmra.mrb[0].mxu0 %v2216
        %v2874 = vpop.f32.mrb[0].mxu0
        %v2875 = vadd.f32 %v2770, %v2874
        %v2876 = vpop.f32.mrb[0].mxu0
        %2877 = vmatprep.mubr.f32.mxu0 %v2225
        %2878 = vmatmul.mubr.f32.gmra.mrb[0].mxu0 %v2217
        %v2879 = vpop.f32.mrb[0].mxu0
        %v2880 = vadd.f32 %v2775, %v2879
        %v2881 = vpop.f32.mrb[0].mxu0
        %2882 = vmatprep.mubr.f32.mxu0 %v2226
        %2883 = vmatmul.mubr.f32.gmra.mrb[0].mxu0 %v2218
        %v2884 = vpop.f32.mrb[0].mxu0
        %v2885 = vadd.f32 %v2780, %v2884
        %v2886 = vpop.f32.mrb[0].mxu0
        %2887 = vmatprep.mubr.f32.mxu0 %v2227
        %2888 = vmatmul.mubr.f32.gmra.mrb[0].mxu0 %v2219
        %v2889 = vpop.f32.mrb[0].mxu0
        %v2890 = vadd.f32 %v2785, %v2889
        %v2891 = vpop.f32.mrb[0].mxu0
        %2892 = vmatprep.mubr.f32.mxu0 %v2229
        %2893 = vmatmul.mubr.f32.gmra.mrb[0].mxu0 %v2228
        %v2894 = vpop.f32.mrb[0].mxu0
        %v2895 = vadd.f32 %v2790, %v2894
        %v2896 = vpop.f32.mrb[0].mxu0
        %2897 = vmatprep.mubr.f32.mxu0 %v2231
        %2898 = vmatmul.mubr.f32.gmra.mrb[0].mxu0 %v2230
        %v2899 = vpop.f32.mrb[0].mxu0
        %v2900 = vadd.f32 %v2795, %v2899
        %v2901 = vpop.f32.mrb[0].mxu0
        %2902 = vmatprep.mubr.f32.mxu0 %v2233
        %2903 = vmatmul.mubr.f32.gmra.mrb[0].mxu0 %v2232
        %v2904 = vpop.f32.mrb[0].mxu0
        %v2905 = vadd.f32 %v2800, %v2904
        %v2906 = vpop.f32.mrb[0].mxu0
        %2907 = vdwg.mxu0
        %2908 = vmatprep.subr.mxu0 0.0
        %2909 = vmatpush1.msra.mxu0 %v2369
        %2910 = vmatprep.subr.mxu0 0.0
        %2911 = vmatpush1.msra.mxu0 %v2370
        %2912 = vmatprep.subr.mxu0 0.0
        %2913 = vmatpush1.msra.mxu0 %v2371
        %2914 = vmatprep.subr.mxu0 0.0
        %2915 = vmatpush1.msra.mxu0 %v2372
        %2916 = vmatprep.subr.mxu0 0.0
        %2917 = vmatpush1.msra.mxu0 %v2373
        %2918 = vmatprep.subr.mxu0 0.0
        %2919 = vmatpush1.msra.mxu0 %v2374
        %2920 = vmatprep.subr.mxu0 0.0
        %2921 = vmatpush1.msra.mxu0 %v2375
        %2922 = vmatprep.subr.mxu0 0.0
        %2923 = vmatpush1.msra.mxu0 %v2376
        %2924 = vmatprep.subr.mxu0 0.0
        %2925 = vmatpush1.msra.mxu0 %v2377
        %2926 = vmatprep.subr.mxu0 0.0
        %2927 = vmatpush1.msra.mxu0 %v2378
        %2928 = vmatprep.subr.mxu0 0.0
        %2929 = vmatpush1.msra.mxu0 %v2379
        %2930 = vmatprep.subr.mxu0 0.0
        %2931 = vmatpush1.msra.mxu0 %v2380
        %2932 = vmatprep.subr.mxu0 0.0
        %2933 = vmatpush1.msra.mxu0 %v2381
        %2934 = vmatprep.subr.mxu0 0.0
        %2935 = vmatpush1.msra.mxu0 %v2382
        %2936 = vmatprep.subr.mxu0 0.0
        %2937 = vmatpush1.msra.mxu0 %v2383
        %2938 = vmatprep.subr.mxu0 0.0
        %2939 = vmatpush1.msra.mxu0 %v2384
        %2940 = vmatprep.subr.mxu0 0.0
        %2941 = vmatpush1.msra.mxu0 %v2385
        %2942 = vmatprep.subr.mxu0 0.0
        %2943 = vmatpush1.msra.mxu0 %v2386
        %2944 = vmatprep.subr.mxu0 0.0
        %2945 = vmatpush1.msra.mxu0 %v2387
        %2946 = vmatprep.subr.mxu0 0.0
        %2947 = vmatpush1.msra.mxu0 %v2388
        %2948 = vmatprep.subr.mxu0 0.0
        %2949 = vmatpush1.msra.mxu0 %v2389
        %2950 = vmatprep.subr.mxu0 0.0
        %2951 = vmatpush1.msra.mxu0 %v2390
        %2952 = vmatprep.subr.mxu0 0.0
        %2953 = vmatpush1.msra.mxu0 %v2391
        %2954 = vmatprep.subr.mxu0 0.0
        %2955 = vmatpush1.msra.mxu0 %v2392
        %2956 = vmatprep.subr.mxu0 0.0
        %2957 = vmatpush1.msra.mxu0 %v2393
        %2958 = vmatprep.subr.mxu0 0.0
        %2959 = vmatpush1.msra.mxu0 %v2394
        %2960 = vmatprep.subr.mxu0 0.0
        %2961 = vmatpush1.msra.mxu0 %v2395
        %2962 = vmatprep.subr.mxu0 0.0
        %2963 = vmatpush1.msra.mxu0 %v2396
        %2964 = vmatprep.subr.mxu0 0.0
        %2965 = vmatpush1.msra.mxu0 %v2397
        %2966 = vmatprep.subr.mxu0 0.0
        %2967 = vmatpush1.msra.mxu0 %v2398
        %2968 = vmatprep.subr.mxu0 0.0
        %2969 = vmatpush1.msra.mxu0 %v2399
        %2970 = vmatprep.subr.mxu0 0.0
        %2971 = vmatpush1.msra.mxu0 %v2400
        %2972 = vmatprep.mubr.f32.mxu0 %v2224
        %2973 = vmatmul.mubr.f32.gmra.mrb[0].mxu0 %v2216
        %v2974 = vpop.f32.mrb[0].mxu0
        %v2975 = vadd.f32 %v2870, %v2974
        %v2976 = vpop.f32.mrb[0].mxu0
        %2977 = vmatprep.mubr.f32.mxu0 %v2225
        %2978 = vmatmul.mubr.f32.gmra.mrb[0].mxu0 %v2217
        %v2979 = vpop.f32.mrb[0].mxu0
        %v2980 = vadd.f32 %v2875, %v2979
        %v2981 = vpop.f32.mrb[0].mxu0
        %2982 = vmatprep.mubr.f32.mxu0 %v2226
        %2983 = vmatmul.mubr.f32.gmra.mrb[0].mxu0 %v2218
        %v2984 = vpop.f32.mrb[0].mxu0
        %v2985 = vadd.f32 %v2880, %v2984
        %v2986 = vpop.f32.mrb[0].mxu0
        %2987 = vmatprep.mubr.f32.mxu0 %v2227
        %2988 = vmatmul.mubr.f32.gmra.mrb[0].mxu0 %v2219
        %v2989 = vpop.f32.mrb[0].mxu0
        %v2990 = vadd.f32 %v2885, %v2989
        %v2991 = vpop.f32.mrb[0].mxu0
        %2992 = vmatprep.mubr.f32.mxu0 %v2229
        %2993 = vmatmul.mubr.f32.gmra.mrb[0].mxu0 %v2228
        %v2994 = vpop.f32.mrb[0].mxu0
        %v2995 = vadd.f32 %v2890, %v2994
        %v2996 = vpop.f32.mrb[0].mxu0
        %2997 = vmatprep.mubr.f32.mxu0 %v2231
        %2998 = vmatmul.mubr.f32.gmra.mrb[0].mxu0 %v2230
        %v2999 = vpop.f32.mrb[0].mxu0
        %v3000 = vadd.f32 %v2895, %v2999
        %v3001 = vpop.f32.mrb[0].mxu0
        %3002 = vmatprep.mubr.f32.mxu0 %v2233
        %3003 = vmatmul.mubr.f32.gmra.mrb[0].mxu0 %v2232
        %v3004 = vpop.f32.mrb[0].mxu0
        %v3005 = vadd.f32 %v2900, %v3004
        %v3006 = vpop.f32.mrb[0].mxu0
        %3007 = vmatprep.mubr.f32.mxu0 %v2235
        %3008 = vmatmul.mubr.f32.gmra.mrb[0].mxu0 %v2234
        %v3009 = vpop.f32.mrb[0].mxu0
        %v3010 = vadd.f32 %v2905, %v3009
        %v3011 = vpop.f32.mrb[0].mxu0
        %3012 = vdwg.mxu0
        %3013 = vmatprep.subr.mxu0 0.0
        %3014 = vmatpush1.msra.mxu0 %v2401
        %3015 = vmatprep.subr.mxu0 0.0
        %3016 = vmatpush1.msra.mxu0 %v2402
        %3017 = vmatprep.subr.mxu0 0.0
        %3018 = vmatpush1.msra.mxu0 %v2403
        %3019 = vmatprep.subr.mxu0 0.0
        %3020 = vmatpush1.msra.mxu0 %v2404
        %3021 = vmatprep.subr.mxu0 0.0
        %3022 = vmatpush1.msra.mxu0 %v2405
        %3023 = vmatprep.subr.mxu0 0.0
        %3024 = vmatpush1.msra.mxu0 %v2406
        %3025 = vmatprep.subr.mxu0 0.0
        %3026 = vmatpush1.msra.mxu0 %v2407
        %3027 = vmatprep.subr.mxu0 0.0
        %3028 = vmatpush1.msra.mxu0 %v2408
        %3029 = vmatprep.subr.mxu0 0.0
        %3030 = vmatpush1.msra.mxu0 %v2409
        %3031 = vmatprep.subr.mxu0 0.0
        %3032 = vmatpush1.msra.mxu0 %v2410
        %3033 = vmatprep.subr.mxu0 0.0
        %3034 = vmatpush1.msra.mxu0 %v2411
        %3035 = vmatprep.subr.mxu0 0.0
        %3036 = vmatpush1.msra.mxu0 %v2412
        %3037 = vmatprep.subr.mxu0 0.0
        %3038 = vmatpush1.msra.mxu0 %v2413
        %3039 = vmatprep.subr.mxu0 0.0
        %3040 = vmatpush1.msra.mxu0 %v2414
        %3041 = vmatprep.subr.mxu0 0.0
        %3042 = vmatpush1.msra.mxu0 %v2415
        %3043 = vmatprep.subr.mxu0 0.0
        %3044 = vmatpush1.msra.mxu0 %v2416
        %3045 = vmatprep.subr.mxu0 0.0
        %3046 = vmatpush1.msra.mxu0 %v2417
        %3047 = vmatprep.subr.mxu0 0.0
        %3048 = vmatpush1.msra.mxu0 %v2418
        %3049 = vmatprep.subr.mxu0 0.0
        %3050 = vmatpush1.msra.mxu0 %v2419
        %3051 = vmatprep.subr.mxu0 0.0
        %3052 = vmatpush1.msra.mxu0 %v2420
        %3053 = vmatprep.subr.mxu0 0.0
        %3054 = vmatpush1.msra.mxu0 %v2421
        %3055 = vmatprep.subr.mxu0 0.0
        %3056 = vmatpush1.msra.mxu0 %v2422
        %3057 = vmatprep.subr.mxu0 0.0
        %3058 = vmatpush1.msra.mxu0 %v2423
        %3059 = vmatprep.subr.mxu0 0.0
        %3060 = vmatpush1.msra.mxu0 %v2424
        %3061 = vmatprep.subr.mxu0 0.0
        %3062 = vmatpush1.msra.mxu0 %v2425
        %3063 = vmatprep.subr.mxu0 0.0
        %3064 = vmatpush1.msra.mxu0 %v2426
        %3065 = vmatprep.subr.mxu0 0.0
        %3066 = vmatpush1.msra.mxu0 %v2427
        %3067 = vmatprep.subr.mxu0 0.0
        %3068 = vmatpush1.msra.mxu0 %v2428
        %3069 = vmatprep.subr.mxu0 0.0
        %3070 = vmatpush1.msra.mxu0 %v2429
        %3071 = vmatprep.subr.mxu0 0.0
        %3072 = vmatpush1.msra.mxu0 %v2430
        %3073 = vmatprep.subr.mxu0 0.0
        %3074 = vmatpush1.msra.mxu0 %v2431
        %3075 = vmatprep.subr.mxu0 0.0
        %3076 = vmatpush1.msra.mxu0 %v2432
        %3077 = vmatprep.mubr.f32.mxu0 %v2225
        %3078 = vmatmul.mubr.f32.gmra.mrb[0].mxu0 %v2217
        %v3079 = vpop.f32.mrb[0].mxu0
        %v3080 = vadd.f32 %v2975, %v3079
        %v3081 = vpop.f32.mrb[0].mxu0
        %3082 = vmatprep.mubr.f32.mxu0 %v2226
        %3083 = vmatmul.mubr.f32.gmra.mrb[0].mxu0 %v2218
        %v3084 = vpop.f32.mrb[0].mxu0
        %v3085 = vadd.f32 %v2980, %v3084
        %v3086 = vpop.f32.mrb[0].mxu0
        %3087 = vmatprep.mubr.f32.mxu0 %v2227
        %3088 = vmatmul.mubr.f32.gmra.mrb[0].mxu0 %v2219
        %v3089 = vpop.f32.mrb[0].mxu0
        %v3090 = vadd.f32 %v2985, %v3089
        %v3091 = vpop.f32.mrb[0].mxu0
        %3092 = vmatprep.mubr.f32.mxu0 %v2229
        %3093 = vmatmul.mubr.f32.gmra.mrb[0].mxu0 %v2228
        %v3094 = vpop.f32.mrb[0].mxu0
        %v3095 = vadd.f32 %v2990, %v3094
        %v3096 = vpop.f32.mrb[0].mxu0
        %3097 = vmatprep.mubr.f32.mxu0 %v2231
        %3098 = vmatmul.mubr.f32.gmra.mrb[0].mxu0 %v2230
        %v3099 = vpop.f32.mrb[0].mxu0
        %v3100 = vadd.f32 %v2995, %v3099
        %v3101 = vpop.f32.mrb[0].mxu0
        %3102 = vmatprep.mubr.f32.mxu0 %v2233
        %3103 = vmatmul.mubr.f32.gmra.mrb[0].mxu0 %v2232
        %v3104 = vpop.f32.mrb[0].mxu0
        %v3105 = vadd.f32 %v3000, %v3104
        %v3106 = vpop.f32.mrb[0].mxu0
        %3107 = vmatprep.mubr.f32.mxu0 %v2235
        %3108 = vmatmul.mubr.f32.gmra.mrb[0].mxu0 %v2234
        %v3109 = vpop.f32.mrb[0].mxu0
        %v3110 = vadd.f32 %v3005, %v3109
        %v3111 = vpop.f32.mrb[0].mxu0
        %3112 = vmatprep.mubr.f32.mxu0 %v2237
        %3113 = vmatmul.mubr.f32.gmra.mrb[0].mxu0 %v2236
        %v3114 = vpop.f32.mrb[0].mxu0
        %v3115 = vadd.f32 %v3010, %v3114
        %v3116 = vpop.f32.mrb[0].mxu0
        %3117 = vdwg.mxu0
        %3118 = vmatprep.subr.mxu0 0.0
        %3119 = vmatpush1.msra.mxu0 %v2433
        %3120 = vmatprep.subr.mxu0 0.0
        %3121 = vmatpush1.msra.mxu0 %v2434
        %3122 = vmatprep.subr.mxu0 0.0
        %3123 = vmatpush1.msra.mxu0 %v2435
        %3124 = vmatprep.subr.mxu0 0.0
        %3125 = vmatpush1.msra.mxu0 %v2436
        %3126 = vmatprep.subr.mxu0 0.0
        %3127 = vmatpush1.msra.mxu0 %v2437
        %3128 = vmatprep.subr.mxu0 0.0
        %3129 = vmatpush1.msra.mxu0 %v2438
        %3130 = vmatprep.subr.mxu0 0.0
        %3131 = vmatpush1.msra.mxu0 %v2439
        %3132 = vmatprep.subr.mxu0 0.0
        %3133 = vmatpush1.msra.mxu0 %v2440
        %3134 = vmatprep.subr.mxu0 0.0
        %3135 = vmatpush1.msra.mxu0 %v2441
        %3136 = vmatprep.subr.mxu0 0.0
        %3137 = vmatpush1.msra.mxu0 %v2442
        %3138 = vmatprep.subr.mxu0 0.0
        %3139 = vmatpush1.msra.mxu0 %v2443
        %3140 = vmatprep.subr.mxu0 0.0
        %3141 = vmatpush1.msra.mxu0 %v2444
        %3142 = vmatprep.subr.mxu0 0.0
        %3143 = vmatpush1.msra.mxu0 %v2445
        %3144 = vmatprep.subr.mxu0 0.0
        %3145 = vmatpush1.msra.mxu0 %v2446
        %3146 = vmatprep.subr.mxu0 0.0
        %3147 = vmatpush1.msra.mxu0 %v2447
        %3148 = vmatprep.subr.mxu0 0.0
        %3149 = vmatpush1.msra.mxu0 %v2448
        %3150 = vmatprep.subr.mxu0 0.0
        %3151 = vmatpush1.msra.mxu0 %v2449
        %3152 = vmatprep.subr.mxu0 0.0
        %3153 = vmatpush1.msra.mxu0 %v2450
        %3154 = vmatprep.subr.mxu0 0.0
        %3155 = vmatpush1.msra.mxu0 %v2451
        %3156 = vmatprep.subr.mxu0 0.0
        %3157 = vmatpush1.msra.mxu0 %v2452
        %3158 = vmatprep.subr.mxu0 0.0
        %3159 = vmatpush1.msra.mxu0 %v2453
        %3160 = vmatprep.subr.mxu0 0.0
        %3161 = vmatpush1.msra.mxu0 %v2454
        %3162 = vmatprep.subr.mxu0 0.0
        %3163 = vmatpush1.msra.mxu0 %v2455
        %3164 = vmatprep.subr.mxu0 0.0
        %3165 = vmatpush1.msra.mxu0 %v2456
        %3166 = vmatprep.subr.mxu0 0.0
        %3167 = vmatpush1.msra.mxu0 %v2457
        %3168 = vmatprep.subr.mxu0 0.0
        %3169 = vmatpush1.msra.mxu0 %v2458
        %3170 = vmatprep.subr.mxu0 0.0
        %3171 = vmatpush1.msra.mxu0 %v2459
        %3172 = vmatprep.subr.mxu0 0.0
        %3173 = vmatpush1.msra.mxu0 %v2460
        %3174 = vmatprep.subr.mxu0 0.0
        %3175 = vmatpush1.msra.mxu0 %v2461
        %3176 = vmatprep.subr.mxu0 0.0
        %3177 = vmatpush1.msra.mxu0 %v2462
        %3178 = vmatprep.subr.mxu0 0.0
        %3179 = vmatpush1.msra.mxu0 %v2463
        %3180 = vmatprep.subr.mxu0 0.0
        %3181 = vmatpush1.msra.mxu0 %v2464
        %3182 = vmatprep.mubr.f32.mxu0 %v2226
        %3183 = vmatmul.mubr.f32.gmra.mrb[0].mxu0 %v2218
        %v3184 = vpop.f32.mrb[0].mxu0
        %v3185 = vadd.f32 %v3080, %v3184
        %v3186 = vpop.f32.mrb[0].mxu0
        %3187 = vmatprep.mubr.f32.mxu0 %v2227
        %3188 = vmatmul.mubr.f32.gmra.mrb[0].mxu0 %v2219
        %v3189 = vpop.f32.mrb[0].mxu0
        %v3190 = vadd.f32 %v3085, %v3189
        %v3191 = vpop.f32.mrb[0].mxu0
        %3192 = vmatprep.mubr.f32.mxu0 %v2229
        %3193 = vmatmul.mubr.f32.gmra.mrb[0].mxu0 %v2228
        %v3194 = vpop.f32.mrb[0].mxu0
        %v3195 = vadd.f32 %v3090, %v3194
        %v3196 = vpop.f32.mrb[0].mxu0
        %3197 = vmatprep.mubr.f32.mxu0 %v2231
        %3198 = vmatmul.mubr.f32.gmra.mrb[0].mxu0 %v2230
        %v3199 = vpop.f32.mrb[0].mxu0
        %v3200 = vadd.f32 %v3095, %v3199
        %v3201 = vpop.f32.mrb[0].mxu0
        %3202 = vmatprep.mubr.f32.mxu0 %v2233
        %3203 = vmatmul.mubr.f32.gmra.mrb[0].mxu0 %v2232
        %v3204 = vpop.f32.mrb[0].mxu0
        %v3205 = vadd.f32 %v3100, %v3204
        %v3206 = vpop.f32.mrb[0].mxu0
        %3207 = vmatprep.mubr.f32.mxu0 %v2235
        %3208 = vmatmul.mubr.f32.gmra.mrb[0].mxu0 %v2234
        %v3209 = vpop.f32.mrb[0].mxu0
        %v3210 = vadd.f32 %v3105, %v3209
        %v3211 = vpop.f32.mrb[0].mxu0
        %3212 = vmatprep.mubr.f32.mxu0 %v2237
        %3213 = vmatmul.mubr.f32.gmra.mrb[0].mxu0 %v2236
        %v3214 = vpop.f32.mrb[0].mxu0
        %v3215 = vadd.f32 %v3110, %v3214
        %v3216 = vpop.f32.mrb[0].mxu0
        %3217 = vmatprep.mubr.f32.mxu0 %v2239
        %3218 = vmatmul.mubr.f32.gmra.mrb[0].mxu0 %v2238
        %v3219 = vpop.f32.mrb[0].mxu0
        %v3220 = vadd.f32 %v3115, %v3219
        %v3221 = vpop.f32.mrb[0].mxu0
        %3222 = vdwg.mxu0
        %3223 = vmatprep.subr.mxu0 0.0
        %3224 = vmatpush1.msra.mxu0 %v2465
        %3225 = vmatprep.subr.mxu0 0.0
        %3226 = vmatpush1.msra.mxu0 %v2466
        %3227 = vmatprep.subr.mxu0 0.0
        %3228 = vmatpush1.msra.mxu0 %v2467
        %3229 = vmatprep.subr.mxu0 0.0
        %3230 = vmatpush1.msra.mxu0 %v2468
        %3231 = vmatprep.subr.mxu0 0.0
        %3232 = vmatpush1.msra.mxu0 %v2469
        %3233 = vmatprep.subr.mxu0 0.0
        %3234 = vmatpush1.msra.mxu0 %v2470
        %3235 = vmatprep.subr.mxu0 0.0
        %3236 = vmatpush1.msra.mxu0 %v2471
        %3237 = vmatprep.subr.mxu0 0.0
        %3238 = vmatpush1.msra.mxu0 %v2472
        %3239 = vmatprep.subr.mxu0 0.0
        %3240 = vmatpush1.msra.mxu0 %v2473
        %3241 = vmatprep.subr.mxu0 0.0
        %3242 = vmatpush1.msra.mxu0 %v2474
        %3243 = vmatprep.subr.mxu0 0.0
        %3244 = vmatpush1.msra.mxu0 %v2475
        %3245 = vmatprep.subr.mxu0 0.0
        %3246 = vmatpush1.msra.mxu0 %v2476
        %3247 = vmatprep.subr.mxu0 0.0
        %3248 = vmatpush1.msra.mxu0 %v2477
        %3249 = vmatprep.subr.mxu0 0.0
        %3250 = vmatpush1.msra.mxu0 %v2478
        %3251 = vmatprep.subr.mxu0 0.0
        %3252 = vmatpush1.msra.mxu0 %v2479
        %3253 = vmatprep.subr.mxu0 0.0
        %3254 = vmatpush1.msra.mxu0 %v2480
        %3255 = vmatprep.subr.mxu0 0.0
        %3256 = vmatpush1.msra.mxu0 0.0
        %3257 = vmatprep.subr.mxu0 0.0
        %3258 = vmatpush1.msra.mxu0 0.0
        %3259 = vmatprep.subr.mxu0 0.0
        %3260 = vmatpush1.msra.mxu0 0.0
        %3261 = vmatprep.subr.mxu0 0.0
        %3262 = vmatpush1.msra.mxu0 0.0
        %3263 = vmatprep.subr.mxu0 0.0
        %3264 = vmatpush1.msra.mxu0 0.0
        %3265 = vmatprep.subr.mxu0 0.0
        %3266 = vmatpush1.msra.mxu0 0.0
        %3267 = vmatprep.subr.mxu0 0.0
        %3268 = vmatpush1.msra.mxu0 0.0
        %3269 = vmatprep.subr.mxu0 0.0
        %3270 = vmatpush1.msra.mxu0 0.0
        %3271 = vmatprep.subr.mxu0 0.0
        %3272 = vmatpush1.msra.mxu0 0.0
        %3273 = vmatprep.subr.mxu0 0.0
        %3274 = vmatpush1.msra.mxu0 0.0
        %3275 = vmatprep.subr.mxu0 0.0
        %3276 = vmatpush1.msra.mxu0 0.0
        %3277 = vmatprep.subr.mxu0 0.0
        %3278 = vmatpush1.msra.mxu0 0.0
        %3279 = vmatprep.subr.mxu0 0.0
        %3280 = vmatpush1.msra.mxu0 0.0
        %3281 = vmatprep.subr.mxu0 0.0
        %3282 = vmatpush1.msra.mxu0 0.0
        %3283 = vmatprep.subr.mxu0 0.0
        %3284 = vmatpush1.msra.mxu0 0.0
        %3285 = vmatprep.subr.mxu0 0.0
        %3286 = vmatpush1.msra.mxu0 0.0
        %3287 = vmatprep.mubr.f32.mxu0 0.0
        %3288 = vmatmul.mubr.f32.gmra.mrb[0].mxu0 %v2219
        %v3289 = vpop.f32.mrb[0].mxu0
        %v3290 = vadd.f32 %v3185, %v3289
        %v3291 = vpop.f32.mrb[0].mxu0
        %3292 = vmatprep.mubr.f32.mxu0 0.0
        %3293 = vmatmul.mubr.f32.gmra.mrb[0].mxu0 %v2228
        %v3294 = vpop.f32.mrb[0].mxu0
        %v3295 = vadd.f32 %v3190, %v3294
        %v3296 = vpop.f32.mrb[0].mxu0
        %3297 = vmatprep.mubr.f32.mxu0 0.0
        %3298 = vmatmul.mubr.f32.gmra.mrb[0].mxu0 %v2230
        %v3299 = vpop.f32.mrb[0].mxu0
        %v3300 = vadd.f32 %v3195, %v3299
        %v3301 = vpop.f32.mrb[0].mxu0
        %3302 = vmatprep.mubr.f32.mxu0 0.0
        %3303 = vmatmul.mubr.f32.gmra.mrb[0].mxu0 %v2232
        %v3304 = vpop.f32.mrb[0].mxu0
        %v3305 = vadd.f32 %v3200, %v3304
        %v3306 = vpop.f32.mrb[0].mxu0
        %3307 = vmatprep.mubr.f32.mxu0 0.0
        %3308 = vmatmul.mubr.f32.gmra.mrb[0].mxu0 %v2234
        %v3309 = vpop.f32.mrb[0].mxu0
        %v3310 = vadd.f32 %v3205, %v3309
        %v3311 = vpop.f32.mrb[0].mxu0
        %3312 = vmatprep.mubr.f32.mxu0 0.0
        %3313 = vmatmul.mubr.f32.gmra.mrb[0].mxu0 %v2236
        %v3314 = vpop.f32.mrb[0].mxu0
        %v3315 = vadd.f32 %v3210, %v3314
        %v3316 = vpop.f32.mrb[0].mxu0
        %3317 = vmatprep.mubr.f32.mxu0 0.0
        %3318 = vmatmul.mubr.f32.gmra.mrb[0].mxu0 %v2238
        %v3319 = vpop.f32.mrb[0].mxu0
        %v3320 = vadd.f32 %v3215, %v3319
        %v3321 = vpop.f32.mrb[0].mxu0
        %3322 = vmatprep.mubr.f32.mxu0 0.0
        %3323 = vmatmul.mubr.f32.gmra.mrb[0].mxu0 %v2240
        %v3324 = vpop.f32.mrb[0].mxu0
        %v3325 = vadd.f32 %v3220, %v3324
        %v3326 = vpop.f32.mrb[0].mxu0
        %3327 = vdwg.mxu0
        %v3328 = vmul.f32 %v3290, %v1282
        %v3329 = vmul.f32 %v3295, %v1288
        %v3330 = vmul.f32 %v3300, %v1294
        %v3331 = vmul.f32 %v3305, %v1300
        %v3332 = vmul.f32 %v3310, %v1306
        %v3333 = vmul.f32 %v3315, %v1312
        %v3334 = vmul.f32 %v3320, %v1318
        %v3335 = vmul.f32 %v3325, %v1324
        %3336 = vst [vmem:[#allocation4 + $0x10] sm:$0xff] %v3328
        %3337 = vst [vmem:[#allocation4 + $0x28] sm:$0xff] %v3329
        %3338 = vst [vmem:[#allocation4 + $0x40] sm:$0xff] %v3330
        %3339 = vst [vmem:[#allocation4 + $0x58] sm:$0xff] %v3331
        %3340 = vst [vmem:[#allocation4 + $0x70] sm:$0xff] %v3332
        %3341 = vst [vmem:[#allocation4 + $0x88] sm:$0xff] %v3333
        %3342 = vst [vmem:[#allocation4 + $0xa0] sm:$0xff] %v3334
        %3343 = vst [vmem:[#allocation4 + $0xb8] sm:$0xff] %v3335
        %v3344 = vld [vmem:[#allocation16] sm:$0xff]
        %v3345 = vld [vmem:[#allocation16 + $0x8] sm:$0xff]
        %v3346 = vld [vmem:[#allocation16 + $0x10] sm:$0xff]
        %v3347 = vld [vmem:[#allocation16 + $0x18] sm:$0xff]
        %v3348 = vld [vmem:[#allocation16 + $0x20] sm:$0xff]
        %v3349 = vld [vmem:[#allocation16 + $0x28] sm:$0xff]
        %v3350 = vld [vmem:[#allocation16 + $0x30] sm:$0xff]
        %v3351 = vld [vmem:[#allocation16 + $0x38] sm:$0xff]
        %v3352 = vld [vmem:[#allocation16 + $0x40] sm:$0xff]
        %v3353 = vld [vmem:[#allocation16 + $0x48] sm:$0xff]
        %v3354 = vld [vmem:[#allocation16 + $0x50] sm:$0xff]
        %v3355 = vld [vmem:[#allocation16 + $0x58] sm:$0xff]
        %v3356 = vld [vmem:[#allocation16 + $0x60] sm:$0xff]
        %v3357 = vld [vmem:[#allocation16 + $0x68] sm:$0xff]
        %v3358 = vld [vmem:[#allocation16 + $0x70] sm:$0xff]
        %v3359 = vld [vmem:[#allocation16 + $0x78] sm:$0xff]
        %v3360 = vld [vmem:[#allocation16 + $0x80] sm:$0xff]
        %v3361 = vld [vmem:[#allocation16 + $0x88] sm:$0xff]
        %v3362 = vld [vmem:[#allocation16 + $0x90] sm:$0xff]
        %v3363 = vld [vmem:[#allocation16 + $0x98] sm:$0xff]
        %v3364 = vld [vmem:[#allocation16 + $0xa0] sm:$0xff]
        %v3365 = vld [vmem:[#allocation16 + $0xa8] sm:$0xff]
        %v3366 = vld [vmem:[#allocation16 + $0xb0] sm:$0xff]
        %v3367 = vld [vmem:[#allocation16 + $0xb8] sm:$0xff]
        %v3368 = vld [vmem:[#allocation17] sm:$0xff]
        %v3369 = vld [vmem:[#allocation17 + $0x8] sm:$0xff]
        %v3370 = vld [vmem:[#allocation17 + $0x10] sm:$0xff]
        %v3371 = vld [vmem:[#allocation17 + $0x18] sm:$0xff]
        %v3372 = vld [vmem:[#allocation17 + $0x20] sm:$0xff]
        %v3373 = vld [vmem:[#allocation17 + $0x28] sm:$0xff]
        %v3374 = vld [vmem:[#allocation17 + $0x30] sm:$0xff]
        %v3375 = vld [vmem:[#allocation17 + $0x38] sm:$0xff]
        %v3376 = vld [vmem:[#allocation17 + $0x40] sm:$0xff]
        %v3377 = vld [vmem:[#allocation17 + $0x48] sm:$0xff]
        %v3378 = vld [vmem:[#allocation17 + $0x50] sm:$0xff]
        %v3379 = vld [vmem:[#allocation17 + $0x58] sm:$0xff]
        %v3380 = vld [vmem:[#allocation17 + $0x60] sm:$0xff]
        %v3381 = vld [vmem:[#allocation17 + $0x68] sm:$0xff]
        %v3382 = vld [vmem:[#allocation17 + $0x70] sm:$0xff]
        %v3383 = vld [vmem:[#allocation17 + $0x78] sm:$0xff]
        %v3384 = vld [vmem:[#allocation17 + $0x80] sm:$0xff]
        %v3385 = vld [vmem:[#allocation17 + $0x88] sm:$0xff]
        %v3386 = vld [vmem:[#allocation17 + $0x90] sm:$0xff]
        %v3387 = vld [vmem:[#allocation17 + $0x98] sm:$0xff]
        %v3388 = vld [vmem:[#allocation17 + $0xa0] sm:$0xff]
        %v3389 = vld [vmem:[#allocation17 + $0xa8] sm:$0xff]
        %v3390 = vld [vmem:[#allocation17 + $0xb0] sm:$0xff]
        %v3391 = vld [vmem:[#allocation17 + $0xb8] sm:$0xff]
        %v3392 = vld [vmem:[#allocation19] sm:$0xff]
        %v3393 = vld [vmem:[#allocation19 + $0x8] sm:$0xff]
        %v3394 = vld [vmem:[#allocation19 + $0x10] sm:$0xff]
        %v3395 = vld [vmem:[#allocation19 + $0x18] sm:$0xff]
        %v3396 = vld [vmem:[#allocation19 + $0x20] sm:$0xff]
        %v3397 = vld [vmem:[#allocation19 + $0x28] sm:$0xff]
        %v3398 = vld [vmem:[#allocation19 + $0x30] sm:$0xff]
        %v3399 = vld [vmem:[#allocation19 + $0x38] sm:$0xff]
        %v3400 = vld [vmem:[#allocation19 + $0x40] sm:$0xff]
        %v3401 = vld [vmem:[#allocation19 + $0x48] sm:$0xff]
        %v3402 = vld [vmem:[#allocation19 + $0x50] sm:$0xff]
        %v3403 = vld [vmem:[#allocation19 + $0x58] sm:$0xff]
        %v3404 = vld [vmem:[#allocation19 + $0x60] sm:$0xff]
        %v3405 = vld [vmem:[#allocation19 + $0x68] sm:$0xff]
        %v3406 = vld [vmem:[#allocation19 + $0x70] sm:$0xff]
        %v3407 = vld [vmem:[#allocation19 + $0x78] sm:$0xff]
        %v3408 = vld [vmem:[#allocation19 + $0x80] sm:$0xff]
        %v3409 = vld [vmem:[#allocation19 + $0x88] sm:$0xff]
        %v3410 = vld [vmem:[#allocation19 + $0x90] sm:$0xff]
        %v3411 = vld [vmem:[#allocation19 + $0x98] sm:$0xff]
        %v3412 = vld [vmem:[#allocation19 + $0xa0] sm:$0xff]
        %v3413 = vld [vmem:[#allocation19 + $0xa8] sm:$0xff]
        %v3414 = vld [vmem:[#allocation19 + $0xb0] sm:$0xff]
        %v3415 = vld [vmem:[#allocation19 + $0xb8] sm:$0xff]
        %v3416 = vld [vmem:[#allocation20] sm:$0xff]
        %v3417 = vld [vmem:[#allocation20 + $0x8] sm:$0xff]
        %v3418 = vld [vmem:[#allocation20 + $0x10] sm:$0xff]
        %v3419 = vld [vmem:[#allocation20 + $0x18] sm:$0xff]
        %v3420 = vld [vmem:[#allocation20 + $0x20] sm:$0xff]
        %v3421 = vld [vmem:[#allocation20 + $0x28] sm:$0xff]
        %v3422 = vld [vmem:[#allocation20 + $0x30] sm:$0xff]
        %v3423 = vld [vmem:[#allocation20 + $0x38] sm:$0xff]
        %v3424 = vld [vmem:[#allocation20 + $0x40] sm:$0xff]
        %v3425 = vld [vmem:[#allocation20 + $0x48] sm:$0xff]
        %v3426 = vld [vmem:[#allocation20 + $0x50] sm:$0xff]
        %v3427 = vld [vmem:[#allocation20 + $0x58] sm:$0xff]
        %v3428 = vld [vmem:[#allocation20 + $0x60] sm:$0xff]
        %v3429 = vld [vmem:[#allocation20 + $0x68] sm:$0xff]
        %v3430 = vld [vmem:[#allocation20 + $0x70] sm:$0xff]
        %v3431 = vld [vmem:[#allocation20 + $0x78] sm:$0xff]
        %v3432 = vld [vmem:[#allocation20 + $0x80] sm:$0xff]
        %v3433 = vld [vmem:[#allocation20 + $0x88] sm:$0xff]
        %v3434 = vld [vmem:[#allocation20 + $0x90] sm:$0xff]
        %v3435 = vld [vmem:[#allocation20 + $0x98] sm:$0xff]
        %v3436 = vld [vmem:[#allocation20 + $0xa0] sm:$0xff]
        %v3437 = vld [vmem:[#allocation20 + $0xa8] sm:$0xff]
        %v3438 = vld [vmem:[#allocation20 + $0xb0] sm:$0xff]
        %v3439 = vld [vmem:[#allocation20 + $0xb8] sm:$0xff]
        %v3440 = vld [vmem:[#allocation22] sm:$0xff]
        %v3441 = vld [vmem:[#allocation22 + $0x8] sm:$0xff]
        %v3442 = vld [vmem:[#allocation22 + $0x10] sm:$0xff]
        %v3443 = vld [vmem:[#allocation22 + $0x18] sm:$0xff]
        %v3444 = vld [vmem:[#allocation22 + $0x20] sm:$0xff]
        %v3445 = vld [vmem:[#allocation22 + $0x28] sm:$0xff]
        %v3446 = vld [vmem:[#allocation22 + $0x30] sm:$0xff]
        %v3447 = vld [vmem:[#allocation22 + $0x38] sm:$0xff]
        %v3448 = vld [vmem:[#allocation22 + $0x40] sm:$0xff]
        %v3449 = vld [vmem:[#allocation22 + $0x48] sm:$0xff]
        %v3450 = vld [vmem:[#allocation22 + $0x50] sm:$0xff]
        %v3451 = vld [vmem:[#allocation22 + $0x58] sm:$0xff]
        %v3452 = vld [vmem:[#allocation22 + $0x60] sm:$0xff]
        %v3453 = vld [vmem:[#allocation22 + $0x68] sm:$0xff]
        %v3454 = vld [vmem:[#allocation22 + $0x70] sm:$0xff]
        %v3455 = vld [vmem:[#allocation22 + $0x78] sm:$0xff]
        %v3456 = vld [vmem:[#allocation22 + $0x80] sm:$0xff]
        %v3457 = vld [vmem:[#allocation22 + $0x88] sm:$0xff]
        %v3458 = vld [vmem:[#allocation22 + $0x90] sm:$0xff]
        %v3459 = vld [vmem:[#allocation22 + $0x98] sm:$0xff]
        %v3460 = vld [vmem:[#allocation22 + $0xa0] sm:$0xff]
        %v3461 = vld [vmem:[#allocation22 + $0xa8] sm:$0xff]
        %v3462 = vld [vmem:[#allocation22 + $0xb0] sm:$0xff]
        %v3463 = vld [vmem:[#allocation22 + $0xb8] sm:$0xff]
        %v3464 = vld [vmem:[#allocation23] sm:$0xff]
        %v3465 = vld [vmem:[#allocation23 + $0x8] sm:$0xff]
        %v3466 = vld [vmem:[#allocation23 + $0x10] sm:$0xff]
        %v3467 = vld [vmem:[#allocation23 + $0x18] sm:$0xff]
        %v3468 = vld [vmem:[#allocation23 + $0x20] sm:$0xff]
        %v3469 = vld [vmem:[#allocation23 + $0x28] sm:$0xff]
        %v3470 = vld [vmem:[#allocation23 + $0x30] sm:$0xff]
        %v3471 = vld [vmem:[#allocation23 + $0x38] sm:$0xff]
        %v3472 = vld [vmem:[#allocation23 + $0x40] sm:$0xff]
        %v3473 = vld [vmem:[#allocation23 + $0x48] sm:$0xff]
        %v3474 = vld [vmem:[#allocation23 + $0x50] sm:$0xff]
        %v3475 = vld [vmem:[#allocation23 + $0x58] sm:$0xff]
        %v3476 = vld [vmem:[#allocation23 + $0x60] sm:$0xff]
        %v3477 = vld [vmem:[#allocation23 + $0x68] sm:$0xff]
        %v3478 = vld [vmem:[#allocation23 + $0x70] sm:$0xff]
        %v3479 = vld [vmem:[#allocation23 + $0x78] sm:$0xff]
        %v3480 = vld [vmem:[#allocation23 + $0x80] sm:$0xff]
        %v3481 = vld [vmem:[#allocation23 + $0x88] sm:$0xff]
        %v3482 = vld [vmem:[#allocation23 + $0x90] sm:$0xff]
        %v3483 = vld [vmem:[#allocation23 + $0x98] sm:$0xff]
        %v3484 = vld [vmem:[#allocation23 + $0xa0] sm:$0xff]
        %v3485 = vld [vmem:[#allocation23 + $0xa8] sm:$0xff]
        %v3486 = vld [vmem:[#allocation23 + $0xb0] sm:$0xff]
        %v3487 = vld [vmem:[#allocation23 + $0xb8] sm:$0xff]
        loop: start=0, step=1, limit=8
        $region129: #{tpu_custom_call.1} parent=79 // loop_pre_header
          _
        $region130: #{tpu_custom_call.1} parent=79 // loop_header
          %s3489 = sphi 0, %s3493
          %p3490 = scmp.ge.s32.totalorder %s3489, 8
        $region131: #{tpu_custom_call.1} parent=79 // loop_header_branch
          %3492 = sbr.rel (%p3490) target = $region135
        $region132: #{tpu_custom_call.1} parent=79 // loop_body
          %s3494 = smul.u32 %s3489, 8
          %s3495 = sshra.s32 %s3494, 3
          %s3496 = sand.u32 %s3494, 7
          %s3497 = smul.u32 %s3495, 3
          %s3498 = smul.addr %s3497, 8
          %s3499 = scalar_lea.vmem [#allocation4], %s3498
          %v3500 = vld [vmem:[%s3499] sm:$0xff]
          %v3501 = vld [vmem:[%s3499 + $0x8] sm:$0xff]
          %v3502 = vld [vmem:[%s3499 + $0x10] sm:$0xff]
          %v3503 = vld [vmem:[#allocation6] sm:$0xff]
          %v3504 = vld [vmem:[#allocation6 + $0x8] sm:$0xff]
          %v3505 = vld [vmem:[#allocation6 + $0x10] sm:$0xff]
          %v3506 = vld [vmem:[#allocation6 + $0x18] sm:$0xff]
          %v3507 = vld [vmem:[#allocation6 + $0x20] sm:$0xff]
          %v3508 = vld [vmem:[#allocation6 + $0x28] sm:$0xff]
          %v3509 = vld [vmem:[#allocation6 + $0x30] sm:$0xff]
          %v3510 = vld [vmem:[#allocation6 + $0x38] sm:$0xff]
          %v3511 = vld [vmem:[#allocation6 + $0x40] sm:$0xff]
          %v3512 = vld [vmem:[#allocation6 + $0x48] sm:$0xff]
          %v3513 = vld [vmem:[#allocation6 + $0x50] sm:$0xff]
          %v3514 = vld [vmem:[#allocation6 + $0x58] sm:$0xff]
          %v3515 = vld [vmem:[#allocation6 + $0x60] sm:$0xff]
          %v3516 = vld [vmem:[#allocation6 + $0x68] sm:$0xff]
          %v3517 = vld [vmem:[#allocation6 + $0x70] sm:$0xff]
          %v3518 = vld [vmem:[#allocation6 + $0x78] sm:$0xff]
          %v3519 = vld [vmem:[#allocation6 + $0x80] sm:$0xff]
          %v3520 = vld [vmem:[#allocation6 + $0x88] sm:$0xff]
          %v3521 = vld [vmem:[#allocation6 + $0x90] sm:$0xff]
          %v3522 = vld [vmem:[#allocation6 + $0x98] sm:$0xff]
          %v3523 = vld [vmem:[#allocation6 + $0xa0] sm:$0xff]
          %v3524 = vld [vmem:[#allocation6 + $0xa8] sm:$0xff]
          %v3525 = vld [vmem:[#allocation6 + $0xb0] sm:$0xff]
          %v3526 = vld [vmem:[#allocation6 + $0xb8] sm:$0xff]
          %v3527 = vld [vmem:[#allocation7] sm:$0xff]
          %v3528 = vld [vmem:[#allocation7 + $0x8] sm:$0xff]
          %v3529 = vld [vmem:[#allocation7 + $0x10] sm:$0xff]
          %v3530 = vld [vmem:[#allocation7 + $0x18] sm:$0xff]
          %v3531 = vld [vmem:[#allocation7 + $0x20] sm:$0xff]
          %v3532 = vld [vmem:[#allocation7 + $0x28] sm:$0xff]
          %v3533 = vld [vmem:[#allocation7 + $0x30] sm:$0xff]
          %v3534 = vld [vmem:[#allocation7 + $0x38] sm:$0xff]
          %v3535 = vld [vmem:[#allocation7 + $0x40] sm:$0xff]
          %v3536 = vld [vmem:[#allocation7 + $0x48] sm:$0xff]
          %v3537 = vld [vmem:[#allocation7 + $0x50] sm:$0xff]
          %v3538 = vld [vmem:[#allocation7 + $0x58] sm:$0xff]
          %v3539 = vld [vmem:[#allocation7 + $0x60] sm:$0xff]
          %v3540 = vld [vmem:[#allocation7 + $0x68] sm:$0xff]
          %v3541 = vld [vmem:[#allocation7 + $0x70] sm:$0xff]
          %v3542 = vld [vmem:[#allocation7 + $0x78] sm:$0xff]
          %v3543 = vld [vmem:[#allocation7 + $0x80] sm:$0xff]
          %v3544 = vld [vmem:[#allocation7 + $0x88] sm:$0xff]
          %v3545 = vld [vmem:[#allocation7 + $0x90] sm:$0xff]
          %v3546 = vld [vmem:[#allocation7 + $0x98] sm:$0xff]
          %v3547 = vld [vmem:[#allocation7 + $0xa0] sm:$0xff]
          %v3548 = vld [vmem:[#allocation7 + $0xa8] sm:$0xff]
          %v3549 = vld [vmem:[#allocation7 + $0xb0] sm:$0xff]
          %v3550 = vld [vmem:[#allocation7 + $0xb8] sm:$0xff]
          %v3551 = vmul.f32 %v3344, %v3503
          %v3552 = vmul.f32 %v3345, %v3504
          %v3553 = vmul.f32 %v3346, %v3505
          %v3554 = vmul.f32 %v3347, %v3506
          %v3555 = vmul.f32 %v3348, %v3507
          %v3556 = vmul.f32 %v3349, %v3508
          %v3557 = vmul.f32 %v3350, %v3509
          %v3558 = vmul.f32 %v3351, %v3510
          %v3559 = vmul.f32 %v3352, %v3511
          %v3560 = vmul.f32 %v3353, %v3512
          %v3561 = vmul.f32 %v3354, %v3513
          %v3562 = vmul.f32 %v3355, %v3514
          %v3563 = vmul.f32 %v3356, %v3515
          %v3564 = vmul.f32 %v3357, %v3516
          %v3565 = vmul.f32 %v3358, %v3517
          %v3566 = vmul.f32 %v3359, %v3518
          %v3567 = vmul.f32 %v3360, %v3519
          %v3568 = vmul.f32 %v3361, %v3520
          %v3569 = vmul.f32 %v3362, %v3521
          %v3570 = vmul.f32 %v3363, %v3522
          %v3571 = vmul.f32 %v3364, %v3523
          %v3572 = vmul.f32 %v3365, %v3524
          %v3573 = vmul.f32 %v3366, %v3525
          %v3574 = vmul.f32 %v3367, %v3526
          %v3575 = vmul.f32 %v3368, %v3527
          %v3576 = vmul.f32 %v3369, %v3528
          %v3577 = vmul.f32 %v3370, %v3529
          %v3578 = vmul.f32 %v3371, %v3530
          %v3579 = vmul.f32 %v3372, %v3531
          %v3580 = vmul.f32 %v3373, %v3532
          %v3581 = vmul.f32 %v3374, %v3533
          %v3582 = vmul.f32 %v3375, %v3534
          %v3583 = vmul.f32 %v3376, %v3535
          %v3584 = vmul.f32 %v3377, %v3536
          %v3585 = vmul.f32 %v3378, %v3537
          %v3586 = vmul.f32 %v3379, %v3538
          %v3587 = vmul.f32 %v3380, %v3539
          %v3588 = vmul.f32 %v3381, %v3540
          %v3589 = vmul.f32 %v3382, %v3541
          %v3590 = vmul.f32 %v3383, %v3542
          %v3591 = vmul.f32 %v3384, %v3543
          %v3592 = vmul.f32 %v3385, %v3544
          %v3593 = vmul.f32 %v3386, %v3545
          %v3594 = vmul.f32 %v3387, %v3546
          %v3595 = vmul.f32 %v3388, %v3547
          %v3596 = vmul.f32 %v3389, %v3548
          %v3597 = vmul.f32 %v3390, %v3549
          %v3598 = vmul.f32 %v3391, %v3550
          %v3599 = vsub.f32 %v3551, %v3575
          %v3600 = vsub.f32 %v3552, %v3576
          %v3601 = vsub.f32 %v3553, %v3577
          %v3602 = vsub.f32 %v3554, %v3578
          %v3603 = vsub.f32 %v3555, %v3579
          %v3604 = vsub.f32 %v3556, %v3580
          %v3605 = vsub.f32 %v3557, %v3581
          %v3606 = vsub.f32 %v3558, %v3582
          %v3607 = vsub.f32 %v3559, %v3583
          %v3608 = vsub.f32 %v3560, %v3584
          %v3609 = vsub.f32 %v3561, %v3585
          %v3610 = vsub.f32 %v3562, %v3586
          %v3611 = vsub.f32 %v3563, %v3587
          %v3612 = vsub.f32 %v3564, %v3588
          %v3613 = vsub.f32 %v3565, %v3589
          %v3614 = vsub.f32 %v3566, %v3590
          %v3615 = vsub.f32 %v3567, %v3591
          %v3616 = vsub.f32 %v3568, %v3592
          %v3617 = vsub.f32 %v3569, %v3593
          %v3618 = vsub.f32 %v3570, %v3594
          %v3619 = vsub.f32 %v3571, %v3595
          %v3620 = vsub.f32 %v3572, %v3596
          %v3621 = vsub.f32 %v3573, %v3597
          %v3622 = vsub.f32 %v3574, %v3598
          %v3623 = vlaneseq
          %v3624 = vshrl.u32 %v3623, 7
          %v3625 = vsub.s32 0, %v3624
          %v3626 = vrot.slane %v3500, %v3625
          %v3627 = vlaneseq
          %v3628 = vshrl.u32 %v3627, 7
          %v3629 = vsub.s32 0, %v3628
          %v3630 = vrot.slane %v3501, %v3629
          %v3631 = vlaneseq
          %v3632 = vshrl.u32 %v3631, 7
          %v3633 = vsub.s32 0, %v3632
          %v3634 = vrot.slane %v3502, %v3633
          %v3635 = vmul.f32 %v3392, %v3626
          %v3636 = vmul.f32 %v3393, %v3630
          %v3637 = vmul.f32 %v3394, %v3634
          %v3638 = vmul.f32 %v3395, %v3626
          %v3639 = vmul.f32 %v3396, %v3630
          %v3640 = vmul.f32 %v3397, %v3634
          %v3641 = vmul.f32 %v3398, %v3626
          %v3642 = vmul.f32 %v3399, %v3630
          %v3643 = vmul.f32 %v3400, %v3634
          %v3644 = vmul.f32 %v3401, %v3626
          %v3645 = vmul.f32 %v3402, %v3630
          %v3646 = vmul.f32 %v3403, %v3634
          %v3647 = vmul.f32 %v3404, %v3626
          %v3648 = vmul.f32 %v3405, %v3630
          %v3649 = vmul.f32 %v3406, %v3634
          %v3650 = vmul.f32 %v3407, %v3626
          %v3651 = vmul.f32 %v3408, %v3630
          %v3652 = vmul.f32 %v3409, %v3634
          %v3653 = vmul.f32 %v3410, %v3626
          %v3654 = vmul.f32 %v3411, %v3630
          %v3655 = vmul.f32 %v3412, %v3634
          %v3656 = vmul.f32 %v3413, %v3626
          %v3657 = vmul.f32 %v3414, %v3630
          %v3658 = vmul.f32 %v3415, %v3634
          %v3659 = vadd.f32 %v3599, %v3635
          %v3660 = vadd.f32 %v3600, %v3636
          %v3661 = vadd.f32 %v3601, %v3637
          %v3662 = vadd.f32 %v3602, %v3638
          %v3663 = vadd.f32 %v3603, %v3639
          %v3664 = vadd.f32 %v3604, %v3640
          %v3665 = vadd.f32 %v3605, %v3641
          %v3666 = vadd.f32 %v3606, %v3642
          %v3667 = vadd.f32 %v3607, %v3643
          %v3668 = vadd.f32 %v3608, %v3644
          %v3669 = vadd.f32 %v3609, %v3645
          %v3670 = vadd.f32 %v3610, %v3646
          %v3671 = vadd.f32 %v3611, %v3647
          %v3672 = vadd.f32 %v3612, %v3648
          %v3673 = vadd.f32 %v3613, %v3649
          %v3674 = vadd.f32 %v3614, %v3650
          %v3675 = vadd.f32 %v3615, %v3651
          %v3676 = vadd.f32 %v3616, %v3652
          %v3677 = vadd.f32 %v3617, %v3653
          %v3678 = vadd.f32 %v3618, %v3654
          %v3679 = vadd.f32 %v3619, %v3655
          %v3680 = vadd.f32 %v3620, %v3656
          %v3681 = vadd.f32 %v3621, %v3657
          %v3682 = vadd.f32 %v3622, %v3658
          %v3683 = vmul.f32 %v3344, %v3527
          %v3684 = vmul.f32 %v3345, %v3528
          %v3685 = vmul.f32 %v3346, %v3529
          %v3686 = vmul.f32 %v3347, %v3530
          %v3687 = vmul.f32 %v3348, %v3531
          %v3688 = vmul.f32 %v3349, %v3532
          %v3689 = vmul.f32 %v3350, %v3533
          %v3690 = vmul.f32 %v3351, %v3534
          %v3691 = vmul.f32 %v3352, %v3535
          %v3692 = vmul.f32 %v3353, %v3536
          %v3693 = vmul.f32 %v3354, %v3537
          %v3694 = vmul.f32 %v3355, %v3538
          %v3695 = vmul.f32 %v3356, %v3539
          %v3696 = vmul.f32 %v3357, %v3540
          %v3697 = vmul.f32 %v3358, %v3541
          %v3698 = vmul.f32 %v3359, %v3542
          %v3699 = vmul.f32 %v3360, %v3543
          %v3700 = vmul.f32 %v3361, %v3544
          %v3701 = vmul.f32 %v3362, %v3545
          %v3702 = vmul.f32 %v3363, %v3546
          %v3703 = vmul.f32 %v3364, %v3547
          %v3704 = vmul.f32 %v3365, %v3548
          %v3705 = vmul.f32 %v3366, %v3549
          %v3706 = vmul.f32 %v3367, %v3550
          %v3707 = vmul.f32 %v3368, %v3503
          %v3708 = vmul.f32 %v3369, %v3504
          %v3709 = vmul.f32 %v3370, %v3505
          %v3710 = vmul.f32 %v3371, %v3506
          %v3711 = vmul.f32 %v3372, %v3507
          %v3712 = vmul.f32 %v3373, %v3508
          %v3713 = vmul.f32 %v3374, %v3509
          %v3714 = vmul.f32 %v3375, %v3510
          %v3715 = vmul.f32 %v3376, %v3511
          %v3716 = vmul.f32 %v3377, %v3512
          %v3717 = vmul.f32 %v3378, %v3513
          %v3718 = vmul.f32 %v3379, %v3514
          %v3719 = vmul.f32 %v3380, %v3515
          %v3720 = vmul.f32 %v3381, %v3516
          %v3721 = vmul.f32 %v3382, %v3517
          %v3722 = vmul.f32 %v3383, %v3518
          %v3723 = vmul.f32 %v3384, %v3519
          %v3724 = vmul.f32 %v3385, %v3520
          %v3725 = vmul.f32 %v3386, %v3521
          %v3726 = vmul.f32 %v3387, %v3522
          %v3727 = vmul.f32 %v3388, %v3523
          %v3728 = vmul.f32 %v3389, %v3524
          %v3729 = vmul.f32 %v3390, %v3525
          %v3730 = vmul.f32 %v3391, %v3526
          %v3731 = vadd.f32 %v3683, %v3707
          %v3732 = vadd.f32 %v3684, %v3708
          %v3733 = vadd.f32 %v3685, %v3709
          %v3734 = vadd.f32 %v3686, %v3710
          %v3735 = vadd.f32 %v3687, %v3711
          %v3736 = vadd.f32 %v3688, %v3712
          %v3737 = vadd.f32 %v3689, %v3713
          %v3738 = vadd.f32 %v3690, %v3714
          %v3739 = vadd.f32 %v3691, %v3715
          %v3740 = vadd.f32 %v3692, %v3716
          %v3741 = vadd.f32 %v3693, %v3717
          %v3742 = vadd.f32 %v3694, %v3718
          %v3743 = vadd.f32 %v3695, %v3719
          %v3744 = vadd.f32 %v3696, %v3720
          %v3745 = vadd.f32 %v3697, %v3721
          %v3746 = vadd.f32 %v3698, %v3722
          %v3747 = vadd.f32 %v3699, %v3723
          %v3748 = vadd.f32 %v3700, %v3724
          %v3749 = vadd.f32 %v3701, %v3725
          %v3750 = vadd.f32 %v3702, %v3726
          %v3751 = vadd.f32 %v3703, %v3727
          %v3752 = vadd.f32 %v3704, %v3728
          %v3753 = vadd.f32 %v3705, %v3729
          %v3754 = vadd.f32 %v3706, %v3730
          %v3755 = vmul.f32 %v3416, %v3626
          %v3756 = vmul.f32 %v3417, %v3630
          %v3757 = vmul.f32 %v3418, %v3634
          %v3758 = vmul.f32 %v3419, %v3626
          %v3759 = vmul.f32 %v3420, %v3630
          %v3760 = vmul.f32 %v3421, %v3634
          %v3761 = vmul.f32 %v3422, %v3626
          %v3762 = vmul.f32 %v3423, %v3630
          %v3763 = vmul.f32 %v3424, %v3634
          %v3764 = vmul.f32 %v3425, %v3626
          %v3765 = vmul.f32 %v3426, %v3630
          %v3766 = vmul.f32 %v3427, %v3634
          %v3767 = vmul.f32 %v3428, %v3626
          %v3768 = vmul.f32 %v3429, %v3630
          %v3769 = vmul.f32 %v3430, %v3634
          %v3770 = vmul.f32 %v3431, %v3626
          %v3771 = vmul.f32 %v3432, %v3630
          %v3772 = vmul.f32 %v3433, %v3634
          %v3773 = vmul.f32 %v3434, %v3626
          %v3774 = vmul.f32 %v3435, %v3630
          %v3775 = vmul.f32 %v3436, %v3634
          %v3776 = vmul.f32 %v3437, %v3626
          %v3777 = vmul.f32 %v3438, %v3630
          %v3778 = vmul.f32 %v3439, %v3634
          %v3779 = vadd.f32 %v3731, %v3755
          %v3780 = vadd.f32 %v3732, %v3756
          %v3781 = vadd.f32 %v3733, %v3757
          %v3782 = vadd.f32 %v3734, %v3758
          %v3783 = vadd.f32 %v3735, %v3759
          %v3784 = vadd.f32 %v3736, %v3760
          %v3785 = vadd.f32 %v3737, %v3761
          %v3786 = vadd.f32 %v3738, %v3762
          %v3787 = vadd.f32 %v3739, %v3763
          %v3788 = vadd.f32 %v3740, %v3764
          %v3789 = vadd.f32 %v3741, %v3765
          %v3790 = vadd.f32 %v3742, %v3766
          %v3791 = vadd.f32 %v3743, %v3767
          %v3792 = vadd.f32 %v3744, %v3768
          %v3793 = vadd.f32 %v3745, %v3769
          %v3794 = vadd.f32 %v3746, %v3770
          %v3795 = vadd.f32 %v3747, %v3771
          %v3796 = vadd.f32 %v3748, %v3772
          %v3797 = vadd.f32 %v3749, %v3773
          %v3798 = vadd.f32 %v3750, %v3774
          %v3799 = vadd.f32 %v3751, %v3775
          %v3800 = vadd.f32 %v3752, %v3776
          %v3801 = vadd.f32 %v3753, %v3777
          %v3802 = vadd.f32 %v3754, %v3778
          %v3803 = vmul.f32 %v3440, %v3659
          %v3804 = vmul.f32 %v3441, %v3660
          %v3805 = vmul.f32 %v3442, %v3661
          %v3806 = vmul.f32 %v3443, %v3662
          %v3807 = vmul.f32 %v3444, %v3663
          %v3808 = vmul.f32 %v3445, %v3664
          %v3809 = vmul.f32 %v3446, %v3665
          %v3810 = vmul.f32 %v3447, %v3666
          %v3811 = vmul.f32 %v3448, %v3667
          %v3812 = vmul.f32 %v3449, %v3668
          %v3813 = vmul.f32 %v3450, %v3669
          %v3814 = vmul.f32 %v3451, %v3670
          %v3815 = vmul.f32 %v3452, %v3671
          %v3816 = vmul.f32 %v3453, %v3672
          %v3817 = vmul.f32 %v3454, %v3673
          %v3818 = vmul.f32 %v3455, %v3674
          %v3819 = vmul.f32 %v3456, %v3675
          %v3820 = vmul.f32 %v3457, %v3676
          %v3821 = vmul.f32 %v3458, %v3677
          %v3822 = vmul.f32 %v3459, %v3678
          %v3823 = vmul.f32 %v3460, %v3679
          %v3824 = vmul.f32 %v3461, %v3680
          %v3825 = vmul.f32 %v3462, %v3681
          %v3826 = vmul.f32 %v3463, %v3682
          %v3827 = vmul.f32 %v3464, %v3779
          %v3828 = vmul.f32 %v3465, %v3780
          %v3829 = vmul.f32 %v3466, %v3781
          %v3830 = vmul.f32 %v3467, %v3782
          %v3831 = vmul.f32 %v3468, %v3783
          %v3832 = vmul.f32 %v3469, %v3784
          %v3833 = vmul.f32 %v3470, %v3785
          %v3834 = vmul.f32 %v3471, %v3786
          %v3835 = vmul.f32 %v3472, %v3787
          %v3836 = vmul.f32 %v3473, %v3788
          %v3837 = vmul.f32 %v3474, %v3789
          %v3838 = vmul.f32 %v3475, %v3790
          %v3839 = vmul.f32 %v3476, %v3791
          %v3840 = vmul.f32 %v3477, %v3792
          %v3841 = vmul.f32 %v3478, %v3793
          %v3842 = vmul.f32 %v3479, %v3794
          %v3843 = vmul.f32 %v3480, %v3795
          %v3844 = vmul.f32 %v3481, %v3796
          %v3845 = vmul.f32 %v3482, %v3797
          %v3846 = vmul.f32 %v3483, %v3798
          %v3847 = vmul.f32 %v3484, %v3799
          %v3848 = vmul.f32 %v3485, %v3800
          %v3849 = vmul.f32 %v3486, %v3801
          %v3850 = vmul.f32 %v3487, %v3802
          %v3851 = vsub.f32 %v3803, %v3827
          %v3852 = vsub.f32 %v3804, %v3828
          %v3853 = vsub.f32 %v3805, %v3829
          %v3854 = vsub.f32 %v3806, %v3830
          %v3855 = vsub.f32 %v3807, %v3831
          %v3856 = vsub.f32 %v3808, %v3832
          %v3857 = vsub.f32 %v3809, %v3833
          %v3858 = vsub.f32 %v3810, %v3834
          %v3859 = vsub.f32 %v3811, %v3835
          %v3860 = vsub.f32 %v3812, %v3836
          %v3861 = vsub.f32 %v3813, %v3837
          %v3862 = vsub.f32 %v3814, %v3838
          %v3863 = vsub.f32 %v3815, %v3839
          %v3864 = vsub.f32 %v3816, %v3840
          %v3865 = vsub.f32 %v3817, %v3841
          %v3866 = vsub.f32 %v3818, %v3842
          %v3867 = vsub.f32 %v3819, %v3843
          %v3868 = vsub.f32 %v3820, %v3844
          %v3869 = vsub.f32 %v3821, %v3845
          %v3870 = vsub.f32 %v3822, %v3846
          %v3871 = vsub.f32 %v3823, %v3847
          %v3872 = vsub.f32 %v3824, %v3848
          %v3873 = vsub.f32 %v3825, %v3849
          %v3874 = vsub.f32 %v3826, %v3850
          %v3875 = vadd.f32 %v3851, %v3854
          %v3876 = vadd.f32 %v3875, %v3857
          %v3877 = vadd.f32 %v3876, %v3860
          %v3878 = vadd.f32 %v3877, %v3863
          %v3879 = vadd.f32 %v3878, %v3866
          %v3880 = vadd.f32 %v3879, %v3869
          %v3881 = vadd.f32 %v3880, %v3872
          %v3882 = vrot.slane %v3881, 4
          %v3883 = vadd.f32 %v3881, %v3882
          %v3884 = vrot.slane %v3883, 2
          %v3885 = vadd.f32 %v3883, %v3884
          %v3886 = vrot.slane %v3885, 1
          %v3887 = vadd.f32 %v3885, %v3886
          %v3888 = vadd.f32 %v3852, %v3855
          %v3889 = vadd.f32 %v3888, %v3858
          %v3890 = vadd.f32 %v3889, %v3861
          %v3891 = vadd.f32 %v3890, %v3864
          %v3892 = vadd.f32 %v3891, %v3867
          %v3893 = vadd.f32 %v3892, %v3870
          %v3894 = vadd.f32 %v3893, %v3873
          %v3895 = vrot.slane %v3894, 4
          %v3896 = vadd.f32 %v3894, %v3895
          %v3897 = vrot.slane %v3896, 2
          %v3898 = vadd.f32 %v3896, %v3897
          %v3899 = vrot.slane %v3898, 1
          %v3900 = vadd.f32 %v3898, %v3899
          %v3901 = vadd.f32 %v3853, %v3856
          %v3902 = vadd.f32 %v3901, %v3859
          %v3903 = vadd.f32 %v3902, %v3862
          %v3904 = vadd.f32 %v3903, %v3865
          %v3905 = vadd.f32 %v3904, %v3868
          %v3906 = vadd.f32 %v3905, %v3871
          %v3907 = vadd.f32 %v3906, %v3874
          %v3908 = vrot.slane %v3907, 4
          %v3909 = vadd.f32 %v3907, %v3908
          %v3910 = vrot.slane %v3909, 2
          %v3911 = vadd.f32 %v3909, %v3910
          %v3912 = vrot.slane %v3911, 1
          %v3913 = vadd.f32 %v3911, %v3912
          %v3914 = vmul.f32 %v3887, 2.0
          %v3915 = vmul.f32 %v3900, 2.0
          %v3916 = vmul.f32 %v3913, 2.0
          %v3917 = vmul.f32 %v3344, %v3659
          %v3918 = vmul.f32 %v3345, %v3660
          %v3919 = vmul.f32 %v3346, %v3661
          %v3920 = vmul.f32 %v3347, %v3662
          %v3921 = vmul.f32 %v3348, %v3663
          %v3922 = vmul.f32 %v3349, %v3664
          %v3923 = vmul.f32 %v3350, %v3665
          %v3924 = vmul.f32 %v3351, %v3666
          %v3925 = vmul.f32 %v3352, %v3667
          %v3926 = vmul.f32 %v3353, %v3668
          %v3927 = vmul.f32 %v3354, %v3669
          %v3928 = vmul.f32 %v3355, %v3670
          %v3929 = vmul.f32 %v3356, %v3671
          %v3930 = vmul.f32 %v3357, %v3672
          %v3931 = vmul.f32 %v3358, %v3673
          %v3932 = vmul.f32 %v3359, %v3674
          %v3933 = vmul.f32 %v3360, %v3675
          %v3934 = vmul.f32 %v3361, %v3676
          %v3935 = vmul.f32 %v3362, %v3677
          %v3936 = vmul.f32 %v3363, %v3678
          %v3937 = vmul.f32 %v3364, %v3679
          %v3938 = vmul.f32 %v3365, %v3680
          %v3939 = vmul.f32 %v3366, %v3681
          %v3940 = vmul.f32 %v3367, %v3682
          %v3941 = vmul.f32 %v3368, %v3779
          %v3942 = vmul.f32 %v3369, %v3780
          %v3943 = vmul.f32 %v3370, %v3781
          %v3944 = vmul.f32 %v3371, %v3782
          %v3945 = vmul.f32 %v3372, %v3783
          %v3946 = vmul.f32 %v3373, %v3784
          %v3947 = vmul.f32 %v3374, %v3785
          %v3948 = vmul.f32 %v3375, %v3786
          %v3949 = vmul.f32 %v3376, %v3787
          %v3950 = vmul.f32 %v3377, %v3788
          %v3951 = vmul.f32 %v3378, %v3789
          %v3952 = vmul.f32 %v3379, %v3790
          %v3953 = vmul.f32 %v3380, %v3791
          %v3954 = vmul.f32 %v3381, %v3792
          %v3955 = vmul.f32 %v3382, %v3793
          %v3956 = vmul.f32 %v3383, %v3794
          %v3957 = vmul.f32 %v3384, %v3795
          %v3958 = vmul.f32 %v3385, %v3796
          %v3959 = vmul.f32 %v3386, %v3797
          %v3960 = vmul.f32 %v3387, %v3798
          %v3961 = vmul.f32 %v3388, %v3799
          %v3962 = vmul.f32 %v3389, %v3800
          %v3963 = vmul.f32 %v3390, %v3801
          %v3964 = vmul.f32 %v3391, %v3802
          %v3965 = vsub.f32 %v3917, %v3941
          %v3966 = vsub.f32 %v3918, %v3942
          %v3967 = vsub.f32 %v3919, %v3943
          %v3968 = vsub.f32 %v3920, %v3944
          %v3969 = vsub.f32 %v3921, %v3945
          %v3970 = vsub.f32 %v3922, %v3946
          %v3971 = vsub.f32 %v3923, %v3947
          %v3972 = vsub.f32 %v3924, %v3948
          %v3973 = vsub.f32 %v3925, %v3949
          %v3974 = vsub.f32 %v3926, %v3950
          %v3975 = vsub.f32 %v3927, %v3951
          %v3976 = vsub.f32 %v3928, %v3952
          %v3977 = vsub.f32 %v3929, %v3953
          %v3978 = vsub.f32 %v3930, %v3954
          %v3979 = vsub.f32 %v3931, %v3955
          %v3980 = vsub.f32 %v3932, %v3956
          %v3981 = vsub.f32 %v3933, %v3957
          %v3982 = vsub.f32 %v3934, %v3958
          %v3983 = vsub.f32 %v3935, %v3959
          %v3984 = vsub.f32 %v3936, %v3960
          %v3985 = vsub.f32 %v3937, %v3961
          %v3986 = vsub.f32 %v3938, %v3962
          %v3987 = vsub.f32 %v3939, %v3963
          %v3988 = vsub.f32 %v3940, %v3964
          %v3989 = vlaneseq
          %v3990 = vshrl.u32 %v3989, 7
          %v3991 = vsub.s32 1, %v3990
          %v3992 = vrot.slane %v3500, %v3991
          %v3993 = vlaneseq
          %v3994 = vshrl.u32 %v3993, 7
          %v3995 = vsub.s32 1, %v3994
          %v3996 = vrot.slane %v3501, %v3995
          %v3997 = vlaneseq
          %v3998 = vshrl.u32 %v3997, 7
          %v3999 = vsub.s32 1, %v3998
          %v4000 = vrot.slane %v3502, %v3999
          %v4001 = vmul.f32 %v3392, %v3992
          %v4002 = vmul.f32 %v3393, %v3996
          %v4003 = vmul.f32 %v3394, %v4000
          %v4004 = vmul.f32 %v3395, %v3992
          %v4005 = vmul.f32 %v3396, %v3996
          %v4006 = vmul.f32 %v3397, %v4000
          %v4007 = vmul.f32 %v3398, %v3992
          %v4008 = vmul.f32 %v3399, %v3996
          %v4009 = vmul.f32 %v3400, %v4000
          %v4010 = vmul.f32 %v3401, %v3992
          %v4011 = vmul.f32 %v3402, %v3996
          %v4012 = vmul.f32 %v3403, %v4000
          %v4013 = vmul.f32 %v3404, %v3992
          %v4014 = vmul.f32 %v3405, %v3996
          %v4015 = vmul.f32 %v3406, %v4000
          %v4016 = vmul.f32 %v3407, %v3992
          %v4017 = vmul.f32 %v3408, %v3996
          %v4018 = vmul.f32 %v3409, %v4000
          %v4019 = vmul.f32 %v3410, %v3992
          %v4020 = vmul.f32 %v3411, %v3996
          %v4021 = vmul.f32 %v3412, %v4000
          %v4022 = vmul.f32 %v3413, %v3992
          %v4023 = vmul.f32 %v3414, %v3996
          %v4024 = vmul.f32 %v3415, %v4000
          %v4025 = vadd.f32 %v3965, %v4001
          %v4026 = vadd.f32 %v3966, %v4002
          %v4027 = vadd.f32 %v3967, %v4003
          %v4028 = vadd.f32 %v3968, %v4004
          %v4029 = vadd.f32 %v3969, %v4005
          %v4030 = vadd.f32 %v3970, %v4006
          %v4031 = vadd.f32 %v3971, %v4007
          %v4032 = vadd.f32 %v3972, %v4008
          %v4033 = vadd.f32 %v3973, %v4009
          %v4034 = vadd.f32 %v3974, %v4010
          %v4035 = vadd.f32 %v3975, %v4011
          %v4036 = vadd.f32 %v3976, %v4012
          %v4037 = vadd.f32 %v3977, %v4013
          %v4038 = vadd.f32 %v3978, %v4014
          %v4039 = vadd.f32 %v3979, %v4015
          %v4040 = vadd.f32 %v3980, %v4016
          %v4041 = vadd.f32 %v3981, %v4017
          %v4042 = vadd.f32 %v3982, %v4018
          %v4043 = vadd.f32 %v3983, %v4019
          %v4044 = vadd.f32 %v3984, %v4020
          %v4045 = vadd.f32 %v3985, %v4021
          %v4046 = vadd.f32 %v3986, %v4022
          %v4047 = vadd.f32 %v3987, %v4023
          %v4048 = vadd.f32 %v3988, %v4024
          %v4049 = vmul.f32 %v3344, %v3779
          %v4050 = vmul.f32 %v3345, %v3780
          %v4051 = vmul.f32 %v3346, %v3781
          %v4052 = vmul.f32 %v3347, %v3782
          %v4053 = vmul.f32 %v3348, %v3783
          %v4054 = vmul.f32 %v3349, %v3784
          %v4055 = vmul.f32 %v3350, %v3785
          %v4056 = vmul.f32 %v3351, %v3786
          %v4057 = vmul.f32 %v3352, %v3787
          %v4058 = vmul.f32 %v3353, %v3788
          %v4059 = vmul.f32 %v3354, %v3789
          %v4060 = vmul.f32 %v3355, %v3790
          %v4061 = vmul.f32 %v3356, %v3791
          %v4062 = vmul.f32 %v3357, %v3792
          %v4063 = vmul.f32 %v3358, %v3793
          %v4064 = vmul.f32 %v3359, %v3794
          %v4065 = vmul.f32 %v3360, %v3795
          %v4066 = vmul.f32 %v3361, %v3796
          %v4067 = vmul.f32 %v3362, %v3797
          %v4068 = vmul.f32 %v3363, %v3798
          %v4069 = vmul.f32 %v3364, %v3799
          %v4070 = vmul.f32 %v3365, %v3800
          %v4071 = vmul.f32 %v3366, %v3801
          %v4072 = vmul.f32 %v3367, %v3802
          %v4073 = vmul.f32 %v3368, %v3659
          %v4074 = vmul.f32 %v3369, %v3660
          %v4075 = vmul.f32 %v3370, %v3661
          %v4076 = vmul.f32 %v3371, %v3662
          %v4077 = vmul.f32 %v3372, %v3663
          %v4078 = vmul.f32 %v3373, %v3664
          %v4079 = vmul.f32 %v3374, %v3665
          %v4080 = vmul.f32 %v3375, %v3666
          %v4081 = vmul.f32 %v3376, %v3667
          %v4082 = vmul.f32 %v3377, %v3668
          %v4083 = vmul.f32 %v3378, %v3669
          %v4084 = vmul.f32 %v3379, %v3670
          %v4085 = vmul.f32 %v3380, %v3671
          %v4086 = vmul.f32 %v3381, %v3672
          %v4087 = vmul.f32 %v3382, %v3673
          %v4088 = vmul.f32 %v3383, %v3674
          %v4089 = vmul.f32 %v3384, %v3675
          %v4090 = vmul.f32 %v3385, %v3676
          %v4091 = vmul.f32 %v3386, %v3677
          %v4092 = vmul.f32 %v3387, %v3678
          %v4093 = vmul.f32 %v3388, %v3679
          %v4094 = vmul.f32 %v3389, %v3680
          %v4095 = vmul.f32 %v3390, %v3681
          %v4096 = vmul.f32 %v3391, %v3682
          %v4097 = vadd.f32 %v4049, %v4073
          %v4098 = vadd.f32 %v4050, %v4074
          %v4099 = vadd.f32 %v4051, %v4075
          %v4100 = vadd.f32 %v4052, %v4076
          %v4101 = vadd.f32 %v4053, %v4077
          %v4102 = vadd.f32 %v4054, %v4078
          %v4103 = vadd.f32 %v4055, %v4079
          %v4104 = vadd.f32 %v4056, %v4080
          %v4105 = vadd.f32 %v4057, %v4081
          %v4106 = vadd.f32 %v4058, %v4082
          %v4107 = vadd.f32 %v4059, %v4083
          %v4108 = vadd.f32 %v4060, %v4084
          %v4109 = vadd.f32 %v4061, %v4085
          %v4110 = vadd.f32 %v4062, %v4086
          %v4111 = vadd.f32 %v4063, %v4087
          %v4112 = vadd.f32 %v4064, %v4088
          %v4113 = vadd.f32 %v4065, %v4089
          %v4114 = vadd.f32 %v4066, %v4090
          %v4115 = vadd.f32 %v4067, %v4091
          %v4116 = vadd.f32 %v4068, %v4092
          %v4117 = vadd.f32 %v4069, %v4093
          %v4118 = vadd.f32 %v4070, %v4094
          %v4119 = vadd.f32 %v4071, %v4095
          %v4120 = vadd.f32 %v4072, %v4096
          %v4121 = vmul.f32 %v3416, %v3992
          %v4122 = vmul.f32 %v3417, %v3996
          %v4123 = vmul.f32 %v3418, %v4000
          %v4124 = vmul.f32 %v3419, %v3992
          %v4125 = vmul.f32 %v3420, %v3996
          %v4126 = vmul.f32 %v3421, %v4000
          %v4127 = vmul.f32 %v3422, %v3992
          %v4128 = vmul.f32 %v3423, %v3996
          %v4129 = vmul.f32 %v3424, %v4000
          %v4130 = vmul.f32 %v3425, %v3992
          %v4131 = vmul.f32 %v3426, %v3996
          %v4132 = vmul.f32 %v3427, %v4000
          %v4133 = vmul.f32 %v3428, %v3992
          %v4134 = vmul.f32 %v3429, %v3996
          %v4135 = vmul.f32 %v3430, %v4000
          %v4136 = vmul.f32 %v3431, %v3992
          %v4137 = vmul.f32 %v3432, %v3996
          %v4138 = vmul.f32 %v3433, %v4000
          %v4139 = vmul.f32 %v3434, %v3992
          %v4140 = vmul.f32 %v3435, %v3996
          %v4141 = vmul.f32 %v3436, %v4000
          %v4142 = vmul.f32 %v3437, %v3992
          %v4143 = vmul.f32 %v3438, %v3996
          %v4144 = vmul.f32 %v3439, %v4000
          %v4145 = vadd.f32 %v4097, %v4121
          %v4146 = vadd.f32 %v4098, %v4122
          %v4147 = vadd.f32 %v4099, %v4123
          %v4148 = vadd.f32 %v4100, %v4124
          %v4149 = vadd.f32 %v4101, %v4125
          %v4150 = vadd.f32 %v4102, %v4126
          %v4151 = vadd.f32 %v4103, %v4127
          %v4152 = vadd.f32 %v4104, %v4128
          %v4153 = vadd.f32 %v4105, %v4129
          %v4154 = vadd.f32 %v4106, %v4130
          %v4155 = vadd.f32 %v4107, %v4131
          %v4156 = vadd.f32 %v4108, %v4132
          %v4157 = vadd.f32 %v4109, %v4133
          %v4158 = vadd.f32 %v4110, %v4134
          %v4159 = vadd.f32 %v4111, %v4135
          %v4160 = vadd.f32 %v4112, %v4136
          %v4161 = vadd.f32 %v4113, %v4137
          %v4162 = vadd.f32 %v4114, %v4138
          %v4163 = vadd.f32 %v4115, %v4139
          %v4164 = vadd.f32 %v4116, %v4140
          %v4165 = vadd.f32 %v4117, %v4141
          %v4166 = vadd.f32 %v4118, %v4142
          %v4167 = vadd.f32 %v4119, %v4143
          %v4168 = vadd.f32 %v4120, %v4144
          %v4169 = vmul.f32 %v3440, %v4025
          %v4170 = vmul.f32 %v3441, %v4026
          %v4171 = vmul.f32 %v3442, %v4027
          %v4172 = vmul.f32 %v3443, %v4028
          %v4173 = vmul.f32 %v3444, %v4029
          %v4174 = vmul.f32 %v3445, %v4030
          %v4175 = vmul.f32 %v3446, %v4031
          %v4176 = vmul.f32 %v3447, %v4032
          %v4177 = vmul.f32 %v3448, %v4033
          %v4178 = vmul.f32 %v3449, %v4034
          %v4179 = vmul.f32 %v3450, %v4035
          %v4180 = vmul.f32 %v3451, %v4036
          %v4181 = vmul.f32 %v3452, %v4037
          %v4182 = vmul.f32 %v3453, %v4038
          %v4183 = vmul.f32 %v3454, %v4039
          %v4184 = vmul.f32 %v3455, %v4040
          %v4185 = vmul.f32 %v3456, %v4041
          %v4186 = vmul.f32 %v3457, %v4042
          %v4187 = vmul.f32 %v3458, %v4043
          %v4188 = vmul.f32 %v3459, %v4044
          %v4189 = vmul.f32 %v3460, %v4045
          %v4190 = vmul.f32 %v3461, %v4046
          %v4191 = vmul.f32 %v3462, %v4047
          %v4192 = vmul.f32 %v3463, %v4048
          %v4193 = vmul.f32 %v3464, %v4145
          %v4194 = vmul.f32 %v3465, %v4146
          %v4195 = vmul.f32 %v3466, %v4147
          %v4196 = vmul.f32 %v3467, %v4148
          %v4197 = vmul.f32 %v3468, %v4149
          %v4198 = vmul.f32 %v3469, %v4150
          %v4199 = vmul.f32 %v3470, %v4151
          %v4200 = vmul.f32 %v3471, %v4152
          %v4201 = vmul.f32 %v3472, %v4153
          %v4202 = vmul.f32 %v3473, %v4154
          %v4203 = vmul.f32 %v3474, %v4155
          %v4204 = vmul.f32 %v3475, %v4156
          %v4205 = vmul.f32 %v3476, %v4157
          %v4206 = vmul.f32 %v3477, %v4158
          %v4207 = vmul.f32 %v3478, %v4159
          %v4208 = vmul.f32 %v3479, %v4160
          %v4209 = vmul.f32 %v3480, %v4161
          %v4210 = vmul.f32 %v3481, %v4162
          %v4211 = vmul.f32 %v3482, %v4163
          %v4212 = vmul.f32 %v3483, %v4164
          %v4213 = vmul.f32 %v3484, %v4165
          %v4214 = vmul.f32 %v3485, %v4166
          %v4215 = vmul.f32 %v3486, %v4167
          %v4216 = vmul.f32 %v3487, %v4168
          %v4217 = vsub.f32 %v4169, %v4193
          %v4218 = vsub.f32 %v4170, %v4194
          %v4219 = vsub.f32 %v4171, %v4195
          %v4220 = vsub.f32 %v4172, %v4196
          %v4221 = vsub.f32 %v4173, %v4197
          %v4222 = vsub.f32 %v4174, %v4198
          %v4223 = vsub.f32 %v4175, %v4199
          %v4224 = vsub.f32 %v4176, %v4200
          %v4225 = vsub.f32 %v4177, %v4201
          %v4226 = vsub.f32 %v4178, %v4202
          %v4227 = vsub.f32 %v4179, %v4203
          %v4228 = vsub.f32 %v4180, %v4204
          %v4229 = vsub.f32 %v4181, %v4205
          %v4230 = vsub.f32 %v4182, %v4206
          %v4231 = vsub.f32 %v4183, %v4207
          %v4232 = vsub.f32 %v4184, %v4208
          %v4233 = vsub.f32 %v4185, %v4209
          %v4234 = vsub.f32 %v4186, %v4210
          %v4235 = vsub.f32 %v4187, %v4211
          %v4236 = vsub.f32 %v4188, %v4212
          %v4237 = vsub.f32 %v4189, %v4213
          %v4238 = vsub.f32 %v4190, %v4214
          %v4239 = vsub.f32 %v4191, %v4215
          %v4240 = vsub.f32 %v4192, %v4216
          %v4241 = vadd.f32 %v4217, %v4220
          %v4242 = vadd.f32 %v4241, %v4223
          %v4243 = vadd.f32 %v4242, %v4226
          %v4244 = vadd.f32 %v4243, %v4229
          %v4245 = vadd.f32 %v4244, %v4232
          %v4246 = vadd.f32 %v4245, %v4235
          %v4247 = vadd.f32 %v4246, %v4238
          %v4248 = vrot.slane %v4247, 4
          %v4249 = vadd.f32 %v4247, %v4248
          %v4250 = vrot.slane %v4249, 2
          %v4251 = vadd.f32 %v4249, %v4250
          %v4252 = vrot.slane %v4251, 1
          %v4253 = vadd.f32 %v4251, %v4252
          %v4254 = vadd.f32 %v4218, %v4221
          %v4255 = vadd.f32 %v4254, %v4224
          %v4256 = vadd.f32 %v4255, %v4227
          %v4257 = vadd.f32 %v4256, %v4230
          %v4258 = vadd.f32 %v4257, %v4233
          %v4259 = vadd.f32 %v4258, %v4236
          %v4260 = vadd.f32 %v4259, %v4239
          %v4261 = vrot.slane %v4260, 4
          %v4262 = vadd.f32 %v4260, %v4261
          %v4263 = vrot.slane %v4262, 2
          %v4264 = vadd.f32 %v4262, %v4263
          %v4265 = vrot.slane %v4264, 1
          %v4266 = vadd.f32 %v4264, %v4265
          %v4267 = vadd.f32 %v4219, %v4222
          %v4268 = vadd.f32 %v4267, %v4225
          %v4269 = vadd.f32 %v4268, %v4228
          %v4270 = vadd.f32 %v4269, %v4231
          %v4271 = vadd.f32 %v4270, %v4234
          %v4272 = vadd.f32 %v4271, %v4237
          %v4273 = vadd.f32 %v4272, %v4240
          %v4274 = vrot.slane %v4273, 4
          %v4275 = vadd.f32 %v4273, %v4274
          %v4276 = vrot.slane %v4275, 2
          %v4277 = vadd.f32 %v4275, %v4276
          %v4278 = vrot.slane %v4277, 1
          %v4279 = vadd.f32 %v4277, %v4278
          %v4280 = vmul.f32 %v4253, 2.0
          %v4281 = vmul.f32 %v4266, 2.0
          %v4282 = vmul.f32 %v4279, 2.0
          %v4283 = vmul.f32 %v3344, %v4025
          %v4284 = vmul.f32 %v3345, %v4026
          %v4285 = vmul.f32 %v3346, %v4027
          %v4286 = vmul.f32 %v3347, %v4028
          %v4287 = vmul.f32 %v3348, %v4029
          %v4288 = vmul.f32 %v3349, %v4030
          %v4289 = vmul.f32 %v3350, %v4031
          %v4290 = vmul.f32 %v3351, %v4032
          %v4291 = vmul.f32 %v3352, %v4033
          %v4292 = vmul.f32 %v3353, %v4034
          %v4293 = vmul.f32 %v3354, %v4035
          %v4294 = vmul.f32 %v3355, %v4036
          %v4295 = vmul.f32 %v3356, %v4037
          %v4296 = vmul.f32 %v3357, %v4038
          %v4297 = vmul.f32 %v3358, %v4039
          %v4298 = vmul.f32 %v3359, %v4040
          %v4299 = vmul.f32 %v3360, %v4041
          %v4300 = vmul.f32 %v3361, %v4042
          %v4301 = vmul.f32 %v3362, %v4043
          %v4302 = vmul.f32 %v3363, %v4044
          %v4303 = vmul.f32 %v3364, %v4045
          %v4304 = vmul.f32 %v3365, %v4046
          %v4305 = vmul.f32 %v3366, %v4047
          %v4306 = vmul.f32 %v3367, %v4048
          %v4307 = vmul.f32 %v3368, %v4145
          %v4308 = vmul.f32 %v3369, %v4146
          %v4309 = vmul.f32 %v3370, %v4147
          %v4310 = vmul.f32 %v3371, %v4148
          %v4311 = vmul.f32 %v3372, %v4149
          %v4312 = vmul.f32 %v3373, %v4150
          %v4313 = vmul.f32 %v3374, %v4151
          %v4314 = vmul.f32 %v3375, %v4152
          %v4315 = vmul.f32 %v3376, %v4153
          %v4316 = vmul.f32 %v3377, %v4154
          %v4317 = vmul.f32 %v3378, %v4155
          %v4318 = vmul.f32 %v3379, %v4156
          %v4319 = vmul.f32 %v3380, %v4157
          %v4320 = vmul.f32 %v3381, %v4158
          %v4321 = vmul.f32 %v3382, %v4159
          %v4322 = vmul.f32 %v3383, %v4160
          %v4323 = vmul.f32 %v3384, %v4161
          %v4324 = vmul.f32 %v3385, %v4162
          %v4325 = vmul.f32 %v3386, %v4163
          %v4326 = vmul.f32 %v3387, %v4164
          %v4327 = vmul.f32 %v3388, %v4165
          %v4328 = vmul.f32 %v3389, %v4166
          %v4329 = vmul.f32 %v3390, %v4167
          %v4330 = vmul.f32 %v3391, %v4168
          %v4331 = vsub.f32 %v4283, %v4307
          %v4332 = vsub.f32 %v4284, %v4308
          %v4333 = vsub.f32 %v4285, %v4309
          %v4334 = vsub.f32 %v4286, %v4310
          %v4335 = vsub.f32 %v4287, %v4311
          %v4336 = vsub.f32 %v4288, %v4312
          %v4337 = vsub.f32 %v4289, %v4313
          %v4338 = vsub.f32 %v4290, %v4314
          %v4339 = vsub.f32 %v4291, %v4315
          %v4340 = vsub.f32 %v4292, %v4316
          %v4341 = vsub.f32 %v4293, %v4317
          %v4342 = vsub.f32 %v4294, %v4318
          %v4343 = vsub.f32 %v4295, %v4319
          %v4344 = vsub.f32 %v4296, %v4320
          %v4345 = vsub.f32 %v4297, %v4321
          %v4346 = vsub.f32 %v4298, %v4322
          %v4347 = vsub.f32 %v4299, %v4323
          %v4348 = vsub.f32 %v4300, %v4324
          %v4349 = vsub.f32 %v4301, %v4325
          %v4350 = vsub.f32 %v4302, %v4326
          %v4351 = vsub.f32 %v4303, %v4327
          %v4352 = vsub.f32 %v4304, %v4328
          %v4353 = vsub.f32 %v4305, %v4329
          %v4354 = vsub.f32 %v4306, %v4330
          %v4355 = vlaneseq
          %v4356 = vshrl.u32 %v4355, 7
          %v4357 = vsub.s32 2, %v4356
          %v4358 = vrot.slane %v3500, %v4357
          %v4359 = vlaneseq
          %v4360 = vshrl.u32 %v4359, 7
          %v4361 = vsub.s32 2, %v4360
          %v4362 = vrot.slane %v3501, %v4361
          %v4363 = vlaneseq
          %v4364 = vshrl.u32 %v4363, 7
          %v4365 = vsub.s32 2, %v4364
          %v4366 = vrot.slane %v3502, %v4365
          %v4367 = vmul.f32 %v3392, %v4358
          %v4368 = vmul.f32 %v3393, %v4362
          %v4369 = vmul.f32 %v3394, %v4366
          %v4370 = vmul.f32 %v3395, %v4358
          %v4371 = vmul.f32 %v3396, %v4362
          %v4372 = vmul.f32 %v3397, %v4366
          %v4373 = vmul.f32 %v3398, %v4358
          %v4374 = vmul.f32 %v3399, %v4362
          %v4375 = vmul.f32 %v3400, %v4366
          %v4376 = vmul.f32 %v3401, %v4358
          %v4377 = vmul.f32 %v3402, %v4362
          %v4378 = vmul.f32 %v3403, %v4366
          %v4379 = vmul.f32 %v3404, %v4358
          %v4380 = vmul.f32 %v3405, %v4362
          %v4381 = vmul.f32 %v3406, %v4366
          %v4382 = vmul.f32 %v3407, %v4358
          %v4383 = vmul.f32 %v3408, %v4362
          %v4384 = vmul.f32 %v3409, %v4366
          %v4385 = vmul.f32 %v3410, %v4358
          %v4386 = vmul.f32 %v3411, %v4362
          %v4387 = vmul.f32 %v3412, %v4366
          %v4388 = vmul.f32 %v3413, %v4358
          %v4389 = vmul.f32 %v3414, %v4362
          %v4390 = vmul.f32 %v3415, %v4366
          %v4391 = vadd.f32 %v4331, %v4367
          %v4392 = vadd.f32 %v4332, %v4368
          %v4393 = vadd.f32 %v4333, %v4369
          %v4394 = vadd.f32 %v4334, %v4370
          %v4395 = vadd.f32 %v4335, %v4371
          %v4396 = vadd.f32 %v4336, %v4372
          %v4397 = vadd.f32 %v4337, %v4373
          %v4398 = vadd.f32 %v4338, %v4374
          %v4399 = vadd.f32 %v4339, %v4375
          %v4400 = vadd.f32 %v4340, %v4376
          %v4401 = vadd.f32 %v4341, %v4377
          %v4402 = vadd.f32 %v4342, %v4378
          %v4403 = vadd.f32 %v4343, %v4379
          %v4404 = vadd.f32 %v4344, %v4380
          %v4405 = vadd.f32 %v4345, %v4381
          %v4406 = vadd.f32 %v4346, %v4382
          %v4407 = vadd.f32 %v4347, %v4383
          %v4408 = vadd.f32 %v4348, %v4384
          %v4409 = vadd.f32 %v4349, %v4385
          %v4410 = vadd.f32 %v4350, %v4386
          %v4411 = vadd.f32 %v4351, %v4387
          %v4412 = vadd.f32 %v4352, %v4388
          %v4413 = vadd.f32 %v4353, %v4389
          %v4414 = vadd.f32 %v4354, %v4390
          %v4415 = vmul.f32 %v3344, %v4145
          %v4416 = vmul.f32 %v3345, %v4146
          %v4417 = vmul.f32 %v3346, %v4147
          %v4418 = vmul.f32 %v3347, %v4148
          %v4419 = vmul.f32 %v3348, %v4149
          %v4420 = vmul.f32 %v3349, %v4150
          %v4421 = vmul.f32 %v3350, %v4151
          %v4422 = vmul.f32 %v3351, %v4152
          %v4423 = vmul.f32 %v3352, %v4153
          %v4424 = vmul.f32 %v3353, %v4154
          %v4425 = vmul.f32 %v3354, %v4155
          %v4426 = vmul.f32 %v3355, %v4156
          %v4427 = vmul.f32 %v3356, %v4157
          %v4428 = vmul.f32 %v3357, %v4158
          %v4429 = vmul.f32 %v3358, %v4159
          %v4430 = vmul.f32 %v3359, %v4160
          %v4431 = vmul.f32 %v3360, %v4161
          %v4432 = vmul.f32 %v3361, %v4162
          %v4433 = vmul.f32 %v3362, %v4163
          %v4434 = vmul.f32 %v3363, %v4164
          %v4435 = vmul.f32 %v3364, %v4165
          %v4436 = vmul.f32 %v3365, %v4166
          %v4437 = vmul.f32 %v3366, %v4167
          %v4438 = vmul.f32 %v3367, %v4168
          %v4439 = vmul.f32 %v3368, %v4025
          %v4440 = vmul.f32 %v3369, %v4026
          %v4441 = vmul.f32 %v3370, %v4027
          %v4442 = vmul.f32 %v3371, %v4028
          %v4443 = vmul.f32 %v3372, %v4029
          %v4444 = vmul.f32 %v3373, %v4030
          %v4445 = vmul.f32 %v3374, %v4031
          %v4446 = vmul.f32 %v3375, %v4032
          %v4447 = vmul.f32 %v3376, %v4033
          %v4448 = vmul.f32 %v3377, %v4034
          %v4449 = vmul.f32 %v3378, %v4035
          %v4450 = vmul.f32 %v3379, %v4036
          %v4451 = vmul.f32 %v3380, %v4037
          %v4452 = vmul.f32 %v3381, %v4038
          %v4453 = vmul.f32 %v3382, %v4039
          %v4454 = vmul.f32 %v3383, %v4040
          %v4455 = vmul.f32 %v3384, %v4041
          %v4456 = vmul.f32 %v3385, %v4042
          %v4457 = vmul.f32 %v3386, %v4043
          %v4458 = vmul.f32 %v3387, %v4044
          %v4459 = vmul.f32 %v3388, %v4045
          %v4460 = vmul.f32 %v3389, %v4046
          %v4461 = vmul.f32 %v3390, %v4047
          %v4462 = vmul.f32 %v3391, %v4048
          %v4463 = vadd.f32 %v4415, %v4439
          %v4464 = vadd.f32 %v4416, %v4440
          %v4465 = vadd.f32 %v4417, %v4441
          %v4466 = vadd.f32 %v4418, %v4442
          %v4467 = vadd.f32 %v4419, %v4443
          %v4468 = vadd.f32 %v4420, %v4444
          %v4469 = vadd.f32 %v4421, %v4445
          %v4470 = vadd.f32 %v4422, %v4446
          %v4471 = vadd.f32 %v4423, %v4447
          %v4472 = vadd.f32 %v4424, %v4448
          %v4473 = vadd.f32 %v4425, %v4449
          %v4474 = vadd.f32 %v4426, %v4450
          %v4475 = vadd.f32 %v4427, %v4451
          %v4476 = vadd.f32 %v4428, %v4452
          %v4477 = vadd.f32 %v4429, %v4453
          %v4478 = vadd.f32 %v4430, %v4454
          %v4479 = vadd.f32 %v4431, %v4455
          %v4480 = vadd.f32 %v4432, %v4456
          %v4481 = vadd.f32 %v4433, %v4457
          %v4482 = vadd.f32 %v4434, %v4458
          %v4483 = vadd.f32 %v4435, %v4459
          %v4484 = vadd.f32 %v4436, %v4460
          %v4485 = vadd.f32 %v4437, %v4461
          %v4486 = vadd.f32 %v4438, %v4462
          %v4487 = vmul.f32 %v3416, %v4358
          %v4488 = vmul.f32 %v3417, %v4362
          %v4489 = vmul.f32 %v3418, %v4366
          %v4490 = vmul.f32 %v3419, %v4358
          %v4491 = vmul.f32 %v3420, %v4362
          %v4492 = vmul.f32 %v3421, %v4366
          %v4493 = vmul.f32 %v3422, %v4358
          %v4494 = vmul.f32 %v3423, %v4362
          %v4495 = vmul.f32 %v3424, %v4366
          %v4496 = vmul.f32 %v3425, %v4358
          %v4497 = vmul.f32 %v3426, %v4362
          %v4498 = vmul.f32 %v3427, %v4366
          %v4499 = vmul.f32 %v3428, %v4358
          %v4500 = vmul.f32 %v3429, %v4362
          %v4501 = vmul.f32 %v3430, %v4366
          %v4502 = vmul.f32 %v3431, %v4358
          %v4503 = vmul.f32 %v3432, %v4362
          %v4504 = vmul.f32 %v3433, %v4366
          %v4505 = vmul.f32 %v3434, %v4358
          %v4506 = vmul.f32 %v3435, %v4362
          %v4507 = vmul.f32 %v3436, %v4366
          %v4508 = vmul.f32 %v3437, %v4358
          %v4509 = vmul.f32 %v3438, %v4362
          %v4510 = vmul.f32 %v3439, %v4366
          %v4511 = vadd.f32 %v4463, %v4487
          %v4512 = vadd.f32 %v4464, %v4488
          %v4513 = vadd.f32 %v4465, %v4489
          %v4514 = vadd.f32 %v4466, %v4490
          %v4515 = vadd.f32 %v4467, %v4491
          %v4516 = vadd.f32 %v4468, %v4492
          %v4517 = vadd.f32 %v4469, %v4493
          %v4518 = vadd.f32 %v4470, %v4494
          %v4519 = vadd.f32 %v4471, %v4495
          %v4520 = vadd.f32 %v4472, %v4496
          %v4521 = vadd.f32 %v4473, %v4497
          %v4522 = vadd.f32 %v4474, %v4498
          %v4523 = vadd.f32 %v4475, %v4499
          %v4524 = vadd.f32 %v4476, %v4500
          %v4525 = vadd.f32 %v4477, %v4501
          %v4526 = vadd.f32 %v4478, %v4502
          %v4527 = vadd.f32 %v4479, %v4503
          %v4528 = vadd.f32 %v4480, %v4504
          %v4529 = vadd.f32 %v4481, %v4505
          %v4530 = vadd.f32 %v4482, %v4506
          %v4531 = vadd.f32 %v4483, %v4507
          %v4532 = vadd.f32 %v4484, %v4508
          %v4533 = vadd.f32 %v4485, %v4509
          %v4534 = vadd.f32 %v4486, %v4510
          %v4535 = vmul.f32 %v3440, %v4391
          %v4536 = vmul.f32 %v3441, %v4392
          %v4537 = vmul.f32 %v3442, %v4393
          %v4538 = vmul.f32 %v3443, %v4394
          %v4539 = vmul.f32 %v3444, %v4395
          %v4540 = vmul.f32 %v3445, %v4396
          %v4541 = vmul.f32 %v3446, %v4397
          %v4542 = vmul.f32 %v3447, %v4398
          %v4543 = vmul.f32 %v3448, %v4399
          %v4544 = vmul.f32 %v3449, %v4400
          %v4545 = vmul.f32 %v3450, %v4401
          %v4546 = vmul.f32 %v3451, %v4402
          %v4547 = vmul.f32 %v3452, %v4403
          %v4548 = vmul.f32 %v3453, %v4404
          %v4549 = vmul.f32 %v3454, %v4405
          %v4550 = vmul.f32 %v3455, %v4406
          %v4551 = vmul.f32 %v3456, %v4407
          %v4552 = vmul.f32 %v3457, %v4408
          %v4553 = vmul.f32 %v3458, %v4409
          %v4554 = vmul.f32 %v3459, %v4410
          %v4555 = vmul.f32 %v3460, %v4411
          %v4556 = vmul.f32 %v3461, %v4412
          %v4557 = vmul.f32 %v3462, %v4413
          %v4558 = vmul.f32 %v3463, %v4414
          %v4559 = vmul.f32 %v3464, %v4511
          %v4560 = vmul.f32 %v3465, %v4512
          %v4561 = vmul.f32 %v3466, %v4513
          %v4562 = vmul.f32 %v3467, %v4514
          %v4563 = vmul.f32 %v3468, %v4515
          %v4564 = vmul.f32 %v3469, %v4516
          %v4565 = vmul.f32 %v3470, %v4517
          %v4566 = vmul.f32 %v3471, %v4518
          %v4567 = vmul.f32 %v3472, %v4519
          %v4568 = vmul.f32 %v3473, %v4520
          %v4569 = vmul.f32 %v3474, %v4521
          %v4570 = vmul.f32 %v3475, %v4522
          %v4571 = vmul.f32 %v3476, %v4523
          %v4572 = vmul.f32 %v3477, %v4524
          %v4573 = vmul.f32 %v3478, %v4525
          %v4574 = vmul.f32 %v3479, %v4526
          %v4575 = vmul.f32 %v3480, %v4527
          %v4576 = vmul.f32 %v3481, %v4528
          %v4577 = vmul.f32 %v3482, %v4529
          %v4578 = vmul.f32 %v3483, %v4530
          %v4579 = vmul.f32 %v3484, %v4531
          %v4580 = vmul.f32 %v3485, %v4532
          %v4581 = vmul.f32 %v3486, %v4533
          %v4582 = vmul.f32 %v3487, %v4534
          %v4583 = vsub.f32 %v4535, %v4559
          %v4584 = vsub.f32 %v4536, %v4560
          %v4585 = vsub.f32 %v4537, %v4561
          %v4586 = vsub.f32 %v4538, %v4562
          %v4587 = vsub.f32 %v4539, %v4563
          %v4588 = vsub.f32 %v4540, %v4564
          %v4589 = vsub.f32 %v4541, %v4565
          %v4590 = vsub.f32 %v4542, %v4566
          %v4591 = vsub.f32 %v4543, %v4567
          %v4592 = vsub.f32 %v4544, %v4568
          %v4593 = vsub.f32 %v4545, %v4569
          %v4594 = vsub.f32 %v4546, %v4570
          %v4595 = vsub.f32 %v4547, %v4571
          %v4596 = vsub.f32 %v4548, %v4572
          %v4597 = vsub.f32 %v4549, %v4573
          %v4598 = vsub.f32 %v4550, %v4574
          %v4599 = vsub.f32 %v4551, %v4575
          %v4600 = vsub.f32 %v4552, %v4576
          %v4601 = vsub.f32 %v4553, %v4577
          %v4602 = vsub.f32 %v4554, %v4578
          %v4603 = vsub.f32 %v4555, %v4579
          %v4604 = vsub.f32 %v4556, %v4580
          %v4605 = vsub.f32 %v4557, %v4581
          %v4606 = vsub.f32 %v4558, %v4582
          %v4607 = vadd.f32 %v4583, %v4586
          %v4608 = vadd.f32 %v4607, %v4589
          %v4609 = vadd.f32 %v4608, %v4592
          %v4610 = vadd.f32 %v4609, %v4595
          %v4611 = vadd.f32 %v4610, %v4598
          %v4612 = vadd.f32 %v4611, %v4601
          %v4613 = vadd.f32 %v4612, %v4604
          %v4614 = vrot.slane %v4613, 4
          %v4615 = vadd.f32 %v4613, %v4614
          %v4616 = vrot.slane %v4615, 2
          %v4617 = vadd.f32 %v4615, %v4616
          %v4618 = vrot.slane %v4617, 1
          %v4619 = vadd.f32 %v4617, %v4618
          %v4620 = vadd.f32 %v4584, %v4587
          %v4621 = vadd.f32 %v4620, %v4590
          %v4622 = vadd.f32 %v4621, %v4593
          %v4623 = vadd.f32 %v4622, %v4596
          %v4624 = vadd.f32 %v4623, %v4599
          %v4625 = vadd.f32 %v4624, %v4602
          %v4626 = vadd.f32 %v4625, %v4605
          %v4627 = vrot.slane %v4626, 4
          %v4628 = vadd.f32 %v4626, %v4627
          %v4629 = vrot.slane %v4628, 2
          %v4630 = vadd.f32 %v4628, %v4629
          %v4631 = vrot.slane %v4630, 1
          %v4632 = vadd.f32 %v4630, %v4631
          %v4633 = vadd.f32 %v4585, %v4588
          %v4634 = vadd.f32 %v4633, %v4591
          %v4635 = vadd.f32 %v4634, %v4594
          %v4636 = vadd.f32 %v4635, %v4597
          %v4637 = vadd.f32 %v4636, %v4600
          %v4638 = vadd.f32 %v4637, %v4603
          %v4639 = vadd.f32 %v4638, %v4606
          %v4640 = vrot.slane %v4639, 4
          %v4641 = vadd.f32 %v4639, %v4640
          %v4642 = vrot.slane %v4641, 2
          %v4643 = vadd.f32 %v4641, %v4642
          %v4644 = vrot.slane %v4643, 1
          %v4645 = vadd.f32 %v4643, %v4644
          %v4646 = vmul.f32 %v4619, 2.0
          %v4647 = vmul.f32 %v4632, 2.0
          %v4648 = vmul.f32 %v4645, 2.0
          %v4649 = vmul.f32 %v3344, %v4391
          %v4650 = vmul.f32 %v3345, %v4392
          %v4651 = vmul.f32 %v3346, %v4393
          %v4652 = vmul.f32 %v3347, %v4394
          %v4653 = vmul.f32 %v3348, %v4395
          %v4654 = vmul.f32 %v3349, %v4396
          %v4655 = vmul.f32 %v3350, %v4397
          %v4656 = vmul.f32 %v3351, %v4398
          %v4657 = vmul.f32 %v3352, %v4399
          %v4658 = vmul.f32 %v3353, %v4400
          %v4659 = vmul.f32 %v3354, %v4401
          %v4660 = vmul.f32 %v3355, %v4402
          %v4661 = vmul.f32 %v3356, %v4403
          %v4662 = vmul.f32 %v3357, %v4404
          %v4663 = vmul.f32 %v3358, %v4405
          %v4664 = vmul.f32 %v3359, %v4406
          %v4665 = vmul.f32 %v3360, %v4407
          %v4666 = vmul.f32 %v3361, %v4408
          %v4667 = vmul.f32 %v3362, %v4409
          %v4668 = vmul.f32 %v3363, %v4410
          %v4669 = vmul.f32 %v3364, %v4411
          %v4670 = vmul.f32 %v3365, %v4412
          %v4671 = vmul.f32 %v3366, %v4413
          %v4672 = vmul.f32 %v3367, %v4414
          %v4673 = vmul.f32 %v3368, %v4511
          %v4674 = vmul.f32 %v3369, %v4512
          %v4675 = vmul.f32 %v3370, %v4513
          %v4676 = vmul.f32 %v3371, %v4514
          %v4677 = vmul.f32 %v3372, %v4515
          %v4678 = vmul.f32 %v3373, %v4516
          %v4679 = vmul.f32 %v3374, %v4517
          %v4680 = vmul.f32 %v3375, %v4518
          %v4681 = vmul.f32 %v3376, %v4519
          %v4682 = vmul.f32 %v3377, %v4520
          %v4683 = vmul.f32 %v3378, %v4521
          %v4684 = vmul.f32 %v3379, %v4522
          %v4685 = vmul.f32 %v3380, %v4523
          %v4686 = vmul.f32 %v3381, %v4524
          %v4687 = vmul.f32 %v3382, %v4525
          %v4688 = vmul.f32 %v3383, %v4526
          %v4689 = vmul.f32 %v3384, %v4527
          %v4690 = vmul.f32 %v3385, %v4528
          %v4691 = vmul.f32 %v3386, %v4529
          %v4692 = vmul.f32 %v3387, %v4530
          %v4693 = vmul.f32 %v3388, %v4531
          %v4694 = vmul.f32 %v3389, %v4532
          %v4695 = vmul.f32 %v3390, %v4533
          %v4696 = vmul.f32 %v3391, %v4534
          %v4697 = vsub.f32 %v4649, %v4673
          %v4698 = vsub.f32 %v4650, %v4674
          %v4699 = vsub.f32 %v4651, %v4675
          %v4700 = vsub.f32 %v4652, %v4676
          %v4701 = vsub.f32 %v4653, %v4677
          %v4702 = vsub.f32 %v4654, %v4678
          %v4703 = vsub.f32 %v4655, %v4679
          %v4704 = vsub.f32 %v4656, %v4680
          %v4705 = vsub.f32 %v4657, %v4681
          %v4706 = vsub.f32 %v4658, %v4682
          %v4707 = vsub.f32 %v4659, %v4683
          %v4708 = vsub.f32 %v4660, %v4684
          %v4709 = vsub.f32 %v4661, %v4685
          %v4710 = vsub.f32 %v4662, %v4686
          %v4711 = vsub.f32 %v4663, %v4687
          %v4712 = vsub.f32 %v4664, %v4688
          %v4713 = vsub.f32 %v4665, %v4689
          %v4714 = vsub.f32 %v4666, %v4690
          %v4715 = vsub.f32 %v4667, %v4691
          %v4716 = vsub.f32 %v4668, %v4692
          %v4717 = vsub.f32 %v4669, %v4693
          %v4718 = vsub.f32 %v4670, %v4694
          %v4719 = vsub.f32 %v4671, %v4695
          %v4720 = vsub.f32 %v4672, %v4696
          %v4721 = vlaneseq
          %v4722 = vshrl.u32 %v4721, 7
          %v4723 = vsub.s32 3, %v4722
          %v4724 = vrot.slane %v3500, %v4723
          %v4725 = vlaneseq
          %v4726 = vshrl.u32 %v4725, 7
          %v4727 = vsub.s32 3, %v4726
          %v4728 = vrot.slane %v3501, %v4727
          %v4729 = vlaneseq
          %v4730 = vshrl.u32 %v4729, 7
          %v4731 = vsub.s32 3, %v4730
          %v4732 = vrot.slane %v3502, %v4731
          %v4733 = vmul.f32 %v3392, %v4724
          %v4734 = vmul.f32 %v3393, %v4728
          %v4735 = vmul.f32 %v3394, %v4732
          %v4736 = vmul.f32 %v3395, %v4724
          %v4737 = vmul.f32 %v3396, %v4728
          %v4738 = vmul.f32 %v3397, %v4732
          %v4739 = vmul.f32 %v3398, %v4724
          %v4740 = vmul.f32 %v3399, %v4728
          %v4741 = vmul.f32 %v3400, %v4732
          %v4742 = vmul.f32 %v3401, %v4724
          %v4743 = vmul.f32 %v3402, %v4728
          %v4744 = vmul.f32 %v3403, %v4732
          %v4745 = vmul.f32 %v3404, %v4724
          %v4746 = vmul.f32 %v3405, %v4728
          %v4747 = vmul.f32 %v3406, %v4732
          %v4748 = vmul.f32 %v3407, %v4724
          %v4749 = vmul.f32 %v3408, %v4728
          %v4750 = vmul.f32 %v3409, %v4732
          %v4751 = vmul.f32 %v3410, %v4724
          %v4752 = vmul.f32 %v3411, %v4728
          %v4753 = vmul.f32 %v3412, %v4732
          %v4754 = vmul.f32 %v3413, %v4724
          %v4755 = vmul.f32 %v3414, %v4728
          %v4756 = vmul.f32 %v3415, %v4732
          %v4757 = vadd.f32 %v4697, %v4733
          %v4758 = vadd.f32 %v4698, %v4734
          %v4759 = vadd.f32 %v4699, %v4735
          %v4760 = vadd.f32 %v4700, %v4736
          %v4761 = vadd.f32 %v4701, %v4737
          %v4762 = vadd.f32 %v4702, %v4738
          %v4763 = vadd.f32 %v4703, %v4739
          %v4764 = vadd.f32 %v4704, %v4740
          %v4765 = vadd.f32 %v4705, %v4741
          %v4766 = vadd.f32 %v4706, %v4742
          %v4767 = vadd.f32 %v4707, %v4743
          %v4768 = vadd.f32 %v4708, %v4744
          %v4769 = vadd.f32 %v4709, %v4745
          %v4770 = vadd.f32 %v4710, %v4746
          %v4771 = vadd.f32 %v4711, %v4747
          %v4772 = vadd.f32 %v4712, %v4748
          %v4773 = vadd.f32 %v4713, %v4749
          %v4774 = vadd.f32 %v4714, %v4750
          %v4775 = vadd.f32 %v4715, %v4751
          %v4776 = vadd.f32 %v4716, %v4752
          %v4777 = vadd.f32 %v4717, %v4753
          %v4778 = vadd.f32 %v4718, %v4754
          %v4779 = vadd.f32 %v4719, %v4755
          %v4780 = vadd.f32 %v4720, %v4756
          %v4781 = vmul.f32 %v3344, %v4511
          %v4782 = vmul.f32 %v3345, %v4512
          %v4783 = vmul.f32 %v3346, %v4513
          %v4784 = vmul.f32 %v3347, %v4514
          %v4785 = vmul.f32 %v3348, %v4515
          %v4786 = vmul.f32 %v3349, %v4516
          %v4787 = vmul.f32 %v3350, %v4517
          %v4788 = vmul.f32 %v3351, %v4518
          %v4789 = vmul.f32 %v3352, %v4519
          %v4790 = vmul.f32 %v3353, %v4520
          %v4791 = vmul.f32 %v3354, %v4521
          %v4792 = vmul.f32 %v3355, %v4522
          %v4793 = vmul.f32 %v3356, %v4523
          %v4794 = vmul.f32 %v3357, %v4524
          %v4795 = vmul.f32 %v3358, %v4525
          %v4796 = vmul.f32 %v3359, %v4526
          %v4797 = vmul.f32 %v3360, %v4527
          %v4798 = vmul.f32 %v3361, %v4528
          %v4799 = vmul.f32 %v3362, %v4529
          %v4800 = vmul.f32 %v3363, %v4530
          %v4801 = vmul.f32 %v3364, %v4531
          %v4802 = vmul.f32 %v3365, %v4532
          %v4803 = vmul.f32 %v3366, %v4533
          %v4804 = vmul.f32 %v3367, %v4534
          %v4805 = vmul.f32 %v3368, %v4391
          %v4806 = vmul.f32 %v3369, %v4392
          %v4807 = vmul.f32 %v3370, %v4393
          %v4808 = vmul.f32 %v3371, %v4394
          %v4809 = vmul.f32 %v3372, %v4395
          %v4810 = vmul.f32 %v3373, %v4396
          %v4811 = vmul.f32 %v3374, %v4397
          %v4812 = vmul.f32 %v3375, %v4398
          %v4813 = vmul.f32 %v3376, %v4399
          %v4814 = vmul.f32 %v3377, %v4400
          %v4815 = vmul.f32 %v3378, %v4401
          %v4816 = vmul.f32 %v3379, %v4402
          %v4817 = vmul.f32 %v3380, %v4403
          %v4818 = vmul.f32 %v3381, %v4404
          %v4819 = vmul.f32 %v3382, %v4405
          %v4820 = vmul.f32 %v3383, %v4406
          %v4821 = vmul.f32 %v3384, %v4407
          %v4822 = vmul.f32 %v3385, %v4408
          %v4823 = vmul.f32 %v3386, %v4409
          %v4824 = vmul.f32 %v3387, %v4410
          %v4825 = vmul.f32 %v3388, %v4411
          %v4826 = vmul.f32 %v3389, %v4412
          %v4827 = vmul.f32 %v3390, %v4413
          %v4828 = vmul.f32 %v3391, %v4414
          %v4829 = vadd.f32 %v4781, %v4805
          %v4830 = vadd.f32 %v4782, %v4806
          %v4831 = vadd.f32 %v4783, %v4807
          %v4832 = vadd.f32 %v4784, %v4808
          %v4833 = vadd.f32 %v4785, %v4809
          %v4834 = vadd.f32 %v4786, %v4810
          %v4835 = vadd.f32 %v4787, %v4811
          %v4836 = vadd.f32 %v4788, %v4812
          %v4837 = vadd.f32 %v4789, %v4813
          %v4838 = vadd.f32 %v4790, %v4814
          %v4839 = vadd.f32 %v4791, %v4815
          %v4840 = vadd.f32 %v4792, %v4816
          %v4841 = vadd.f32 %v4793, %v4817
          %v4842 = vadd.f32 %v4794, %v4818
          %v4843 = vadd.f32 %v4795, %v4819
          %v4844 = vadd.f32 %v4796, %v4820
          %v4845 = vadd.f32 %v4797, %v4821
          %v4846 = vadd.f32 %v4798, %v4822
          %v4847 = vadd.f32 %v4799, %v4823
          %v4848 = vadd.f32 %v4800, %v4824
          %v4849 = vadd.f32 %v4801, %v4825
          %v4850 = vadd.f32 %v4802, %v4826
          %v4851 = vadd.f32 %v4803, %v4827
          %v4852 = vadd.f32 %v4804, %v4828
          %v4853 = vmul.f32 %v3416, %v4724
          %v4854 = vmul.f32 %v3417, %v4728
          %v4855 = vmul.f32 %v3418, %v4732
          %v4856 = vmul.f32 %v3419, %v4724
          %v4857 = vmul.f32 %v3420, %v4728
          %v4858 = vmul.f32 %v3421, %v4732
          %v4859 = vmul.f32 %v3422, %v4724
          %v4860 = vmul.f32 %v3423, %v4728
          %v4861 = vmul.f32 %v3424, %v4732
          %v4862 = vmul.f32 %v3425, %v4724
          %v4863 = vmul.f32 %v3426, %v4728
          %v4864 = vmul.f32 %v3427, %v4732
          %v4865 = vmul.f32 %v3428, %v4724
          %v4866 = vmul.f32 %v3429, %v4728
          %v4867 = vmul.f32 %v3430, %v4732
          %v4868 = vmul.f32 %v3431, %v4724
          %v4869 = vmul.f32 %v3432, %v4728
          %v4870 = vmul.f32 %v3433, %v4732
          %v4871 = vmul.f32 %v3434, %v4724
          %v4872 = vmul.f32 %v3435, %v4728
          %v4873 = vmul.f32 %v3436, %v4732
          %v4874 = vmul.f32 %v3437, %v4724
          %v4875 = vmul.f32 %v3438, %v4728
          %v4876 = vmul.f32 %v3439, %v4732
          %v4877 = vadd.f32 %v4829, %v4853
          %v4878 = vadd.f32 %v4830, %v4854
          %v4879 = vadd.f32 %v4831, %v4855
          %v4880 = vadd.f32 %v4832, %v4856
          %v4881 = vadd.f32 %v4833, %v4857
          %v4882 = vadd.f32 %v4834, %v4858
          %v4883 = vadd.f32 %v4835, %v4859
          %v4884 = vadd.f32 %v4836, %v4860
          %v4885 = vadd.f32 %v4837, %v4861
          %v4886 = vadd.f32 %v4838, %v4862
          %v4887 = vadd.f32 %v4839, %v4863
          %v4888 = vadd.f32 %v4840, %v4864
          %v4889 = vadd.f32 %v4841, %v4865
          %v4890 = vadd.f32 %v4842, %v4866
          %v4891 = vadd.f32 %v4843, %v4867
          %v4892 = vadd.f32 %v4844, %v4868
          %v4893 = vadd.f32 %v4845, %v4869
          %v4894 = vadd.f32 %v4846, %v4870
          %v4895 = vadd.f32 %v4847, %v4871
          %v4896 = vadd.f32 %v4848, %v4872
          %v4897 = vadd.f32 %v4849, %v4873
          %v4898 = vadd.f32 %v4850, %v4874
          %v4899 = vadd.f32 %v4851, %v4875
          %v4900 = vadd.f32 %v4852, %v4876
          %v4901 = vmul.f32 %v3440, %v4757
          %v4902 = vmul.f32 %v3441, %v4758
          %v4903 = vmul.f32 %v3442, %v4759
          %v4904 = vmul.f32 %v3443, %v4760
          %v4905 = vmul.f32 %v3444, %v4761
          %v4906 = vmul.f32 %v3445, %v4762
          %v4907 = vmul.f32 %v3446, %v4763
          %v4908 = vmul.f32 %v3447, %v4764
          %v4909 = vmul.f32 %v3448, %v4765
          %v4910 = vmul.f32 %v3449, %v4766
          %v4911 = vmul.f32 %v3450, %v4767
          %v4912 = vmul.f32 %v3451, %v4768
          %v4913 = vmul.f32 %v3452, %v4769
          %v4914 = vmul.f32 %v3453, %v4770
          %v4915 = vmul.f32 %v3454, %v4771
          %v4916 = vmul.f32 %v3455, %v4772
          %v4917 = vmul.f32 %v3456, %v4773
          %v4918 = vmul.f32 %v3457, %v4774
          %v4919 = vmul.f32 %v3458, %v4775
          %v4920 = vmul.f32 %v3459, %v4776
          %v4921 = vmul.f32 %v3460, %v4777
          %v4922 = vmul.f32 %v3461, %v4778
          %v4923 = vmul.f32 %v3462, %v4779
          %v4924 = vmul.f32 %v3463, %v4780
          %v4925 = vmul.f32 %v3464, %v4877
          %v4926 = vmul.f32 %v3465, %v4878
          %v4927 = vmul.f32 %v3466, %v4879
          %v4928 = vmul.f32 %v3467, %v4880
          %v4929 = vmul.f32 %v3468, %v4881
          %v4930 = vmul.f32 %v3469, %v4882
          %v4931 = vmul.f32 %v3470, %v4883
          %v4932 = vmul.f32 %v3471, %v4884
          %v4933 = vmul.f32 %v3472, %v4885
          %v4934 = vmul.f32 %v3473, %v4886
          %v4935 = vmul.f32 %v3474, %v4887
          %v4936 = vmul.f32 %v3475, %v4888
          %v4937 = vmul.f32 %v3476, %v4889
          %v4938 = vmul.f32 %v3477, %v4890
          %v4939 = vmul.f32 %v3478, %v4891
          %v4940 = vmul.f32 %v3479, %v4892
          %v4941 = vmul.f32 %v3480, %v4893
          %v4942 = vmul.f32 %v3481, %v4894
          %v4943 = vmul.f32 %v3482, %v4895
          %v4944 = vmul.f32 %v3483, %v4896
          %v4945 = vmul.f32 %v3484, %v4897
          %v4946 = vmul.f32 %v3485, %v4898
          %v4947 = vmul.f32 %v3486, %v4899
          %v4948 = vmul.f32 %v3487, %v4900
          %v4949 = vsub.f32 %v4901, %v4925
          %v4950 = vsub.f32 %v4902, %v4926
          %v4951 = vsub.f32 %v4903, %v4927
          %v4952 = vsub.f32 %v4904, %v4928
          %v4953 = vsub.f32 %v4905, %v4929
          %v4954 = vsub.f32 %v4906, %v4930
          %v4955 = vsub.f32 %v4907, %v4931
          %v4956 = vsub.f32 %v4908, %v4932
          %v4957 = vsub.f32 %v4909, %v4933
          %v4958 = vsub.f32 %v4910, %v4934
          %v4959 = vsub.f32 %v4911, %v4935
          %v4960 = vsub.f32 %v4912, %v4936
          %v4961 = vsub.f32 %v4913, %v4937
          %v4962 = vsub.f32 %v4914, %v4938
          %v4963 = vsub.f32 %v4915, %v4939
          %v4964 = vsub.f32 %v4916, %v4940
          %v4965 = vsub.f32 %v4917, %v4941
          %v4966 = vsub.f32 %v4918, %v4942
          %v4967 = vsub.f32 %v4919, %v4943
          %v4968 = vsub.f32 %v4920, %v4944
          %v4969 = vsub.f32 %v4921, %v4945
          %v4970 = vsub.f32 %v4922, %v4946
          %v4971 = vsub.f32 %v4923, %v4947
          %v4972 = vsub.f32 %v4924, %v4948
          %v4973 = vadd.f32 %v4949, %v4952
          %v4974 = vadd.f32 %v4973, %v4955
          %v4975 = vadd.f32 %v4974, %v4958
          %v4976 = vadd.f32 %v4975, %v4961
          %v4977 = vadd.f32 %v4976, %v4964
          %v4978 = vadd.f32 %v4977, %v4967
          %v4979 = vadd.f32 %v4978, %v4970
          %v4980 = vrot.slane %v4979, 4
          %v4981 = vadd.f32 %v4979, %v4980
          %v4982 = vrot.slane %v4981, 2
          %v4983 = vadd.f32 %v4981, %v4982
          %v4984 = vrot.slane %v4983, 1
          %v4985 = vadd.f32 %v4983, %v4984
          %v4986 = vadd.f32 %v4950, %v4953
          %v4987 = vadd.f32 %v4986, %v4956
          %v4988 = vadd.f32 %v4987, %v4959
          %v4989 = vadd.f32 %v4988, %v4962
          %v4990 = vadd.f32 %v4989, %v4965
          %v4991 = vadd.f32 %v4990, %v4968
          %v4992 = vadd.f32 %v4991, %v4971
          %v4993 = vrot.slane %v4992, 4
          %v4994 = vadd.f32 %v4992, %v4993
          %v4995 = vrot.slane %v4994, 2
          %v4996 = vadd.f32 %v4994, %v4995
          %v4997 = vrot.slane %v4996, 1
          %v4998 = vadd.f32 %v4996, %v4997
          %v4999 = vadd.f32 %v4951, %v4954
          %v5000 = vadd.f32 %v4999, %v4957
          %v5001 = vadd.f32 %v5000, %v4960
          %v5002 = vadd.f32 %v5001, %v4963
          %v5003 = vadd.f32 %v5002, %v4966
          %v5004 = vadd.f32 %v5003, %v4969
          %v5005 = vadd.f32 %v5004, %v4972
          %v5006 = vrot.slane %v5005, 4
          %v5007 = vadd.f32 %v5005, %v5006
          %v5008 = vrot.slane %v5007, 2
          %v5009 = vadd.f32 %v5007, %v5008
          %v5010 = vrot.slane %v5009, 1
          %v5011 = vadd.f32 %v5009, %v5010
          %v5012 = vmul.f32 %v4985, 2.0
          %v5013 = vmul.f32 %v4998, 2.0
          %v5014 = vmul.f32 %v5011, 2.0
          %v5015 = vmul.f32 %v3344, %v4757
          %v5016 = vmul.f32 %v3345, %v4758
          %v5017 = vmul.f32 %v3346, %v4759
          %v5018 = vmul.f32 %v3347, %v4760
          %v5019 = vmul.f32 %v3348, %v4761
          %v5020 = vmul.f32 %v3349, %v4762
          %v5021 = vmul.f32 %v3350, %v4763
          %v5022 = vmul.f32 %v3351, %v4764
          %v5023 = vmul.f32 %v3352, %v4765
          %v5024 = vmul.f32 %v3353, %v4766
          %v5025 = vmul.f32 %v3354, %v4767
          %v5026 = vmul.f32 %v3355, %v4768
          %v5027 = vmul.f32 %v3356, %v4769
          %v5028 = vmul.f32 %v3357, %v4770
          %v5029 = vmul.f32 %v3358, %v4771
          %v5030 = vmul.f32 %v3359, %v4772
          %v5031 = vmul.f32 %v3360, %v4773
          %v5032 = vmul.f32 %v3361, %v4774
          %v5033 = vmul.f32 %v3362, %v4775
          %v5034 = vmul.f32 %v3363, %v4776
          %v5035 = vmul.f32 %v3364, %v4777
          %v5036 = vmul.f32 %v3365, %v4778
          %v5037 = vmul.f32 %v3366, %v4779
          %v5038 = vmul.f32 %v3367, %v4780
          %v5039 = vmul.f32 %v3368, %v4877
          %v5040 = vmul.f32 %v3369, %v4878
          %v5041 = vmul.f32 %v3370, %v4879
          %v5042 = vmul.f32 %v3371, %v4880
          %v5043 = vmul.f32 %v3372, %v4881
          %v5044 = vmul.f32 %v3373, %v4882
          %v5045 = vmul.f32 %v3374, %v4883
          %v5046 = vmul.f32 %v3375, %v4884
          %v5047 = vmul.f32 %v3376, %v4885
          %v5048 = vmul.f32 %v3377, %v4886
          %v5049 = vmul.f32 %v3378, %v4887
          %v5050 = vmul.f32 %v3379, %v4888
          %v5051 = vmul.f32 %v3380, %v4889
          %v5052 = vmul.f32 %v3381, %v4890
          %v5053 = vmul.f32 %v3382, %v4891
          %v5054 = vmul.f32 %v3383, %v4892
          %v5055 = vmul.f32 %v3384, %v4893
          %v5056 = vmul.f32 %v3385, %v4894
          %v5057 = vmul.f32 %v3386, %v4895
          %v5058 = vmul.f32 %v3387, %v4896
          %v5059 = vmul.f32 %v3388, %v4897
          %v5060 = vmul.f32 %v3389, %v4898
          %v5061 = vmul.f32 %v3390, %v4899
          %v5062 = vmul.f32 %v3391, %v4900
          %v5063 = vsub.f32 %v5015, %v5039
          %v5064 = vsub.f32 %v5016, %v5040
          %v5065 = vsub.f32 %v5017, %v5041
          %v5066 = vsub.f32 %v5018, %v5042
          %v5067 = vsub.f32 %v5019, %v5043
          %v5068 = vsub.f32 %v5020, %v5044
          %v5069 = vsub.f32 %v5021, %v5045
          %v5070 = vsub.f32 %v5022, %v5046
          %v5071 = vsub.f32 %v5023, %v5047
          %v5072 = vsub.f32 %v5024, %v5048
          %v5073 = vsub.f32 %v5025, %v5049
          %v5074 = vsub.f32 %v5026, %v5050
          %v5075 = vsub.f32 %v5027, %v5051
          %v5076 = vsub.f32 %v5028, %v5052
          %v5077 = vsub.f32 %v5029, %v5053
          %v5078 = vsub.f32 %v5030, %v5054
          %v5079 = vsub.f32 %v5031, %v5055
          %v5080 = vsub.f32 %v5032, %v5056
          %v5081 = vsub.f32 %v5033, %v5057
          %v5082 = vsub.f32 %v5034, %v5058
          %v5083 = vsub.f32 %v5035, %v5059
          %v5084 = vsub.f32 %v5036, %v5060
          %v5085 = vsub.f32 %v5037, %v5061
          %v5086 = vsub.f32 %v5038, %v5062
          %v5087 = vlaneseq
          %v5088 = vshrl.u32 %v5087, 7
          %v5089 = vsub.s32 4, %v5088
          %v5090 = vrot.slane %v3500, %v5089
          %v5091 = vlaneseq
          %v5092 = vshrl.u32 %v5091, 7
          %v5093 = vsub.s32 4, %v5092
          %v5094 = vrot.slane %v3501, %v5093
          %v5095 = vlaneseq
          %v5096 = vshrl.u32 %v5095, 7
          %v5097 = vsub.s32 4, %v5096
          %v5098 = vrot.slane %v3502, %v5097
          %v5099 = vmul.f32 %v3392, %v5090
          %v5100 = vmul.f32 %v3393, %v5094
          %v5101 = vmul.f32 %v3394, %v5098
          %v5102 = vmul.f32 %v3395, %v5090
          %v5103 = vmul.f32 %v3396, %v5094
          %v5104 = vmul.f32 %v3397, %v5098
          %v5105 = vmul.f32 %v3398, %v5090
          %v5106 = vmul.f32 %v3399, %v5094
          %v5107 = vmul.f32 %v3400, %v5098
          %v5108 = vmul.f32 %v3401, %v5090
          %v5109 = vmul.f32 %v3402, %v5094
          %v5110 = vmul.f32 %v3403, %v5098
          %v5111 = vmul.f32 %v3404, %v5090
          %v5112 = vmul.f32 %v3405, %v5094
          %v5113 = vmul.f32 %v3406, %v5098
          %v5114 = vmul.f32 %v3407, %v5090
          %v5115 = vmul.f32 %v3408, %v5094
          %v5116 = vmul.f32 %v3409, %v5098
          %v5117 = vmul.f32 %v3410, %v5090
          %v5118 = vmul.f32 %v3411, %v5094
          %v5119 = vmul.f32 %v3412, %v5098
          %v5120 = vmul.f32 %v3413, %v5090
          %v5121 = vmul.f32 %v3414, %v5094
          %v5122 = vmul.f32 %v3415, %v5098
          %v5123 = vadd.f32 %v5063, %v5099
          %v5124 = vadd.f32 %v5064, %v5100
          %v5125 = vadd.f32 %v5065, %v5101
          %v5126 = vadd.f32 %v5066, %v5102
          %v5127 = vadd.f32 %v5067, %v5103
          %v5128 = vadd.f32 %v5068, %v5104
          %v5129 = vadd.f32 %v5069, %v5105
          %v5130 = vadd.f32 %v5070, %v5106
          %v5131 = vadd.f32 %v5071, %v5107
          %v5132 = vadd.f32 %v5072, %v5108
          %v5133 = vadd.f32 %v5073, %v5109
          %v5134 = vadd.f32 %v5074, %v5110
          %v5135 = vadd.f32 %v5075, %v5111
          %v5136 = vadd.f32 %v5076, %v5112
          %v5137 = vadd.f32 %v5077, %v5113
          %v5138 = vadd.f32 %v5078, %v5114
          %v5139 = vadd.f32 %v5079, %v5115
          %v5140 = vadd.f32 %v5080, %v5116
          %v5141 = vadd.f32 %v5081, %v5117
          %v5142 = vadd.f32 %v5082, %v5118
          %v5143 = vadd.f32 %v5083, %v5119
          %v5144 = vadd.f32 %v5084, %v5120
          %v5145 = vadd.f32 %v5085, %v5121
          %v5146 = vadd.f32 %v5086, %v5122
          %v5147 = vmul.f32 %v3344, %v4877
          %v5148 = vmul.f32 %v3345, %v4878
          %v5149 = vmul.f32 %v3346, %v4879
          %v5150 = vmul.f32 %v3347, %v4880
          %v5151 = vmul.f32 %v3348, %v4881
          %v5152 = vmul.f32 %v3349, %v4882
          %v5153 = vmul.f32 %v3350, %v4883
          %v5154 = vmul.f32 %v3351, %v4884
          %v5155 = vmul.f32 %v3352, %v4885
          %v5156 = vmul.f32 %v3353, %v4886
          %v5157 = vmul.f32 %v3354, %v4887
          %v5158 = vmul.f32 %v3355, %v4888
          %v5159 = vmul.f32 %v3356, %v4889
          %v5160 = vmul.f32 %v3357, %v4890
          %v5161 = vmul.f32 %v3358, %v4891
          %v5162 = vmul.f32 %v3359, %v4892
          %v5163 = vmul.f32 %v3360, %v4893
          %v5164 = vmul.f32 %v3361, %v4894
          %v5165 = vmul.f32 %v3362, %v4895
          %v5166 = vmul.f32 %v3363, %v4896
          %v5167 = vmul.f32 %v3364, %v4897
          %v5168 = vmul.f32 %v3365, %v4898
          %v5169 = vmul.f32 %v3366, %v4899
          %v5170 = vmul.f32 %v3367, %v4900
          %v5171 = vmul.f32 %v3368, %v4757
          %v5172 = vmul.f32 %v3369, %v4758
          %v5173 = vmul.f32 %v3370, %v4759
          %v5174 = vmul.f32 %v3371, %v4760
          %v5175 = vmul.f32 %v3372, %v4761
          %v5176 = vmul.f32 %v3373, %v4762
          %v5177 = vmul.f32 %v3374, %v4763
          %v5178 = vmul.f32 %v3375, %v4764
          %v5179 = vmul.f32 %v3376, %v4765
          %v5180 = vmul.f32 %v3377, %v4766
          %v5181 = vmul.f32 %v3378, %v4767
          %v5182 = vmul.f32 %v3379, %v4768
          %v5183 = vmul.f32 %v3380, %v4769
          %v5184 = vmul.f32 %v3381, %v4770
          %v5185 = vmul.f32 %v3382, %v4771
          %v5186 = vmul.f32 %v3383, %v4772
          %v5187 = vmul.f32 %v3384, %v4773
          %v5188 = vmul.f32 %v3385, %v4774
          %v5189 = vmul.f32 %v3386, %v4775
          %v5190 = vmul.f32 %v3387, %v4776
          %v5191 = vmul.f32 %v3388, %v4777
          %v5192 = vmul.f32 %v3389, %v4778
          %v5193 = vmul.f32 %v3390, %v4779
          %v5194 = vmul.f32 %v3391, %v4780
          %v5195 = vadd.f32 %v5147, %v5171
          %v5196 = vadd.f32 %v5148, %v5172
          %v5197 = vadd.f32 %v5149, %v5173
          %v5198 = vadd.f32 %v5150, %v5174
          %v5199 = vadd.f32 %v5151, %v5175
          %v5200 = vadd.f32 %v5152, %v5176
          %v5201 = vadd.f32 %v5153, %v5177
          %v5202 = vadd.f32 %v5154, %v5178
          %v5203 = vadd.f32 %v5155, %v5179
          %v5204 = vadd.f32 %v5156, %v5180
          %v5205 = vadd.f32 %v5157, %v5181
          %v5206 = vadd.f32 %v5158, %v5182
          %v5207 = vadd.f32 %v5159, %v5183
          %v5208 = vadd.f32 %v5160, %v5184
          %v5209 = vadd.f32 %v5161, %v5185
          %v5210 = vadd.f32 %v5162, %v5186
          %v5211 = vadd.f32 %v5163, %v5187
          %v5212 = vadd.f32 %v5164, %v5188
          %v5213 = vadd.f32 %v5165, %v5189
          %v5214 = vadd.f32 %v5166, %v5190
          %v5215 = vadd.f32 %v5167, %v5191
          %v5216 = vadd.f32 %v5168, %v5192
          %v5217 = vadd.f32 %v5169, %v5193
          %v5218 = vadd.f32 %v5170, %v5194
          %v5219 = vmul.f32 %v3416, %v5090
          %v5220 = vmul.f32 %v3417, %v5094
          %v5221 = vmul.f32 %v3418, %v5098
          %v5222 = vmul.f32 %v3419, %v5090
          %v5223 = vmul.f32 %v3420, %v5094
          %v5224 = vmul.f32 %v3421, %v5098
          %v5225 = vmul.f32 %v3422, %v5090
          %v5226 = vmul.f32 %v3423, %v5094
          %v5227 = vmul.f32 %v3424, %v5098
          %v5228 = vmul.f32 %v3425, %v5090
          %v5229 = vmul.f32 %v3426, %v5094
          %v5230 = vmul.f32 %v3427, %v5098
          %v5231 = vmul.f32 %v3428, %v5090
          %v5232 = vmul.f32 %v3429, %v5094
          %v5233 = vmul.f32 %v3430, %v5098
          %v5234 = vmul.f32 %v3431, %v5090
          %v5235 = vmul.f32 %v3432, %v5094
          %v5236 = vmul.f32 %v3433, %v5098
          %v5237 = vmul.f32 %v3434, %v5090
          %v5238 = vmul.f32 %v3435, %v5094
          %v5239 = vmul.f32 %v3436, %v5098
          %v5240 = vmul.f32 %v3437, %v5090
          %v5241 = vmul.f32 %v3438, %v5094
          %v5242 = vmul.f32 %v3439, %v5098
          %v5243 = vadd.f32 %v5195, %v5219
          %v5244 = vadd.f32 %v5196, %v5220
          %v5245 = vadd.f32 %v5197, %v5221
          %v5246 = vadd.f32 %v5198, %v5222
          %v5247 = vadd.f32 %v5199, %v5223
          %v5248 = vadd.f32 %v5200, %v5224
          %v5249 = vadd.f32 %v5201, %v5225
          %v5250 = vadd.f32 %v5202, %v5226
          %v5251 = vadd.f32 %v5203, %v5227
          %v5252 = vadd.f32 %v5204, %v5228
          %v5253 = vadd.f32 %v5205, %v5229
          %v5254 = vadd.f32 %v5206, %v5230
          %v5255 = vadd.f32 %v5207, %v5231
          %v5256 = vadd.f32 %v5208, %v5232
          %v5257 = vadd.f32 %v5209, %v5233
          %v5258 = vadd.f32 %v5210, %v5234
          %v5259 = vadd.f32 %v5211, %v5235
          %v5260 = vadd.f32 %v5212, %v5236
          %v5261 = vadd.f32 %v5213, %v5237
          %v5262 = vadd.f32 %v5214, %v5238
          %v5263 = vadd.f32 %v5215, %v5239
          %v5264 = vadd.f32 %v5216, %v5240
          %v5265 = vadd.f32 %v5217, %v5241
          %v5266 = vadd.f32 %v5218, %v5242
          %v5267 = vmul.f32 %v3440, %v5123
          %v5268 = vmul.f32 %v3441, %v5124
          %v5269 = vmul.f32 %v3442, %v5125
          %v5270 = vmul.f32 %v3443, %v5126
          %v5271 = vmul.f32 %v3444, %v5127
          %v5272 = vmul.f32 %v3445, %v5128
          %v5273 = vmul.f32 %v3446, %v5129
          %v5274 = vmul.f32 %v3447, %v5130
          %v5275 = vmul.f32 %v3448, %v5131
          %v5276 = vmul.f32 %v3449, %v5132
          %v5277 = vmul.f32 %v3450, %v5133
          %v5278 = vmul.f32 %v3451, %v5134
          %v5279 = vmul.f32 %v3452, %v5135
          %v5280 = vmul.f32 %v3453, %v5136
          %v5281 = vmul.f32 %v3454, %v5137
          %v5282 = vmul.f32 %v3455, %v5138
          %v5283 = vmul.f32 %v3456, %v5139
          %v5284 = vmul.f32 %v3457, %v5140
          %v5285 = vmul.f32 %v3458, %v5141
          %v5286 = vmul.f32 %v3459, %v5142
          %v5287 = vmul.f32 %v3460, %v5143
          %v5288 = vmul.f32 %v3461, %v5144
          %v5289 = vmul.f32 %v3462, %v5145
          %v5290 = vmul.f32 %v3463, %v5146
          %v5291 = vmul.f32 %v3464, %v5243
          %v5292 = vmul.f32 %v3465, %v5244
          %v5293 = vmul.f32 %v3466, %v5245
          %v5294 = vmul.f32 %v3467, %v5246
          %v5295 = vmul.f32 %v3468, %v5247
          %v5296 = vmul.f32 %v3469, %v5248
          %v5297 = vmul.f32 %v3470, %v5249
          %v5298 = vmul.f32 %v3471, %v5250
          %v5299 = vmul.f32 %v3472, %v5251
          %v5300 = vmul.f32 %v3473, %v5252
          %v5301 = vmul.f32 %v3474, %v5253
          %v5302 = vmul.f32 %v3475, %v5254
          %v5303 = vmul.f32 %v3476, %v5255
          %v5304 = vmul.f32 %v3477, %v5256
          %v5305 = vmul.f32 %v3478, %v5257
          %v5306 = vmul.f32 %v3479, %v5258
          %v5307 = vmul.f32 %v3480, %v5259
          %v5308 = vmul.f32 %v3481, %v5260
          %v5309 = vmul.f32 %v3482, %v5261
          %v5310 = vmul.f32 %v3483, %v5262
          %v5311 = vmul.f32 %v3484, %v5263
          %v5312 = vmul.f32 %v3485, %v5264
          %v5313 = vmul.f32 %v3486, %v5265
          %v5314 = vmul.f32 %v3487, %v5266
          %v5315 = vsub.f32 %v5267, %v5291
          %v5316 = vsub.f32 %v5268, %v5292
          %v5317 = vsub.f32 %v5269, %v5293
          %v5318 = vsub.f32 %v5270, %v5294
          %v5319 = vsub.f32 %v5271, %v5295
          %v5320 = vsub.f32 %v5272, %v5296
          %v5321 = vsub.f32 %v5273, %v5297
          %v5322 = vsub.f32 %v5274, %v5298
          %v5323 = vsub.f32 %v5275, %v5299
          %v5324 = vsub.f32 %v5276, %v5300
          %v5325 = vsub.f32 %v5277, %v5301
          %v5326 = vsub.f32 %v5278, %v5302
          %v5327 = vsub.f32 %v5279, %v5303
          %v5328 = vsub.f32 %v5280, %v5304
          %v5329 = vsub.f32 %v5281, %v5305
          %v5330 = vsub.f32 %v5282, %v5306
          %v5331 = vsub.f32 %v5283, %v5307
          %v5332 = vsub.f32 %v5284, %v5308
          %v5333 = vsub.f32 %v5285, %v5309
          %v5334 = vsub.f32 %v5286, %v5310
          %v5335 = vsub.f32 %v5287, %v5311
          %v5336 = vsub.f32 %v5288, %v5312
          %v5337 = vsub.f32 %v5289, %v5313
          %v5338 = vsub.f32 %v5290, %v5314
          %v5339 = vadd.f32 %v5315, %v5318
          %v5340 = vadd.f32 %v5339, %v5321
          %v5341 = vadd.f32 %v5340, %v5324
          %v5342 = vadd.f32 %v5341, %v5327
          %v5343 = vadd.f32 %v5342, %v5330
          %v5344 = vadd.f32 %v5343, %v5333
          %v5345 = vadd.f32 %v5344, %v5336
          %v5346 = vrot.slane %v5345, 4
          %v5347 = vadd.f32 %v5345, %v5346
          %v5348 = vrot.slane %v5347, 2
          %v5349 = vadd.f32 %v5347, %v5348
          %v5350 = vrot.slane %v5349, 1
          %v5351 = vadd.f32 %v5349, %v5350
          %v5352 = vadd.f32 %v5316, %v5319
          %v5353 = vadd.f32 %v5352, %v5322
          %v5354 = vadd.f32 %v5353, %v5325
          %v5355 = vadd.f32 %v5354, %v5328
          %v5356 = vadd.f32 %v5355, %v5331
          %v5357 = vadd.f32 %v5356, %v5334
          %v5358 = vadd.f32 %v5357, %v5337
          %v5359 = vrot.slane %v5358, 4
          %v5360 = vadd.f32 %v5358, %v5359
          %v5361 = vrot.slane %v5360, 2
          %v5362 = vadd.f32 %v5360, %v5361
          %v5363 = vrot.slane %v5362, 1
          %v5364 = vadd.f32 %v5362, %v5363
          %v5365 = vadd.f32 %v5317, %v5320
          %v5366 = vadd.f32 %v5365, %v5323
          %v5367 = vadd.f32 %v5366, %v5326
          %v5368 = vadd.f32 %v5367, %v5329
          %v5369 = vadd.f32 %v5368, %v5332
          %v5370 = vadd.f32 %v5369, %v5335
          %v5371 = vadd.f32 %v5370, %v5338
          %v5372 = vrot.slane %v5371, 4
          %v5373 = vadd.f32 %v5371, %v5372
          %v5374 = vrot.slane %v5373, 2
          %v5375 = vadd.f32 %v5373, %v5374
          %v5376 = vrot.slane %v5375, 1
          %v5377 = vadd.f32 %v5375, %v5376
          %v5378 = vmul.f32 %v5351, 2.0
          %v5379 = vmul.f32 %v5364, 2.0
          %v5380 = vmul.f32 %v5377, 2.0
          %v5381 = vmul.f32 %v3344, %v5123
          %v5382 = vmul.f32 %v3345, %v5124
          %v5383 = vmul.f32 %v3346, %v5125
          %v5384 = vmul.f32 %v3347, %v5126
          %v5385 = vmul.f32 %v3348, %v5127
          %v5386 = vmul.f32 %v3349, %v5128
          %v5387 = vmul.f32 %v3350, %v5129
          %v5388 = vmul.f32 %v3351, %v5130
          %v5389 = vmul.f32 %v3352, %v5131
          %v5390 = vmul.f32 %v3353, %v5132
          %v5391 = vmul.f32 %v3354, %v5133
          %v5392 = vmul.f32 %v3355, %v5134
          %v5393 = vmul.f32 %v3356, %v5135
          %v5394 = vmul.f32 %v3357, %v5136
          %v5395 = vmul.f32 %v3358, %v5137
          %v5396 = vmul.f32 %v3359, %v5138
          %v5397 = vmul.f32 %v3360, %v5139
          %v5398 = vmul.f32 %v3361, %v5140
          %v5399 = vmul.f32 %v3362, %v5141
          %v5400 = vmul.f32 %v3363, %v5142
          %v5401 = vmul.f32 %v3364, %v5143
          %v5402 = vmul.f32 %v3365, %v5144
          %v5403 = vmul.f32 %v3366, %v5145
          %v5404 = vmul.f32 %v3367, %v5146
          %v5405 = vmul.f32 %v3368, %v5243
          %v5406 = vmul.f32 %v3369, %v5244
          %v5407 = vmul.f32 %v3370, %v5245
          %v5408 = vmul.f32 %v3371, %v5246
          %v5409 = vmul.f32 %v3372, %v5247
          %v5410 = vmul.f32 %v3373, %v5248
          %v5411 = vmul.f32 %v3374, %v5249
          %v5412 = vmul.f32 %v3375, %v5250
          %v5413 = vmul.f32 %v3376, %v5251
          %v5414 = vmul.f32 %v3377, %v5252
          %v5415 = vmul.f32 %v3378, %v5253
          %v5416 = vmul.f32 %v3379, %v5254
          %v5417 = vmul.f32 %v3380, %v5255
          %v5418 = vmul.f32 %v3381, %v5256
          %v5419 = vmul.f32 %v3382, %v5257
          %v5420 = vmul.f32 %v3383, %v5258
          %v5421 = vmul.f32 %v3384, %v5259
          %v5422 = vmul.f32 %v3385, %v5260
          %v5423 = vmul.f32 %v3386, %v5261
          %v5424 = vmul.f32 %v3387, %v5262
          %v5425 = vmul.f32 %v3388, %v5263
          %v5426 = vmul.f32 %v3389, %v5264
          %v5427 = vmul.f32 %v3390, %v5265
          %v5428 = vmul.f32 %v3391, %v5266
          %v5429 = vsub.f32 %v5381, %v5405
          %v5430 = vsub.f32 %v5382, %v5406
          %v5431 = vsub.f32 %v5383, %v5407
          %v5432 = vsub.f32 %v5384, %v5408
          %v5433 = vsub.f32 %v5385, %v5409
          %v5434 = vsub.f32 %v5386, %v5410
          %v5435 = vsub.f32 %v5387, %v5411
          %v5436 = vsub.f32 %v5388, %v5412
          %v5437 = vsub.f32 %v5389, %v5413
          %v5438 = vsub.f32 %v5390, %v5414
          %v5439 = vsub.f32 %v5391, %v5415
          %v5440 = vsub.f32 %v5392, %v5416
          %v5441 = vsub.f32 %v5393, %v5417
          %v5442 = vsub.f32 %v5394, %v5418
          %v5443 = vsub.f32 %v5395, %v5419
          %v5444 = vsub.f32 %v5396, %v5420
          %v5445 = vsub.f32 %v5397, %v5421
          %v5446 = vsub.f32 %v5398, %v5422
          %v5447 = vsub.f32 %v5399, %v5423
          %v5448 = vsub.f32 %v5400, %v5424
          %v5449 = vsub.f32 %v5401, %v5425
          %v5450 = vsub.f32 %v5402, %v5426
          %v5451 = vsub.f32 %v5403, %v5427
          %v5452 = vsub.f32 %v5404, %v5428
          %v5453 = vlaneseq
          %v5454 = vshrl.u32 %v5453, 7
          %v5455 = vsub.s32 5, %v5454
          %v5456 = vrot.slane %v3500, %v5455
          %v5457 = vlaneseq
          %v5458 = vshrl.u32 %v5457, 7
          %v5459 = vsub.s32 5, %v5458
          %v5460 = vrot.slane %v3501, %v5459
          %v5461 = vlaneseq
          %v5462 = vshrl.u32 %v5461, 7
          %v5463 = vsub.s32 5, %v5462
          %v5464 = vrot.slane %v3502, %v5463
          %v5465 = vmul.f32 %v3392, %v5456
          %v5466 = vmul.f32 %v3393, %v5460
          %v5467 = vmul.f32 %v3394, %v5464
          %v5468 = vmul.f32 %v3395, %v5456
          %v5469 = vmul.f32 %v3396, %v5460
          %v5470 = vmul.f32 %v3397, %v5464
          %v5471 = vmul.f32 %v3398, %v5456
          %v5472 = vmul.f32 %v3399, %v5460
          %v5473 = vmul.f32 %v3400, %v5464
          %v5474 = vmul.f32 %v3401, %v5456
          %v5475 = vmul.f32 %v3402, %v5460
          %v5476 = vmul.f32 %v3403, %v5464
          %v5477 = vmul.f32 %v3404, %v5456
          %v5478 = vmul.f32 %v3405, %v5460
          %v5479 = vmul.f32 %v3406, %v5464
          %v5480 = vmul.f32 %v3407, %v5456
          %v5481 = vmul.f32 %v3408, %v5460
          %v5482 = vmul.f32 %v3409, %v5464
          %v5483 = vmul.f32 %v3410, %v5456
          %v5484 = vmul.f32 %v3411, %v5460
          %v5485 = vmul.f32 %v3412, %v5464
          %v5486 = vmul.f32 %v3413, %v5456
          %v5487 = vmul.f32 %v3414, %v5460
          %v5488 = vmul.f32 %v3415, %v5464
          %v5489 = vadd.f32 %v5429, %v5465
          %v5490 = vadd.f32 %v5430, %v5466
          %v5491 = vadd.f32 %v5431, %v5467
          %v5492 = vadd.f32 %v5432, %v5468
          %v5493 = vadd.f32 %v5433, %v5469
          %v5494 = vadd.f32 %v5434, %v5470
          %v5495 = vadd.f32 %v5435, %v5471
          %v5496 = vadd.f32 %v5436, %v5472
          %v5497 = vadd.f32 %v5437, %v5473
          %v5498 = vadd.f32 %v5438, %v5474
          %v5499 = vadd.f32 %v5439, %v5475
          %v5500 = vadd.f32 %v5440, %v5476
          %v5501 = vadd.f32 %v5441, %v5477
          %v5502 = vadd.f32 %v5442, %v5478
          %v5503 = vadd.f32 %v5443, %v5479
          %v5504 = vadd.f32 %v5444, %v5480
          %v5505 = vadd.f32 %v5445, %v5481
          %v5506 = vadd.f32 %v5446, %v5482
          %v5507 = vadd.f32 %v5447, %v5483
          %v5508 = vadd.f32 %v5448, %v5484
          %v5509 = vadd.f32 %v5449, %v5485
          %v5510 = vadd.f32 %v5450, %v5486
          %v5511 = vadd.f32 %v5451, %v5487
          %v5512 = vadd.f32 %v5452, %v5488
          %v5513 = vmul.f32 %v3344, %v5243
          %v5514 = vmul.f32 %v3345, %v5244
          %v5515 = vmul.f32 %v3346, %v5245
          %v5516 = vmul.f32 %v3347, %v5246
          %v5517 = vmul.f32 %v3348, %v5247
          %v5518 = vmul.f32 %v3349, %v5248
          %v5519 = vmul.f32 %v3350, %v5249
          %v5520 = vmul.f32 %v3351, %v5250
          %v5521 = vmul.f32 %v3352, %v5251
          %v5522 = vmul.f32 %v3353, %v5252
          %v5523 = vmul.f32 %v3354, %v5253
          %v5524 = vmul.f32 %v3355, %v5254
          %v5525 = vmul.f32 %v3356, %v5255
          %v5526 = vmul.f32 %v3357, %v5256
          %v5527 = vmul.f32 %v3358, %v5257
          %v5528 = vmul.f32 %v3359, %v5258
          %v5529 = vmul.f32 %v3360, %v5259
          %v5530 = vmul.f32 %v3361, %v5260
          %v5531 = vmul.f32 %v3362, %v5261
          %v5532 = vmul.f32 %v3363, %v5262
          %v5533 = vmul.f32 %v3364, %v5263
          %v5534 = vmul.f32 %v3365, %v5264
          %v5535 = vmul.f32 %v3366, %v5265
          %v5536 = vmul.f32 %v3367, %v5266
          %v5537 = vmul.f32 %v3368, %v5123
          %v5538 = vmul.f32 %v3369, %v5124
          %v5539 = vmul.f32 %v3370, %v5125
          %v5540 = vmul.f32 %v3371, %v5126
          %v5541 = vmul.f32 %v3372, %v5127
          %v5542 = vmul.f32 %v3373, %v5128
          %v5543 = vmul.f32 %v3374, %v5129
          %v5544 = vmul.f32 %v3375, %v5130
          %v5545 = vmul.f32 %v3376, %v5131
          %v5546 = vmul.f32 %v3377, %v5132
          %v5547 = vmul.f32 %v3378, %v5133
          %v5548 = vmul.f32 %v3379, %v5134
          %v5549 = vmul.f32 %v3380, %v5135
          %v5550 = vmul.f32 %v3381, %v5136
          %v5551 = vmul.f32 %v3382, %v5137
          %v5552 = vmul.f32 %v3383, %v5138
          %v5553 = vmul.f32 %v3384, %v5139
          %v5554 = vmul.f32 %v3385, %v5140
          %v5555 = vmul.f32 %v3386, %v5141
          %v5556 = vmul.f32 %v3387, %v5142
          %v5557 = vmul.f32 %v3388, %v5143
          %v5558 = vmul.f32 %v3389, %v5144
          %v5559 = vmul.f32 %v3390, %v5145
          %v5560 = vmul.f32 %v3391, %v5146
          %v5561 = vadd.f32 %v5513, %v5537
          %v5562 = vadd.f32 %v5514, %v5538
          %v5563 = vadd.f32 %v5515, %v5539
          %v5564 = vadd.f32 %v5516, %v5540
          %v5565 = vadd.f32 %v5517, %v5541
          %v5566 = vadd.f32 %v5518, %v5542
          %v5567 = vadd.f32 %v5519, %v5543
          %v5568 = vadd.f32 %v5520, %v5544
          %v5569 = vadd.f32 %v5521, %v5545
          %v5570 = vadd.f32 %v5522, %v5546
          %v5571 = vadd.f32 %v5523, %v5547
          %v5572 = vadd.f32 %v5524, %v5548
          %v5573 = vadd.f32 %v5525, %v5549
          %v5574 = vadd.f32 %v5526, %v5550
          %v5575 = vadd.f32 %v5527, %v5551
          %v5576 = vadd.f32 %v5528, %v5552
          %v5577 = vadd.f32 %v5529, %v5553
          %v5578 = vadd.f32 %v5530, %v5554
          %v5579 = vadd.f32 %v5531, %v5555
          %v5580 = vadd.f32 %v5532, %v5556
          %v5581 = vadd.f32 %v5533, %v5557
          %v5582 = vadd.f32 %v5534, %v5558
          %v5583 = vadd.f32 %v5535, %v5559
          %v5584 = vadd.f32 %v5536, %v5560
          %v5585 = vmul.f32 %v3416, %v5456
          %v5586 = vmul.f32 %v3417, %v5460
          %v5587 = vmul.f32 %v3418, %v5464
          %v5588 = vmul.f32 %v3419, %v5456
          %v5589 = vmul.f32 %v3420, %v5460
          %v5590 = vmul.f32 %v3421, %v5464
          %v5591 = vmul.f32 %v3422, %v5456
          %v5592 = vmul.f32 %v3423, %v5460
          %v5593 = vmul.f32 %v3424, %v5464
          %v5594 = vmul.f32 %v3425, %v5456
          %v5595 = vmul.f32 %v3426, %v5460
          %v5596 = vmul.f32 %v3427, %v5464
          %v5597 = vmul.f32 %v3428, %v5456
          %v5598 = vmul.f32 %v3429, %v5460
          %v5599 = vmul.f32 %v3430, %v5464
          %v5600 = vmul.f32 %v3431, %v5456
          %v5601 = vmul.f32 %v3432, %v5460
          %v5602 = vmul.f32 %v3433, %v5464
          %v5603 = vmul.f32 %v3434, %v5456
          %v5604 = vmul.f32 %v3435, %v5460
          %v5605 = vmul.f32 %v3436, %v5464
          %v5606 = vmul.f32 %v3437, %v5456
          %v5607 = vmul.f32 %v3438, %v5460
          %v5608 = vmul.f32 %v3439, %v5464
          %v5609 = vadd.f32 %v5561, %v5585
          %v5610 = vadd.f32 %v5562, %v5586
          %v5611 = vadd.f32 %v5563, %v5587
          %v5612 = vadd.f32 %v5564, %v5588
          %v5613 = vadd.f32 %v5565, %v5589
          %v5614 = vadd.f32 %v5566, %v5590
          %v5615 = vadd.f32 %v5567, %v5591
          %v5616 = vadd.f32 %v5568, %v5592
          %v5617 = vadd.f32 %v5569, %v5593
          %v5618 = vadd.f32 %v5570, %v5594
          %v5619 = vadd.f32 %v5571, %v5595
          %v5620 = vadd.f32 %v5572, %v5596
          %v5621 = vadd.f32 %v5573, %v5597
          %v5622 = vadd.f32 %v5574, %v5598
          %v5623 = vadd.f32 %v5575, %v5599
          %v5624 = vadd.f32 %v5576, %v5600
          %v5625 = vadd.f32 %v5577, %v5601
          %v5626 = vadd.f32 %v5578, %v5602
          %v5627 = vadd.f32 %v5579, %v5603
          %v5628 = vadd.f32 %v5580, %v5604
          %v5629 = vadd.f32 %v5581, %v5605
          %v5630 = vadd.f32 %v5582, %v5606
          %v5631 = vadd.f32 %v5583, %v5607
          %v5632 = vadd.f32 %v5584, %v5608
          %v5633 = vmul.f32 %v3440, %v5489
          %v5634 = vmul.f32 %v3441, %v5490
          %v5635 = vmul.f32 %v3442, %v5491
          %v5636 = vmul.f32 %v3443, %v5492
          %v5637 = vmul.f32 %v3444, %v5493
          %v5638 = vmul.f32 %v3445, %v5494
          %v5639 = vmul.f32 %v3446, %v5495
          %v5640 = vmul.f32 %v3447, %v5496
          %v5641 = vmul.f32 %v3448, %v5497
          %v5642 = vmul.f32 %v3449, %v5498
          %v5643 = vmul.f32 %v3450, %v5499
          %v5644 = vmul.f32 %v3451, %v5500
          %v5645 = vmul.f32 %v3452, %v5501
          %v5646 = vmul.f32 %v3453, %v5502
          %v5647 = vmul.f32 %v3454, %v5503
          %v5648 = vmul.f32 %v3455, %v5504
          %v5649 = vmul.f32 %v3456, %v5505
          %v5650 = vmul.f32 %v3457, %v5506
          %v5651 = vmul.f32 %v3458, %v5507
          %v5652 = vmul.f32 %v3459, %v5508
          %v5653 = vmul.f32 %v3460, %v5509
          %v5654 = vmul.f32 %v3461, %v5510
          %v5655 = vmul.f32 %v3462, %v5511
          %v5656 = vmul.f32 %v3463, %v5512
          %v5657 = vmul.f32 %v3464, %v5609
          %v5658 = vmul.f32 %v3465, %v5610
          %v5659 = vmul.f32 %v3466, %v5611
          %v5660 = vmul.f32 %v3467, %v5612
          %v5661 = vmul.f32 %v3468, %v5613
          %v5662 = vmul.f32 %v3469, %v5614
          %v5663 = vmul.f32 %v3470, %v5615
          %v5664 = vmul.f32 %v3471, %v5616
          %v5665 = vmul.f32 %v3472, %v5617
          %v5666 = vmul.f32 %v3473, %v5618
          %v5667 = vmul.f32 %v3474, %v5619
          %v5668 = vmul.f32 %v3475, %v5620
          %v5669 = vmul.f32 %v3476, %v5621
          %v5670 = vmul.f32 %v3477, %v5622
          %v5671 = vmul.f32 %v3478, %v5623
          %v5672 = vmul.f32 %v3479, %v5624
          %v5673 = vmul.f32 %v3480, %v5625
          %v5674 = vmul.f32 %v3481, %v5626
          %v5675 = vmul.f32 %v3482, %v5627
          %v5676 = vmul.f32 %v3483, %v5628
          %v5677 = vmul.f32 %v3484, %v5629
          %v5678 = vmul.f32 %v3485, %v5630
          %v5679 = vmul.f32 %v3486, %v5631
          %v5680 = vmul.f32 %v3487, %v5632
          %v5681 = vsub.f32 %v5633, %v5657
          %v5682 = vsub.f32 %v5634, %v5658
          %v5683 = vsub.f32 %v5635, %v5659
          %v5684 = vsub.f32 %v5636, %v5660
          %v5685 = vsub.f32 %v5637, %v5661
          %v5686 = vsub.f32 %v5638, %v5662
          %v5687 = vsub.f32 %v5639, %v5663
          %v5688 = vsub.f32 %v5640, %v5664
          %v5689 = vsub.f32 %v5641, %v5665
          %v5690 = vsub.f32 %v5642, %v5666
          %v5691 = vsub.f32 %v5643, %v5667
          %v5692 = vsub.f32 %v5644, %v5668
          %v5693 = vsub.f32 %v5645, %v5669
          %v5694 = vsub.f32 %v5646, %v5670
          %v5695 = vsub.f32 %v5647, %v5671
          %v5696 = vsub.f32 %v5648, %v5672
          %v5697 = vsub.f32 %v5649, %v5673
          %v5698 = vsub.f32 %v5650, %v5674
          %v5699 = vsub.f32 %v5651, %v5675
          %v5700 = vsub.f32 %v5652, %v5676
          %v5701 = vsub.f32 %v5653, %v5677
          %v5702 = vsub.f32 %v5654, %v5678
          %v5703 = vsub.f32 %v5655, %v5679
          %v5704 = vsub.f32 %v5656, %v5680
          %v5705 = vadd.f32 %v5681, %v5684
          %v5706 = vadd.f32 %v5705, %v5687
          %v5707 = vadd.f32 %v5706, %v5690
          %v5708 = vadd.f32 %v5707, %v5693
          %v5709 = vadd.f32 %v5708, %v5696
          %v5710 = vadd.f32 %v5709, %v5699
          %v5711 = vadd.f32 %v5710, %v5702
          %v5712 = vrot.slane %v5711, 4
          %v5713 = vadd.f32 %v5711, %v5712
          %v5714 = vrot.slane %v5713, 2
          %v5715 = vadd.f32 %v5713, %v5714
          %v5716 = vrot.slane %v5715, 1
          %v5717 = vadd.f32 %v5715, %v5716
          %v5718 = vadd.f32 %v5682, %v5685
          %v5719 = vadd.f32 %v5718, %v5688
          %v5720 = vadd.f32 %v5719, %v5691
          %v5721 = vadd.f32 %v5720, %v5694
          %v5722 = vadd.f32 %v5721, %v5697
          %v5723 = vadd.f32 %v5722, %v5700
          %v5724 = vadd.f32 %v5723, %v5703
          %v5725 = vrot.slane %v5724, 4
          %v5726 = vadd.f32 %v5724, %v5725
          %v5727 = vrot.slane %v5726, 2
          %v5728 = vadd.f32 %v5726, %v5727
          %v5729 = vrot.slane %v5728, 1
          %v5730 = vadd.f32 %v5728, %v5729
          %v5731 = vadd.f32 %v5683, %v5686
          %v5732 = vadd.f32 %v5731, %v5689
          %v5733 = vadd.f32 %v5732, %v5692
          %v5734 = vadd.f32 %v5733, %v5695
          %v5735 = vadd.f32 %v5734, %v5698
          %v5736 = vadd.f32 %v5735, %v5701
          %v5737 = vadd.f32 %v5736, %v5704
          %v5738 = vrot.slane %v5737, 4
          %v5739 = vadd.f32 %v5737, %v5738
          %v5740 = vrot.slane %v5739, 2
          %v5741 = vadd.f32 %v5739, %v5740
          %v5742 = vrot.slane %v5741, 1
          %v5743 = vadd.f32 %v5741, %v5742
          %v5744 = vmul.f32 %v5717, 2.0
          %v5745 = vmul.f32 %v5730, 2.0
          %v5746 = vmul.f32 %v5743, 2.0
          %v5747 = vmul.f32 %v3344, %v5489
          %v5748 = vmul.f32 %v3345, %v5490
          %v5749 = vmul.f32 %v3346, %v5491
          %v5750 = vmul.f32 %v3347, %v5492
          %v5751 = vmul.f32 %v3348, %v5493
          %v5752 = vmul.f32 %v3349, %v5494
          %v5753 = vmul.f32 %v3350, %v5495
          %v5754 = vmul.f32 %v3351, %v5496
          %v5755 = vmul.f32 %v3352, %v5497
          %v5756 = vmul.f32 %v3353, %v5498
          %v5757 = vmul.f32 %v3354, %v5499
          %v5758 = vmul.f32 %v3355, %v5500
          %v5759 = vmul.f32 %v3356, %v5501
          %v5760 = vmul.f32 %v3357, %v5502
          %v5761 = vmul.f32 %v3358, %v5503
          %v5762 = vmul.f32 %v3359, %v5504
          %v5763 = vmul.f32 %v3360, %v5505
          %v5764 = vmul.f32 %v3361, %v5506
          %v5765 = vmul.f32 %v3362, %v5507
          %v5766 = vmul.f32 %v3363, %v5508
          %v5767 = vmul.f32 %v3364, %v5509
          %v5768 = vmul.f32 %v3365, %v5510
          %v5769 = vmul.f32 %v3366, %v5511
          %v5770 = vmul.f32 %v3367, %v5512
          %v5771 = vmul.f32 %v3368, %v5609
          %v5772 = vmul.f32 %v3369, %v5610
          %v5773 = vmul.f32 %v3370, %v5611
          %v5774 = vmul.f32 %v3371, %v5612
          %v5775 = vmul.f32 %v3372, %v5613
          %v5776 = vmul.f32 %v3373, %v5614
          %v5777 = vmul.f32 %v3374, %v5615
          %v5778 = vmul.f32 %v3375, %v5616
          %v5779 = vmul.f32 %v3376, %v5617
          %v5780 = vmul.f32 %v3377, %v5618
          %v5781 = vmul.f32 %v3378, %v5619
          %v5782 = vmul.f32 %v3379, %v5620
          %v5783 = vmul.f32 %v3380, %v5621
          %v5784 = vmul.f32 %v3381, %v5622
          %v5785 = vmul.f32 %v3382, %v5623
          %v5786 = vmul.f32 %v3383, %v5624
          %v5787 = vmul.f32 %v3384, %v5625
          %v5788 = vmul.f32 %v3385, %v5626
          %v5789 = vmul.f32 %v3386, %v5627
          %v5790 = vmul.f32 %v3387, %v5628
          %v5791 = vmul.f32 %v3388, %v5629
          %v5792 = vmul.f32 %v3389, %v5630
          %v5793 = vmul.f32 %v3390, %v5631
          %v5794 = vmul.f32 %v3391, %v5632
          %v5795 = vsub.f32 %v5747, %v5771
          %v5796 = vsub.f32 %v5748, %v5772
          %v5797 = vsub.f32 %v5749, %v5773
          %v5798 = vsub.f32 %v5750, %v5774
          %v5799 = vsub.f32 %v5751, %v5775
          %v5800 = vsub.f32 %v5752, %v5776
          %v5801 = vsub.f32 %v5753, %v5777
          %v5802 = vsub.f32 %v5754, %v5778
          %v5803 = vsub.f32 %v5755, %v5779
          %v5804 = vsub.f32 %v5756, %v5780
          %v5805 = vsub.f32 %v5757, %v5781
          %v5806 = vsub.f32 %v5758, %v5782
          %v5807 = vsub.f32 %v5759, %v5783
          %v5808 = vsub.f32 %v5760, %v5784
          %v5809 = vsub.f32 %v5761, %v5785
          %v5810 = vsub.f32 %v5762, %v5786
          %v5811 = vsub.f32 %v5763, %v5787
          %v5812 = vsub.f32 %v5764, %v5788
          %v5813 = vsub.f32 %v5765, %v5789
          %v5814 = vsub.f32 %v5766, %v5790
          %v5815 = vsub.f32 %v5767, %v5791
          %v5816 = vsub.f32 %v5768, %v5792
          %v5817 = vsub.f32 %v5769, %v5793
          %v5818 = vsub.f32 %v5770, %v5794
          %v5819 = vlaneseq
          %v5820 = vshrl.u32 %v5819, 7
          %v5821 = vsub.s32 6, %v5820
          %v5822 = vrot.slane %v3500, %v5821
          %v5823 = vlaneseq
          %v5824 = vshrl.u32 %v5823, 7
          %v5825 = vsub.s32 6, %v5824
          %v5826 = vrot.slane %v3501, %v5825
          %v5827 = vlaneseq
          %v5828 = vshrl.u32 %v5827, 7
          %v5829 = vsub.s32 6, %v5828
          %v5830 = vrot.slane %v3502, %v5829
          %v5831 = vmul.f32 %v3392, %v5822
          %v5832 = vmul.f32 %v3393, %v5826
          %v5833 = vmul.f32 %v3394, %v5830
          %v5834 = vmul.f32 %v3395, %v5822
          %v5835 = vmul.f32 %v3396, %v5826
          %v5836 = vmul.f32 %v3397, %v5830
          %v5837 = vmul.f32 %v3398, %v5822
          %v5838 = vmul.f32 %v3399, %v5826
          %v5839 = vmul.f32 %v3400, %v5830
          %v5840 = vmul.f32 %v3401, %v5822
          %v5841 = vmul.f32 %v3402, %v5826
          %v5842 = vmul.f32 %v3403, %v5830
          %v5843 = vmul.f32 %v3404, %v5822
          %v5844 = vmul.f32 %v3405, %v5826
          %v5845 = vmul.f32 %v3406, %v5830
          %v5846 = vmul.f32 %v3407, %v5822
          %v5847 = vmul.f32 %v3408, %v5826
          %v5848 = vmul.f32 %v3409, %v5830
          %v5849 = vmul.f32 %v3410, %v5822
          %v5850 = vmul.f32 %v3411, %v5826
          %v5851 = vmul.f32 %v3412, %v5830
          %v5852 = vmul.f32 %v3413, %v5822
          %v5853 = vmul.f32 %v3414, %v5826
          %v5854 = vmul.f32 %v3415, %v5830
          %v5855 = vadd.f32 %v5795, %v5831
          %v5856 = vadd.f32 %v5796, %v5832
          %v5857 = vadd.f32 %v5797, %v5833
          %v5858 = vadd.f32 %v5798, %v5834
          %v5859 = vadd.f32 %v5799, %v5835
          %v5860 = vadd.f32 %v5800, %v5836
          %v5861 = vadd.f32 %v5801, %v5837
          %v5862 = vadd.f32 %v5802, %v5838
          %v5863 = vadd.f32 %v5803, %v5839
          %v5864 = vadd.f32 %v5804, %v5840
          %v5865 = vadd.f32 %v5805, %v5841
          %v5866 = vadd.f32 %v5806, %v5842
          %v5867 = vadd.f32 %v5807, %v5843
          %v5868 = vadd.f32 %v5808, %v5844
          %v5869 = vadd.f32 %v5809, %v5845
          %v5870 = vadd.f32 %v5810, %v5846
          %v5871 = vadd.f32 %v5811, %v5847
          %v5872 = vadd.f32 %v5812, %v5848
          %v5873 = vadd.f32 %v5813, %v5849
          %v5874 = vadd.f32 %v5814, %v5850
          %v5875 = vadd.f32 %v5815, %v5851
          %v5876 = vadd.f32 %v5816, %v5852
          %v5877 = vadd.f32 %v5817, %v5853
          %v5878 = vadd.f32 %v5818, %v5854
          %v5879 = vmul.f32 %v3344, %v5609
          %v5880 = vmul.f32 %v3345, %v5610
          %v5881 = vmul.f32 %v3346, %v5611
          %v5882 = vmul.f32 %v3347, %v5612
          %v5883 = vmul.f32 %v3348, %v5613
          %v5884 = vmul.f32 %v3349, %v5614
          %v5885 = vmul.f32 %v3350, %v5615
          %v5886 = vmul.f32 %v3351, %v5616
          %v5887 = vmul.f32 %v3352, %v5617
          %v5888 = vmul.f32 %v3353, %v5618
          %v5889 = vmul.f32 %v3354, %v5619
          %v5890 = vmul.f32 %v3355, %v5620
          %v5891 = vmul.f32 %v3356, %v5621
          %v5892 = vmul.f32 %v3357, %v5622
          %v5893 = vmul.f32 %v3358, %v5623
          %v5894 = vmul.f32 %v3359, %v5624
          %v5895 = vmul.f32 %v3360, %v5625
          %v5896 = vmul.f32 %v3361, %v5626
          %v5897 = vmul.f32 %v3362, %v5627
          %v5898 = vmul.f32 %v3363, %v5628
          %v5899 = vmul.f32 %v3364, %v5629
          %v5900 = vmul.f32 %v3365, %v5630
          %v5901 = vmul.f32 %v3366, %v5631
          %v5902 = vmul.f32 %v3367, %v5632
          %v5903 = vmul.f32 %v3368, %v5489
          %v5904 = vmul.f32 %v3369, %v5490
          %v5905 = vmul.f32 %v3370, %v5491
          %v5906 = vmul.f32 %v3371, %v5492
          %v5907 = vmul.f32 %v3372, %v5493
          %v5908 = vmul.f32 %v3373, %v5494
          %v5909 = vmul.f32 %v3374, %v5495
          %v5910 = vmul.f32 %v3375, %v5496
          %v5911 = vmul.f32 %v3376, %v5497
          %v5912 = vmul.f32 %v3377, %v5498
          %v5913 = vmul.f32 %v3378, %v5499
          %v5914 = vmul.f32 %v3379, %v5500
          %v5915 = vmul.f32 %v3380, %v5501
          %v5916 = vmul.f32 %v3381, %v5502
          %v5917 = vmul.f32 %v3382, %v5503
          %v5918 = vmul.f32 %v3383, %v5504
          %v5919 = vmul.f32 %v3384, %v5505
          %v5920 = vmul.f32 %v3385, %v5506
          %v5921 = vmul.f32 %v3386, %v5507
          %v5922 = vmul.f32 %v3387, %v5508
          %v5923 = vmul.f32 %v3388, %v5509
          %v5924 = vmul.f32 %v3389, %v5510
          %v5925 = vmul.f32 %v3390, %v5511
          %v5926 = vmul.f32 %v3391, %v5512
          %v5927 = vadd.f32 %v5879, %v5903
          %v5928 = vadd.f32 %v5880, %v5904
          %v5929 = vadd.f32 %v5881, %v5905
          %v5930 = vadd.f32 %v5882, %v5906
          %v5931 = vadd.f32 %v5883, %v5907
          %v5932 = vadd.f32 %v5884, %v5908
          %v5933 = vadd.f32 %v5885, %v5909
          %v5934 = vadd.f32 %v5886, %v5910
          %v5935 = vadd.f32 %v5887, %v5911
          %v5936 = vadd.f32 %v5888, %v5912
          %v5937 = vadd.f32 %v5889, %v5913
          %v5938 = vadd.f32 %v5890, %v5914
          %v5939 = vadd.f32 %v5891, %v5915
          %v5940 = vadd.f32 %v5892, %v5916
          %v5941 = vadd.f32 %v5893, %v5917
          %v5942 = vadd.f32 %v5894, %v5918
          %v5943 = vadd.f32 %v5895, %v5919
          %v5944 = vadd.f32 %v5896, %v5920
          %v5945 = vadd.f32 %v5897, %v5921
          %v5946 = vadd.f32 %v5898, %v5922
          %v5947 = vadd.f32 %v5899, %v5923
          %v5948 = vadd.f32 %v5900, %v5924
          %v5949 = vadd.f32 %v5901, %v5925
          %v5950 = vadd.f32 %v5902, %v5926
          %v5951 = vmul.f32 %v3416, %v5822
          %v5952 = vmul.f32 %v3417, %v5826
          %v5953 = vmul.f32 %v3418, %v5830
          %v5954 = vmul.f32 %v3419, %v5822
          %v5955 = vmul.f32 %v3420, %v5826
          %v5956 = vmul.f32 %v3421, %v5830
          %v5957 = vmul.f32 %v3422, %v5822
          %v5958 = vmul.f32 %v3423, %v5826
          %v5959 = vmul.f32 %v3424, %v5830
          %v5960 = vmul.f32 %v3425, %v5822
          %v5961 = vmul.f32 %v3426, %v5826
          %v5962 = vmul.f32 %v3427, %v5830
          %v5963 = vmul.f32 %v3428, %v5822
          %v5964 = vmul.f32 %v3429, %v5826
          %v5965 = vmul.f32 %v3430, %v5830
          %v5966 = vmul.f32 %v3431, %v5822
          %v5967 = vmul.f32 %v3432, %v5826
          %v5968 = vmul.f32 %v3433, %v5830
          %v5969 = vmul.f32 %v3434, %v5822
          %v5970 = vmul.f32 %v3435, %v5826
          %v5971 = vmul.f32 %v3436, %v5830
          %v5972 = vmul.f32 %v3437, %v5822
          %v5973 = vmul.f32 %v3438, %v5826
          %v5974 = vmul.f32 %v3439, %v5830
          %v5975 = vadd.f32 %v5927, %v5951
          %v5976 = vadd.f32 %v5928, %v5952
          %v5977 = vadd.f32 %v5929, %v5953
          %v5978 = vadd.f32 %v5930, %v5954
          %v5979 = vadd.f32 %v5931, %v5955
          %v5980 = vadd.f32 %v5932, %v5956
          %v5981 = vadd.f32 %v5933, %v5957
          %v5982 = vadd.f32 %v5934, %v5958
          %v5983 = vadd.f32 %v5935, %v5959
          %v5984 = vadd.f32 %v5936, %v5960
          %v5985 = vadd.f32 %v5937, %v5961
          %v5986 = vadd.f32 %v5938, %v5962
          %v5987 = vadd.f32 %v5939, %v5963
          %v5988 = vadd.f32 %v5940, %v5964
          %v5989 = vadd.f32 %v5941, %v5965
          %v5990 = vadd.f32 %v5942, %v5966
          %v5991 = vadd.f32 %v5943, %v5967
          %v5992 = vadd.f32 %v5944, %v5968
          %v5993 = vadd.f32 %v5945, %v5969
          %v5994 = vadd.f32 %v5946, %v5970
          %v5995 = vadd.f32 %v5947, %v5971
          %v5996 = vadd.f32 %v5948, %v5972
          %v5997 = vadd.f32 %v5949, %v5973
          %v5998 = vadd.f32 %v5950, %v5974
          %v5999 = vmul.f32 %v3440, %v5855
          %v6000 = vmul.f32 %v3441, %v5856
          %v6001 = vmul.f32 %v3442, %v5857
          %v6002 = vmul.f32 %v3443, %v5858
          %v6003 = vmul.f32 %v3444, %v5859
          %v6004 = vmul.f32 %v3445, %v5860
          %v6005 = vmul.f32 %v3446, %v5861
          %v6006 = vmul.f32 %v3447, %v5862
          %v6007 = vmul.f32 %v3448, %v5863
          %v6008 = vmul.f32 %v3449, %v5864
          %v6009 = vmul.f32 %v3450, %v5865
          %v6010 = vmul.f32 %v3451, %v5866
          %v6011 = vmul.f32 %v3452, %v5867
          %v6012 = vmul.f32 %v3453, %v5868
          %v6013 = vmul.f32 %v3454, %v5869
          %v6014 = vmul.f32 %v3455, %v5870
          %v6015 = vmul.f32 %v3456, %v5871
          %v6016 = vmul.f32 %v3457, %v5872
          %v6017 = vmul.f32 %v3458, %v5873
          %v6018 = vmul.f32 %v3459, %v5874
          %v6019 = vmul.f32 %v3460, %v5875
          %v6020 = vmul.f32 %v3461, %v5876
          %v6021 = vmul.f32 %v3462, %v5877
          %v6022 = vmul.f32 %v3463, %v5878
          %v6023 = vmul.f32 %v3464, %v5975
          %v6024 = vmul.f32 %v3465, %v5976
          %v6025 = vmul.f32 %v3466, %v5977
          %v6026 = vmul.f32 %v3467, %v5978
          %v6027 = vmul.f32 %v3468, %v5979
          %v6028 = vmul.f32 %v3469, %v5980
          %v6029 = vmul.f32 %v3470, %v5981
          %v6030 = vmul.f32 %v3471, %v5982
          %v6031 = vmul.f32 %v3472, %v5983
          %v6032 = vmul.f32 %v3473, %v5984
          %v6033 = vmul.f32 %v3474, %v5985
          %v6034 = vmul.f32 %v3475, %v5986
          %v6035 = vmul.f32 %v3476, %v5987
          %v6036 = vmul.f32 %v3477, %v5988
          %v6037 = vmul.f32 %v3478, %v5989
          %v6038 = vmul.f32 %v3479, %v5990
          %v6039 = vmul.f32 %v3480, %v5991
          %v6040 = vmul.f32 %v3481, %v5992
          %v6041 = vmul.f32 %v3482, %v5993
          %v6042 = vmul.f32 %v3483, %v5994
          %v6043 = vmul.f32 %v3484, %v5995
          %v6044 = vmul.f32 %v3485, %v5996
          %v6045 = vmul.f32 %v3486, %v5997
          %v6046 = vmul.f32 %v3487, %v5998
          %v6047 = vsub.f32 %v5999, %v6023
          %v6048 = vsub.f32 %v6000, %v6024
          %v6049 = vsub.f32 %v6001, %v6025
          %v6050 = vsub.f32 %v6002, %v6026
          %v6051 = vsub.f32 %v6003, %v6027
          %v6052 = vsub.f32 %v6004, %v6028
          %v6053 = vsub.f32 %v6005, %v6029
          %v6054 = vsub.f32 %v6006, %v6030
          %v6055 = vsub.f32 %v6007, %v6031
          %v6056 = vsub.f32 %v6008, %v6032
          %v6057 = vsub.f32 %v6009, %v6033
          %v6058 = vsub.f32 %v6010, %v6034
          %v6059 = vsub.f32 %v6011, %v6035
          %v6060 = vsub.f32 %v6012, %v6036
          %v6061 = vsub.f32 %v6013, %v6037
          %v6062 = vsub.f32 %v6014, %v6038
          %v6063 = vsub.f32 %v6015, %v6039
          %v6064 = vsub.f32 %v6016, %v6040
          %v6065 = vsub.f32 %v6017, %v6041
          %v6066 = vsub.f32 %v6018, %v6042
          %v6067 = vsub.f32 %v6019, %v6043
          %v6068 = vsub.f32 %v6020, %v6044
          %v6069 = vsub.f32 %v6021, %v6045
          %v6070 = vsub.f32 %v6022, %v6046
          %v6071 = vadd.f32 %v6047, %v6050
          %v6072 = vadd.f32 %v6071, %v6053
          %v6073 = vadd.f32 %v6072, %v6056
          %v6074 = vadd.f32 %v6073, %v6059
          %v6075 = vadd.f32 %v6074, %v6062
          %v6076 = vadd.f32 %v6075, %v6065
          %v6077 = vadd.f32 %v6076, %v6068
          %v6078 = vrot.slane %v6077, 4
          %v6079 = vadd.f32 %v6077, %v6078
          %v6080 = vrot.slane %v6079, 2
          %v6081 = vadd.f32 %v6079, %v6080
          %v6082 = vrot.slane %v6081, 1
          %v6083 = vadd.f32 %v6081, %v6082
          %v6084 = vadd.f32 %v6048, %v6051
          %v6085 = vadd.f32 %v6084, %v6054
          %v6086 = vadd.f32 %v6085, %v6057
          %v6087 = vadd.f32 %v6086, %v6060
          %v6088 = vadd.f32 %v6087, %v6063
          %v6089 = vadd.f32 %v6088, %v6066
          %v6090 = vadd.f32 %v6089, %v6069
          %v6091 = vrot.slane %v6090, 4
          %v6092 = vadd.f32 %v6090, %v6091
          %v6093 = vrot.slane %v6092, 2
          %v6094 = vadd.f32 %v6092, %v6093
          %v6095 = vrot.slane %v6094, 1
          %v6096 = vadd.f32 %v6094, %v6095
          %v6097 = vadd.f32 %v6049, %v6052
          %v6098 = vadd.f32 %v6097, %v6055
          %v6099 = vadd.f32 %v6098, %v6058
          %v6100 = vadd.f32 %v6099, %v6061
          %v6101 = vadd.f32 %v6100, %v6064
          %v6102 = vadd.f32 %v6101, %v6067
          %v6103 = vadd.f32 %v6102, %v6070
          %v6104 = vrot.slane %v6103, 4
          %v6105 = vadd.f32 %v6103, %v6104
          %v6106 = vrot.slane %v6105, 2
          %v6107 = vadd.f32 %v6105, %v6106
          %v6108 = vrot.slane %v6107, 1
          %v6109 = vadd.f32 %v6107, %v6108
          %v6110 = vmul.f32 %v6083, 2.0
          %v6111 = vmul.f32 %v6096, 2.0
          %v6112 = vmul.f32 %v6109, 2.0
          %v6113 = vmul.f32 %v3344, %v5855
          %v6114 = vmul.f32 %v3345, %v5856
          %v6115 = vmul.f32 %v3346, %v5857
          %v6116 = vmul.f32 %v3347, %v5858
          %v6117 = vmul.f32 %v3348, %v5859
          %v6118 = vmul.f32 %v3349, %v5860
          %v6119 = vmul.f32 %v3350, %v5861
          %v6120 = vmul.f32 %v3351, %v5862
          %v6121 = vmul.f32 %v3352, %v5863
          %v6122 = vmul.f32 %v3353, %v5864
          %v6123 = vmul.f32 %v3354, %v5865
          %v6124 = vmul.f32 %v3355, %v5866
          %v6125 = vmul.f32 %v3356, %v5867
          %v6126 = vmul.f32 %v3357, %v5868
          %v6127 = vmul.f32 %v3358, %v5869
          %v6128 = vmul.f32 %v3359, %v5870
          %v6129 = vmul.f32 %v3360, %v5871
          %v6130 = vmul.f32 %v3361, %v5872
          %v6131 = vmul.f32 %v3362, %v5873
          %v6132 = vmul.f32 %v3363, %v5874
          %v6133 = vmul.f32 %v3364, %v5875
          %v6134 = vmul.f32 %v3365, %v5876
          %v6135 = vmul.f32 %v3366, %v5877
          %v6136 = vmul.f32 %v3367, %v5878
          %v6137 = vmul.f32 %v3368, %v5975
          %v6138 = vmul.f32 %v3369, %v5976
          %v6139 = vmul.f32 %v3370, %v5977
          %v6140 = vmul.f32 %v3371, %v5978
          %v6141 = vmul.f32 %v3372, %v5979
          %v6142 = vmul.f32 %v3373, %v5980
          %v6143 = vmul.f32 %v3374, %v5981
          %v6144 = vmul.f32 %v3375, %v5982
          %v6145 = vmul.f32 %v3376, %v5983
          %v6146 = vmul.f32 %v3377, %v5984
          %v6147 = vmul.f32 %v3378, %v5985
          %v6148 = vmul.f32 %v3379, %v5986
          %v6149 = vmul.f32 %v3380, %v5987
          %v6150 = vmul.f32 %v3381, %v5988
          %v6151 = vmul.f32 %v3382, %v5989
          %v6152 = vmul.f32 %v3383, %v5990
          %v6153 = vmul.f32 %v3384, %v5991
          %v6154 = vmul.f32 %v3385, %v5992
          %v6155 = vmul.f32 %v3386, %v5993
          %v6156 = vmul.f32 %v3387, %v5994
          %v6157 = vmul.f32 %v3388, %v5995
          %v6158 = vmul.f32 %v3389, %v5996
          %v6159 = vmul.f32 %v3390, %v5997
          %v6160 = vmul.f32 %v3391, %v5998
          %v6161 = vsub.f32 %v6113, %v6137
          %v6162 = vsub.f32 %v6114, %v6138
          %v6163 = vsub.f32 %v6115, %v6139
          %v6164 = vsub.f32 %v6116, %v6140
          %v6165 = vsub.f32 %v6117, %v6141
          %v6166 = vsub.f32 %v6118, %v6142
          %v6167 = vsub.f32 %v6119, %v6143
          %v6168 = vsub.f32 %v6120, %v6144
          %v6169 = vsub.f32 %v6121, %v6145
          %v6170 = vsub.f32 %v6122, %v6146
          %v6171 = vsub.f32 %v6123, %v6147
          %v6172 = vsub.f32 %v6124, %v6148
          %v6173 = vsub.f32 %v6125, %v6149
          %v6174 = vsub.f32 %v6126, %v6150
          %v6175 = vsub.f32 %v6127, %v6151
          %v6176 = vsub.f32 %v6128, %v6152
          %v6177 = vsub.f32 %v6129, %v6153
          %v6178 = vsub.f32 %v6130, %v6154
          %v6179 = vsub.f32 %v6131, %v6155
          %v6180 = vsub.f32 %v6132, %v6156
          %v6181 = vsub.f32 %v6133, %v6157
          %v6182 = vsub.f32 %v6134, %v6158
          %v6183 = vsub.f32 %v6135, %v6159
          %v6184 = vsub.f32 %v6136, %v6160
          %v6185 = vlaneseq
          %v6186 = vshrl.u32 %v6185, 7
          %v6187 = vsub.s32 7, %v6186
          %v6188 = vrot.slane %v3500, %v6187
          %v6189 = vlaneseq
          %v6190 = vshrl.u32 %v6189, 7
          %v6191 = vsub.s32 7, %v6190
          %v6192 = vrot.slane %v3501, %v6191
          %v6193 = vlaneseq
          %v6194 = vshrl.u32 %v6193, 7
          %v6195 = vsub.s32 7, %v6194
          %v6196 = vrot.slane %v3502, %v6195
          %v6197 = vmul.f32 %v3392, %v6188
          %v6198 = vmul.f32 %v3393, %v6192
          %v6199 = vmul.f32 %v3394, %v6196
          %v6200 = vmul.f32 %v3395, %v6188
          %v6201 = vmul.f32 %v3396, %v6192
          %v6202 = vmul.f32 %v3397, %v6196
          %v6203 = vmul.f32 %v3398, %v6188
          %v6204 = vmul.f32 %v3399, %v6192
          %v6205 = vmul.f32 %v3400, %v6196
          %v6206 = vmul.f32 %v3401, %v6188
          %v6207 = vmul.f32 %v3402, %v6192
          %v6208 = vmul.f32 %v3403, %v6196
          %v6209 = vmul.f32 %v3404, %v6188
          %v6210 = vmul.f32 %v3405, %v6192
          %v6211 = vmul.f32 %v3406, %v6196
          %v6212 = vmul.f32 %v3407, %v6188
          %v6213 = vmul.f32 %v3408, %v6192
          %v6214 = vmul.f32 %v3409, %v6196
          %v6215 = vmul.f32 %v3410, %v6188
          %v6216 = vmul.f32 %v3411, %v6192
          %v6217 = vmul.f32 %v3412, %v6196
          %v6218 = vmul.f32 %v3413, %v6188
          %v6219 = vmul.f32 %v3414, %v6192
          %v6220 = vmul.f32 %v3415, %v6196
          %v6221 = vadd.f32 %v6161, %v6197
          %v6222 = vadd.f32 %v6162, %v6198
          %v6223 = vadd.f32 %v6163, %v6199
          %v6224 = vadd.f32 %v6164, %v6200
          %v6225 = vadd.f32 %v6165, %v6201
          %v6226 = vadd.f32 %v6166, %v6202
          %v6227 = vadd.f32 %v6167, %v6203
          %v6228 = vadd.f32 %v6168, %v6204
          %v6229 = vadd.f32 %v6169, %v6205
          %v6230 = vadd.f32 %v6170, %v6206
          %v6231 = vadd.f32 %v6171, %v6207
          %v6232 = vadd.f32 %v6172, %v6208
          %v6233 = vadd.f32 %v6173, %v6209
          %v6234 = vadd.f32 %v6174, %v6210
          %v6235 = vadd.f32 %v6175, %v6211
          %v6236 = vadd.f32 %v6176, %v6212
          %v6237 = vadd.f32 %v6177, %v6213
          %v6238 = vadd.f32 %v6178, %v6214
          %v6239 = vadd.f32 %v6179, %v6215
          %v6240 = vadd.f32 %v6180, %v6216
          %v6241 = vadd.f32 %v6181, %v6217
          %v6242 = vadd.f32 %v6182, %v6218
          %v6243 = vadd.f32 %v6183, %v6219
          %v6244 = vadd.f32 %v6184, %v6220
          %v6245 = vmul.f32 %v3344, %v5975
          %v6246 = vmul.f32 %v3345, %v5976
          %v6247 = vmul.f32 %v3346, %v5977
          %v6248 = vmul.f32 %v3347, %v5978
          %v6249 = vmul.f32 %v3348, %v5979
          %v6250 = vmul.f32 %v3349, %v5980
          %v6251 = vmul.f32 %v3350, %v5981
          %v6252 = vmul.f32 %v3351, %v5982
          %v6253 = vmul.f32 %v3352, %v5983
          %v6254 = vmul.f32 %v3353, %v5984
          %v6255 = vmul.f32 %v3354, %v5985
          %v6256 = vmul.f32 %v3355, %v5986
          %v6257 = vmul.f32 %v3356, %v5987
          %v6258 = vmul.f32 %v3357, %v5988
          %v6259 = vmul.f32 %v3358, %v5989
          %v6260 = vmul.f32 %v3359, %v5990
          %v6261 = vmul.f32 %v3360, %v5991
          %v6262 = vmul.f32 %v3361, %v5992
          %v6263 = vmul.f32 %v3362, %v5993
          %v6264 = vmul.f32 %v3363, %v5994
          %v6265 = vmul.f32 %v3364, %v5995
          %v6266 = vmul.f32 %v3365, %v5996
          %v6267 = vmul.f32 %v3366, %v5997
          %v6268 = vmul.f32 %v3367, %v5998
          %v6269 = vmul.f32 %v3368, %v5855
          %v6270 = vmul.f32 %v3369, %v5856
          %v6271 = vmul.f32 %v3370, %v5857
          %v6272 = vmul.f32 %v3371, %v5858
          %v6273 = vmul.f32 %v3372, %v5859
          %v6274 = vmul.f32 %v3373, %v5860
          %v6275 = vmul.f32 %v3374, %v5861
          %v6276 = vmul.f32 %v3375, %v5862
          %v6277 = vmul.f32 %v3376, %v5863
          %v6278 = vmul.f32 %v3377, %v5864
          %v6279 = vmul.f32 %v3378, %v5865
          %v6280 = vmul.f32 %v3379, %v5866
          %v6281 = vmul.f32 %v3380, %v5867
          %v6282 = vmul.f32 %v3381, %v5868
          %v6283 = vmul.f32 %v3382, %v5869
          %v6284 = vmul.f32 %v3383, %v5870
          %v6285 = vmul.f32 %v3384, %v5871
          %v6286 = vmul.f32 %v3385, %v5872
          %v6287 = vmul.f32 %v3386, %v5873
          %v6288 = vmul.f32 %v3387, %v5874
          %v6289 = vmul.f32 %v3388, %v5875
          %v6290 = vmul.f32 %v3389, %v5876
          %v6291 = vmul.f32 %v3390, %v5877
          %v6292 = vmul.f32 %v3391, %v5878
          %v6293 = vadd.f32 %v6245, %v6269
          %v6294 = vadd.f32 %v6246, %v6270
          %v6295 = vadd.f32 %v6247, %v6271
          %v6296 = vadd.f32 %v6248, %v6272
          %v6297 = vadd.f32 %v6249, %v6273
          %v6298 = vadd.f32 %v6250, %v6274
          %v6299 = vadd.f32 %v6251, %v6275
          %v6300 = vadd.f32 %v6252, %v6276
          %v6301 = vadd.f32 %v6253, %v6277
          %v6302 = vadd.f32 %v6254, %v6278
          %v6303 = vadd.f32 %v6255, %v6279
          %v6304 = vadd.f32 %v6256, %v6280
          %v6305 = vadd.f32 %v6257, %v6281
          %v6306 = vadd.f32 %v6258, %v6282
          %v6307 = vadd.f32 %v6259, %v6283
          %v6308 = vadd.f32 %v6260, %v6284
          %v6309 = vadd.f32 %v6261, %v6285
          %v6310 = vadd.f32 %v6262, %v6286
          %v6311 = vadd.f32 %v6263, %v6287
          %v6312 = vadd.f32 %v6264, %v6288
          %v6313 = vadd.f32 %v6265, %v6289
          %v6314 = vadd.f32 %v6266, %v6290
          %v6315 = vadd.f32 %v6267, %v6291
          %v6316 = vadd.f32 %v6268, %v6292
          %v6317 = vmul.f32 %v3416, %v6188
          %v6318 = vmul.f32 %v3417, %v6192
          %v6319 = vmul.f32 %v3418, %v6196
          %v6320 = vmul.f32 %v3419, %v6188
          %v6321 = vmul.f32 %v3420, %v6192
          %v6322 = vmul.f32 %v3421, %v6196
          %v6323 = vmul.f32 %v3422, %v6188
          %v6324 = vmul.f32 %v3423, %v6192
          %v6325 = vmul.f32 %v3424, %v6196
          %v6326 = vmul.f32 %v3425, %v6188
          %v6327 = vmul.f32 %v3426, %v6192
          %v6328 = vmul.f32 %v3427, %v6196
          %v6329 = vmul.f32 %v3428, %v6188
          %v6330 = vmul.f32 %v3429, %v6192
          %v6331 = vmul.f32 %v3430, %v6196
          %v6332 = vmul.f32 %v3431, %v6188
          %v6333 = vmul.f32 %v3432, %v6192
          %v6334 = vmul.f32 %v3433, %v6196
          %v6335 = vmul.f32 %v3434, %v6188
          %v6336 = vmul.f32 %v3435, %v6192
          %v6337 = vmul.f32 %v3436, %v6196
          %v6338 = vmul.f32 %v3437, %v6188
          %v6339 = vmul.f32 %v3438, %v6192
          %v6340 = vmul.f32 %v3439, %v6196
          %v6341 = vadd.f32 %v6293, %v6317
          %v6342 = vadd.f32 %v6294, %v6318
          %v6343 = vadd.f32 %v6295, %v6319
          %v6344 = vadd.f32 %v6296, %v6320
          %v6345 = vadd.f32 %v6297, %v6321
          %v6346 = vadd.f32 %v6298, %v6322
          %v6347 = vadd.f32 %v6299, %v6323
          %v6348 = vadd.f32 %v6300, %v6324
          %v6349 = vadd.f32 %v6301, %v6325
          %v6350 = vadd.f32 %v6302, %v6326
          %v6351 = vadd.f32 %v6303, %v6327
          %v6352 = vadd.f32 %v6304, %v6328
          %v6353 = vadd.f32 %v6305, %v6329
          %v6354 = vadd.f32 %v6306, %v6330
          %v6355 = vadd.f32 %v6307, %v6331
          %v6356 = vadd.f32 %v6308, %v6332
          %v6357 = vadd.f32 %v6309, %v6333
          %v6358 = vadd.f32 %v6310, %v6334
          %v6359 = vadd.f32 %v6311, %v6335
          %v6360 = vadd.f32 %v6312, %v6336
          %v6361 = vadd.f32 %v6313, %v6337
          %v6362 = vadd.f32 %v6314, %v6338
          %v6363 = vadd.f32 %v6315, %v6339
          %v6364 = vadd.f32 %v6316, %v6340
          %v6365 = vmul.f32 %v3440, %v6221
          %v6366 = vmul.f32 %v3441, %v6222
          %v6367 = vmul.f32 %v3442, %v6223
          %v6368 = vmul.f32 %v3443, %v6224
          %v6369 = vmul.f32 %v3444, %v6225
          %v6370 = vmul.f32 %v3445, %v6226
          %v6371 = vmul.f32 %v3446, %v6227
          %v6372 = vmul.f32 %v3447, %v6228
          %v6373 = vmul.f32 %v3448, %v6229
          %v6374 = vmul.f32 %v3449, %v6230
          %v6375 = vmul.f32 %v3450, %v6231
          %v6376 = vmul.f32 %v3451, %v6232
          %v6377 = vmul.f32 %v3452, %v6233
          %v6378 = vmul.f32 %v3453, %v6234
          %v6379 = vmul.f32 %v3454, %v6235
          %v6380 = vmul.f32 %v3455, %v6236
          %v6381 = vmul.f32 %v3456, %v6237
          %v6382 = vmul.f32 %v3457, %v6238
          %v6383 = vmul.f32 %v3458, %v6239
          %v6384 = vmul.f32 %v3459, %v6240
          %v6385 = vmul.f32 %v3460, %v6241
          %v6386 = vmul.f32 %v3461, %v6242
          %v6387 = vmul.f32 %v3462, %v6243
          %v6388 = vmul.f32 %v3463, %v6244
          %v6389 = vmul.f32 %v3464, %v6341
          %v6390 = vmul.f32 %v3465, %v6342
          %v6391 = vmul.f32 %v3466, %v6343
          %v6392 = vmul.f32 %v3467, %v6344
          %v6393 = vmul.f32 %v3468, %v6345
          %v6394 = vmul.f32 %v3469, %v6346
          %v6395 = vmul.f32 %v3470, %v6347
          %v6396 = vmul.f32 %v3471, %v6348
          %v6397 = vmul.f32 %v3472, %v6349
          %v6398 = vmul.f32 %v3473, %v6350
          %v6399 = vmul.f32 %v3474, %v6351
          %v6400 = vmul.f32 %v3475, %v6352
          %v6401 = vmul.f32 %v3476, %v6353
          %v6402 = vmul.f32 %v3477, %v6354
          %v6403 = vmul.f32 %v3478, %v6355
          %v6404 = vmul.f32 %v3479, %v6356
          %v6405 = vmul.f32 %v3480, %v6357
          %v6406 = vmul.f32 %v3481, %v6358
          %v6407 = vmul.f32 %v3482, %v6359
          %v6408 = vmul.f32 %v3483, %v6360
          %v6409 = vmul.f32 %v3484, %v6361
          %v6410 = vmul.f32 %v3485, %v6362
          %v6411 = vmul.f32 %v3486, %v6363
          %v6412 = vmul.f32 %v3487, %v6364
          %v6413 = vsub.f32 %v6365, %v6389
          %v6414 = vsub.f32 %v6366, %v6390
          %v6415 = vsub.f32 %v6367, %v6391
          %v6416 = vsub.f32 %v6368, %v6392
          %v6417 = vsub.f32 %v6369, %v6393
          %v6418 = vsub.f32 %v6370, %v6394
          %v6419 = vsub.f32 %v6371, %v6395
          %v6420 = vsub.f32 %v6372, %v6396
          %v6421 = vsub.f32 %v6373, %v6397
          %v6422 = vsub.f32 %v6374, %v6398
          %v6423 = vsub.f32 %v6375, %v6399
          %v6424 = vsub.f32 %v6376, %v6400
          %v6425 = vsub.f32 %v6377, %v6401
          %v6426 = vsub.f32 %v6378, %v6402
          %v6427 = vsub.f32 %v6379, %v6403
          %v6428 = vsub.f32 %v6380, %v6404
          %v6429 = vsub.f32 %v6381, %v6405
          %v6430 = vsub.f32 %v6382, %v6406
          %v6431 = vsub.f32 %v6383, %v6407
          %v6432 = vsub.f32 %v6384, %v6408
          %v6433 = vsub.f32 %v6385, %v6409
          %v6434 = vsub.f32 %v6386, %v6410
          %v6435 = vsub.f32 %v6387, %v6411
          %v6436 = vsub.f32 %v6388, %v6412
          %v6437 = vadd.f32 %v6413, %v6416
          %v6438 = vadd.f32 %v6437, %v6419
          %v6439 = vadd.f32 %v6438, %v6422
          %v6440 = vadd.f32 %v6439, %v6425
          %v6441 = vadd.f32 %v6440, %v6428
          %v6442 = vadd.f32 %v6441, %v6431
          %v6443 = vadd.f32 %v6442, %v6434
          %v6444 = vrot.slane %v6443, 4
          %v6445 = vadd.f32 %v6443, %v6444
          %v6446 = vrot.slane %v6445, 2
          %v6447 = vadd.f32 %v6445, %v6446
          %v6448 = vrot.slane %v6447, 1
          %v6449 = vadd.f32 %v6447, %v6448
          %v6450 = vadd.f32 %v6414, %v6417
          %v6451 = vadd.f32 %v6450, %v6420
          %v6452 = vadd.f32 %v6451, %v6423
          %v6453 = vadd.f32 %v6452, %v6426
          %v6454 = vadd.f32 %v6453, %v6429
          %v6455 = vadd.f32 %v6454, %v6432
          %v6456 = vadd.f32 %v6455, %v6435
          %v6457 = vrot.slane %v6456, 4
          %v6458 = vadd.f32 %v6456, %v6457
          %v6459 = vrot.slane %v6458, 2
          %v6460 = vadd.f32 %v6458, %v6459
          %v6461 = vrot.slane %v6460, 1
          %v6462 = vadd.f32 %v6460, %v6461
          %v6463 = vadd.f32 %v6415, %v6418
          %v6464 = vadd.f32 %v6463, %v6421
          %v6465 = vadd.f32 %v6464, %v6424
          %v6466 = vadd.f32 %v6465, %v6427
          %v6467 = vadd.f32 %v6466, %v6430
          %v6468 = vadd.f32 %v6467, %v6433
          %v6469 = vadd.f32 %v6468, %v6436
          %v6470 = vrot.slane %v6469, 4
          %v6471 = vadd.f32 %v6469, %v6470
          %v6472 = vrot.slane %v6471, 2
          %v6473 = vadd.f32 %v6471, %v6472
          %v6474 = vrot.slane %v6473, 1
          %v6475 = vadd.f32 %v6473, %v6474
          %v6476 = vmul.f32 %v6449, 2.0
          %v6477 = vmul.f32 %v6462, 2.0
          %v6478 = vmul.f32 %v6475, 2.0
          %6479 = vst [vmem:[#allocation6] sm:$0xff] %v6221
          %6480 = vst [vmem:[#allocation6 + $0x8] sm:$0xff] %v6222
          %6481 = vst [vmem:[#allocation6 + $0x10] sm:$0xff] %v6223
          %6482 = vst [vmem:[#allocation6 + $0x18] sm:$0xff] %v6224
          %6483 = vst [vmem:[#allocation6 + $0x20] sm:$0xff] %v6225
          %6484 = vst [vmem:[#allocation6 + $0x28] sm:$0xff] %v6226
          %6485 = vst [vmem:[#allocation6 + $0x30] sm:$0xff] %v6227
          %6486 = vst [vmem:[#allocation6 + $0x38] sm:$0xff] %v6228
          %6487 = vst [vmem:[#allocation6 + $0x40] sm:$0xff] %v6229
          %6488 = vst [vmem:[#allocation6 + $0x48] sm:$0xff] %v6230
          %6489 = vst [vmem:[#allocation6 + $0x50] sm:$0xff] %v6231
          %6490 = vst [vmem:[#allocation6 + $0x58] sm:$0xff] %v6232
          %6491 = vst [vmem:[#allocation6 + $0x60] sm:$0xff] %v6233
          %6492 = vst [vmem:[#allocation6 + $0x68] sm:$0xff] %v6234
          %6493 = vst [vmem:[#allocation6 + $0x70] sm:$0xff] %v6235
          %6494 = vst [vmem:[#allocation6 + $0x78] sm:$0xff] %v6236
          %6495 = vst [vmem:[#allocation6 + $0x80] sm:$0xff] %v6237
          %6496 = vst [vmem:[#allocation6 + $0x88] sm:$0xff] %v6238
          %6497 = vst [vmem:[#allocation6 + $0x90] sm:$0xff] %v6239
          %6498 = vst [vmem:[#allocation6 + $0x98] sm:$0xff] %v6240
          %6499 = vst [vmem:[#allocation6 + $0xa0] sm:$0xff] %v6241
          %6500 = vst [vmem:[#allocation6 + $0xa8] sm:$0xff] %v6242
          %6501 = vst [vmem:[#allocation6 + $0xb0] sm:$0xff] %v6243
          %6502 = vst [vmem:[#allocation6 + $0xb8] sm:$0xff] %v6244
          %6503 = vst [vmem:[#allocation7] sm:$0xff] %v6341
          %6504 = vst [vmem:[#allocation7 + $0x8] sm:$0xff] %v6342
          %6505 = vst [vmem:[#allocation7 + $0x10] sm:$0xff] %v6343
          %6506 = vst [vmem:[#allocation7 + $0x18] sm:$0xff] %v6344
          %6507 = vst [vmem:[#allocation7 + $0x20] sm:$0xff] %v6345
          %6508 = vst [vmem:[#allocation7 + $0x28] sm:$0xff] %v6346
          %6509 = vst [vmem:[#allocation7 + $0x30] sm:$0xff] %v6347
          %6510 = vst [vmem:[#allocation7 + $0x38] sm:$0xff] %v6348
          %6511 = vst [vmem:[#allocation7 + $0x40] sm:$0xff] %v6349
          %6512 = vst [vmem:[#allocation7 + $0x48] sm:$0xff] %v6350
          %6513 = vst [vmem:[#allocation7 + $0x50] sm:$0xff] %v6351
          %6514 = vst [vmem:[#allocation7 + $0x58] sm:$0xff] %v6352
          %6515 = vst [vmem:[#allocation7 + $0x60] sm:$0xff] %v6353
          %6516 = vst [vmem:[#allocation7 + $0x68] sm:$0xff] %v6354
          %6517 = vst [vmem:[#allocation7 + $0x70] sm:$0xff] %v6355
          %6518 = vst [vmem:[#allocation7 + $0x78] sm:$0xff] %v6356
          %6519 = vst [vmem:[#allocation7 + $0x80] sm:$0xff] %v6357
          %6520 = vst [vmem:[#allocation7 + $0x88] sm:$0xff] %v6358
          %6521 = vst [vmem:[#allocation7 + $0x90] sm:$0xff] %v6359
          %6522 = vst [vmem:[#allocation7 + $0x98] sm:$0xff] %v6360
          %6523 = vst [vmem:[#allocation7 + $0xa0] sm:$0xff] %v6361
          %6524 = vst [vmem:[#allocation7 + $0xa8] sm:$0xff] %v6362
          %6525 = vst [vmem:[#allocation7 + $0xb0] sm:$0xff] %v6363
          %6526 = vst [vmem:[#allocation7 + $0xb8] sm:$0xff] %v6364
          %vm6527 = vcmask 1040384
          %v6528 = vsel %vm6527, %v3914, %v4280
          %v6529 = vsel %vm6527, %v3915, %v4281
          %v6530 = vsel %vm6527, %v3916, %v4282
          %vm6531 = vcmask 1041408
          %v6532 = vsel %vm6531, %v6528, %v4646
          %v6533 = vsel %vm6531, %v6529, %v4647
          %v6534 = vsel %vm6531, %v6530, %v4648
          %vm6535 = vcmask 1042432
          %v6536 = vsel %vm6535, %v6532, %v5012
          %v6537 = vsel %vm6535, %v6533, %v5013
          %v6538 = vsel %vm6535, %v6534, %v5014
          %vm6539 = vcmask 1043456
          %v6540 = vsel %vm6539, %v6536, %v5378
          %v6541 = vsel %vm6539, %v6537, %v5379
          %v6542 = vsel %vm6539, %v6538, %v5380
          %vm6543 = vcmask 1044480
          %v6544 = vsel %vm6543, %v6540, %v5744
          %v6545 = vsel %vm6543, %v6541, %v5745
          %v6546 = vsel %vm6543, %v6542, %v5746
          %vm6547 = vcmask 1045504
          %v6548 = vsel %vm6547, %v6544, %v6110
          %v6549 = vsel %vm6547, %v6545, %v6111
          %v6550 = vsel %vm6547, %v6546, %v6112
          %vm6551 = vcmask 1046528
          %v6552 = vsel %vm6551, %v6548, %v6476
          %v6553 = vsel %vm6551, %v6549, %v6477
          %v6554 = vsel %vm6551, %v6550, %v6478
          %s6555 = smul.addr %s3497, 8
          %s6556 = scalar_lea.vmem [#allocation5], %s6555
          %6557 = vst [vmem:[%s6556] sm:$0xff] %v6552
          %6558 = vst [vmem:[%s6556 + $0x8] sm:$0xff] %v6553
          %6559 = vst [vmem:[%s6556 + $0x10] sm:$0xff] %v6554
        $region133: #{tpu_custom_call.1} parent=79 // loop_footer
          %s3493 = sadd.s32 1, %s3489
        $region134: #{tpu_custom_call.1} parent=79 // loop_footer_branch
          %3488 = sbr.rel target = $region130
        $region135: #{tpu_custom_call.1} parent=79 // loop_exit
          _
        %v6560 = vld [vmem:[#allocation5] sm:$0xff]
        %v6561 = vld [vmem:[#allocation5 + $0x8] sm:$0xff]
        %v6562 = vld [vmem:[#allocation5 + $0x10] sm:$0xff]
        %v6563 = vld [vmem:[#allocation5 + $0x18] sm:$0xff]
        %v6564 = vld [vmem:[#allocation5 + $0x20] sm:$0xff]
        %v6565 = vld [vmem:[#allocation5 + $0x28] sm:$0xff]
        %v6566 = vld [vmem:[#allocation5 + $0x30] sm:$0xff]
        %v6567 = vld [vmem:[#allocation5 + $0x38] sm:$0xff]
        %v6568 = vld [vmem:[#allocation5 + $0x40] sm:$0xff]
        %v6569 = vld [vmem:[#allocation5 + $0x48] sm:$0xff]
        %v6570 = vld [vmem:[#allocation5 + $0x50] sm:$0xff]
        %v6571 = vld [vmem:[#allocation5 + $0x58] sm:$0xff]
        %v6572 = vld [vmem:[#allocation5 + $0x60] sm:$0xff]
        %v6573 = vld [vmem:[#allocation5 + $0x68] sm:$0xff]
        %v6574 = vld [vmem:[#allocation5 + $0x70] sm:$0xff]
        %v6575 = vld [vmem:[#allocation5 + $0x78] sm:$0xff]
        %v6576 = vld [vmem:[#allocation5 + $0x80] sm:$0xff]
        %v6577 = vld [vmem:[#allocation5 + $0x88] sm:$0xff]
        %v6578 = vld [vmem:[#allocation5 + $0x90] sm:$0xff]
        %v6579 = vld [vmem:[#allocation5 + $0x98] sm:$0xff]
        %v6580 = vld [vmem:[#allocation5 + $0xa0] sm:$0xff]
        %v6581 = vld [vmem:[#allocation5 + $0xa8] sm:$0xff]
        %v6582 = vld [vmem:[#allocation5 + $0xb0] sm:$0xff]
        %v6583 = vld [vmem:[#allocation5 + $0xb8] sm:$0xff]
        %v6584 = vld [vmem:[#allocation4] sm:$0xff]
        %v6585 = vld [vmem:[#allocation4 + $0x8] sm:$0xff]
        %v6586 = vld [vmem:[#allocation4 + $0x10] sm:$0xff]
        %v6587 = vld [vmem:[#allocation4 + $0x18] sm:$0xff]
        %v6588 = vld [vmem:[#allocation4 + $0x20] sm:$0xff]
        %v6589 = vld [vmem:[#allocation4 + $0x28] sm:$0xff]
        %v6590 = vld [vmem:[#allocation4 + $0x30] sm:$0xff]
        %v6591 = vld [vmem:[#allocation4 + $0x38] sm:$0xff]
        %v6592 = vld [vmem:[#allocation4 + $0x40] sm:$0xff]
        %v6593 = vld [vmem:[#allocation4 + $0x48] sm:$0xff]
        %v6594 = vld [vmem:[#allocation4 + $0x50] sm:$0xff]
        %v6595 = vld [vmem:[#allocation4 + $0x58] sm:$0xff]
        %v6596 = vld [vmem:[#allocation4 + $0x60] sm:$0xff]
        %v6597 = vld [vmem:[#allocation4 + $0x68] sm:$0xff]
        %v6598 = vld [vmem:[#allocation4 + $0x70] sm:$0xff]
        %v6599 = vld [vmem:[#allocation4 + $0x78] sm:$0xff]
        %v6600 = vld [vmem:[#allocation4 + $0x80] sm:$0xff]
        %v6601 = vld [vmem:[#allocation4 + $0x88] sm:$0xff]
        %v6602 = vld [vmem:[#allocation4 + $0x90] sm:$0xff]
        %v6603 = vld [vmem:[#allocation4 + $0x98] sm:$0xff]
        %v6604 = vld [vmem:[#allocation4 + $0xa0] sm:$0xff]
        %v6605 = vld [vmem:[#allocation4 + $0xa8] sm:$0xff]
        %v6606 = vld [vmem:[#allocation4 + $0xb0] sm:$0xff]
        %v6607 = vld [vmem:[#allocation4 + $0xb8] sm:$0xff]
        %v6608 = vld [vmem:[%s13] sm:$0x7]
        %v6610 = vlaneseq
        %v6611 = vshrl.u32 %v6610, 7
        %v6612 = vsub.s32 0, %v6611
        %v6613 = vrot.slane %v6608, %v6612
        %v6614 = vlaneseq
        %v6615 = vshrl.u32 %v6614, 7
        %v6616 = vsub.s32 1, %v6615
        %v6617 = vrot.slane %v6608, %v6616
        %v6618 = vlaneseq
        %v6619 = vshrl.u32 %v6618, 7
        %v6620 = vsub.s32 2, %v6619
        %v6621 = vrot.slane %v6608, %v6620
        %v6625 = vmul.f32 %v6584, %v6613
        %v6626 = vmul.f32 %v6585, %v6617
        %v6627 = vmul.f32 %v6586, %v6621
        %v6628 = vmul.f32 %v6587, %v6613
        %v6629 = vmul.f32 %v6588, %v6617
        %v6630 = vmul.f32 %v6589, %v6621
        %v6631 = vmul.f32 %v6590, %v6613
        %v6632 = vmul.f32 %v6591, %v6617
        %v6633 = vmul.f32 %v6592, %v6621
        %v6634 = vmul.f32 %v6593, %v6613
        %v6635 = vmul.f32 %v6594, %v6617
        %v6636 = vmul.f32 %v6595, %v6621
        %v6637 = vmul.f32 %v6596, %v6613
        %v6638 = vmul.f32 %v6597, %v6617
        %v6639 = vmul.f32 %v6598, %v6621
        %v6640 = vmul.f32 %v6599, %v6613
        %v6641 = vmul.f32 %v6600, %v6617
        %v6642 = vmul.f32 %v6601, %v6621
        %v6643 = vmul.f32 %v6602, %v6613
        %v6644 = vmul.f32 %v6603, %v6617
        %v6645 = vmul.f32 %v6604, %v6621
        %v6646 = vmul.f32 %v6605, %v6613
        %v6647 = vmul.f32 %v6606, %v6617
        %v6648 = vmul.f32 %v6607, %v6621
        %v6649 = vadd.f32 %v6560, %v6625
        %v6650 = vadd.f32 %v6561, %v6626
        %v6651 = vadd.f32 %v6562, %v6627
        %v6652 = vadd.f32 %v6563, %v6628
        %v6653 = vadd.f32 %v6564, %v6629
        %v6654 = vadd.f32 %v6565, %v6630
        %v6655 = vadd.f32 %v6566, %v6631
        %v6656 = vadd.f32 %v6567, %v6632
        %v6657 = vadd.f32 %v6568, %v6633
        %v6658 = vadd.f32 %v6569, %v6634
        %v6659 = vadd.f32 %v6570, %v6635
        %v6660 = vadd.f32 %v6571, %v6636
        %v6661 = vadd.f32 %v6572, %v6637
        %v6662 = vadd.f32 %v6573, %v6638
        %v6663 = vadd.f32 %v6574, %v6639
        %v6664 = vadd.f32 %v6575, %v6640
        %v6665 = vadd.f32 %v6576, %v6641
        %v6666 = vadd.f32 %v6577, %v6642
        %v6667 = vadd.f32 %v6578, %v6643
        %v6668 = vadd.f32 %v6579, %v6644
        %v6669 = vadd.f32 %v6580, %v6645
        %v6670 = vadd.f32 %v6581, %v6646
        %v6671 = vadd.f32 %v6582, %v6647
        %v6672 = vadd.f32 %v6583, %v6648
        %v6673 = vadd.f32 %v6649, %v1024
        %v6674 = vadd.f32 %v6650, %v1135
        %v6675 = vadd.f32 %v6651, %v1137
        %v6676 = vadd.f32 %v6652, %v1030
        %v6677 = vadd.f32 %v6653, %v1141
        %v6678 = vadd.f32 %v6654, %v1143
        %v6679 = vadd.f32 %v6655, %v1036
        %v6680 = vadd.f32 %v6656, %v1147
        %v6681 = vadd.f32 %v6657, %v1149
        %v6682 = vadd.f32 %v6658, %v1042
        %v6683 = vadd.f32 %v6659, %v1153
        %v6684 = vadd.f32 %v6660, %v1155
        %v6685 = vadd.f32 %v6661, %v1048
        %v6686 = vadd.f32 %v6662, %v1159
        %v6687 = vadd.f32 %v6663, %v1161
        %v6688 = vadd.f32 %v6664, %v1054
        %v6689 = vadd.f32 %v6665, %v1165
        %v6690 = vadd.f32 %v6666, %v1167
        %v6691 = vadd.f32 %v6667, %v1060
        %v6692 = vadd.f32 %v6668, %v1171
        %v6693 = vadd.f32 %v6669, %v1173
        %v6694 = vadd.f32 %v6670, %v1066
        %v6695 = vadd.f32 %v6671, %v1177
        %v6696 = vadd.f32 %v6672, %v1179
        %v6697 = vadd.f32 %v6673, %v6674
        %v6698 = vadd.f32 %v6697, %v6675
        %6699 = vadd.xlane.f32.xlu0 %v6698
        %v6700 = vpop.xlane.xlu0 %6699
        %v6701 = vadd.f32 %v6676, %v6677
        %v6702 = vadd.f32 %v6701, %v6678
        %6703 = vadd.xlane.f32.xlu0 %v6702
        %v6704 = vpop.xlane.xlu0 %6703
        %v6705 = vadd.f32 %v6679, %v6680
        %v6706 = vadd.f32 %v6705, %v6681
        %6707 = vadd.xlane.f32.xlu0 %v6706
        %v6708 = vpop.xlane.xlu0 %6707
        %v6709 = vadd.f32 %v6682, %v6683
        %v6710 = vadd.f32 %v6709, %v6684
        %6711 = vadd.xlane.f32.xlu0 %v6710
        %v6712 = vpop.xlane.xlu0 %6711
        %v6713 = vadd.f32 %v6685, %v6686
        %v6714 = vadd.f32 %v6713, %v6687
        %6715 = vadd.xlane.f32.xlu0 %v6714
        %v6716 = vpop.xlane.xlu0 %6715
        %v6717 = vadd.f32 %v6688, %v6689
        %v6718 = vadd.f32 %v6717, %v6690
        %6719 = vadd.xlane.f32.xlu0 %v6718
        %v6720 = vpop.xlane.xlu0 %6719
        %v6721 = vadd.f32 %v6691, %v6692
        %v6722 = vadd.f32 %v6721, %v6693
        %6723 = vadd.xlane.f32.xlu0 %v6722
        %v6724 = vpop.xlane.xlu0 %6723
        %v6725 = vadd.f32 %v6694, %v6695
        %v6726 = vadd.f32 %v6725, %v6696
        %6727 = vadd.xlane.f32.xlu0 %v6726
        %v6728 = vpop.xlane.xlu0 %6727
        %v6729 = vrcp.pop 384.0
        %v6730 = vmul.f32 %v6700, %v6729
        %v6731 = vmul.f32 %v6704, %v6729
        %v6732 = vmul.f32 %v6708, %v6729
        %v6733 = vmul.f32 %v6712, %v6729
        %v6734 = vmul.f32 %v6716, %v6729
        %v6735 = vmul.f32 %v6720, %v6729
        %v6736 = vmul.f32 %v6724, %v6729
        %v6737 = vmul.f32 %v6728, %v6729
        %v6738 = vsub.f32 %v6673, %v6730
        %v6739 = vsub.f32 %v6674, %v6730
        %v6740 = vsub.f32 %v6675, %v6730
        %v6741 = vsub.f32 %v6676, %v6731
        %v6742 = vsub.f32 %v6677, %v6731
        %v6743 = vsub.f32 %v6678, %v6731
        %v6744 = vsub.f32 %v6679, %v6732
        %v6745 = vsub.f32 %v6680, %v6732
        %v6746 = vsub.f32 %v6681, %v6732
        %v6747 = vsub.f32 %v6682, %v6733
        %v6748 = vsub.f32 %v6683, %v6733
        %v6749 = vsub.f32 %v6684, %v6733
        %v6750 = vsub.f32 %v6685, %v6734
        %v6751 = vsub.f32 %v6686, %v6734
        %v6752 = vsub.f32 %v6687, %v6734
        %v6753 = vsub.f32 %v6688, %v6735
        %v6754 = vsub.f32 %v6689, %v6735
        %v6755 = vsub.f32 %v6690, %v6735
        %v6756 = vsub.f32 %v6691, %v6736
        %v6757 = vsub.f32 %v6692, %v6736
        %v6758 = vsub.f32 %v6693, %v6736
        %v6759 = vsub.f32 %v6694, %v6737
        %v6760 = vsub.f32 %v6695, %v6737
        %v6761 = vsub.f32 %v6696, %v6737
        %v6762 = vmul.f32 %v6738, %v6738
        %v6763 = vmul.f32 %v6739, %v6739
        %v6764 = vmul.f32 %v6740, %v6740
        %v6765 = vmul.f32 %v6741, %v6741
        %v6766 = vmul.f32 %v6742, %v6742
        %v6767 = vmul.f32 %v6743, %v6743
        %v6768 = vmul.f32 %v6744, %v6744
        %v6769 = vmul.f32 %v6745, %v6745
        %v6770 = vmul.f32 %v6746, %v6746
        %v6771 = vmul.f32 %v6747, %v6747
        %v6772 = vmul.f32 %v6748, %v6748
        %v6773 = vmul.f32 %v6749, %v6749
        %v6774 = vmul.f32 %v6750, %v6750
        %v6775 = vmul.f32 %v6751, %v6751
        %v6776 = vmul.f32 %v6752, %v6752
        %v6777 = vmul.f32 %v6753, %v6753
        %v6778 = vmul.f32 %v6754, %v6754
        %v6779 = vmul.f32 %v6755, %v6755
        %v6780 = vmul.f32 %v6756, %v6756
        %v6781 = vmul.f32 %v6757, %v6757
        %v6782 = vmul.f32 %v6758, %v6758
        %v6783 = vmul.f32 %v6759, %v6759
        %v6784 = vmul.f32 %v6760, %v6760
        %v6785 = vmul.f32 %v6761, %v6761
        %v6786 = vadd.f32 %v6762, %v6763
        %v6787 = vadd.f32 %v6786, %v6764
        %6788 = vadd.xlane.f32.xlu0 %v6787
        %v6789 = vpop.xlane.xlu0 %6788
        %v6790 = vadd.f32 %v6765, %v6766
        %v6791 = vadd.f32 %v6790, %v6767
        %6792 = vadd.xlane.f32.xlu0 %v6791
        %v6793 = vpop.xlane.xlu0 %6792
        %v6794 = vadd.f32 %v6768, %v6769
        %v6795 = vadd.f32 %v6794, %v6770
        %6796 = vadd.xlane.f32.xlu0 %v6795
        %v6797 = vpop.xlane.xlu0 %6796
        %v6798 = vadd.f32 %v6771, %v6772
        %v6799 = vadd.f32 %v6798, %v6773
        %6800 = vadd.xlane.f32.xlu0 %v6799
        %v6801 = vpop.xlane.xlu0 %6800
        %v6802 = vadd.f32 %v6774, %v6775
        %v6803 = vadd.f32 %v6802, %v6776
        %6804 = vadd.xlane.f32.xlu0 %v6803
        %v6805 = vpop.xlane.xlu0 %6804
        %v6806 = vadd.f32 %v6777, %v6778
        %v6807 = vadd.f32 %v6806, %v6779
        %6808 = vadd.xlane.f32.xlu0 %v6807
        %v6809 = vpop.xlane.xlu0 %6808
        %v6810 = vadd.f32 %v6780, %v6781
        %v6811 = vadd.f32 %v6810, %v6782
        %6812 = vadd.xlane.f32.xlu0 %v6811
        %v6813 = vpop.xlane.xlu0 %6812
        %v6814 = vadd.f32 %v6783, %v6784
        %v6815 = vadd.f32 %v6814, %v6785
        %6816 = vadd.xlane.f32.xlu0 %v6815
        %v6817 = vpop.xlane.xlu0 %6816
        %v6818 = vmul.f32 %v6789, %v6729
        %v6819 = vmul.f32 %v6793, %v6729
        %v6820 = vmul.f32 %v6797, %v6729
        %v6821 = vmul.f32 %v6801, %v6729
        %v6822 = vmul.f32 %v6805, %v6729
        %v6823 = vmul.f32 %v6809, %v6729
        %v6824 = vmul.f32 %v6813, %v6729
        %v6825 = vmul.f32 %v6817, %v6729
        %v6826 = vadd.f32 %v6818, 1e-05
        %v6827 = vadd.f32 %v6819, 1e-05
        %v6828 = vadd.f32 %v6820, 1e-05
        %v6829 = vadd.f32 %v6821, 1e-05
        %v6830 = vadd.f32 %v6822, 1e-05
        %v6831 = vadd.f32 %v6823, 1e-05
        %v6832 = vadd.f32 %v6824, 1e-05
        %v6833 = vadd.f32 %v6825, 1e-05
        %v6834 = vrsqrt.pop %v6826
        %v6835 = vrsqrt.pop %v6827
        %v6836 = vrsqrt.pop %v6828
        %v6837 = vrsqrt.pop %v6829
        %v6838 = vrsqrt.pop %v6830
        %v6839 = vrsqrt.pop %v6831
        %v6840 = vrsqrt.pop %v6832
        %v6841 = vrsqrt.pop %v6833
        %v6842 = vmul.f32 %v6738, %v6834
        %v6843 = vmul.f32 %v6739, %v6834
        %v6844 = vmul.f32 %v6740, %v6834
        %v6845 = vmul.f32 %v6741, %v6835
        %v6846 = vmul.f32 %v6742, %v6835
        %v6847 = vmul.f32 %v6743, %v6835
        %v6848 = vmul.f32 %v6744, %v6836
        %v6849 = vmul.f32 %v6745, %v6836
        %v6850 = vmul.f32 %v6746, %v6836
        %v6851 = vmul.f32 %v6747, %v6837
        %v6852 = vmul.f32 %v6748, %v6837
        %v6853 = vmul.f32 %v6749, %v6837
        %v6854 = vmul.f32 %v6750, %v6838
        %v6855 = vmul.f32 %v6751, %v6838
        %v6856 = vmul.f32 %v6752, %v6838
        %v6857 = vmul.f32 %v6753, %v6839
        %v6858 = vmul.f32 %v6754, %v6839
        %v6859 = vmul.f32 %v6755, %v6839
        %v6860 = vmul.f32 %v6756, %v6840
        %v6861 = vmul.f32 %v6757, %v6840
        %v6862 = vmul.f32 %v6758, %v6840
        %v6863 = vmul.f32 %v6759, %v6841
        %v6864 = vmul.f32 %v6760, %v6841
        %v6865 = vmul.f32 %v6761, %v6841
        %v6866 = vld [vmem:[%s14] sm:$0x7]
        %v6868 = vlaneseq
        %v6869 = vshrl.u32 %v6868, 7
        %v6870 = vsub.s32 0, %v6869
        %v6871 = vrot.slane %v6866, %v6870
        %v6872 = vlaneseq
        %v6873 = vshrl.u32 %v6872, 7
        %v6874 = vsub.s32 1, %v6873
        %v6875 = vrot.slane %v6866, %v6874
        %v6876 = vlaneseq
        %v6877 = vshrl.u32 %v6876, 7
        %v6878 = vsub.s32 2, %v6877
        %v6879 = vrot.slane %v6866, %v6878
        %v6883 = vmul.f32 %v6842, %v6871
        %v6884 = vmul.f32 %v6843, %v6875
        %v6885 = vmul.f32 %v6844, %v6879
        %v6886 = vmul.f32 %v6845, %v6871
        %v6887 = vmul.f32 %v6846, %v6875
        %v6888 = vmul.f32 %v6847, %v6879
        %v6889 = vmul.f32 %v6848, %v6871
        %v6890 = vmul.f32 %v6849, %v6875
        %v6891 = vmul.f32 %v6850, %v6879
        %v6892 = vmul.f32 %v6851, %v6871
        %v6893 = vmul.f32 %v6852, %v6875
        %v6894 = vmul.f32 %v6853, %v6879
        %v6895 = vmul.f32 %v6854, %v6871
        %v6896 = vmul.f32 %v6855, %v6875
        %v6897 = vmul.f32 %v6856, %v6879
        %v6898 = vmul.f32 %v6857, %v6871
        %v6899 = vmul.f32 %v6858, %v6875
        %v6900 = vmul.f32 %v6859, %v6879
        %v6901 = vmul.f32 %v6860, %v6871
        %v6902 = vmul.f32 %v6861, %v6875
        %v6903 = vmul.f32 %v6862, %v6879
        %v6904 = vmul.f32 %v6863, %v6871
        %v6905 = vmul.f32 %v6864, %v6875
        %v6906 = vmul.f32 %v6865, %v6879
        %v6907 = vld [vmem:[%s15] sm:$0x7]
        %v6909 = vlaneseq
        %v6910 = vshrl.u32 %v6909, 7
        %v6911 = vsub.s32 0, %v6910
        %v6912 = vrot.slane %v6907, %v6911
        %v6913 = vlaneseq
        %v6914 = vshrl.u32 %v6913, 7
        %v6915 = vsub.s32 1, %v6914
        %v6916 = vrot.slane %v6907, %v6915
        %v6917 = vlaneseq
        %v6918 = vshrl.u32 %v6917, 7
        %v6919 = vsub.s32 2, %v6918
        %v6920 = vrot.slane %v6907, %v6919
        %v6924 = vadd.f32 %v6883, %v6912
        %v6925 = vadd.f32 %v6884, %v6916
        %v6926 = vadd.f32 %v6885, %v6920
        %v6927 = vadd.f32 %v6886, %v6912
        %v6928 = vadd.f32 %v6887, %v6916
        %v6929 = vadd.f32 %v6888, %v6920
        %v6930 = vadd.f32 %v6889, %v6912
        %v6931 = vadd.f32 %v6890, %v6916
        %v6932 = vadd.f32 %v6891, %v6920
        %v6933 = vadd.f32 %v6892, %v6912
        %v6934 = vadd.f32 %v6893, %v6916
        %v6935 = vadd.f32 %v6894, %v6920
        %v6936 = vadd.f32 %v6895, %v6912
        %v6937 = vadd.f32 %v6896, %v6916
        %v6938 = vadd.f32 %v6897, %v6920
        %v6939 = vadd.f32 %v6898, %v6912
        %v6940 = vadd.f32 %v6899, %v6916
        %v6941 = vadd.f32 %v6900, %v6920
        %v6942 = vadd.f32 %v6901, %v6912
        %v6943 = vadd.f32 %v6902, %v6916
        %v6944 = vadd.f32 %v6903, %v6920
        %v6945 = vadd.f32 %v6904, %v6912
        %v6946 = vadd.f32 %v6905, %v6916
        %v6947 = vadd.f32 %v6906, %v6920
        %6948 = vst [vmem:[%s633] sm:$0xff] %v6924
        %6949 = vst [vmem:[%s633 + $0x8] sm:$0xff] %v6925
        %6950 = vst [vmem:[%s633 + $0x10] sm:$0xff] %v6926
        %6951 = vst [vmem:[%s633 + $0x18] sm:$0xff] %v6927
        %6952 = vst [vmem:[%s633 + $0x20] sm:$0xff] %v6928
        %6953 = vst [vmem:[%s633 + $0x28] sm:$0xff] %v6929
        %6954 = vst [vmem:[%s633 + $0x30] sm:$0xff] %v6930
        %6955 = vst [vmem:[%s633 + $0x38] sm:$0xff] %v6931
        %6956 = vst [vmem:[%s633 + $0x40] sm:$0xff] %v6932
        %6957 = vst [vmem:[%s633 + $0x48] sm:$0xff] %v6933
        %6958 = vst [vmem:[%s633 + $0x50] sm:$0xff] %v6934
        %6959 = vst [vmem:[%s633 + $0x58] sm:$0xff] %v6935
        %6960 = vst [vmem:[%s633 + $0x60] sm:$0xff] %v6936
        %6961 = vst [vmem:[%s633 + $0x68] sm:$0xff] %v6937
        %6962 = vst [vmem:[%s633 + $0x70] sm:$0xff] %v6938
        %6963 = vst [vmem:[%s633 + $0x78] sm:$0xff] %v6939
        %6964 = vst [vmem:[%s633 + $0x80] sm:$0xff] %v6940
        %6965 = vst [vmem:[%s633 + $0x88] sm:$0xff] %v6941
        %6966 = vst [vmem:[%s633 + $0x90] sm:$0xff] %v6942
        %6967 = vst [vmem:[%s633 + $0x98] sm:$0xff] %v6943
        %6968 = vst [vmem:[%s633 + $0xa0] sm:$0xff] %v6944
        %6969 = vst [vmem:[%s633 + $0xa8] sm:$0xff] %v6945
        %6970 = vst [vmem:[%s633 + $0xb0] sm:$0xff] %v6946
        %6971 = vst [vmem:[%s633 + $0xb8] sm:$0xff] %v6947
        %s6972 = sand.u32 %s373, 1
        %s6973 = scalar_lea.sflag [#allocation10], %s6972
        %s6974 = sand.u32 %s373, 1
        %s6975 = smul.addr %s6974, 192
        %s6976 = scalar_lea.vmem [#allocation25], %s6975
        // Predicated region
        $region136: #{tpu_custom_call.1} parent=79 // pred_check
          %p6977 = pneg %p383
        $region137: #{tpu_custom_call.1} parent=79 // pred_check_branch
          %6979 = sbr.rel (%p6977) target = $region139
        $region138: #{tpu_custom_call.1} parent=79 // pred_region
          %s6980 = smul.u32 8, %s41
          %s6982 = ssub.s32 3072, 3072
          %6983 = vsyncadd %s6973, %s6982
          %s6984 = smul.addr %s6980, 3
          %s6985 = smul.addr %s40, 48
          %s6986 = sadd.s32 %s6984, %s6985
          %s6987 = smul.addr %s6986, 128
          %s6988 = scalar_lea.hbm %s16, %s6987
          %s6989 = sshll.u32 %s6976, 4
          %s6990 = int_to_ptr.vmem [resolvable:$true] %s6989
          %6995 = dma.vmem_to_hbm [thread:$0]  %s6990, 3072, %s6988, %s6973, 384, 384, 24
        $region139: #{tpu_custom_call.1} parent=79 // pred_fallthru
          _
      $region80: #{tpu_custom_call.1} parent=5 // pred_fallthru
        _
      %p6996 = scmp.le.s32.totalorder 2, %s31
      // Predicated region
      $region140: #{tpu_custom_call.1} parent=5 // pred_check
        %p6997 = pneg %p6996
      $region141: #{tpu_custom_call.1} parent=5 // pred_check_branch
        %6999 = sbr.rel (%p6997) target = $region143
      $region142: #{tpu_custom_call.1} parent=5 // pred_region
        %s7000 = ssub.s32 %s31, 2
        // Predicated region
        $region144: #{tpu_custom_call.1} parent=142 // pred_check
          %p7001 = pneg %p389
        $region145: #{tpu_custom_call.1} parent=142 // pred_check_branch
          %7003 = sbr.rel (%p7001) target = $region147
        $region146: #{tpu_custom_call.1} parent=142 // pred_region
          %s7004 = sand.u32 %s374, 1
          %s7005 = scalar_lea.sflag [#allocation10], %s7004
          %s7006 = sand.u32 %s374, 1
          %s7007 = smul.addr %s7006, 192
          %s7008 = scalar_lea.vmem [#allocation25], %s7007
          %7009 = dma.done %s7005, 3072
        $region147: #{tpu_custom_call.1} parent=142 // pred_fallthru
          _
      $region143: #{tpu_custom_call.1} parent=5 // pred_fallthru
        _
    $region6: #{tpu_custom_call.1} parent=1 // loop_footer
      %s35 = sadd.s32 1, %s31
    $region7: #{tpu_custom_call.1} parent=1 // loop_footer_branch
      %30 = sbr.rel target = $region3
    $region8: #{tpu_custom_call.1} parent=1 // loop_exit
      _
    %7010 = vsyncpa [#allocation9], 1
    %s7011 = scalar_lea.sflag [#allocation9], 1
    %7012 = vsyncpa %s7011, 1
    %7013 = vsyncpa [#allocation12], 1
    %7014 = vsyncpa [#allocation15], 1
    %7015 = vsyncpa [#allocation18], 1
    %7016 = vsyncpa [#allocation21], 1
    %7017 = vsyncpa [#allocation24], 1
    %7018 = vsyncpa [#allocation10], 1
    %s7019 = scalar_lea.sflag [#allocation10], 1
    %7020 = vsyncpa %s7019, 1
  %7021 = vsyncmov [#allocation3]
  %s7022 = vpop.sfrf %7021
  %p7023 = scmp.eq.s32.totalorder %s7022, 0
  %p7024 = pneg %p7023
  %7026 = shalt.err (%p7024)

</llo_original>
